<compile_context>
chip_gen: v5e
topology: v5e:2x2
jax: 0.10.0
libtpu: 0.0.40
codegen_flags: <defaults>
</compile_context>

<pallas_src>
import functools
import math

import jax
import jax.numpy as jnp
from jax.experimental import pallas as pl
from jax.experimental.pallas import tpu as pltpu

ACT_DTYPE = jnp.bfloat16          # storage / MXU input dtype (f32 accumulation inside)
TARGET_BLOCK_BYTES = 1 << 20      # ~1 MiB per pipelined activation block (HBM roofline)
TM_MIN = 512                      # below this, use a single full-extent block
TM_MAX = 8192
F32_SCRATCH_BUDGET = 16 << 20     # cap on in-kernel f32 intermediates per block
VMEM_LIMIT_BYTES = 48 * 1024 * 1024   # scoped VMEM: under v7x 64 MiB physical


def _row_tile(M, max_cols, f32_cols=0):
    """C-aware row tile.

    Targets ~1 MiB bf16 per pipelined in/out block, caps by the in-kernel f32
    intermediate footprint, rounds to a multiple of 8, and falls back to a
    single full-extent block for small M (full-extent blocks are exempt from
    the (8,128) divisibility rule)."""
    if M <= TM_MIN:
        return M
    tm = TARGET_BLOCK_BYTES // (2 * max_cols)
    if f32_cols:
        tm = min(tm, F32_SCRATCH_BUDGET // (4 * f32_cols))
    tm = max(TM_MIN, min(TM_MAX, tm))
    tm = (tm // 8) * 8
    return M if tm >= M else tm


def _act_spec(tm, cols, steps):
    """Row-tiled activation BlockSpec; 3-deep buffering for tiny-C stages with
    enough grid steps (hides DMA issue latency when blocks are small)."""
    if steps >= 4 and cols <= 64:
        return pl.BlockSpec((tm, cols), lambda i: (i, 0),
                            pipeline_mode=pl.Buffered(3))
    return pl.BlockSpec((tm, cols), lambda i: (i, 0))


def _compiler_params():
    return pltpu.CompilerParams(dimension_semantics=("parallel",),
                                vmem_limit_bytes=VMEM_LIMIT_BYTES)


# -----------------------------------------------------------------------------
# Kernel 1: [M,K] @ [K,N] + b  (+ optional relu)  — K,N fully resident, M tiled
# -----------------------------------------------------------------------------
def _mm_kernel(x_ref, w_ref, b_ref, o_ref, *, act):
    r = jnp.dot(x_ref[...], w_ref[...], preferred_element_type=jnp.float32)
    r = r + b_ref[...].astype(jnp.float32)
    if act == "relu":
        r = jnp.maximum(r, 0.0)
    o_ref[...] = r.astype(o_ref.dtype)


def matmul_bias_act(x, w, b, act="none"):
    M, K = x.shape
    N = w.shape[1]
    tm = _row_tile(M, max(K, N), f32_cols=N)
    steps = -(-M // tm)
    return pl.pallas_call(
        functools.partial(_mm_kernel, act=act),
        out_shape=jax.ShapeDtypeStruct((M, N), ACT_DTYPE),
        grid_spec=pltpu.PrefetchScalarGridSpec(
            num_scalar_prefetch=0,
            grid=(steps,),
            in_specs=[
                _act_spec(tm, K, steps),
                pl.BlockSpec((K, N), lambda i: (0, 0)),
                pl.BlockSpec((1, N), lambda i: (0, 0)),
            ],
            out_specs=_act_spec(tm, N, steps),
        ),
        compiler_params=_compiler_params(),
    )(x, w, b.reshape(1, N))


# -----------------------------------------------------------------------------
# Kernel 2: fused (x @ W + b) -> LayerNorm   (patch-embed / patch-merging)
# -----------------------------------------------------------------------------
def _mm_ln_kernel(x_ref, w_ref, b_ref, g_ref, bt_ref, o_ref, *, eps):
    r = jnp.dot(x_ref[...], w_ref[...], preferred_element_type=jnp.float32)
    r = r + b_ref[...].astype(jnp.float32)
    mean = jnp.mean(r, axis=-1, keepdims=True)
    var = jnp.mean(jnp.square(r - mean), axis=-1, keepdims=True)
    y = (r - mean) * jax.lax.rsqrt(var + eps)
    o_ref[...] = (y * g_ref[...].astype(jnp.float32)
                  + bt_ref[...].astype(jnp.float32)).astype(o_ref.dtype)


def matmul_bias_ln(x, w, b, g, beta, eps=1e-5):
    M, K = x.shape
    N = w.shape[1]
    tm = _row_tile(M, max(K, N), f32_cols=N)
    steps = -(-M // tm)
    return pl.pallas_call(
        functools.partial(_mm_ln_kernel, eps=eps),
        out_shape=jax.ShapeDtypeStruct((M, N), ACT_DTYPE),
        grid_spec=pltpu.PrefetchScalarGridSpec(
            num_scalar_prefetch=0,
            grid=(steps,),
            in_specs=[
                _act_spec(tm, K, steps),
                pl.BlockSpec((K, N), lambda i: (0, 0)),
                pl.BlockSpec((1, N), lambda i: (0, 0)),
                pl.BlockSpec((1, N), lambda i: (0, 0)),
                pl.BlockSpec((1, N), lambda i: (0, 0)),
            ],
            out_specs=_act_spec(tm, N, steps),
        ),
        compiler_params=_compiler_params(),
    )(x, w, b.reshape(1, N), g.reshape(1, N), beta.reshape(1, N))


# -----------------------------------------------------------------------------
# Kernel 3: fused encoder block  y = x + fc2( SiLU( fc1( LN(x) ) ) )
#           (weights fully resident in VMEM, rows pipelined)
# -----------------------------------------------------------------------------
def _block_kernel(x_ref, g_ref, bt_ref, w1_ref, b1_ref, w2_ref, b2_ref,
                  o_ref, *, eps):
    x = x_ref[...].astype(jnp.float32)
    mean = jnp.mean(x, axis=-1, keepdims=True)
    var = jnp.mean(jnp.square(x - mean), axis=-1, keepdims=True)
    y = (x - mean) * jax.lax.rsqrt(var + eps)
    y = y * g_ref[...].astype(jnp.float32) + bt_ref[...].astype(jnp.float32)
    h = jnp.dot(y.astype(ACT_DTYPE), w1_ref[...],
                preferred_element_type=jnp.float32)
    h = h + b1_ref[...].astype(jnp.float32)
    h = h * jax.nn.sigmoid(h)                                  # SiLU in f32
    z = jnp.dot(h.astype(ACT_DTYPE), w2_ref[...],
                preferred_element_type=jnp.float32)
    z = z + b2_ref[...].astype(jnp.float32)
    o_ref[...] = (x + z).astype(o_ref.dtype)


def fused_block(x, g, beta, w1, b1, w2, b2, eps=1e-5):
    M, C = x.shape
    Hd = w1.shape[1]
    tm = _row_tile(M, max(C, Hd), f32_cols=2 * C + Hd)
    steps = -(-M // tm)
    return pl.pallas_call(
        functools.partial(_block_kernel, eps=eps),
        out_shape=jax.ShapeDtypeStruct((M, C), ACT_DTYPE),
        grid_spec=pltpu.PrefetchScalarGridSpec(
            num_scalar_prefetch=0,
            grid=(steps,),
            in_specs=[
                _act_spec(tm, C, steps),
                pl.BlockSpec((1, C), lambda i: (0, 0)),
                pl.BlockSpec((1, C), lambda i: (0, 0)),
                pl.BlockSpec((C, Hd), lambda i: (0, 0)),
                pl.BlockSpec((1, Hd), lambda i: (0, 0)),
                pl.BlockSpec((Hd, C), lambda i: (0, 0)),
                pl.BlockSpec((1, C), lambda i: (0, 0)),
            ],
            out_specs=_act_spec(tm, C, steps),
        ),
        compiler_params=_compiler_params(),
    )(x, g.reshape(1, C), beta.reshape(1, C),
      w1, b1.reshape(1, Hd), w2, b2.reshape(1, C))


# -----------------------------------------------------------------------------
# Kernel 4: concat-free dual-input 1x1 conv:  relu(x1 @ W1 + x2 @ W2 + b)
#           (fusion blocks with folded eval-BN, decoder laterals)
# -----------------------------------------------------------------------------
def _dual_mm_relu_kernel(x1_ref, x2_ref, w1_ref, w2_ref, b_ref, o_ref):
    r = jnp.dot(x1_ref[...], w1_ref[...], preferred_element_type=jnp.float32)
    r = r + jnp.dot(x2_ref[...], w2_ref[...], preferred_element_type=jnp.float32)
    r = r + b_ref[...].astype(jnp.float32)
    o_ref[...] = jnp.maximum(r, 0.0).astype(o_ref.dtype)


def dual_matmul_relu(x1, x2, w1, w2, b):
    M, C1 = x1.shape
    C2 = x2.shape[1]
    N = w1.shape[1]
    tm = _row_tile(M, max(C1 + C2, N), f32_cols=N)
    steps = -(-M // tm)
    return pl.pallas_call(
        _dual_mm_relu_kernel,
        out_shape=jax.ShapeDtypeStruct((M, N), ACT_DTYPE),
        grid_spec=pltpu.PrefetchScalarGridSpec(
            num_scalar_prefetch=0,
            grid=(steps,),
            in_specs=[
                _act_spec(tm, C1, steps),
                _act_spec(tm, C2, steps),
                pl.BlockSpec((C1, N), lambda i: (0, 0)),
                pl.BlockSpec((C2, N), lambda i: (0, 0)),
                pl.BlockSpec((1, N), lambda i: (0, 0)),
            ],
            out_specs=_act_spec(tm, N, steps),
        ),
        compiler_params=_compiler_params(),
    )(x1, x2, w1, w2, b.reshape(1, N))


# -----------------------------------------------------------------------------
# Parameter construction (deterministic synthetic init)
# -----------------------------------------------------------------------------
def init_params(key, opt_bands, sar_bands, dims):
    def nxt():
        nonlocal key
        key, sub = jax.random.split(key)
        return sub

    def dense(cin, cout):
        return {"w": (0.02 * jax.random.normal(nxt(), (cin, cout),
                                               jnp.float32)).astype(ACT_DTYPE),
                "b": jnp.zeros((cout,), jnp.float32)}

    def ln(c):
        return {"g": jnp.ones((c,), jnp.float32),
                "b": jnp.zeros((c,), jnp.float32)}

    def encoder(in_ch):
        enc = {"patch_embed": dense(16 * in_ch, dims[0]),
               "pe_ln": ln(dims[0]),
               "stages": []}
        for i in range(4):
            st = {}
            if i > 0:
                st["down"] = dense(4 * dims[i - 1], dims[i])
                st["down_ln"] = ln(dims[i])
            st["blk_ln"] = ln(dims[i])
            st["fc1"] = dense(dims[i], 2 * dims[i])
            st["fc2"] = dense(2 * dims[i], dims[i])
            enc["stages"].append(st)
        return enc

    # eval-mode BatchNorm with identity stats folded into the 1x1 conv
    bn_scale = jnp.float32(1.0 / math.sqrt(1.0 + 1e-5))

    def split_dual(cin_each, cout, fold_bn=False):
        d = dense(2 * cin_each, cout)
        w = d["w"].astype(jnp.float32)
        b = d["b"]
        if fold_bn:
            w = w * bn_scale
            b = b * bn_scale
        return {"w1": w[:cin_each].astype(ACT_DTYPE),
                "w2": w[cin_each:].astype(ACT_DTYPE),
                "b": b}

    return {
        "enc_opt": encoder(opt_bands),
        "enc_sar": encoder(sar_bands),
        # fusion_block{1..4}: Conv1x1(2C->C) + BN(eval) + ReLU, concat-free
        "fusion": [split_dual(d, d, fold_bn=True) for d in dims],
        # ChangeDecoder approximation: lateral 1x1 conv (2C -> 64) per scale
        "dec_lateral": [split_dual(d, 64) for d in dims],
        # main_clf: Conv1x1(64 -> 2)
        "main_clf": dense(64, 2),
    }


# -----------------------------------------------------------------------------
# Model forward
# -----------------------------------------------------------------------------
def _space_to_depth(x, p):
    # [N, H, W, C] -> [N, H/p, W/p, p*p*C]  (stride-p non-overlapping unfold)
    N, H, W, C = x.shape
    x = x.reshape(N, H // p, p, W // p, p, C).transpose(0, 1, 3, 2, 4, 5)
    return x.reshape(N, H // p, W // p, p * p * C)


def run_encoder(enc, x_nhwc, dims):
    """Simplified Backbone_VSSM: patch-embed (s4) + 4 stages at strides 4/8/16/32.

    Operates on the pre/post-batched tensor so each shared-weight kernel is
    launched once."""
    N = x_nhwc.shape[0]
    t = _space_to_depth(x_nhwc, 4)
    _, H, W, K = t.shape
    y = matmul_bias_ln(t.reshape(-1, K),
                       enc["patch_embed"]["w"], enc["patch_embed"]["b"],
                       enc["pe_ln"]["g"], enc["pe_ln"]["b"])
    x = y.reshape(N, H, W, dims[0])

    feats = []
    for i, st in enumerate(enc["stages"]):
        if i > 0:
            t = _space_to_depth(x, 2)
            _, H, W, K = t.shape
            y = matmul_bias_ln(t.reshape(-1, K),
                               st["down"]["w"], st["down"]["b"],
                               st["down_ln"]["g"], st["down_ln"]["b"])
            x = y.reshape(N, H, W, dims[i])
        # TODO(synk): SS2D selective scan replaced by fused LN + MLP residual block.
        Nb, Hb, Wb, Cb = x.shape
        y = fused_block(x.reshape(-1, Cb),
                        st["blk_ln"]["g"], st["blk_ln"]["b"],
                        st["fc1"]["w"], st["fc1"]["b"],
                        st["fc2"]["w"], st["fc2"]["b"])
        x = y.reshape(Nb, Hb, Wb, Cb)
        feats.append(x)
    return feats


def stmamba_bcd_forward(params, pre_nchw, post_nchw, dims, opt_bands):
    N, _, H, W = pre_nchw.shape

    # Batch pre/post along the leading axis: every shared-weight kernel
    # (both encoders, fusion blocks) runs once on 2N samples.
    data = jnp.concatenate([pre_nchw, post_nchw], axis=0)          # [2N, C, H, W]
    x = jnp.transpose(data, (0, 2, 3, 1)).astype(ACT_DTYPE)        # NCHW -> NHWC
    opt = x[..., :opt_bands]                                       # data[:, :-2]
    sar = x[..., opt_bands:]                                       # data[:, -2:]

    f_opt = run_encoder(params["enc_opt"], opt, dims)
    f_sar = run_encoder(params["enc_sar"], sar, dims)

    # fusion blocks (concat-free, pre+post still batched), then split
    pre_f, post_f = [], []
    for i in range(4):
        a, b = f_opt[i], f_sar[i]
        nb, h_, w_, c = a.shape
        fw = params["fusion"][i]
        y = dual_matmul_relu(a.reshape(-1, c), b.reshape(-1, c),
                             fw["w1"], fw["w2"], fw["b"]).reshape(nb, h_, w_, dims[i])
        pre_f.append(y[:N])
        post_f.append(y[N:])

    # TODO(synk): ChangeDecoder VSS (Mamba) blocks replaced by concat-free 1x1
    #             laterals on (pre, post) + bilinear upsample-add pyramid -> 64ch.
    laterals = []
    for i in range(4):
        a, b = pre_f[i], post_f[i]
        n_, h_, w_, c = a.shape
        lw = params["dec_lateral"][i]
        y = dual_matmul_relu(a.reshape(-1, c), b.reshape(-1, c),
                             lw["w1"], lw["w2"], lw["b"])
        laterals.append(y.reshape(n_, h_, w_, 64))

    # upsample-add pyramid kept fully in bf16 (no f32 cast round trips)
    p = laterals[3]
    for i in (2, 1, 0):
        tgt = laterals[i]
        p = jax.image.resize(p, tgt.shape, method="bilinear") + tgt

    n_, h_, w_, _ = p.shape
    logits = matmul_bias_act(p.reshape(-1, 64),
                             params["main_clf"]["w"], params["main_clf"]["b"])
    logits = logits.reshape(n_, h_, w_, 2)
    # final bilinear upsample in NCHW (W on the lane axis) and f32; the large
    # output tensor then needs no transpose.
    logits = jnp.transpose(logits, (0, 3, 1, 2)).astype(jnp.float32)  # small tensor
    logits = jax.image.resize(logits, (N, 2, H, W), method="bilinear")
    return logits                                                     # NCHW


# -----------------------------------------------------------------------------
if __name__ == "__main__":
    OPT_BANDS = 4        # small stand-in for in_chans_opt=13
    SAR_BANDS = 2
    DIMS = (16, 32, 64, 128)
    N, H, W = 2, 32, 32
    C_IN = OPT_BANDS + SAR_BANDS

    key = jax.random.PRNGKey(0)
    kp, k1, k2 = jax.random.split(key, 3)
    params = init_params(kp, OPT_BANDS, SAR_BANDS, DIMS)

    pre_data = jax.random.normal(k1, (N, C_IN, H, W), jnp.float32)
    post_data = jax.random.normal(k2, (N, C_IN, H, W), jnp.float32)

    fwd = jax.jit(functools.partial(stmamba_bcd_forward,
                                    dims=DIMS, opt_bands=OPT_BANDS))
    out = fwd(params, pre_data, post_data)
    out = jax.block_until_ready(out)
    assert out.shape == (N, 2, H, W), out.shape
    assert jnp.all(jnp.isfinite(out))
    print("KERNEL_OK")
</pallas_src>

<mosaic_0001>
module attributes {stable_mosaic.version = 11 : i64} {
  func.func @_mm_ln_kernel(%arg0: i32, %arg1: memref<256x64xbf16, #tpu.memory_space<vmem>>, %arg2: memref<64x16xbf16, #tpu.memory_space<vmem>>, %arg3: memref<1x16xf32, #tpu.memory_space<vmem>>, %arg4: memref<1x16xf32, #tpu.memory_space<vmem>>, %arg5: memref<1x16xf32, #tpu.memory_space<vmem>>, %arg6: memref<256x16xbf16, #tpu.memory_space<vmem>>) attributes {dimension_semantics = [#tpu.dimension_semantics<parallel>], iteration_bounds = array<i64: 1>, scalar_prefetch = 0 : i64, scratch_operands = 0 : i64, tpu.core_type = #tpu.core_type<tc>, window_params = [{transform_indices = @transform_0, window_bounds = array<i64: 256, 64>}, {pipeline_mode = #tpu.pipeline_mode<synchronous>, transform_indices = @transform_1, window_bounds = array<i64: 64, 16>}, {pipeline_mode = #tpu.pipeline_mode<synchronous>, transform_indices = @transform_2, window_bounds = array<i64: 1, 16>}, {pipeline_mode = #tpu.pipeline_mode<synchronous>, transform_indices = @transform_3, window_bounds = array<i64: 1, 16>}, {pipeline_mode = #tpu.pipeline_mode<synchronous>, transform_indices = @transform_4, window_bounds = array<i64: 1, 16>}, {transform_indices = @transform_5, window_bounds = array<i64: 256, 16>}]} {
    %c0 = arith.constant 0 : index
    %c0_0 = arith.constant 0 : index
    %0 = vector.load %arg1[%c0, %c0_0] : memref<256x64xbf16, #tpu.memory_space<vmem>>, vector<256x64xbf16>
    %c0_1 = arith.constant 0 : index
    %c0_2 = arith.constant 0 : index
    %1 = vector.load %arg2[%c0_1, %c0_2] : memref<64x16xbf16, #tpu.memory_space<vmem>>, vector<64x16xbf16>
    %cst = arith.constant dense<0.000000e+00> : vector<256x16xf32>
    %2 = tpu.matmul %0, %1, %cst {dimension_numbers = #tpu.dot_dimension_numbers<[1], [0], [0], [1], [0, 0, 1, 1], [], []>} : vector<256x64xbf16>, vector<64x16xbf16>, vector<256x16xf32> -> vector<256x16xf32>
    %c0_3 = arith.constant 0 : index
    %c0_4 = arith.constant 0 : index
    %3 = vector.load %arg3[%c0_3, %c0_4] : memref<1x16xf32, #tpu.memory_space<vmem>>, vector<1x16xf32>
    %4 = vector.broadcast %3 : vector<1x16xf32> to vector<256x16xf32>
    %5 = arith.addf %2, %4 : vector<256x16xf32>
    %cst_5 = arith.constant dense<0.000000e+00> : vector<256xf32>
    %6 = vector.multi_reduction <add>, %5, %cst_5 [1] : vector<256x16xf32> to vector<256xf32>
    %7 = vector.shape_cast %6 : vector<256xf32> to vector<256x1xf32>
    %cst_6 = arith.constant 1.600000e+01 : f32
    %8 = vector.broadcast %cst_6 : f32 to vector<256x1xf32>
    %9 = arith.divf %7, %8 : vector<256x1xf32>
    %10 = vector.broadcast %9 : vector<256x1xf32> to vector<256x16xf32>
    %11 = arith.subf %5, %10 : vector<256x16xf32>
    %12 = arith.mulf %11, %11 : vector<256x16xf32>
    %cst_7 = arith.constant dense<0.000000e+00> : vector<256xf32>
    %13 = vector.multi_reduction <add>, %12, %cst_7 [1] : vector<256x16xf32> to vector<256xf32>
    %14 = vector.shape_cast %13 : vector<256xf32> to vector<256x1xf32>
    %cst_8 = arith.constant 1.600000e+01 : f32
    %15 = vector.broadcast %cst_8 : f32 to vector<256x1xf32>
    %16 = arith.divf %14, %15 : vector<256x1xf32>
    %17 = vector.broadcast %9 : vector<256x1xf32> to vector<256x16xf32>
    %18 = arith.subf %5, %17 : vector<256x16xf32>
    %cst_9 = arith.constant 9.99999974E-6 : f32
    %19 = vector.broadcast %cst_9 : f32 to vector<256x1xf32>
    %20 = arith.addf %16, %19 : vector<256x1xf32>
    %21 = math.rsqrt %20 : vector<256x1xf32>
    %22 = vector.broadcast %21 : vector<256x1xf32> to vector<256x16xf32>
    %23 = arith.mulf %18, %22 : vector<256x16xf32>
    %c0_10 = arith.constant 0 : index
    %c0_11 = arith.constant 0 : index
    %24 = vector.load %arg4[%c0_10, %c0_11] : memref<1x16xf32, #tpu.memory_space<vmem>>, vector<1x16xf32>
    %25 = vector.broadcast %24 : vector<1x16xf32> to vector<256x16xf32>
    %26 = arith.mulf %23, %25 : vector<256x16xf32>
    %c0_12 = arith.constant 0 : index
    %c0_13 = arith.constant 0 : index
    %27 = vector.load %arg5[%c0_12, %c0_13] : memref<1x16xf32, #tpu.memory_space<vmem>>, vector<1x16xf32>
    %28 = vector.broadcast %27 : vector<1x16xf32> to vector<256x16xf32>
    %29 = arith.addf %26, %28 : vector<256x16xf32>
    %30 = arith.truncf %29 : vector<256x16xf32> to vector<256x16xbf16>
    %c0_14 = arith.constant 0 : index
    %c0_15 = arith.constant 0 : index
    %31 = vector.load %arg6[%c0_14, %c0_15] : memref<256x16xbf16, #tpu.memory_space<vmem>>, vector<256x16xbf16>
    tpu.vector_store %arg6[%c0_14, %c0_15], %30 {strides = array<i32>} : memref<256x16xbf16, #tpu.memory_space<vmem>>, vector<256x16xbf16>,
    return
  }
  func.func @transform_0(%arg0: i32) -> (i32, i32) {
    %c0_i32 = arith.constant 0 : i32
    %c0_i32_0 = arith.constant 0 : i32
    return %arg0, %c0_i32 : i32, i32
  }
  func.func @transform_1(%arg0: i32) -> (i32, i32) {
    %c0_i32 = arith.constant 0 : i32
    %c0_i32_0 = arith.constant 0 : i32
    %c0_i32_1 = arith.constant 0 : i32
    return %c0_i32, %c0_i32_0 : i32, i32
  }
  func.func @transform_2(%arg0: i32) -> (i32, i32) {
    %c0_i32 = arith.constant 0 : i32
    %c0_i32_0 = arith.constant 0 : i32
    %c0_i32_1 = arith.constant 0 : i32
    return %c0_i32, %c0_i32_0 : i32, i32
  }
  func.func @transform_3(%arg0: i32) -> (i32, i32) {
    %c0_i32 = arith.constant 0 : i32
    %c0_i32_0 = arith.constant 0 : i32
    %c0_i32_1 = arith.constant 0 : i32
    return %c0_i32, %c0_i32_0 : i32, i32
  }
  func.func @transform_4(%arg0: i32) -> (i32, i32) {
    %c0_i32 = arith.constant 0 : i32
    %c0_i32_0 = arith.constant 0 : i32
    %c0_i32_1 = arith.constant 0 : i32
    return %c0_i32, %c0_i32_0 : i32, i32
  }
  func.func @transform_5(%arg0: i32) -> (i32, i32) {
    %c0_i32 = arith.constant 0 : i32
    %c0_i32_0 = arith.constant 0 : i32
    return %arg0, %c0_i32 : i32, i32
  }
}

module attributes {stable_mosaic.version = 11 : i64} {
  func.func @_block_kernel(%arg0: i32, %arg1: memref<256x16xbf16, #tpu.memory_space<vmem>>, %arg2: memref<1x16xf32, #tpu.memory_space<vmem>>, %arg3: memref<1x16xf32, #tpu.memory_space<vmem>>, %arg4: memref<16x32xbf16, #tpu.memory_space<vmem>>, %arg5: memref<1x32xf32, #tpu.memory_space<vmem>>, %arg6: memref<32x16xbf16, #tpu.memory_space<vmem>>, %arg7: memref<1x16xf32, #tpu.memory_space<vmem>>, %arg8: memref<256x16xbf16, #tpu.memory_space<vmem>>) attributes {dimension_semantics = [#tpu.dimension_semantics<parallel>], iteration_bounds = array<i64: 1>, scalar_prefetch = 0 : i64, scratch_operands = 0 : i64, tpu.core_type = #tpu.core_type<tc>, window_params = [{transform_indices = @transform_0, window_bounds = array<i64: 256, 16>}, {pipeline_mode = #tpu.pipeline_mode<synchronous>, transform_indices = @transform_1, window_bounds = array<i64: 1, 16>}, {pipeline_mode = #tpu.pipeline_mode<synchronous>, transform_indices = @transform_2, window_bounds = array<i64: 1, 16>}, {pipeline_mode = #tpu.pipeline_mode<synchronous>, transform_indices = @transform_3, window_bounds = array<i64: 16, 32>}, {pipeline_mode = #tpu.pipeline_mode<synchronous>, transform_indices = @transform_4, window_bounds = array<i64: 1, 32>}, {pipeline_mode = #tpu.pipeline_mode<synchronous>, transform_indices = @transform_5, window_bounds = array<i64: 32, 16>}, {pipeline_mode = #tpu.pipeline_mode<synchronous>, transform_indices = @transform_6, window_bounds = array<i64: 1, 16>}, {transform_indices = @transform_7, window_bounds = array<i64: 256, 16>}]} {
    %c0 = arith.constant 0 : index
    %c0_0 = arith.constant 0 : index
    %0 = vector.load %arg1[%c0, %c0_0] : memref<256x16xbf16, #tpu.memory_space<vmem>>, vector<256x16xbf16>
    %1 = arith.extf %0 : vector<256x16xbf16> to vector<256x16xf32>
    %cst = arith.constant dense<0.000000e+00> : vector<256xf32>
    %2 = vector.multi_reduction <add>, %1, %cst [1] : vector<256x16xf32> to vector<256xf32>
    %3 = vector.shape_cast %2 : vector<256xf32> to vector<256x1xf32>
    %cst_1 = arith.constant 1.600000e+01 : f32
    %4 = vector.broadcast %cst_1 : f32 to vector<256x1xf32>
    %5 = arith.divf %3, %4 : vector<256x1xf32>
    %6 = vector.broadcast %5 : vector<256x1xf32> to vector<256x16xf32>
    %7 = arith.subf %1, %6 : vector<256x16xf32>
    %8 = arith.mulf %7, %7 : vector<256x16xf32>
    %cst_2 = arith.constant dense<0.000000e+00> : vector<256xf32>
    %9 = vector.multi_reduction <add>, %8, %cst_2 [1] : vector<256x16xf32> to vector<256xf32>
    %10 = vector.shape_cast %9 : vector<256xf32> to vector<256x1xf32>
    %cst_3 = arith.constant 1.600000e+01 : f32
    %11 = vector.broadcast %cst_3 : f32 to vector<256x1xf32>
    %12 = arith.divf %10, %11 : vector<256x1xf32>
    %13 = vector.broadcast %5 : vector<256x1xf32> to vector<256x16xf32>
    %14 = arith.subf %1, %13 : vector<256x16xf32>
    %cst_4 = arith.constant 9.99999974E-6 : f32
    %15 = vector.broadcast %cst_4 : f32 to vector<256x1xf32>
    %16 = arith.addf %12, %15 : vector<256x1xf32>
    %17 = math.rsqrt %16 : vector<256x1xf32>
    %18 = vector.broadcast %17 : vector<256x1xf32> to vector<256x16xf32>
    %19 = arith.mulf %14, %18 : vector<256x16xf32>
    %c0_5 = arith.constant 0 : index
    %c0_6 = arith.constant 0 : index
    %20 = vector.load %arg2[%c0_5, %c0_6] : memref<1x16xf32, #tpu.memory_space<vmem>>, vector<1x16xf32>
    %21 = vector.broadcast %20 : vector<1x16xf32> to vector<256x16xf32>
    %22 = arith.mulf %19, %21 : vector<256x16xf32>
    %c0_7 = arith.constant 0 : index
    %c0_8 = arith.constant 0 : index
    %23 = vector.load %arg3[%c0_7, %c0_8] : memref<1x16xf32, #tpu.memory_space<vmem>>, vector<1x16xf32>
    %24 = vector.broadcast %23 : vector<1x16xf32> to vector<256x16xf32>
    %25 = arith.addf %22, %24 : vector<256x16xf32>
    %26 = arith.truncf %25 : vector<256x16xf32> to vector<256x16xbf16>
    %c0_9 = arith.constant 0 : index
    %c0_10 = arith.constant 0 : index
    %27 = vector.load %arg4[%c0_9, %c0_10] : memref<16x32xbf16, #tpu.memory_space<vmem>>, vector<16x32xbf16>
    %cst_11 = arith.constant dense<0.000000e+00> : vector<256x32xf32>
    %28 = tpu.matmul %26, %27, %cst_11 {dimension_numbers = #tpu.dot_dimension_numbers<[1], [0], [0], [1], [0, 0, 1, 1], [], []>} : vector<256x16xbf16>, vector<16x32xbf16>, vector<256x32xf32> -> vector<256x32xf32>
    %c0_12 = arith.constant 0 : index
    %c0_13 = arith.constant 0 : index
    %29 = vector.load %arg5[%c0_12, %c0_13] : memref<1x32xf32, #tpu.memory_space<vmem>>, vector<1x32xf32>
    %30 = vector.broadcast %29 : vector<1x32xf32> to vector<256x32xf32>
    %31 = arith.addf %28, %30 : vector<256x32xf32>
    %32 = arith.negf %31 : vector<256x32xf32>
    %33 = math.exp %32 : vector<256x32xf32>
    %cst_14 = arith.constant 1.000000e+00 : f32
    %34 = vector.broadcast %cst_14 : f32 to vector<256x32xf32>
    %35 = arith.addf %34, %33 : vector<256x32xf32>
    %36 = arith.divf %34, %35 : vector<256x32xf32>
    %37 = arith.mulf %31, %36 : vector<256x32xf32>
    %38 = arith.truncf %37 : vector<256x32xf32> to vector<256x32xbf16>
    %c0_15 = arith.constant 0 : index
    %c0_16 = arith.constant 0 : index
    %39 = vector.load %arg6[%c0_15, %c0_16] : memref<32x16xbf16, #tpu.memory_space<vmem>>, vector<32x16xbf16>
    %cst_17 = arith.constant dense<0.000000e+00> : vector<256x16xf32>
    %40 = tpu.matmul %38, %39, %cst_17 {dimension_numbers = #tpu.dot_dimension_numbers<[1], [0], [0], [1], [0, 0, 1, 1], [], []>} : vector<256x32xbf16>, vector<32x16xbf16>, vector<256x16xf32> -> vector<256x16xf32>
    %c0_18 = arith.constant 0 : index
    %c0_19 = arith.constant 0 : index
    %41 = vector.load %arg7[%c0_18, %c0_19] : memref<1x16xf32, #tpu.memory_space<vmem>>, vector<1x16xf32>
    %42 = vector.broadcast %41 : vector<1x16xf32> to vector<256x16xf32>
    %43 = arith.addf %40, %42 : vector<256x16xf32>
    %44 = arith.addf %1, %43 : vector<256x16xf32>
    %45 = arith.truncf %44 : vector<256x16xf32> to vector<256x16xbf16>
    %c0_20 = arith.constant 0 : index
    %c0_21 = arith.constant 0 : index
    %46 = vector.load %arg8[%c0_20, %c0_21] : memref<256x16xbf16, #tpu.memory_space<vmem>>, vector<256x16xbf16>
    tpu.vector_store %arg8[%c0_20, %c0_21], %45 {strides = array<i32>} : memref<256x16xbf16, #tpu.memory_space<vmem>>, vector<256x16xbf16>,
    return
  }
  func.func @transform_0(%arg0: i32) -> (i32, i32) {
    %c0_i32 = arith.constant 0 : i32
    %c0_i32_0 = arith.constant 0 : i32
    return %arg0, %c0_i32 : i32, i32
  }
  func.func @transform_1(%arg0: i32) -> (i32, i32) {
    %c0_i32 = arith.constant 0 : i32
    %c0_i32_0 = arith.constant 0 : i32
    %c0_i32_1 = arith.constant 0 : i32
    return %c0_i32, %c0_i32_0 : i32, i32
  }
  func.func @transform_2(%arg0: i32) -> (i32, i32) {
    %c0_i32 = arith.constant 0 : i32
    %c0_i32_0 = arith.constant 0 : i32
    %c0_i32_1 = arith.constant 0 : i32
    return %c0_i32, %c0_i32_0 : i32, i32
  }
  func.func @transform_3(%arg0: i32) -> (i32, i32) {
    %c0_i32 = arith.constant 0 : i32
    %c0_i32_0 = arith.constant 0 : i32
    %c0_i32_1 = arith.constant 0 : i32
    return %c0_i32, %c0_i32_0 : i32, i32
  }
  func.func @transform_4(%arg0: i32) -> (i32, i32) {
    %c0_i32 = arith.constant 0 : i32
    %c0_i32_0 = arith.constant 0 : i32
    %c0_i32_1 = arith.constant 0 : i32
    return %c0_i32, %c0_i32_0 : i32, i32
  }
  func.func @transform_5(%arg0: i32) -> (i32, i32) {
    %c0_i32 = arith.constant 0 : i32
    %c0_i32_0 = arith.constant 0 : i32
    %c0_i32_1 = arith.constant 0 : i32
    return %c0_i32, %c0_i32_0 : i32, i32
  }
  func.func @transform_6(%arg0: i32) -> (i32, i32) {
    %c0_i32 = arith.constant 0 : i32
    %c0_i32_0 = arith.constant 0 : i32
    %c0_i32_1 = arith.constant 0 : i32
    return %c0_i32, %c0_i32_0 : i32, i32
  }
  func.func @transform_7(%arg0: i32) -> (i32, i32) {
    %c0_i32 = arith.constant 0 : i32
    %c0_i32_0 = arith.constant 0 : i32
    return %arg0, %c0_i32 : i32, i32
  }
}

module attributes {stable_mosaic.version = 11 : i64} {
  func.func @_mm_ln_kernel(%arg0: i32, %arg1: memref<64x64xbf16, #tpu.memory_space<vmem>>, %arg2: memref<64x32xbf16, #tpu.memory_space<vmem>>, %arg3: memref<1x32xf32, #tpu.memory_space<vmem>>, %arg4: memref<1x32xf32, #tpu.memory_space<vmem>>, %arg5: memref<1x32xf32, #tpu.memory_space<vmem>>, %arg6: memref<64x32xbf16, #tpu.memory_space<vmem>>) attributes {dimension_semantics = [#tpu.dimension_semantics<parallel>], iteration_bounds = array<i64: 1>, scalar_prefetch = 0 : i64, scratch_operands = 0 : i64, tpu.core_type = #tpu.core_type<tc>, window_params = [{transform_indices = @transform_0, window_bounds = array<i64: 64, 64>}, {pipeline_mode = #tpu.pipeline_mode<synchronous>, transform_indices = @transform_1, window_bounds = array<i64: 64, 32>}, {pipeline_mode = #tpu.pipeline_mode<synchronous>, transform_indices = @transform_2, window_bounds = array<i64: 1, 32>}, {pipeline_mode = #tpu.pipeline_mode<synchronous>, transform_indices = @transform_3, window_bounds = array<i64: 1, 32>}, {pipeline_mode = #tpu.pipeline_mode<synchronous>, transform_indices = @transform_4, window_bounds = array<i64: 1, 32>}, {transform_indices = @transform_5, window_bounds = array<i64: 64, 32>}]} {
    %c0 = arith.constant 0 : index
    %c0_0 = arith.constant 0 : index
    %0 = vector.load %arg1[%c0, %c0_0] : memref<64x64xbf16, #tpu.memory_space<vmem>>, vector<64x64xbf16>
    %c0_1 = arith.constant 0 : index
    %c0_2 = arith.constant 0 : index
    %1 = vector.load %arg2[%c0_1, %c0_2] : memref<64x32xbf16, #tpu.memory_space<vmem>>, vector<64x32xbf16>
    %cst = arith.constant dense<0.000000e+00> : vector<64x32xf32>
    %2 = tpu.matmul %0, %1, %cst {dimension_numbers = #tpu.dot_dimension_numbers<[1], [0], [0], [1], [0, 0, 1, 1], [], []>} : vector<64x64xbf16>, vector<64x32xbf16>, vector<64x32xf32> -> vector<64x32xf32>
    %c0_3 = arith.constant 0 : index
    %c0_4 = arith.constant 0 : index
    %3 = vector.load %arg3[%c0_3, %c0_4] : memref<1x32xf32, #tpu.memory_space<vmem>>, vector<1x32xf32>
    %4 = vector.broadcast %3 : vector<1x32xf32> to vector<64x32xf32>
    %5 = arith.addf %2, %4 : vector<64x32xf32>
    %cst_5 = arith.constant dense<0.000000e+00> : vector<64xf32>
    %6 = vector.multi_reduction <add>, %5, %cst_5 [1] : vector<64x32xf32> to vector<64xf32>
    %7 = vector.shape_cast %6 : vector<64xf32> to vector<64x1xf32>
    %cst_6 = arith.constant 3.200000e+01 : f32
    %8 = vector.broadcast %cst_6 : f32 to vector<64x1xf32>
    %9 = arith.divf %7, %8 : vector<64x1xf32>
    %10 = vector.broadcast %9 : vector<64x1xf32> to vector<64x32xf32>
    %11 = arith.subf %5, %10 : vector<64x32xf32>
    %12 = arith.mulf %11, %11 : vector<64x32xf32>
    %cst_7 = arith.constant dense<0.000000e+00> : vector<64xf32>
    %13 = vector.multi_reduction <add>, %12, %cst_7 [1] : vector<64x32xf32> to vector<64xf32>
    %14 = vector.shape_cast %13 : vector<64xf32> to vector<64x1xf32>
    %cst_8 = arith.constant 3.200000e+01 : f32
    %15 = vector.broadcast %cst_8 : f32 to vector<64x1xf32>
    %16 = arith.divf %14, %15 : vector<64x1xf32>
    %17 = vector.broadcast %9 : vector<64x1xf32> to vector<64x32xf32>
    %18 = arith.subf %5, %17 : vector<64x32xf32>
    %cst_9 = arith.constant 9.99999974E-6 : f32
    %19 = vector.broadcast %cst_9 : f32 to vector<64x1xf32>
    %20 = arith.addf %16, %19 : vector<64x1xf32>
    %21 = math.rsqrt %20 : vector<64x1xf32>
    %22 = vector.broadcast %21 : vector<64x1xf32> to vector<64x32xf32>
    %23 = arith.mulf %18, %22 : vector<64x32xf32>
    %c0_10 = arith.constant 0 : index
    %c0_11 = arith.constant 0 : index
    %24 = vector.load %arg4[%c0_10, %c0_11] : memref<1x32xf32, #tpu.memory_space<vmem>>, vector<1x32xf32>
    %25 = vector.broadcast %24 : vector<1x32xf32> to vector<64x32xf32>
    %26 = arith.mulf %23, %25 : vector<64x32xf32>
    %c0_12 = arith.constant 0 : index
    %c0_13 = arith.constant 0 : index
    %27 = vector.load %arg5[%c0_12, %c0_13] : memref<1x32xf32, #tpu.memory_space<vmem>>, vector<1x32xf32>
    %28 = vector.broadcast %27 : vector<1x32xf32> to vector<64x32xf32>
    %29 = arith.addf %26, %28 : vector<64x32xf32>
    %30 = arith.truncf %29 : vector<64x32xf32> to vector<64x32xbf16>
    %c0_14 = arith.constant 0 : index
    %c0_15 = arith.constant 0 : index
    %31 = vector.load %arg6[%c0_14, %c0_15] : memref<64x32xbf16, #tpu.memory_space<vmem>>, vector<64x32xbf16>
    tpu.vector_store %arg6[%c0_14, %c0_15], %30 {strides = array<i32>} : memref<64x32xbf16, #tpu.memory_space<vmem>>, vector<64x32xbf16>,
    return
  }
  func.func @transform_0(%arg0: i32) -> (i32, i32) {
    %c0_i32 = arith.constant 0 : i32
    %c0_i32_0 = arith.constant 0 : i32
    return %arg0, %c0_i32 : i32, i32
  }
  func.func @transform_1(%arg0: i32) -> (i32, i32) {
    %c0_i32 = arith.constant 0 : i32
    %c0_i32_0 = arith.constant 0 : i32
    %c0_i32_1 = arith.constant 0 : i32
    return %c0_i32, %c0_i32_0 : i32, i32
  }
  func.func @transform_2(%arg0: i32) -> (i32, i32) {
    %c0_i32 = arith.constant 0 : i32
    %c0_i32_0 = arith.constant 0 : i32
    %c0_i32_1 = arith.constant 0 : i32
    return %c0_i32, %c0_i32_0 : i32, i32
  }
  func.func @transform_3(%arg0: i32) -> (i32, i32) {
    %c0_i32 = arith.constant 0 : i32
    %c0_i32_0 = arith.constant 0 : i32
    %c0_i32_1 = arith.constant 0 : i32
    return %c0_i32, %c0_i32_0 : i32, i32
  }
  func.func @transform_4(%arg0: i32) -> (i32, i32) {
    %c0_i32 = arith.constant 0 : i32
    %c0_i32_0 = arith.constant 0 : i32
    %c0_i32_1 = arith.constant 0 : i32
    return %c0_i32, %c0_i32_0 : i32, i32
  }
  func.func @transform_5(%arg0: i32) -> (i32, i32) {
    %c0_i32 = arith.constant 0 : i32
    %c0_i32_0 = arith.constant 0 : i32
    return %arg0, %c0_i32 : i32, i32
  }
}

module attributes {stable_mosaic.version = 11 : i64} {
  func.func @_block_kernel(%arg0: i32, %arg1: memref<64x32xbf16, #tpu.memory_space<vmem>>, %arg2: memref<1x32xf32, #tpu.memory_space<vmem>>, %arg3: memref<1x32xf32, #tpu.memory_space<vmem>>, %arg4: memref<32x64xbf16, #tpu.memory_space<vmem>>, %arg5: memref<1x64xf32, #tpu.memory_space<vmem>>, %arg6: memref<64x32xbf16, #tpu.memory_space<vmem>>, %arg7: memref<1x32xf32, #tpu.memory_space<vmem>>, %arg8: memref<64x32xbf16, #tpu.memory_space<vmem>>) attributes {dimension_semantics = [#tpu.dimension_semantics<parallel>], iteration_bounds = array<i64: 1>, scalar_prefetch = 0 : i64, scratch_operands = 0 : i64, tpu.core_type = #tpu.core_type<tc>, window_params = [{transform_indices = @transform_0, window_bounds = array<i64: 64, 32>}, {pipeline_mode = #tpu.pipeline_mode<synchronous>, transform_indices = @transform_1, window_bounds = array<i64: 1, 32>}, {pipeline_mode = #tpu.pipeline_mode<synchronous>, transform_indices = @transform_2, window_bounds = array<i64: 1, 32>}, {pipeline_mode = #tpu.pipeline_mode<synchronous>, transform_indices = @transform_3, window_bounds = array<i64: 32, 64>}, {pipeline_mode = #tpu.pipeline_mode<synchronous>, transform_indices = @transform_4, window_bounds = array<i64: 1, 64>}, {pipeline_mode = #tpu.pipeline_mode<synchronous>, transform_indices = @transform_5, window_bounds = array<i64: 64, 32>}, {pipeline_mode = #tpu.pipeline_mode<synchronous>, transform_indices = @transform_6, window_bounds = array<i64: 1, 32>}, {transform_indices = @transform_7, window_bounds = array<i64: 64, 32>}]} {
    %c0 = arith.constant 0 : index
    %c0_0 = arith.constant 0 : index
    %0 = vector.load %arg1[%c0, %c0_0] : memref<64x32xbf16, #tpu.memory_space<vmem>>, vector<64x32xbf16>
    %1 = arith.extf %0 : vector<64x32xbf16> to vector<64x32xf32>
    %cst = arith.constant dense<0.000000e+00> : vector<64xf32>
    %2 = vector.multi_reduction <add>, %1, %cst [1] : vector<64x32xf32> to vector<64xf32>
    %3 = vector.shape_cast %2 : vector<64xf32> to vector<64x1xf32>
    %cst_1 = arith.constant 3.200000e+01 : f32
    %4 = vector.broadcast %cst_1 : f32 to vector<64x1xf32>
    %5 = arith.divf %3, %4 : vector<64x1xf32>
    %6 = vector.broadcast %5 : vector<64x1xf32> to vector<64x32xf32>
    %7 = arith.subf %1, %6 : vector<64x32xf32>
    %8 = arith.mulf %7, %7 : vector<64x32xf32>
    %cst_2 = arith.constant dense<0.000000e+00> : vector<64xf32>
    %9 = vector.multi_reduction <add>, %8, %cst_2 [1] : vector<64x32xf32> to vector<64xf32>
    %10 = vector.shape_cast %9 : vector<64xf32> to vector<64x1xf32>
    %cst_3 = arith.constant 3.200000e+01 : f32
    %11 = vector.broadcast %cst_3 : f32 to vector<64x1xf32>
    %12 = arith.divf %10, %11 : vector<64x1xf32>
    %13 = vector.broadcast %5 : vector<64x1xf32> to vector<64x32xf32>
    %14 = arith.subf %1, %13 : vector<64x32xf32>
    %cst_4 = arith.constant 9.99999974E-6 : f32
    %15 = vector.broadcast %cst_4 : f32 to vector<64x1xf32>
    %16 = arith.addf %12, %15 : vector<64x1xf32>
    %17 = math.rsqrt %16 : vector<64x1xf32>
    %18 = vector.broadcast %17 : vector<64x1xf32> to vector<64x32xf32>
    %19 = arith.mulf %14, %18 : vector<64x32xf32>
    %c0_5 = arith.constant 0 : index
    %c0_6 = arith.constant 0 : index
    %20 = vector.load %arg2[%c0_5, %c0_6] : memref<1x32xf32, #tpu.memory_space<vmem>>, vector<1x32xf32>
    %21 = vector.broadcast %20 : vector<1x32xf32> to vector<64x32xf32>
    %22 = arith.mulf %19, %21 : vector<64x32xf32>
    %c0_7 = arith.constant 0 : index
    %c0_8 = arith.constant 0 : index
    %23 = vector.load %arg3[%c0_7, %c0_8] : memref<1x32xf32, #tpu.memory_space<vmem>>, vector<1x32xf32>
    %24 = vector.broadcast %23 : vector<1x32xf32> to vector<64x32xf32>
    %25 = arith.addf %22, %24 : vector<64x32xf32>
    %26 = arith.truncf %25 : vector<64x32xf32> to vector<64x32xbf16>
    %c0_9 = arith.constant 0 : index
    %c0_10 = arith.constant 0 : index
    %27 = vector.load %arg4[%c0_9, %c0_10] : memref<32x64xbf16, #tpu.memory_space<vmem>>, vector<32x64xbf16>
    %cst_11 = arith.constant dense<0.000000e+00> : vector<64x64xf32>
    %28 = tpu.matmul %26, %27, %cst_11 {dimension_numbers = #tpu.dot_dimension_numbers<[1], [0], [0], [1], [0, 0, 1, 1], [], []>} : vector<64x32xbf16>, vector<32x64xbf16>, vector<64x64xf32> -> vector<64x64xf32>
    %c0_12 = arith.constant 0 : index
    %c0_13 = arith.constant 0 : index
    %29 = vector.load %arg5[%c0_12, %c0_13] : memref<1x64xf32, #tpu.memory_space<vmem>>, vector<1x64xf32>
    %30 = vector.broadcast %29 : vector<1x64xf32> to vector<64x64xf32>
    %31 = arith.addf %28, %30 : vector<64x64xf32>
    %32 = arith.negf %31 : vector<64x64xf32>
    %33 = math.exp %32 : vector<64x64xf32>
    %cst_14 = arith.constant 1.000000e+00 : f32
    %34 = vector.broadcast %cst_14 : f32 to vector<64x64xf32>
    %35 = arith.addf %34, %33 : vector<64x64xf32>
    %36 = arith.divf %34, %35 : vector<64x64xf32>
    %37 = arith.mulf %31, %36 : vector<64x64xf32>
    %38 = arith.truncf %37 : vector<64x64xf32> to vector<64x64xbf16>
    %c0_15 = arith.constant 0 : index
    %c0_16 = arith.constant 0 : index
    %39 = vector.load %arg6[%c0_15, %c0_16] : memref<64x32xbf16, #tpu.memory_space<vmem>>, vector<64x32xbf16>
    %cst_17 = arith.constant dense<0.000000e+00> : vector<64x32xf32>
    %40 = tpu.matmul %38, %39, %cst_17 {dimension_numbers = #tpu.dot_dimension_numbers<[1], [0], [0], [1], [0, 0, 1, 1], [], []>} : vector<64x64xbf16>, vector<64x32xbf16>, vector<64x32xf32> -> vector<64x32xf32>
    %c0_18 = arith.constant 0 : index
    %c0_19 = arith.constant 0 : index
    %41 = vector.load %arg7[%c0_18, %c0_19] : memref<1x32xf32, #tpu.memory_space<vmem>>, vector<1x32xf32>
    %42 = vector.broadcast %41 : vector<1x32xf32> to vector<64x32xf32>
    %43 = arith.addf %40, %42 : vector<64x32xf32>
    %44 = arith.addf %1, %43 : vector<64x32xf32>
    %45 = arith.truncf %44 : vector<64x32xf32> to vector<64x32xbf16>
    %c0_20 = arith.constant 0 : index
    %c0_21 = arith.constant 0 : index
    %46 = vector.load %arg8[%c0_20, %c0_21] : memref<64x32xbf16, #tpu.memory_space<vmem>>, vector<64x32xbf16>
    tpu.vector_store %arg8[%c0_20, %c0_21], %45 {strides = array<i32>} : memref<64x32xbf16, #tpu.memory_space<vmem>>, vector<64x32xbf16>,
    return
  }
  func.func @transform_0(%arg0: i32) -> (i32, i32) {
    %c0_i32 = arith.constant 0 : i32
    %c0_i32_0 = arith.constant 0 : i32
    return %arg0, %c0_i32 : i32, i32
  }
  func.func @transform_1(%arg0: i32) -> (i32, i32) {
    %c0_i32 = arith.constant 0 : i32
    %c0_i32_0 = arith.constant 0 : i32
    %c0_i32_1 = arith.constant 0 : i32
    return %c0_i32, %c0_i32_0 : i32, i32
  }
  func.func @transform_2(%arg0: i32) -> (i32, i32) {
    %c0_i32 = arith.constant 0 : i32
    %c0_i32_0 = arith.constant 0 : i32
    %c0_i32_1 = arith.constant 0 : i32
    return %c0_i32, %c0_i32_0 : i32, i32
  }
  func.func @transform_3(%arg0: i32) -> (i32, i32) {
    %c0_i32 = arith.constant 0 : i32
    %c0_i32_0 = arith.constant 0 : i32
    %c0_i32_1 = arith.constant 0 : i32
    return %c0_i32, %c0_i32_0 : i32, i32
  }
  func.func @transform_4(%arg0: i32) -> (i32, i32) {
    %c0_i32 = arith.constant 0 : i32
    %c0_i32_0 = arith.constant 0 : i32
    %c0_i32_1 = arith.constant 0 : i32
    return %c0_i32, %c0_i32_0 : i32, i32
  }
  func.func @transform_5(%arg0: i32) -> (i32, i32) {
    %c0_i32 = arith.constant 0 : i32
    %c0_i32_0 = arith.constant 0 : i32
    %c0_i32_1 = arith.constant 0 : i32
    return %c0_i32, %c0_i32_0 : i32, i32
  }
  func.func @transform_6(%arg0: i32) -> (i32, i32) {
    %c0_i32 = arith.constant 0 : i32
    %c0_i32_0 = arith.constant 0 : i32
    %c0_i32_1 = arith.constant 0 : i32
    return %c0_i32, %c0_i32_0 : i32, i32
  }
  func.func @transform_7(%arg0: i32) -> (i32, i32) {
    %c0_i32 = arith.constant 0 : i32
    %c0_i32_0 = arith.constant 0 : i32
    return %arg0, %c0_i32 : i32, i32
  }
}

module attributes {stable_mosaic.version = 11 : i64} {
  func.func @_mm_ln_kernel(%arg0: i32, %arg1: memref<4x256xbf16, #tpu.memory_space<vmem>>, %arg2: memref<256x128xbf16, #tpu.memory_space<vmem>>, %arg3: memref<1x128xf32, #tpu.memory_space<vmem>>, %arg4: memref<1x128xf32, #tpu.memory_space<vmem>>, %arg5: memref<1x128xf32, #tpu.memory_space<vmem>>, %arg6: memref<4x128xbf16, #tpu.memory_space<vmem>>) attributes {dimension_semantics = [#tpu.dimension_semantics<parallel>], iteration_bounds = array<i64: 1>, scalar_prefetch = 0 : i64, scratch_operands = 0 : i64, tpu.core_type = #tpu.core_type<tc>, window_params = [{transform_indices = @transform_0, window_bounds = array<i64: 4, 256>}, {pipeline_mode = #tpu.pipeline_mode<synchronous>, transform_indices = @transform_1, window_bounds = array<i64: 256, 128>}, {pipeline_mode = #tpu.pipeline_mode<synchronous>, transform_indices = @transform_2, window_bounds = array<i64: 1, 128>}, {pipeline_mode = #tpu.pipeline_mode<synchronous>, transform_indices = @transform_3, window_bounds = array<i64: 1, 128>}, {pipeline_mode = #tpu.pipeline_mode<synchronous>, transform_indices = @transform_4, window_bounds = array<i64: 1, 128>}, {transform_indices = @transform_5, window_bounds = array<i64: 4, 128>}]} {
    %c0 = arith.constant 0 : index
    %c0_0 = arith.constant 0 : index
    %0 = vector.load %arg1[%c0, %c0_0] : memref<4x256xbf16, #tpu.memory_space<vmem>>, vector<4x256xbf16>
    %c0_1 = arith.constant 0 : index
    %c0_2 = arith.constant 0 : index
    %1 = vector.load %arg2[%c0_1, %c0_2] : memref<256x128xbf16, #tpu.memory_space<vmem>>, vector<256x128xbf16>
    %cst = arith.constant dense<0.000000e+00> : vector<4x128xf32>
    %2 = tpu.matmul %0, %1, %cst {dimension_numbers = #tpu.dot_dimension_numbers<[1], [0], [0], [1], [0, 0, 1, 1], [], []>} : vector<4x256xbf16>, vector<256x128xbf16>, vector<4x128xf32> -> vector<4x128xf32>
    %c0_3 = arith.constant 0 : index
    %c0_4 = arith.constant 0 : index
    %3 = vector.load %arg3[%c0_3, %c0_4] : memref<1x128xf32, #tpu.memory_space<vmem>>, vector<1x128xf32>
    %4 = vector.broadcast %3 : vector<1x128xf32> to vector<4x128xf32>
    %5 = arith.addf %2, %4 : vector<4x128xf32>
    %cst_5 = arith.constant dense<0.000000e+00> : vector<4xf32>
    %6 = vector.multi_reduction <add>, %5, %cst_5 [1] : vector<4x128xf32> to vector<4xf32>
    %7 = vector.shape_cast %6 : vector<4xf32> to vector<4x1xf32>
    %cst_6 = arith.constant 1.280000e+02 : f32
    %8 = vector.broadcast %cst_6 : f32 to vector<4x1xf32>
    %9 = arith.divf %7, %8 : vector<4x1xf32>
    %10 = vector.broadcast %9 : vector<4x1xf32> to vector<4x128xf32>
    %11 = arith.subf %5, %10 : vector<4x128xf32>
    %12 = arith.mulf %11, %11 : vector<4x128xf32>
    %cst_7 = arith.constant dense<0.000000e+00> : vector<4xf32>
    %13 = vector.multi_reduction <add>, %12, %cst_7 [1] : vector<4x128xf32> to vector<4xf32>
    %14 = vector.shape_cast %13 : vector<4xf32> to vector<4x1xf32>
    %cst_8 = arith.constant 1.280000e+02 : f32
    %15 = vector.broadcast %cst_8 : f32 to vector<4x1xf32>
    %16 = arith.divf %14, %15 : vector<4x1xf32>
    %17 = vector.broadcast %9 : vector<4x1xf32> to vector<4x128xf32>
    %18 = arith.subf %5, %17 : vector<4x128xf32>
    %cst_9 = arith.constant 9.99999974E-6 : f32
    %19 = vector.broadcast %cst_9 : f32 to vector<4x1xf32>
    %20 = arith.addf %16, %19 : vector<4x1xf32>
    %21 = math.rsqrt %20 : vector<4x1xf32>
    %22 = vector.broadcast %21 : vector<4x1xf32> to vector<4x128xf32>
    %23 = arith.mulf %18, %22 : vector<4x128xf32>
    %c0_10 = arith.constant 0 : index
    %c0_11 = arith.constant 0 : index
    %24 = vector.load %arg4[%c0_10, %c0_11] : memref<1x128xf32, #tpu.memory_space<vmem>>, vector<1x128xf32>
    %25 = vector.broadcast %24 : vector<1x128xf32> to vector<4x128xf32>
    %26 = arith.mulf %23, %25 : vector<4x128xf32>
    %c0_12 = arith.constant 0 : index
    %c0_13 = arith.constant 0 : index
    %27 = vector.load %arg5[%c0_12, %c0_13] : memref<1x128xf32, #tpu.memory_space<vmem>>, vector<1x128xf32>
    %28 = vector.broadcast %27 : vector<1x128xf32> to vector<4x128xf32>
    %29 = arith.addf %26, %28 : vector<4x128xf32>
    %30 = arith.truncf %29 : vector<4x128xf32> to vector<4x128xbf16>
    %c0_14 = arith.constant 0 : index
    %c0_15 = arith.constant 0 : index
    %31 = vector.load %arg6[%c0_14, %c0_15] : memref<4x128xbf16, #tpu.memory_space<vmem>>, vector<4x128xbf16>
    tpu.vector_store %arg6[%c0_14, %c0_15], %30 {strides = array<i32>} : memref<4x128xbf16, #tpu.memory_space<vmem>>, vector<4x128xbf16>,
    return
  }
  func.func @transform_0(%arg0: i32) -> (i32, i32) {
    %c0_i32 = arith.constant 0 : i32
    %c0_i32_0 = arith.constant 0 : i32
    return %arg0, %c0_i32 : i32, i32
  }
  func.func @transform_1(%arg0: i32) -> (i32, i32) {
    %c0_i32 = arith.constant 0 : i32
    %c0_i32_0 = arith.constant 0 : i32
    %c0_i32_1 = arith.constant 0 : i32
    return %c0_i32, %c0_i32_0 : i32, i32
  }
  func.func @transform_2(%arg0: i32) -> (i32, i32) {
    %c0_i32 = arith.constant 0 : i32
    %c0_i32_0 = arith.constant 0 : i32
    %c0_i32_1 = arith.constant 0 : i32
    return %c0_i32, %c0_i32_0 : i32, i32
  }
  func.func @transform_3(%arg0: i32) -> (i32, i32) {
    %c0_i32 = arith.constant 0 : i32
    %c0_i32_0 = arith.constant 0 : i32
    %c0_i32_1 = arith.constant 0 : i32
    return %c0_i32, %c0_i32_0 : i32, i32
  }
  func.func @transform_4(%arg0: i32) -> (i32, i32) {
    %c0_i32 = arith.constant 0 : i32
    %c0_i32_0 = arith.constant 0 : i32
    %c0_i32_1 = arith.constant 0 : i32
    return %c0_i32, %c0_i32_0 : i32, i32
  }
  func.func @transform_5(%arg0: i32) -> (i32, i32) {
    %c0_i32 = arith.constant 0 : i32
    %c0_i32_0 = arith.constant 0 : i32
    return %arg0, %c0_i32 : i32, i32
  }
}

module attributes {stable_mosaic.version = 11 : i64} {
  func.func @_mm_ln_kernel(%arg0: i32, %arg1: memref<16x128xbf16, #tpu.memory_space<vmem>>, %arg2: memref<128x64xbf16, #tpu.memory_space<vmem>>, %arg3: memref<1x64xf32, #tpu.memory_space<vmem>>, %arg4: memref<1x64xf32, #tpu.memory_space<vmem>>, %arg5: memref<1x64xf32, #tpu.memory_space<vmem>>, %arg6: memref<16x64xbf16, #tpu.memory_space<vmem>>) attributes {dimension_semantics = [#tpu.dimension_semantics<parallel>], iteration_bounds = array<i64: 1>, scalar_prefetch = 0 : i64, scratch_operands = 0 : i64, tpu.core_type = #tpu.core_type<tc>, window_params = [{transform_indices = @transform_0, window_bounds = array<i64: 16, 128>}, {pipeline_mode = #tpu.pipeline_mode<synchronous>, transform_indices = @transform_1, window_bounds = array<i64: 128, 64>}, {pipeline_mode = #tpu.pipeline_mode<synchronous>, transform_indices = @transform_2, window_bounds = array<i64: 1, 64>}, {pipeline_mode = #tpu.pipeline_mode<synchronous>, transform_indices = @transform_3, window_bounds = array<i64: 1, 64>}, {pipeline_mode = #tpu.pipeline_mode<synchronous>, transform_indices = @transform_4, window_bounds = array<i64: 1, 64>}, {transform_indices = @transform_5, window_bounds = array<i64: 16, 64>}]} {
    %c0 = arith.constant 0 : index
    %c0_0 = arith.constant 0 : index
    %0 = vector.load %arg1[%c0, %c0_0] : memref<16x128xbf16, #tpu.memory_space<vmem>>, vector<16x128xbf16>
    %c0_1 = arith.constant 0 : index
    %c0_2 = arith.constant 0 : index
    %1 = vector.load %arg2[%c0_1, %c0_2] : memref<128x64xbf16, #tpu.memory_space<vmem>>, vector<128x64xbf16>
    %cst = arith.constant dense<0.000000e+00> : vector<16x64xf32>
    %2 = tpu.matmul %0, %1, %cst {dimension_numbers = #tpu.dot_dimension_numbers<[1], [0], [0], [1], [0, 0, 1, 1], [], []>} : vector<16x128xbf16>, vector<128x64xbf16>, vector<16x64xf32> -> vector<16x64xf32>
    %c0_3 = arith.constant 0 : index
    %c0_4 = arith.constant 0 : index
    %3 = vector.load %arg3[%c0_3, %c0_4] : memref<1x64xf32, #tpu.memory_space<vmem>>, vector<1x64xf32>
    %4 = vector.broadcast %3 : vector<1x64xf32> to vector<16x64xf32>
    %5 = arith.addf %2, %4 : vector<16x64xf32>
    %cst_5 = arith.constant dense<0.000000e+00> : vector<16xf32>
    %6 = vector.multi_reduction <add>, %5, %cst_5 [1] : vector<16x64xf32> to vector<16xf32>
    %7 = vector.shape_cast %6 : vector<16xf32> to vector<16x1xf32>
    %cst_6 = arith.constant 6.400000e+01 : f32
    %8 = vector.broadcast %cst_6 : f32 to vector<16x1xf32>
    %9 = arith.divf %7, %8 : vector<16x1xf32>
    %10 = vector.broadcast %9 : vector<16x1xf32> to vector<16x64xf32>
    %11 = arith.subf %5, %10 : vector<16x64xf32>
    %12 = arith.mulf %11, %11 : vector<16x64xf32>
    %cst_7 = arith.constant dense<0.000000e+00> : vector<16xf32>
    %13 = vector.multi_reduction <add>, %12, %cst_7 [1] : vector<16x64xf32> to vector<16xf32>
    %14 = vector.shape_cast %13 : vector<16xf32> to vector<16x1xf32>
    %cst_8 = arith.constant 6.400000e+01 : f32
    %15 = vector.broadcast %cst_8 : f32 to vector<16x1xf32>
    %16 = arith.divf %14, %15 : vector<16x1xf32>
    %17 = vector.broadcast %9 : vector<16x1xf32> to vector<16x64xf32>
    %18 = arith.subf %5, %17 : vector<16x64xf32>
    %cst_9 = arith.constant 9.99999974E-6 : f32
    %19 = vector.broadcast %cst_9 : f32 to vector<16x1xf32>
    %20 = arith.addf %16, %19 : vector<16x1xf32>
    %21 = math.rsqrt %20 : vector<16x1xf32>
    %22 = vector.broadcast %21 : vector<16x1xf32> to vector<16x64xf32>
    %23 = arith.mulf %18, %22 : vector<16x64xf32>
    %c0_10 = arith.constant 0 : index
    %c0_11 = arith.constant 0 : index
    %24 = vector.load %arg4[%c0_10, %c0_11] : memref<1x64xf32, #tpu.memory_space<vmem>>, vector<1x64xf32>
    %25 = vector.broadcast %24 : vector<1x64xf32> to vector<16x64xf32>
    %26 = arith.mulf %23, %25 : vector<16x64xf32>
    %c0_12 = arith.constant 0 : index
    %c0_13 = arith.constant 0 : index
    %27 = vector.load %arg5[%c0_12, %c0_13] : memref<1x64xf32, #tpu.memory_space<vmem>>, vector<1x64xf32>
    %28 = vector.broadcast %27 : vector<1x64xf32> to vector<16x64xf32>
    %29 = arith.addf %26, %28 : vector<16x64xf32>
    %30 = arith.truncf %29 : vector<16x64xf32> to vector<16x64xbf16>
    %c0_14 = arith.constant 0 : index
    %c0_15 = arith.constant 0 : index
    %31 = vector.load %arg6[%c0_14, %c0_15] : memref<16x64xbf16, #tpu.memory_space<vmem>>, vector<16x64xbf16>
    tpu.vector_store %arg6[%c0_14, %c0_15], %30 {strides = array<i32>} : memref<16x64xbf16, #tpu.memory_space<vmem>>, vector<16x64xbf16>,
    return
  }
  func.func @transform_0(%arg0: i32) -> (i32, i32) {
    %c0_i32 = arith.constant 0 : i32
    %c0_i32_0 = arith.constant 0 : i32
    return %arg0, %c0_i32 : i32, i32
  }
  func.func @transform_1(%arg0: i32) -> (i32, i32) {
    %c0_i32 = arith.constant 0 : i32
    %c0_i32_0 = arith.constant 0 : i32
    %c0_i32_1 = arith.constant 0 : i32
    return %c0_i32, %c0_i32_0 : i32, i32
  }
  func.func @transform_2(%arg0: i32) -> (i32, i32) {
    %c0_i32 = arith.constant 0 : i32
    %c0_i32_0 = arith.constant 0 : i32
    %c0_i32_1 = arith.constant 0 : i32
    return %c0_i32, %c0_i32_0 : i32, i32
  }
  func.func @transform_3(%arg0: i32) -> (i32, i32) {
    %c0_i32 = arith.constant 0 : i32
    %c0_i32_0 = arith.constant 0 : i32
    %c0_i32_1 = arith.constant 0 : i32
    return %c0_i32, %c0_i32_0 : i32, i32
  }
  func.func @transform_4(%arg0: i32) -> (i32, i32) {
    %c0_i32 = arith.constant 0 : i32
    %c0_i32_0 = arith.constant 0 : i32
    %c0_i32_1 = arith.constant 0 : i32
    return %c0_i32, %c0_i32_0 : i32, i32
  }
  func.func @transform_5(%arg0: i32) -> (i32, i32) {
    %c0_i32 = arith.constant 0 : i32
    %c0_i32_0 = arith.constant 0 : i32
    return %arg0, %c0_i32 : i32, i32
  }
}

module attributes {stable_mosaic.version = 11 : i64} {
  func.func @_block_kernel(%arg0: i32, %arg1: memref<16x64xbf16, #tpu.memory_space<vmem>>, %arg2: memref<1x64xf32, #tpu.memory_space<vmem>>, %arg3: memref<1x64xf32, #tpu.memory_space<vmem>>, %arg4: memref<64x128xbf16, #tpu.memory_space<vmem>>, %arg5: memref<1x128xf32, #tpu.memory_space<vmem>>, %arg6: memref<128x64xbf16, #tpu.memory_space<vmem>>, %arg7: memref<1x64xf32, #tpu.memory_space<vmem>>, %arg8: memref<16x64xbf16, #tpu.memory_space<vmem>>) attributes {dimension_semantics = [#tpu.dimension_semantics<parallel>], iteration_bounds = array<i64: 1>, scalar_prefetch = 0 : i64, scratch_operands = 0 : i64, tpu.core_type = #tpu.core_type<tc>, window_params = [{transform_indices = @transform_0, window_bounds = array<i64: 16, 64>}, {pipeline_mode = #tpu.pipeline_mode<synchronous>, transform_indices = @transform_1, window_bounds = array<i64: 1, 64>}, {pipeline_mode = #tpu.pipeline_mode<synchronous>, transform_indices = @transform_2, window_bounds = array<i64: 1, 64>}, {pipeline_mode = #tpu.pipeline_mode<synchronous>, transform_indices = @transform_3, window_bounds = array<i64: 64, 128>}, {pipeline_mode = #tpu.pipeline_mode<synchronous>, transform_indices = @transform_4, window_bounds = array<i64: 1, 128>}, {pipeline_mode = #tpu.pipeline_mode<synchronous>, transform_indices = @transform_5, window_bounds = array<i64: 128, 64>}, {pipeline_mode = #tpu.pipeline_mode<synchronous>, transform_indices = @transform_6, window_bounds = array<i64: 1, 64>}, {transform_indices = @transform_7, window_bounds = array<i64: 16, 64>}]} {
    %c0 = arith.constant 0 : index
    %c0_0 = arith.constant 0 : index
    %0 = vector.load %arg1[%c0, %c0_0] : memref<16x64xbf16, #tpu.memory_space<vmem>>, vector<16x64xbf16>
    %1 = arith.extf %0 : vector<16x64xbf16> to vector<16x64xf32>
    %cst = arith.constant dense<0.000000e+00> : vector<16xf32>
    %2 = vector.multi_reduction <add>, %1, %cst [1] : vector<16x64xf32> to vector<16xf32>
    %3 = vector.shape_cast %2 : vector<16xf32> to vector<16x1xf32>
    %cst_1 = arith.constant 6.400000e+01 : f32
    %4 = vector.broadcast %cst_1 : f32 to vector<16x1xf32>
    %5 = arith.divf %3, %4 : vector<16x1xf32>
    %6 = vector.broadcast %5 : vector<16x1xf32> to vector<16x64xf32>
    %7 = arith.subf %1, %6 : vector<16x64xf32>
    %8 = arith.mulf %7, %7 : vector<16x64xf32>
    %cst_2 = arith.constant dense<0.000000e+00> : vector<16xf32>
    %9 = vector.multi_reduction <add>, %8, %cst_2 [1] : vector<16x64xf32> to vector<16xf32>
    %10 = vector.shape_cast %9 : vector<16xf32> to vector<16x1xf32>
    %cst_3 = arith.constant 6.400000e+01 : f32
    %11 = vector.broadcast %cst_3 : f32 to vector<16x1xf32>
    %12 = arith.divf %10, %11 : vector<16x1xf32>
    %13 = vector.broadcast %5 : vector<16x1xf32> to vector<16x64xf32>
    %14 = arith.subf %1, %13 : vector<16x64xf32>
    %cst_4 = arith.constant 9.99999974E-6 : f32
    %15 = vector.broadcast %cst_4 : f32 to vector<16x1xf32>
    %16 = arith.addf %12, %15 : vector<16x1xf32>
    %17 = math.rsqrt %16 : vector<16x1xf32>
    %18 = vector.broadcast %17 : vector<16x1xf32> to vector<16x64xf32>
    %19 = arith.mulf %14, %18 : vector<16x64xf32>
    %c0_5 = arith.constant 0 : index
    %c0_6 = arith.constant 0 : index
    %20 = vector.load %arg2[%c0_5, %c0_6] : memref<1x64xf32, #tpu.memory_space<vmem>>, vector<1x64xf32>
    %21 = vector.broadcast %20 : vector<1x64xf32> to vector<16x64xf32>
    %22 = arith.mulf %19, %21 : vector<16x64xf32>
    %c0_7 = arith.constant 0 : index
    %c0_8 = arith.constant 0 : index
    %23 = vector.load %arg3[%c0_7, %c0_8] : memref<1x64xf32, #tpu.memory_space<vmem>>, vector<1x64xf32>
    %24 = vector.broadcast %23 : vector<1x64xf32> to vector<16x64xf32>
    %25 = arith.addf %22, %24 : vector<16x64xf32>
    %26 = arith.truncf %25 : vector<16x64xf32> to vector<16x64xbf16>
    %c0_9 = arith.constant 0 : index
    %c0_10 = arith.constant 0 : index
    %27 = vector.load %arg4[%c0_9, %c0_10] : memref<64x128xbf16, #tpu.memory_space<vmem>>, vector<64x128xbf16>
    %cst_11 = arith.constant dense<0.000000e+00> : vector<16x128xf32>
    %28 = tpu.matmul %26, %27, %cst_11 {dimension_numbers = #tpu.dot_dimension_numbers<[1], [0], [0], [1], [0, 0, 1, 1], [], []>} : vector<16x64xbf16>, vector<64x128xbf16>, vector<16x128xf32> -> vector<16x128xf32>
    %c0_12 = arith.constant 0 : index
    %c0_13 = arith.constant 0 : index
    %29 = vector.load %arg5[%c0_12, %c0_13] : memref<1x128xf32, #tpu.memory_space<vmem>>, vector<1x128xf32>
    %30 = vector.broadcast %29 : vector<1x128xf32> to vector<16x128xf32>
    %31 = arith.addf %28, %30 : vector<16x128xf32>
    %32 = arith.negf %31 : vector<16x128xf32>
    %33 = math.exp %32 : vector<16x128xf32>
    %cst_14 = arith.constant 1.000000e+00 : f32
    %34 = vector.broadcast %cst_14 : f32 to vector<16x128xf32>
    %35 = arith.addf %34, %33 : vector<16x128xf32>
    %36 = arith.divf %34, %35 : vector<16x128xf32>
    %37 = arith.mulf %31, %36 : vector<16x128xf32>
    %38 = arith.truncf %37 : vector<16x128xf32> to vector<16x128xbf16>
    %c0_15 = arith.constant 0 : index
    %c0_16 = arith.constant 0 : index
    %39 = vector.load %arg6[%c0_15, %c0_16] : memref<128x64xbf16, #tpu.memory_space<vmem>>, vector<128x64xbf16>
    %cst_17 = arith.constant dense<0.000000e+00> : vector<16x64xf32>
    %40 = tpu.matmul %38, %39, %cst_17 {dimension_numbers = #tpu.dot_dimension_numbers<[1], [0], [0], [1], [0, 0, 1, 1], [], []>} : vector<16x128xbf16>, vector<128x64xbf16>, vector<16x64xf32> -> vector<16x64xf32>
    %c0_18 = arith.constant 0 : index
    %c0_19 = arith.constant 0 : index
    %41 = vector.load %arg7[%c0_18, %c0_19] : memref<1x64xf32, #tpu.memory_space<vmem>>, vector<1x64xf32>
    %42 = vector.broadcast %41 : vector<1x64xf32> to vector<16x64xf32>
    %43 = arith.addf %40, %42 : vector<16x64xf32>
    %44 = arith.addf %1, %43 : vector<16x64xf32>
    %45 = arith.truncf %44 : vector<16x64xf32> to vector<16x64xbf16>
    %c0_20 = arith.constant 0 : index
    %c0_21 = arith.constant 0 : index
    %46 = vector.load %arg8[%c0_20, %c0_21] : memref<16x64xbf16, #tpu.memory_space<vmem>>, vector<16x64xbf16>
    tpu.vector_store %arg8[%c0_20, %c0_21], %45 {strides = array<i32>} : memref<16x64xbf16, #tpu.memory_space<vmem>>, vector<16x64xbf16>,
    return
  }
  func.func @transform_0(%arg0: i32) -> (i32, i32) {
    %c0_i32 = arith.constant 0 : i32
    %c0_i32_0 = arith.constant 0 : i32
    return %arg0, %c0_i32 : i32, i32
  }
  func.func @transform_1(%arg0: i32) -> (i32, i32) {
    %c0_i32 = arith.constant 0 : i32
    %c0_i32_0 = arith.constant 0 : i32
    %c0_i32_1 = arith.constant 0 : i32
    return %c0_i32, %c0_i32_0 : i32, i32
  }
  func.func @transform_2(%arg0: i32) -> (i32, i32) {
    %c0_i32 = arith.constant 0 : i32
    %c0_i32_0 = arith.constant 0 : i32
    %c0_i32_1 = arith.constant 0 : i32
    return %c0_i32, %c0_i32_0 : i32, i32
  }
  func.func @transform_3(%arg0: i32) -> (i32, i32) {
    %c0_i32 = arith.constant 0 : i32
    %c0_i32_0 = arith.constant 0 : i32
    %c0_i32_1 = arith.constant 0 : i32
    return %c0_i32, %c0_i32_0 : i32, i32
  }
  func.func @transform_4(%arg0: i32) -> (i32, i32) {
    %c0_i32 = arith.constant 0 : i32
    %c0_i32_0 = arith.constant 0 : i32
    %c0_i32_1 = arith.constant 0 : i32
    return %c0_i32, %c0_i32_0 : i32, i32
  }
  func.func @transform_5(%arg0: i32) -> (i32, i32) {
    %c0_i32 = arith.constant 0 : i32
    %c0_i32_0 = arith.constant 0 : i32
    %c0_i32_1 = arith.constant 0 : i32
    return %c0_i32, %c0_i32_0 : i32, i32
  }
  func.func @transform_6(%arg0: i32) -> (i32, i32) {
    %c0_i32 = arith.constant 0 : i32
    %c0_i32_0 = arith.constant 0 : i32
    %c0_i32_1 = arith.constant 0 : i32
    return %c0_i32, %c0_i32_0 : i32, i32
  }
  func.func @transform_7(%arg0: i32) -> (i32, i32) {
    %c0_i32 = arith.constant 0 : i32
    %c0_i32_0 = arith.constant 0 : i32
    return %arg0, %c0_i32 : i32, i32
  }
}

module attributes {stable_mosaic.version = 11 : i64} {
  func.func @_block_kernel(%arg0: i32, %arg1: memref<4x128xbf16, #tpu.memory_space<vmem>>, %arg2: memref<1x128xf32, #tpu.memory_space<vmem>>, %arg3: memref<1x128xf32, #tpu.memory_space<vmem>>, %arg4: memref<128x256xbf16, #tpu.memory_space<vmem>>, %arg5: memref<1x256xf32, #tpu.memory_space<vmem>>, %arg6: memref<256x128xbf16, #tpu.memory_space<vmem>>, %arg7: memref<1x128xf32, #tpu.memory_space<vmem>>, %arg8: memref<4x128xbf16, #tpu.memory_space<vmem>>) attributes {dimension_semantics = [#tpu.dimension_semantics<parallel>], iteration_bounds = array<i64: 1>, scalar_prefetch = 0 : i64, scratch_operands = 0 : i64, tpu.core_type = #tpu.core_type<tc>, window_params = [{transform_indices = @transform_0, window_bounds = array<i64: 4, 128>}, {pipeline_mode = #tpu.pipeline_mode<synchronous>, transform_indices = @transform_1, window_bounds = array<i64: 1, 128>}, {pipeline_mode = #tpu.pipeline_mode<synchronous>, transform_indices = @transform_2, window_bounds = array<i64: 1, 128>}, {pipeline_mode = #tpu.pipeline_mode<synchronous>, transform_indices = @transform_3, window_bounds = array<i64: 128, 256>}, {pipeline_mode = #tpu.pipeline_mode<synchronous>, transform_indices = @transform_4, window_bounds = array<i64: 1, 256>}, {pipeline_mode = #tpu.pipeline_mode<synchronous>, transform_indices = @transform_5, window_bounds = array<i64: 256, 128>}, {pipeline_mode = #tpu.pipeline_mode<synchronous>, transform_indices = @transform_6, window_bounds = array<i64: 1, 128>}, {transform_indices = @transform_7, window_bounds = array<i64: 4, 128>}]} {
    %c0 = arith.constant 0 : index
    %c0_0 = arith.constant 0 : index
    %0 = vector.load %arg1[%c0, %c0_0] : memref<4x128xbf16, #tpu.memory_space<vmem>>, vector<4x128xbf16>
    %1 = arith.extf %0 : vector<4x128xbf16> to vector<4x128xf32>
    %cst = arith.constant dense<0.000000e+00> : vector<4xf32>
    %2 = vector.multi_reduction <add>, %1, %cst [1] : vector<4x128xf32> to vector<4xf32>
    %3 = vector.shape_cast %2 : vector<4xf32> to vector<4x1xf32>
    %cst_1 = arith.constant 1.280000e+02 : f32
    %4 = vector.broadcast %cst_1 : f32 to vector<4x1xf32>
    %5 = arith.divf %3, %4 : vector<4x1xf32>
    %6 = vector.broadcast %5 : vector<4x1xf32> to vector<4x128xf32>
    %7 = arith.subf %1, %6 : vector<4x128xf32>
    %8 = arith.mulf %7, %7 : vector<4x128xf32>
    %cst_2 = arith.constant dense<0.000000e+00> : vector<4xf32>
    %9 = vector.multi_reduction <add>, %8, %cst_2 [1] : vector<4x128xf32> to vector<4xf32>
    %10 = vector.shape_cast %9 : vector<4xf32> to vector<4x1xf32>
    %cst_3 = arith.constant 1.280000e+02 : f32
    %11 = vector.broadcast %cst_3 : f32 to vector<4x1xf32>
    %12 = arith.divf %10, %11 : vector<4x1xf32>
    %13 = vector.broadcast %5 : vector<4x1xf32> to vector<4x128xf32>
    %14 = arith.subf %1, %13 : vector<4x128xf32>
    %cst_4 = arith.constant 9.99999974E-6 : f32
    %15 = vector.broadcast %cst_4 : f32 to vector<4x1xf32>
    %16 = arith.addf %12, %15 : vector<4x1xf32>
    %17 = math.rsqrt %16 : vector<4x1xf32>
    %18 = vector.broadcast %17 : vector<4x1xf32> to vector<4x128xf32>
    %19 = arith.mulf %14, %18 : vector<4x128xf32>
    %c0_5 = arith.constant 0 : index
    %c0_6 = arith.constant 0 : index
    %20 = vector.load %arg2[%c0_5, %c0_6] : memref<1x128xf32, #tpu.memory_space<vmem>>, vector<1x128xf32>
    %21 = vector.broadcast %20 : vector<1x128xf32> to vector<4x128xf32>
    %22 = arith.mulf %19, %21 : vector<4x128xf32>
    %c0_7 = arith.constant 0 : index
    %c0_8 = arith.constant 0 : index
    %23 = vector.load %arg3[%c0_7, %c0_8] : memref<1x128xf32, #tpu.memory_space<vmem>>, vector<1x128xf32>
    %24 = vector.broadcast %23 : vector<1x128xf32> to vector<4x128xf32>
    %25 = arith.addf %22, %24 : vector<4x128xf32>
    %26 = arith.truncf %25 : vector<4x128xf32> to vector<4x128xbf16>
    %c0_9 = arith.constant 0 : index
    %c0_10 = arith.constant 0 : index
    %27 = vector.load %arg4[%c0_9, %c0_10] : memref<128x256xbf16, #tpu.memory_space<vmem>>, vector<128x256xbf16>
    %cst_11 = arith.constant dense<0.000000e+00> : vector<4x256xf32>
    %28 = tpu.matmul %26, %27, %cst_11 {dimension_numbers = #tpu.dot_dimension_numbers<[1], [0], [0], [1], [0, 0, 1, 1], [], []>} : vector<4x128xbf16>, vector<128x256xbf16>, vector<4x256xf32> -> vector<4x256xf32>
    %c0_12 = arith.constant 0 : index
    %c0_13 = arith.constant 0 : index
    %29 = vector.load %arg5[%c0_12, %c0_13] : memref<1x256xf32, #tpu.memory_space<vmem>>, vector<1x256xf32>
    %30 = vector.broadcast %29 : vector<1x256xf32> to vector<4x256xf32>
    %31 = arith.addf %28, %30 : vector<4x256xf32>
    %32 = arith.negf %31 : vector<4x256xf32>
    %33 = math.exp %32 : vector<4x256xf32>
    %cst_14 = arith.constant 1.000000e+00 : f32
    %34 = vector.broadcast %cst_14 : f32 to vector<4x256xf32>
    %35 = arith.addf %34, %33 : vector<4x256xf32>
    %36 = arith.divf %34, %35 : vector<4x256xf32>
    %37 = arith.mulf %31, %36 : vector<4x256xf32>
    %38 = arith.truncf %37 : vector<4x256xf32> to vector<4x256xbf16>
    %c0_15 = arith.constant 0 : index
    %c0_16 = arith.constant 0 : index
    %39 = vector.load %arg6[%c0_15, %c0_16] : memref<256x128xbf16, #tpu.memory_space<vmem>>, vector<256x128xbf16>
    %cst_17 = arith.constant dense<0.000000e+00> : vector<4x128xf32>
    %40 = tpu.matmul %38, %39, %cst_17 {dimension_numbers = #tpu.dot_dimension_numbers<[1], [0], [0], [1], [0, 0, 1, 1], [], []>} : vector<4x256xbf16>, vector<256x128xbf16>, vector<4x128xf32> -> vector<4x128xf32>
    %c0_18 = arith.constant 0 : index
    %c0_19 = arith.constant 0 : index
    %41 = vector.load %arg7[%c0_18, %c0_19] : memref<1x128xf32, #tpu.memory_space<vmem>>, vector<1x128xf32>
    %42 = vector.broadcast %41 : vector<1x128xf32> to vector<4x128xf32>
    %43 = arith.addf %40, %42 : vector<4x128xf32>
    %44 = arith.addf %1, %43 : vector<4x128xf32>
    %45 = arith.truncf %44 : vector<4x128xf32> to vector<4x128xbf16>
    %c0_20 = arith.constant 0 : index
    %c0_21 = arith.constant 0 : index
    %46 = vector.load %arg8[%c0_20, %c0_21] : memref<4x128xbf16, #tpu.memory_space<vmem>>, vector<4x128xbf16>
    tpu.vector_store %arg8[%c0_20, %c0_21], %45 {strides = array<i32>} : memref<4x128xbf16, #tpu.memory_space<vmem>>, vector<4x128xbf16>,
    return
  }
  func.func @transform_0(%arg0: i32) -> (i32, i32) {
    %c0_i32 = arith.constant 0 : i32
    %c0_i32_0 = arith.constant 0 : i32
    return %arg0, %c0_i32 : i32, i32
  }
  func.func @transform_1(%arg0: i32) -> (i32, i32) {
    %c0_i32 = arith.constant 0 : i32
    %c0_i32_0 = arith.constant 0 : i32
    %c0_i32_1 = arith.constant 0 : i32
    return %c0_i32, %c0_i32_0 : i32, i32
  }
  func.func @transform_2(%arg0: i32) -> (i32, i32) {
    %c0_i32 = arith.constant 0 : i32
    %c0_i32_0 = arith.constant 0 : i32
    %c0_i32_1 = arith.constant 0 : i32
    return %c0_i32, %c0_i32_0 : i32, i32
  }
  func.func @transform_3(%arg0: i32) -> (i32, i32) {
    %c0_i32 = arith.constant 0 : i32
    %c0_i32_0 = arith.constant 0 : i32
    %c0_i32_1 = arith.constant 0 : i32
    return %c0_i32, %c0_i32_0 : i32, i32
  }
  func.func @transform_4(%arg0: i32) -> (i32, i32) {
    %c0_i32 = arith.constant 0 : i32
    %c0_i32_0 = arith.constant 0 : i32
    %c0_i32_1 = arith.constant 0 : i32
    return %c0_i32, %c0_i32_0 : i32, i32
  }
  func.func @transform_5(%arg0: i32) -> (i32, i32) {
    %c0_i32 = arith.constant 0 : i32
    %c0_i32_0 = arith.constant 0 : i32
    %c0_i32_1 = arith.constant 0 : i32
    return %c0_i32, %c0_i32_0 : i32, i32
  }
  func.func @transform_6(%arg0: i32) -> (i32, i32) {
    %c0_i32 = arith.constant 0 : i32
    %c0_i32_0 = arith.constant 0 : i32
    %c0_i32_1 = arith.constant 0 : i32
    return %c0_i32, %c0_i32_0 : i32, i32
  }
  func.func @transform_7(%arg0: i32) -> (i32, i32) {
    %c0_i32 = arith.constant 0 : i32
    %c0_i32_0 = arith.constant 0 : i32
    return %arg0, %c0_i32 : i32, i32
  }
}

module attributes {stable_mosaic.version = 11 : i64} {
  func.func @_mm_ln_kernel(%arg0: i32, %arg1: memref<256x32xbf16, #tpu.memory_space<vmem>>, %arg2: memref<32x16xbf16, #tpu.memory_space<vmem>>, %arg3: memref<1x16xf32, #tpu.memory_space<vmem>>, %arg4: memref<1x16xf32, #tpu.memory_space<vmem>>, %arg5: memref<1x16xf32, #tpu.memory_space<vmem>>, %arg6: memref<256x16xbf16, #tpu.memory_space<vmem>>) attributes {dimension_semantics = [#tpu.dimension_semantics<parallel>], iteration_bounds = array<i64: 1>, scalar_prefetch = 0 : i64, scratch_operands = 0 : i64, tpu.core_type = #tpu.core_type<tc>, window_params = [{transform_indices = @transform_0, window_bounds = array<i64: 256, 32>}, {pipeline_mode = #tpu.pipeline_mode<synchronous>, transform_indices = @transform_1, window_bounds = array<i64: 32, 16>}, {pipeline_mode = #tpu.pipeline_mode<synchronous>, transform_indices = @transform_2, window_bounds = array<i64: 1, 16>}, {pipeline_mode = #tpu.pipeline_mode<synchronous>, transform_indices = @transform_3, window_bounds = array<i64: 1, 16>}, {pipeline_mode = #tpu.pipeline_mode<synchronous>, transform_indices = @transform_4, window_bounds = array<i64: 1, 16>}, {transform_indices = @transform_5, window_bounds = array<i64: 256, 16>}]} {
    %c0 = arith.constant 0 : index
    %c0_0 = arith.constant 0 : index
    %0 = vector.load %arg1[%c0, %c0_0] : memref<256x32xbf16, #tpu.memory_space<vmem>>, vector<256x32xbf16>
    %c0_1 = arith.constant 0 : index
    %c0_2 = arith.constant 0 : index
    %1 = vector.load %arg2[%c0_1, %c0_2] : memref<32x16xbf16, #tpu.memory_space<vmem>>, vector<32x16xbf16>
    %cst = arith.constant dense<0.000000e+00> : vector<256x16xf32>
    %2 = tpu.matmul %0, %1, %cst {dimension_numbers = #tpu.dot_dimension_numbers<[1], [0], [0], [1], [0, 0, 1, 1], [], []>} : vector<256x32xbf16>, vector<32x16xbf16>, vector<256x16xf32> -> vector<256x16xf32>
    %c0_3 = arith.constant 0 : index
    %c0_4 = arith.constant 0 : index
    %3 = vector.load %arg3[%c0_3, %c0_4] : memref<1x16xf32, #tpu.memory_space<vmem>>, vector<1x16xf32>
    %4 = vector.broadcast %3 : vector<1x16xf32> to vector<256x16xf32>
    %5 = arith.addf %2, %4 : vector<256x16xf32>
    %cst_5 = arith.constant dense<0.000000e+00> : vector<256xf32>
    %6 = vector.multi_reduction <add>, %5, %cst_5 [1] : vector<256x16xf32> to vector<256xf32>
    %7 = vector.shape_cast %6 : vector<256xf32> to vector<256x1xf32>
    %cst_6 = arith.constant 1.600000e+01 : f32
    %8 = vector.broadcast %cst_6 : f32 to vector<256x1xf32>
    %9 = arith.divf %7, %8 : vector<256x1xf32>
    %10 = vector.broadcast %9 : vector<256x1xf32> to vector<256x16xf32>
    %11 = arith.subf %5, %10 : vector<256x16xf32>
    %12 = arith.mulf %11, %11 : vector<256x16xf32>
    %cst_7 = arith.constant dense<0.000000e+00> : vector<256xf32>
    %13 = vector.multi_reduction <add>, %12, %cst_7 [1] : vector<256x16xf32> to vector<256xf32>
    %14 = vector.shape_cast %13 : vector<256xf32> to vector<256x1xf32>
    %cst_8 = arith.constant 1.600000e+01 : f32
    %15 = vector.broadcast %cst_8 : f32 to vector<256x1xf32>
    %16 = arith.divf %14, %15 : vector<256x1xf32>
    %17 = vector.broadcast %9 : vector<256x1xf32> to vector<256x16xf32>
    %18 = arith.subf %5, %17 : vector<256x16xf32>
    %cst_9 = arith.constant 9.99999974E-6 : f32
    %19 = vector.broadcast %cst_9 : f32 to vector<256x1xf32>
    %20 = arith.addf %16, %19 : vector<256x1xf32>
    %21 = math.rsqrt %20 : vector<256x1xf32>
    %22 = vector.broadcast %21 : vector<256x1xf32> to vector<256x16xf32>
    %23 = arith.mulf %18, %22 : vector<256x16xf32>
    %c0_10 = arith.constant 0 : index
    %c0_11 = arith.constant 0 : index
    %24 = vector.load %arg4[%c0_10, %c0_11] : memref<1x16xf32, #tpu.memory_space<vmem>>, vector<1x16xf32>
    %25 = vector.broadcast %24 : vector<1x16xf32> to vector<256x16xf32>
    %26 = arith.mulf %23, %25 : vector<256x16xf32>
    %c0_12 = arith.constant 0 : index
    %c0_13 = arith.constant 0 : index
    %27 = vector.load %arg5[%c0_12, %c0_13] : memref<1x16xf32, #tpu.memory_space<vmem>>, vector<1x16xf32>
    %28 = vector.broadcast %27 : vector<1x16xf32> to vector<256x16xf32>
    %29 = arith.addf %26, %28 : vector<256x16xf32>
    %30 = arith.truncf %29 : vector<256x16xf32> to vector<256x16xbf16>
    %c0_14 = arith.constant 0 : index
    %c0_15 = arith.constant 0 : index
    %31 = vector.load %arg6[%c0_14, %c0_15] : memref<256x16xbf16, #tpu.memory_space<vmem>>, vector<256x16xbf16>
    tpu.vector_store %arg6[%c0_14, %c0_15], %30 {strides = array<i32>} : memref<256x16xbf16, #tpu.memory_space<vmem>>, vector<256x16xbf16>,
    return
  }
  func.func @transform_0(%arg0: i32) -> (i32, i32) {
    %c0_i32 = arith.constant 0 : i32
    %c0_i32_0 = arith.constant 0 : i32
    return %arg0, %c0_i32 : i32, i32
  }
  func.func @transform_1(%arg0: i32) -> (i32, i32) {
    %c0_i32 = arith.constant 0 : i32
    %c0_i32_0 = arith.constant 0 : i32
    %c0_i32_1 = arith.constant 0 : i32
    return %c0_i32, %c0_i32_0 : i32, i32
  }
  func.func @transform_2(%arg0: i32) -> (i32, i32) {
    %c0_i32 = arith.constant 0 : i32
    %c0_i32_0 = arith.constant 0 : i32
    %c0_i32_1 = arith.constant 0 : i32
    return %c0_i32, %c0_i32_0 : i32, i32
  }
  func.func @transform_3(%arg0: i32) -> (i32, i32) {
    %c0_i32 = arith.constant 0 : i32
    %c0_i32_0 = arith.constant 0 : i32
    %c0_i32_1 = arith.constant 0 : i32
    return %c0_i32, %c0_i32_0 : i32, i32
  }
  func.func @transform_4(%arg0: i32) -> (i32, i32) {
    %c0_i32 = arith.constant 0 : i32
    %c0_i32_0 = arith.constant 0 : i32
    %c0_i32_1 = arith.constant 0 : i32
    return %c0_i32, %c0_i32_0 : i32, i32
  }
  func.func @transform_5(%arg0: i32) -> (i32, i32) {
    %c0_i32 = arith.constant 0 : i32
    %c0_i32_0 = arith.constant 0 : i32
    return %arg0, %c0_i32 : i32, i32
  }
}

module attributes {stable_mosaic.version = 11 : i64} {
  func.func @_dual_mm_relu_kernel(%arg0: i32, %arg1: memref<4x128xbf16, #tpu.memory_space<vmem>>, %arg2: memref<4x128xbf16, #tpu.memory_space<vmem>>, %arg3: memref<128x128xbf16, #tpu.memory_space<vmem>>, %arg4: memref<128x128xbf16, #tpu.memory_space<vmem>>, %arg5: memref<1x128xf32, #tpu.memory_space<vmem>>, %arg6: memref<4x128xbf16, #tpu.memory_space<vmem>>) attributes {dimension_semantics = [#tpu.dimension_semantics<parallel>], iteration_bounds = array<i64: 1>, scalar_prefetch = 0 : i64, scratch_operands = 0 : i64, tpu.core_type = #tpu.core_type<tc>, window_params = [{transform_indices = @transform_0, window_bounds = array<i64: 4, 128>}, {transform_indices = @transform_1, window_bounds = array<i64: 4, 128>}, {pipeline_mode = #tpu.pipeline_mode<synchronous>, transform_indices = @transform_2, window_bounds = array<i64: 128, 128>}, {pipeline_mode = #tpu.pipeline_mode<synchronous>, transform_indices = @transform_3, window_bounds = array<i64: 128, 128>}, {pipeline_mode = #tpu.pipeline_mode<synchronous>, transform_indices = @transform_4, window_bounds = array<i64: 1, 128>}, {transform_indices = @transform_5, window_bounds = array<i64: 4, 128>}]} {
    %c0 = arith.constant 0 : index
    %c0_0 = arith.constant 0 : index
    %0 = vector.load %arg1[%c0, %c0_0] : memref<4x128xbf16, #tpu.memory_space<vmem>>, vector<4x128xbf16>
    %c0_1 = arith.constant 0 : index
    %c0_2 = arith.constant 0 : index
    %1 = vector.load %arg3[%c0_1, %c0_2] : memref<128x128xbf16, #tpu.memory_space<vmem>>, vector<128x128xbf16>
    %cst = arith.constant dense<0.000000e+00> : vector<4x128xf32>
    %2 = tpu.matmul %0, %1, %cst {dimension_numbers = #tpu.dot_dimension_numbers<[1], [0], [0], [1], [0, 0, 1, 1], [], []>} : vector<4x128xbf16>, vector<128x128xbf16>, vector<4x128xf32> -> vector<4x128xf32>
    %c0_3 = arith.constant 0 : index
    %c0_4 = arith.constant 0 : index
    %3 = vector.load %arg2[%c0_3, %c0_4] : memref<4x128xbf16, #tpu.memory_space<vmem>>, vector<4x128xbf16>
    %c0_5 = arith.constant 0 : index
    %c0_6 = arith.constant 0 : index
    %4 = vector.load %arg4[%c0_5, %c0_6] : memref<128x128xbf16, #tpu.memory_space<vmem>>, vector<128x128xbf16>
    %cst_7 = arith.constant dense<0.000000e+00> : vector<4x128xf32>
    %5 = tpu.matmul %3, %4, %cst_7 {dimension_numbers = #tpu.dot_dimension_numbers<[1], [0], [0], [1], [0, 0, 1, 1], [], []>} : vector<4x128xbf16>, vector<128x128xbf16>, vector<4x128xf32> -> vector<4x128xf32>
    %6 = arith.addf %2, %5 : vector<4x128xf32>
    %c0_8 = arith.constant 0 : index
    %c0_9 = arith.constant 0 : index
    %7 = vector.load %arg5[%c0_8, %c0_9] : memref<1x128xf32, #tpu.memory_space<vmem>>, vector<1x128xf32>
    %8 = vector.broadcast %7 : vector<1x128xf32> to vector<4x128xf32>
    %9 = arith.addf %6, %8 : vector<4x128xf32>
    %cst_10 = arith.constant 0.000000e+00 : f32
    %10 = vector.broadcast %cst_10 : f32 to vector<4x128xf32>
    %11 = arith.maximumf %9, %10 : vector<4x128xf32>
    %12 = arith.truncf %11 : vector<4x128xf32> to vector<4x128xbf16>
    %c0_11 = arith.constant 0 : index
    %c0_12 = arith.constant 0 : index
    %13 = vector.load %arg6[%c0_11, %c0_12] : memref<4x128xbf16, #tpu.memory_space<vmem>>, vector<4x128xbf16>
    tpu.vector_store %arg6[%c0_11, %c0_12], %12 {strides = array<i32>} : memref<4x128xbf16, #tpu.memory_space<vmem>>, vector<4x128xbf16>,
    return
  }
  func.func @transform_0(%arg0: i32) -> (i32, i32) {
    %c0_i32 = arith.constant 0 : i32
    %c0_i32_0 = arith.constant 0 : i32
    return %arg0, %c0_i32 : i32, i32
  }
  func.func @transform_1(%arg0: i32) -> (i32, i32) {
    %c0_i32 = arith.constant 0 : i32
    %c0_i32_0 = arith.constant 0 : i32
    return %arg0, %c0_i32 : i32, i32
  }
  func.func @transform_2(%arg0: i32) -> (i32, i32) {
    %c0_i32 = arith.constant 0 : i32
    %c0_i32_0 = arith.constant 0 : i32
    %c0_i32_1 = arith.constant 0 : i32
    return %c0_i32, %c0_i32_0 : i32, i32
  }
  func.func @transform_3(%arg0: i32) -> (i32, i32) {
    %c0_i32 = arith.constant 0 : i32
    %c0_i32_0 = arith.constant 0 : i32
    %c0_i32_1 = arith.constant 0 : i32
    return %c0_i32, %c0_i32_0 : i32, i32
  }
  func.func @transform_4(%arg0: i32) -> (i32, i32) {
    %c0_i32 = arith.constant 0 : i32
    %c0_i32_0 = arith.constant 0 : i32
    %c0_i32_1 = arith.constant 0 : i32
    return %c0_i32, %c0_i32_0 : i32, i32
  }
  func.func @transform_5(%arg0: i32) -> (i32, i32) {
    %c0_i32 = arith.constant 0 : i32
    %c0_i32_0 = arith.constant 0 : i32
    return %arg0, %c0_i32 : i32, i32
  }
}

module attributes {stable_mosaic.version = 11 : i64} {
  func.func @_dual_mm_relu_kernel(%arg0: i32, %arg1: memref<16x64xbf16, #tpu.memory_space<vmem>>, %arg2: memref<16x64xbf16, #tpu.memory_space<vmem>>, %arg3: memref<64x64xbf16, #tpu.memory_space<vmem>>, %arg4: memref<64x64xbf16, #tpu.memory_space<vmem>>, %arg5: memref<1x64xf32, #tpu.memory_space<vmem>>, %arg6: memref<16x64xbf16, #tpu.memory_space<vmem>>) attributes {dimension_semantics = [#tpu.dimension_semantics<parallel>], iteration_bounds = array<i64: 1>, scalar_prefetch = 0 : i64, scratch_operands = 0 : i64, tpu.core_type = #tpu.core_type<tc>, window_params = [{transform_indices = @transform_0, window_bounds = array<i64: 16, 64>}, {transform_indices = @transform_1, window_bounds = array<i64: 16, 64>}, {pipeline_mode = #tpu.pipeline_mode<synchronous>, transform_indices = @transform_2, window_bounds = array<i64: 64, 64>}, {pipeline_mode = #tpu.pipeline_mode<synchronous>, transform_indices = @transform_3, window_bounds = array<i64: 64, 64>}, {pipeline_mode = #tpu.pipeline_mode<synchronous>, transform_indices = @transform_4, window_bounds = array<i64: 1, 64>}, {transform_indices = @transform_5, window_bounds = array<i64: 16, 64>}]} {
    %c0 = arith.constant 0 : index
    %c0_0 = arith.constant 0 : index
    %0 = vector.load %arg1[%c0, %c0_0] : memref<16x64xbf16, #tpu.memory_space<vmem>>, vector<16x64xbf16>
    %c0_1 = arith.constant 0 : index
    %c0_2 = arith.constant 0 : index
    %1 = vector.load %arg3[%c0_1, %c0_2] : memref<64x64xbf16, #tpu.memory_space<vmem>>, vector<64x64xbf16>
    %cst = arith.constant dense<0.000000e+00> : vector<16x64xf32>
    %2 = tpu.matmul %0, %1, %cst {dimension_numbers = #tpu.dot_dimension_numbers<[1], [0], [0], [1], [0, 0, 1, 1], [], []>} : vector<16x64xbf16>, vector<64x64xbf16>, vector<16x64xf32> -> vector<16x64xf32>
    %c0_3 = arith.constant 0 : index
    %c0_4 = arith.constant 0 : index
    %3 = vector.load %arg2[%c0_3, %c0_4] : memref<16x64xbf16, #tpu.memory_space<vmem>>, vector<16x64xbf16>
    %c0_5 = arith.constant 0 : index
    %c0_6 = arith.constant 0 : index
    %4 = vector.load %arg4[%c0_5, %c0_6] : memref<64x64xbf16, #tpu.memory_space<vmem>>, vector<64x64xbf16>
    %cst_7 = arith.constant dense<0.000000e+00> : vector<16x64xf32>
    %5 = tpu.matmul %3, %4, %cst_7 {dimension_numbers = #tpu.dot_dimension_numbers<[1], [0], [0], [1], [0, 0, 1, 1], [], []>} : vector<16x64xbf16>, vector<64x64xbf16>, vector<16x64xf32> -> vector<16x64xf32>
    %6 = arith.addf %2, %5 : vector<16x64xf32>
    %c0_8 = arith.constant 0 : index
    %c0_9 = arith.constant 0 : index
    %7 = vector.load %arg5[%c0_8, %c0_9] : memref<1x64xf32, #tpu.memory_space<vmem>>, vector<1x64xf32>
    %8 = vector.broadcast %7 : vector<1x64xf32> to vector<16x64xf32>
    %9 = arith.addf %6, %8 : vector<16x64xf32>
    %cst_10 = arith.constant 0.000000e+00 : f32
    %10 = vector.broadcast %cst_10 : f32 to vector<16x64xf32>
    %11 = arith.maximumf %9, %10 : vector<16x64xf32>
    %12 = arith.truncf %11 : vector<16x64xf32> to vector<16x64xbf16>
    %c0_11 = arith.constant 0 : index
    %c0_12 = arith.constant 0 : index
    %13 = vector.load %arg6[%c0_11, %c0_12] : memref<16x64xbf16, #tpu.memory_space<vmem>>, vector<16x64xbf16>
    tpu.vector_store %arg6[%c0_11, %c0_12], %12 {strides = array<i32>} : memref<16x64xbf16, #tpu.memory_space<vmem>>, vector<16x64xbf16>,
    return
  }
  func.func @transform_0(%arg0: i32) -> (i32, i32) {
    %c0_i32 = arith.constant 0 : i32
    %c0_i32_0 = arith.constant 0 : i32
    return %arg0, %c0_i32 : i32, i32
  }
  func.func @transform_1(%arg0: i32) -> (i32, i32) {
    %c0_i32 = arith.constant 0 : i32
    %c0_i32_0 = arith.constant 0 : i32
    return %arg0, %c0_i32 : i32, i32
  }
  func.func @transform_2(%arg0: i32) -> (i32, i32) {
    %c0_i32 = arith.constant 0 : i32
    %c0_i32_0 = arith.constant 0 : i32
    %c0_i32_1 = arith.constant 0 : i32
    return %c0_i32, %c0_i32_0 : i32, i32
  }
  func.func @transform_3(%arg0: i32) -> (i32, i32) {
    %c0_i32 = arith.constant 0 : i32
    %c0_i32_0 = arith.constant 0 : i32
    %c0_i32_1 = arith.constant 0 : i32
    return %c0_i32, %c0_i32_0 : i32, i32
  }
  func.func @transform_4(%arg0: i32) -> (i32, i32) {
    %c0_i32 = arith.constant 0 : i32
    %c0_i32_0 = arith.constant 0 : i32
    %c0_i32_1 = arith.constant 0 : i32
    return %c0_i32, %c0_i32_0 : i32, i32
  }
  func.func @transform_5(%arg0: i32) -> (i32, i32) {
    %c0_i32 = arith.constant 0 : i32
    %c0_i32_0 = arith.constant 0 : i32
    return %arg0, %c0_i32 : i32, i32
  }
}

module attributes {stable_mosaic.version = 11 : i64} {
  func.func @_dual_mm_relu_kernel(%arg0: i32, %arg1: memref<2x128xbf16, #tpu.memory_space<vmem>>, %arg2: memref<2x128xbf16, #tpu.memory_space<vmem>>, %arg3: memref<128x64xbf16, #tpu.memory_space<vmem>>, %arg4: memref<128x64xbf16, #tpu.memory_space<vmem>>, %arg5: memref<1x64xf32, #tpu.memory_space<vmem>>, %arg6: memref<2x64xbf16, #tpu.memory_space<vmem>>) attributes {dimension_semantics = [#tpu.dimension_semantics<parallel>], iteration_bounds = array<i64: 1>, scalar_prefetch = 0 : i64, scratch_operands = 0 : i64, tpu.core_type = #tpu.core_type<tc>, window_params = [{transform_indices = @transform_0, window_bounds = array<i64: 2, 128>}, {transform_indices = @transform_1, window_bounds = array<i64: 2, 128>}, {pipeline_mode = #tpu.pipeline_mode<synchronous>, transform_indices = @transform_2, window_bounds = array<i64: 128, 64>}, {pipeline_mode = #tpu.pipeline_mode<synchronous>, transform_indices = @transform_3, window_bounds = array<i64: 128, 64>}, {pipeline_mode = #tpu.pipeline_mode<synchronous>, transform_indices = @transform_4, window_bounds = array<i64: 1, 64>}, {transform_indices = @transform_5, window_bounds = array<i64: 2, 64>}]} {
    %c0 = arith.constant 0 : index
    %c0_0 = arith.constant 0 : index
    %0 = vector.load %arg1[%c0, %c0_0] : memref<2x128xbf16, #tpu.memory_space<vmem>>, vector<2x128xbf16>
    %c0_1 = arith.constant 0 : index
    %c0_2 = arith.constant 0 : index
    %1 = vector.load %arg3[%c0_1, %c0_2] : memref<128x64xbf16, #tpu.memory_space<vmem>>, vector<128x64xbf16>
    %cst = arith.constant dense<0.000000e+00> : vector<2x64xf32>
    %2 = tpu.matmul %0, %1, %cst {dimension_numbers = #tpu.dot_dimension_numbers<[1], [0], [0], [1], [0, 0, 1, 1], [], []>} : vector<2x128xbf16>, vector<128x64xbf16>, vector<2x64xf32> -> vector<2x64xf32>
    %c0_3 = arith.constant 0 : index
    %c0_4 = arith.constant 0 : index
    %3 = vector.load %arg2[%c0_3, %c0_4] : memref<2x128xbf16, #tpu.memory_space<vmem>>, vector<2x128xbf16>
    %c0_5 = arith.constant 0 : index
    %c0_6 = arith.constant 0 : index
    %4 = vector.load %arg4[%c0_5, %c0_6] : memref<128x64xbf16, #tpu.memory_space<vmem>>, vector<128x64xbf16>
    %cst_7 = arith.constant dense<0.000000e+00> : vector<2x64xf32>
    %5 = tpu.matmul %3, %4, %cst_7 {dimension_numbers = #tpu.dot_dimension_numbers<[1], [0], [0], [1], [0, 0, 1, 1], [], []>} : vector<2x128xbf16>, vector<128x64xbf16>, vector<2x64xf32> -> vector<2x64xf32>
    %6 = arith.addf %2, %5 : vector<2x64xf32>
    %c0_8 = arith.constant 0 : index
    %c0_9 = arith.constant 0 : index
    %7 = vector.load %arg5[%c0_8, %c0_9] : memref<1x64xf32, #tpu.memory_space<vmem>>, vector<1x64xf32>
    %8 = vector.broadcast %7 : vector<1x64xf32> to vector<2x64xf32>
    %9 = arith.addf %6, %8 : vector<2x64xf32>
    %cst_10 = arith.constant 0.000000e+00 : f32
    %10 = vector.broadcast %cst_10 : f32 to vector<2x64xf32>
    %11 = arith.maximumf %9, %10 : vector<2x64xf32>
    %12 = arith.truncf %11 : vector<2x64xf32> to vector<2x64xbf16>
    %c0_11 = arith.constant 0 : index
    %c0_12 = arith.constant 0 : index
    %13 = vector.load %arg6[%c0_11, %c0_12] : memref<2x64xbf16, #tpu.memory_space<vmem>>, vector<2x64xbf16>
    tpu.vector_store %arg6[%c0_11, %c0_12], %12 {strides = array<i32>} : memref<2x64xbf16, #tpu.memory_space<vmem>>, vector<2x64xbf16>,
    return
  }
  func.func @transform_0(%arg0: i32) -> (i32, i32) {
    %c0_i32 = arith.constant 0 : i32
    %c0_i32_0 = arith.constant 0 : i32
    return %arg0, %c0_i32 : i32, i32
  }
  func.func @transform_1(%arg0: i32) -> (i32, i32) {
    %c0_i32 = arith.constant 0 : i32
    %c0_i32_0 = arith.constant 0 : i32
    return %arg0, %c0_i32 : i32, i32
  }
  func.func @transform_2(%arg0: i32) -> (i32, i32) {
    %c0_i32 = arith.constant 0 : i32
    %c0_i32_0 = arith.constant 0 : i32
    %c0_i32_1 = arith.constant 0 : i32
    return %c0_i32, %c0_i32_0 : i32, i32
  }
  func.func @transform_3(%arg0: i32) -> (i32, i32) {
    %c0_i32 = arith.constant 0 : i32
    %c0_i32_0 = arith.constant 0 : i32
    %c0_i32_1 = arith.constant 0 : i32
    return %c0_i32, %c0_i32_0 : i32, i32
  }
  func.func @transform_4(%arg0: i32) -> (i32, i32) {
    %c0_i32 = arith.constant 0 : i32
    %c0_i32_0 = arith.constant 0 : i32
    %c0_i32_1 = arith.constant 0 : i32
    return %c0_i32, %c0_i32_0 : i32, i32
  }
  func.func @transform_5(%arg0: i32) -> (i32, i32) {
    %c0_i32 = arith.constant 0 : i32
    %c0_i32_0 = arith.constant 0 : i32
    return %arg0, %c0_i32 : i32, i32
  }
}

module attributes {stable_mosaic.version = 11 : i64} {
  func.func @_dual_mm_relu_kernel(%arg0: i32, %arg1: memref<8x64xbf16, #tpu.memory_space<vmem>>, %arg2: memref<8x64xbf16, #tpu.memory_space<vmem>>, %arg3: memref<64x64xbf16, #tpu.memory_space<vmem>>, %arg4: memref<64x64xbf16, #tpu.memory_space<vmem>>, %arg5: memref<1x64xf32, #tpu.memory_space<vmem>>, %arg6: memref<8x64xbf16, #tpu.memory_space<vmem>>) attributes {dimension_semantics = [#tpu.dimension_semantics<parallel>], iteration_bounds = array<i64: 1>, scalar_prefetch = 0 : i64, scratch_operands = 0 : i64, tpu.core_type = #tpu.core_type<tc>, window_params = [{transform_indices = @transform_0, window_bounds = array<i64: 8, 64>}, {transform_indices = @transform_1, window_bounds = array<i64: 8, 64>}, {pipeline_mode = #tpu.pipeline_mode<synchronous>, transform_indices = @transform_2, window_bounds = array<i64: 64, 64>}, {pipeline_mode = #tpu.pipeline_mode<synchronous>, transform_indices = @transform_3, window_bounds = array<i64: 64, 64>}, {pipeline_mode = #tpu.pipeline_mode<synchronous>, transform_indices = @transform_4, window_bounds = array<i64: 1, 64>}, {transform_indices = @transform_5, window_bounds = array<i64: 8, 64>}]} {
    %c0 = arith.constant 0 : index
    %c0_0 = arith.constant 0 : index
    %0 = vector.load %arg1[%c0, %c0_0] : memref<8x64xbf16, #tpu.memory_space<vmem>>, vector<8x64xbf16>
    %c0_1 = arith.constant 0 : index
    %c0_2 = arith.constant 0 : index
    %1 = vector.load %arg3[%c0_1, %c0_2] : memref<64x64xbf16, #tpu.memory_space<vmem>>, vector<64x64xbf16>
    %cst = arith.constant dense<0.000000e+00> : vector<8x64xf32>
    %2 = tpu.matmul %0, %1, %cst {dimension_numbers = #tpu.dot_dimension_numbers<[1], [0], [0], [1], [0, 0, 1, 1], [], []>} : vector<8x64xbf16>, vector<64x64xbf16>, vector<8x64xf32> -> vector<8x64xf32>
    %c0_3 = arith.constant 0 : index
    %c0_4 = arith.constant 0 : index
    %3 = vector.load %arg2[%c0_3, %c0_4] : memref<8x64xbf16, #tpu.memory_space<vmem>>, vector<8x64xbf16>
    %c0_5 = arith.constant 0 : index
    %c0_6 = arith.constant 0 : index
    %4 = vector.load %arg4[%c0_5, %c0_6] : memref<64x64xbf16, #tpu.memory_space<vmem>>, vector<64x64xbf16>
    %cst_7 = arith.constant dense<0.000000e+00> : vector<8x64xf32>
    %5 = tpu.matmul %3, %4, %cst_7 {dimension_numbers = #tpu.dot_dimension_numbers<[1], [0], [0], [1], [0, 0, 1, 1], [], []>} : vector<8x64xbf16>, vector<64x64xbf16>, vector<8x64xf32> -> vector<8x64xf32>
    %6 = arith.addf %2, %5 : vector<8x64xf32>
    %c0_8 = arith.constant 0 : index
    %c0_9 = arith.constant 0 : index
    %7 = vector.load %arg5[%c0_8, %c0_9] : memref<1x64xf32, #tpu.memory_space<vmem>>, vector<1x64xf32>
    %8 = vector.broadcast %7 : vector<1x64xf32> to vector<8x64xf32>
    %9 = arith.addf %6, %8 : vector<8x64xf32>
    %cst_10 = arith.constant 0.000000e+00 : f32
    %10 = vector.broadcast %cst_10 : f32 to vector<8x64xf32>
    %11 = arith.maximumf %9, %10 : vector<8x64xf32>
    %12 = arith.truncf %11 : vector<8x64xf32> to vector<8x64xbf16>
    %c0_11 = arith.constant 0 : index
    %c0_12 = arith.constant 0 : index
    %13 = vector.load %arg6[%c0_11, %c0_12] : memref<8x64xbf16, #tpu.memory_space<vmem>>, vector<8x64xbf16>
    tpu.vector_store %arg6[%c0_11, %c0_12], %12 {strides = array<i32>} : memref<8x64xbf16, #tpu.memory_space<vmem>>, vector<8x64xbf16>,
    return
  }
  func.func @transform_0(%arg0: i32) -> (i32, i32) {
    %c0_i32 = arith.constant 0 : i32
    %c0_i32_0 = arith.constant 0 : i32
    return %arg0, %c0_i32 : i32, i32
  }
  func.func @transform_1(%arg0: i32) -> (i32, i32) {
    %c0_i32 = arith.constant 0 : i32
    %c0_i32_0 = arith.constant 0 : i32
    return %arg0, %c0_i32 : i32, i32
  }
  func.func @transform_2(%arg0: i32) -> (i32, i32) {
    %c0_i32 = arith.constant 0 : i32
    %c0_i32_0 = arith.constant 0 : i32
    %c0_i32_1 = arith.constant 0 : i32
    return %c0_i32, %c0_i32_0 : i32, i32
  }
  func.func @transform_3(%arg0: i32) -> (i32, i32) {
    %c0_i32 = arith.constant 0 : i32
    %c0_i32_0 = arith.constant 0 : i32
    %c0_i32_1 = arith.constant 0 : i32
    return %c0_i32, %c0_i32_0 : i32, i32
  }
  func.func @transform_4(%arg0: i32) -> (i32, i32) {
    %c0_i32 = arith.constant 0 : i32
    %c0_i32_0 = arith.constant 0 : i32
    %c0_i32_1 = arith.constant 0 : i32
    return %c0_i32, %c0_i32_0 : i32, i32
  }
  func.func @transform_5(%arg0: i32) -> (i32, i32) {
    %c0_i32 = arith.constant 0 : i32
    %c0_i32_0 = arith.constant 0 : i32
    return %arg0, %c0_i32 : i32, i32
  }
}

module attributes {stable_mosaic.version = 11 : i64} {
  func.func @_dual_mm_relu_kernel(%arg0: i32, %arg1: memref<64x32xbf16, #tpu.memory_space<vmem>>, %arg2: memref<64x32xbf16, #tpu.memory_space<vmem>>, %arg3: memref<32x32xbf16, #tpu.memory_space<vmem>>, %arg4: memref<32x32xbf16, #tpu.memory_space<vmem>>, %arg5: memref<1x32xf32, #tpu.memory_space<vmem>>, %arg6: memref<64x32xbf16, #tpu.memory_space<vmem>>) attributes {dimension_semantics = [#tpu.dimension_semantics<parallel>], iteration_bounds = array<i64: 1>, scalar_prefetch = 0 : i64, scratch_operands = 0 : i64, tpu.core_type = #tpu.core_type<tc>, window_params = [{transform_indices = @transform_0, window_bounds = array<i64: 64, 32>}, {transform_indices = @transform_1, window_bounds = array<i64: 64, 32>}, {pipeline_mode = #tpu.pipeline_mode<synchronous>, transform_indices = @transform_2, window_bounds = array<i64: 32, 32>}, {pipeline_mode = #tpu.pipeline_mode<synchronous>, transform_indices = @transform_3, window_bounds = array<i64: 32, 32>}, {pipeline_mode = #tpu.pipeline_mode<synchronous>, transform_indices = @transform_4, window_bounds = array<i64: 1, 32>}, {transform_indices = @transform_5, window_bounds = array<i64: 64, 32>}]} {
    %c0 = arith.constant 0 : index
    %c0_0 = arith.constant 0 : index
    %0 = vector.load %arg1[%c0, %c0_0] : memref<64x32xbf16, #tpu.memory_space<vmem>>, vector<64x32xbf16>
    %c0_1 = arith.constant 0 : index
    %c0_2 = arith.constant 0 : index
    %1 = vector.load %arg3[%c0_1, %c0_2] : memref<32x32xbf16, #tpu.memory_space<vmem>>, vector<32x32xbf16>
    %cst = arith.constant dense<0.000000e+00> : vector<64x32xf32>
    %2 = tpu.matmul %0, %1, %cst {dimension_numbers = #tpu.dot_dimension_numbers<[1], [0], [0], [1], [0, 0, 1, 1], [], []>} : vector<64x32xbf16>, vector<32x32xbf16>, vector<64x32xf32> -> vector<64x32xf32>
    %c0_3 = arith.constant 0 : index
    %c0_4 = arith.constant 0 : index
    %3 = vector.load %arg2[%c0_3, %c0_4] : memref<64x32xbf16, #tpu.memory_space<vmem>>, vector<64x32xbf16>
    %c0_5 = arith.constant 0 : index
    %c0_6 = arith.constant 0 : index
    %4 = vector.load %arg4[%c0_5, %c0_6] : memref<32x32xbf16, #tpu.memory_space<vmem>>, vector<32x32xbf16>
    %cst_7 = arith.constant dense<0.000000e+00> : vector<64x32xf32>
    %5 = tpu.matmul %3, %4, %cst_7 {dimension_numbers = #tpu.dot_dimension_numbers<[1], [0], [0], [1], [0, 0, 1, 1], [], []>} : vector<64x32xbf16>, vector<32x32xbf16>, vector<64x32xf32> -> vector<64x32xf32>
    %6 = arith.addf %2, %5 : vector<64x32xf32>
    %c0_8 = arith.constant 0 : index
    %c0_9 = arith.constant 0 : index
    %7 = vector.load %arg5[%c0_8, %c0_9] : memref<1x32xf32, #tpu.memory_space<vmem>>, vector<1x32xf32>
    %8 = vector.broadcast %7 : vector<1x32xf32> to vector<64x32xf32>
    %9 = arith.addf %6, %8 : vector<64x32xf32>
    %cst_10 = arith.constant 0.000000e+00 : f32
    %10 = vector.broadcast %cst_10 : f32 to vector<64x32xf32>
    %11 = arith.maximumf %9, %10 : vector<64x32xf32>
    %12 = arith.truncf %11 : vector<64x32xf32> to vector<64x32xbf16>
    %c0_11 = arith.constant 0 : index
    %c0_12 = arith.constant 0 : index
    %13 = vector.load %arg6[%c0_11, %c0_12] : memref<64x32xbf16, #tpu.memory_space<vmem>>, vector<64x32xbf16>
    tpu.vector_store %arg6[%c0_11, %c0_12], %12 {strides = array<i32>} : memref<64x32xbf16, #tpu.memory_space<vmem>>, vector<64x32xbf16>,
    return
  }
  func.func @transform_0(%arg0: i32) -> (i32, i32) {
    %c0_i32 = arith.constant 0 : i32
    %c0_i32_0 = arith.constant 0 : i32
    return %arg0, %c0_i32 : i32, i32
  }
  func.func @transform_1(%arg0: i32) -> (i32, i32) {
    %c0_i32 = arith.constant 0 : i32
    %c0_i32_0 = arith.constant 0 : i32
    return %arg0, %c0_i32 : i32, i32
  }
  func.func @transform_2(%arg0: i32) -> (i32, i32) {
    %c0_i32 = arith.constant 0 : i32
    %c0_i32_0 = arith.constant 0 : i32
    %c0_i32_1 = arith.constant 0 : i32
    return %c0_i32, %c0_i32_0 : i32, i32
  }
  func.func @transform_3(%arg0: i32) -> (i32, i32) {
    %c0_i32 = arith.constant 0 : i32
    %c0_i32_0 = arith.constant 0 : i32
    %c0_i32_1 = arith.constant 0 : i32
    return %c0_i32, %c0_i32_0 : i32, i32
  }
  func.func @transform_4(%arg0: i32) -> (i32, i32) {
    %c0_i32 = arith.constant 0 : i32
    %c0_i32_0 = arith.constant 0 : i32
    %c0_i32_1 = arith.constant 0 : i32
    return %c0_i32, %c0_i32_0 : i32, i32
  }
  func.func @transform_5(%arg0: i32) -> (i32, i32) {
    %c0_i32 = arith.constant 0 : i32
    %c0_i32_0 = arith.constant 0 : i32
    return %arg0, %c0_i32 : i32, i32
  }
}

module attributes {stable_mosaic.version = 11 : i64} {
  func.func @_dual_mm_relu_kernel(%arg0: i32, %arg1: memref<32x32xbf16, #tpu.memory_space<vmem>>, %arg2: memref<32x32xbf16, #tpu.memory_space<vmem>>, %arg3: memref<32x64xbf16, #tpu.memory_space<vmem>>, %arg4: memref<32x64xbf16, #tpu.memory_space<vmem>>, %arg5: memref<1x64xf32, #tpu.memory_space<vmem>>, %arg6: memref<32x64xbf16, #tpu.memory_space<vmem>>) attributes {dimension_semantics = [#tpu.dimension_semantics<parallel>], iteration_bounds = array<i64: 1>, scalar_prefetch = 0 : i64, scratch_operands = 0 : i64, tpu.core_type = #tpu.core_type<tc>, window_params = [{transform_indices = @transform_0, window_bounds = array<i64: 32, 32>}, {transform_indices = @transform_1, window_bounds = array<i64: 32, 32>}, {pipeline_mode = #tpu.pipeline_mode<synchronous>, transform_indices = @transform_2, window_bounds = array<i64: 32, 64>}, {pipeline_mode = #tpu.pipeline_mode<synchronous>, transform_indices = @transform_3, window_bounds = array<i64: 32, 64>}, {pipeline_mode = #tpu.pipeline_mode<synchronous>, transform_indices = @transform_4, window_bounds = array<i64: 1, 64>}, {transform_indices = @transform_5, window_bounds = array<i64: 32, 64>}]} {
    %c0 = arith.constant 0 : index
    %c0_0 = arith.constant 0 : index
    %0 = vector.load %arg1[%c0, %c0_0] : memref<32x32xbf16, #tpu.memory_space<vmem>>, vector<32x32xbf16>
    %c0_1 = arith.constant 0 : index
    %c0_2 = arith.constant 0 : index
    %1 = vector.load %arg3[%c0_1, %c0_2] : memref<32x64xbf16, #tpu.memory_space<vmem>>, vector<32x64xbf16>
    %cst = arith.constant dense<0.000000e+00> : vector<32x64xf32>
    %2 = tpu.matmul %0, %1, %cst {dimension_numbers = #tpu.dot_dimension_numbers<[1], [0], [0], [1], [0, 0, 1, 1], [], []>} : vector<32x32xbf16>, vector<32x64xbf16>, vector<32x64xf32> -> vector<32x64xf32>
    %c0_3 = arith.constant 0 : index
    %c0_4 = arith.constant 0 : index
    %3 = vector.load %arg2[%c0_3, %c0_4] : memref<32x32xbf16, #tpu.memory_space<vmem>>, vector<32x32xbf16>
    %c0_5 = arith.constant 0 : index
    %c0_6 = arith.constant 0 : index
    %4 = vector.load %arg4[%c0_5, %c0_6] : memref<32x64xbf16, #tpu.memory_space<vmem>>, vector<32x64xbf16>
    %cst_7 = arith.constant dense<0.000000e+00> : vector<32x64xf32>
    %5 = tpu.matmul %3, %4, %cst_7 {dimension_numbers = #tpu.dot_dimension_numbers<[1], [0], [0], [1], [0, 0, 1, 1], [], []>} : vector<32x32xbf16>, vector<32x64xbf16>, vector<32x64xf32> -> vector<32x64xf32>
    %6 = arith.addf %2, %5 : vector<32x64xf32>
    %c0_8 = arith.constant 0 : index
    %c0_9 = arith.constant 0 : index
    %7 = vector.load %arg5[%c0_8, %c0_9] : memref<1x64xf32, #tpu.memory_space<vmem>>, vector<1x64xf32>
    %8 = vector.broadcast %7 : vector<1x64xf32> to vector<32x64xf32>
    %9 = arith.addf %6, %8 : vector<32x64xf32>
    %cst_10 = arith.constant 0.000000e+00 : f32
    %10 = vector.broadcast %cst_10 : f32 to vector<32x64xf32>
    %11 = arith.maximumf %9, %10 : vector<32x64xf32>
    %12 = arith.truncf %11 : vector<32x64xf32> to vector<32x64xbf16>
    %c0_11 = arith.constant 0 : index
    %c0_12 = arith.constant 0 : index
    %13 = vector.load %arg6[%c0_11, %c0_12] : memref<32x64xbf16, #tpu.memory_space<vmem>>, vector<32x64xbf16>
    tpu.vector_store %arg6[%c0_11, %c0_12], %12 {strides = array<i32>} : memref<32x64xbf16, #tpu.memory_space<vmem>>, vector<32x64xbf16>,
    return
  }
  func.func @transform_0(%arg0: i32) -> (i32, i32) {
    %c0_i32 = arith.constant 0 : i32
    %c0_i32_0 = arith.constant 0 : i32
    return %arg0, %c0_i32 : i32, i32
  }
  func.func @transform_1(%arg0: i32) -> (i32, i32) {
    %c0_i32 = arith.constant 0 : i32
    %c0_i32_0 = arith.constant 0 : i32
    return %arg0, %c0_i32 : i32, i32
  }
  func.func @transform_2(%arg0: i32) -> (i32, i32) {
    %c0_i32 = arith.constant 0 : i32
    %c0_i32_0 = arith.constant 0 : i32
    %c0_i32_1 = arith.constant 0 : i32
    return %c0_i32, %c0_i32_0 : i32, i32
  }
  func.func @transform_3(%arg0: i32) -> (i32, i32) {
    %c0_i32 = arith.constant 0 : i32
    %c0_i32_0 = arith.constant 0 : i32
    %c0_i32_1 = arith.constant 0 : i32
    return %c0_i32, %c0_i32_0 : i32, i32
  }
  func.func @transform_4(%arg0: i32) -> (i32, i32) {
    %c0_i32 = arith.constant 0 : i32
    %c0_i32_0 = arith.constant 0 : i32
    %c0_i32_1 = arith.constant 0 : i32
    return %c0_i32, %c0_i32_0 : i32, i32
  }
  func.func @transform_5(%arg0: i32) -> (i32, i32) {
    %c0_i32 = arith.constant 0 : i32
    %c0_i32_0 = arith.constant 0 : i32
    return %arg0, %c0_i32 : i32, i32
  }
}

module attributes {stable_mosaic.version = 11 : i64} {
  func.func @_dual_mm_relu_kernel(%arg0: i32, %arg1: memref<128x16xbf16, #tpu.memory_space<vmem>>, %arg2: memref<128x16xbf16, #tpu.memory_space<vmem>>, %arg3: memref<16x64xbf16, #tpu.memory_space<vmem>>, %arg4: memref<16x64xbf16, #tpu.memory_space<vmem>>, %arg5: memref<1x64xf32, #tpu.memory_space<vmem>>, %arg6: memref<128x64xbf16, #tpu.memory_space<vmem>>) attributes {dimension_semantics = [#tpu.dimension_semantics<parallel>], iteration_bounds = array<i64: 1>, scalar_prefetch = 0 : i64, scratch_operands = 0 : i64, tpu.core_type = #tpu.core_type<tc>, window_params = [{transform_indices = @transform_0, window_bounds = array<i64: 128, 16>}, {transform_indices = @transform_1, window_bounds = array<i64: 128, 16>}, {pipeline_mode = #tpu.pipeline_mode<synchronous>, transform_indices = @transform_2, window_bounds = array<i64: 16, 64>}, {pipeline_mode = #tpu.pipeline_mode<synchronous>, transform_indices = @transform_3, window_bounds = array<i64: 16, 64>}, {pipeline_mode = #tpu.pipeline_mode<synchronous>, transform_indices = @transform_4, window_bounds = array<i64: 1, 64>}, {transform_indices = @transform_5, window_bounds = array<i64: 128, 64>}]} {
    %c0 = arith.constant 0 : index
    %c0_0 = arith.constant 0 : index
    %0 = vector.load %arg1[%c0, %c0_0] : memref<128x16xbf16, #tpu.memory_space<vmem>>, vector<128x16xbf16>
    %c0_1 = arith.constant 0 : index
    %c0_2 = arith.constant 0 : index
    %1 = vector.load %arg3[%c0_1, %c0_2] : memref<16x64xbf16, #tpu.memory_space<vmem>>, vector<16x64xbf16>
    %cst = arith.constant dense<0.000000e+00> : vector<128x64xf32>
    %2 = tpu.matmul %0, %1, %cst {dimension_numbers = #tpu.dot_dimension_numbers<[1], [0], [0], [1], [0, 0, 1, 1], [], []>} : vector<128x16xbf16>, vector<16x64xbf16>, vector<128x64xf32> -> vector<128x64xf32>
    %c0_3 = arith.constant 0 : index
    %c0_4 = arith.constant 0 : index
    %3 = vector.load %arg2[%c0_3, %c0_4] : memref<128x16xbf16, #tpu.memory_space<vmem>>, vector<128x16xbf16>
    %c0_5 = arith.constant 0 : index
    %c0_6 = arith.constant 0 : index
    %4 = vector.load %arg4[%c0_5, %c0_6] : memref<16x64xbf16, #tpu.memory_space<vmem>>, vector<16x64xbf16>
    %cst_7 = arith.constant dense<0.000000e+00> : vector<128x64xf32>
    %5 = tpu.matmul %3, %4, %cst_7 {dimension_numbers = #tpu.dot_dimension_numbers<[1], [0], [0], [1], [0, 0, 1, 1], [], []>} : vector<128x16xbf16>, vector<16x64xbf16>, vector<128x64xf32> -> vector<128x64xf32>
    %6 = arith.addf %2, %5 : vector<128x64xf32>
    %c0_8 = arith.constant 0 : index
    %c0_9 = arith.constant 0 : index
    %7 = vector.load %arg5[%c0_8, %c0_9] : memref<1x64xf32, #tpu.memory_space<vmem>>, vector<1x64xf32>
    %8 = vector.broadcast %7 : vector<1x64xf32> to vector<128x64xf32>
    %9 = arith.addf %6, %8 : vector<128x64xf32>
    %cst_10 = arith.constant 0.000000e+00 : f32
    %10 = vector.broadcast %cst_10 : f32 to vector<128x64xf32>
    %11 = arith.maximumf %9, %10 : vector<128x64xf32>
    %12 = arith.truncf %11 : vector<128x64xf32> to vector<128x64xbf16>
    %c0_11 = arith.constant 0 : index
    %c0_12 = arith.constant 0 : index
    %13 = vector.load %arg6[%c0_11, %c0_12] : memref<128x64xbf16, #tpu.memory_space<vmem>>, vector<128x64xbf16>
    tpu.vector_store %arg6[%c0_11, %c0_12], %12 {strides = array<i32>} : memref<128x64xbf16, #tpu.memory_space<vmem>>, vector<128x64xbf16>,
    return
  }
  func.func @transform_0(%arg0: i32) -> (i32, i32) {
    %c0_i32 = arith.constant 0 : i32
    %c0_i32_0 = arith.constant 0 : i32
    return %arg0, %c0_i32 : i32, i32
  }
  func.func @transform_1(%arg0: i32) -> (i32, i32) {
    %c0_i32 = arith.constant 0 : i32
    %c0_i32_0 = arith.constant 0 : i32
    return %arg0, %c0_i32 : i32, i32
  }
  func.func @transform_2(%arg0: i32) -> (i32, i32) {
    %c0_i32 = arith.constant 0 : i32
    %c0_i32_0 = arith.constant 0 : i32
    %c0_i32_1 = arith.constant 0 : i32
    return %c0_i32, %c0_i32_0 : i32, i32
  }
  func.func @transform_3(%arg0: i32) -> (i32, i32) {
    %c0_i32 = arith.constant 0 : i32
    %c0_i32_0 = arith.constant 0 : i32
    %c0_i32_1 = arith.constant 0 : i32
    return %c0_i32, %c0_i32_0 : i32, i32
  }
  func.func @transform_4(%arg0: i32) -> (i32, i32) {
    %c0_i32 = arith.constant 0 : i32
    %c0_i32_0 = arith.constant 0 : i32
    %c0_i32_1 = arith.constant 0 : i32
    return %c0_i32, %c0_i32_0 : i32, i32
  }
  func.func @transform_5(%arg0: i32) -> (i32, i32) {
    %c0_i32 = arith.constant 0 : i32
    %c0_i32_0 = arith.constant 0 : i32
    return %arg0, %c0_i32 : i32, i32
  }
}

module attributes {stable_mosaic.version = 11 : i64} {
  func.func @_dual_mm_relu_kernel(%arg0: i32, %arg1: memref<256x16xbf16, #tpu.memory_space<vmem>>, %arg2: memref<256x16xbf16, #tpu.memory_space<vmem>>, %arg3: memref<16x16xbf16, #tpu.memory_space<vmem>>, %arg4: memref<16x16xbf16, #tpu.memory_space<vmem>>, %arg5: memref<1x16xf32, #tpu.memory_space<vmem>>, %arg6: memref<256x16xbf16, #tpu.memory_space<vmem>>) attributes {dimension_semantics = [#tpu.dimension_semantics<parallel>], iteration_bounds = array<i64: 1>, scalar_prefetch = 0 : i64, scratch_operands = 0 : i64, tpu.core_type = #tpu.core_type<tc>, window_params = [{transform_indices = @transform_0, window_bounds = array<i64: 256, 16>}, {transform_indices = @transform_1, window_bounds = array<i64: 256, 16>}, {pipeline_mode = #tpu.pipeline_mode<synchronous>, transform_indices = @transform_2, window_bounds = array<i64: 16, 16>}, {pipeline_mode = #tpu.pipeline_mode<synchronous>, transform_indices = @transform_3, window_bounds = array<i64: 16, 16>}, {pipeline_mode = #tpu.pipeline_mode<synchronous>, transform_indices = @transform_4, window_bounds = array<i64: 1, 16>}, {transform_indices = @transform_5, window_bounds = array<i64: 256, 16>}]} {
    %c0 = arith.constant 0 : index
    %c0_0 = arith.constant 0 : index
    %0 = vector.load %arg1[%c0, %c0_0] : memref<256x16xbf16, #tpu.memory_space<vmem>>, vector<256x16xbf16>
    %c0_1 = arith.constant 0 : index
    %c0_2 = arith.constant 0 : index
    %1 = vector.load %arg3[%c0_1, %c0_2] : memref<16x16xbf16, #tpu.memory_space<vmem>>, vector<16x16xbf16>
    %cst = arith.constant dense<0.000000e+00> : vector<256x16xf32>
    %2 = tpu.matmul %0, %1, %cst {dimension_numbers = #tpu.dot_dimension_numbers<[1], [0], [0], [1], [0, 0, 1, 1], [], []>} : vector<256x16xbf16>, vector<16x16xbf16>, vector<256x16xf32> -> vector<256x16xf32>
    %c0_3 = arith.constant 0 : index
    %c0_4 = arith.constant 0 : index
    %3 = vector.load %arg2[%c0_3, %c0_4] : memref<256x16xbf16, #tpu.memory_space<vmem>>, vector<256x16xbf16>
    %c0_5 = arith.constant 0 : index
    %c0_6 = arith.constant 0 : index
    %4 = vector.load %arg4[%c0_5, %c0_6] : memref<16x16xbf16, #tpu.memory_space<vmem>>, vector<16x16xbf16>
    %cst_7 = arith.constant dense<0.000000e+00> : vector<256x16xf32>
    %5 = tpu.matmul %3, %4, %cst_7 {dimension_numbers = #tpu.dot_dimension_numbers<[1], [0], [0], [1], [0, 0, 1, 1], [], []>} : vector<256x16xbf16>, vector<16x16xbf16>, vector<256x16xf32> -> vector<256x16xf32>
    %6 = arith.addf %2, %5 : vector<256x16xf32>
    %c0_8 = arith.constant 0 : index
    %c0_9 = arith.constant 0 : index
    %7 = vector.load %arg5[%c0_8, %c0_9] : memref<1x16xf32, #tpu.memory_space<vmem>>, vector<1x16xf32>
    %8 = vector.broadcast %7 : vector<1x16xf32> to vector<256x16xf32>
    %9 = arith.addf %6, %8 : vector<256x16xf32>
    %cst_10 = arith.constant 0.000000e+00 : f32
    %10 = vector.broadcast %cst_10 : f32 to vector<256x16xf32>
    %11 = arith.maximumf %9, %10 : vector<256x16xf32>
    %12 = arith.truncf %11 : vector<256x16xf32> to vector<256x16xbf16>
    %c0_11 = arith.constant 0 : index
    %c0_12 = arith.constant 0 : index
    %13 = vector.load %arg6[%c0_11, %c0_12] : memref<256x16xbf16, #tpu.memory_space<vmem>>, vector<256x16xbf16>
    tpu.vector_store %arg6[%c0_11, %c0_12], %12 {strides = array<i32>} : memref<256x16xbf16, #tpu.memory_space<vmem>>, vector<256x16xbf16>,
    return
  }
  func.func @transform_0(%arg0: i32) -> (i32, i32) {
    %c0_i32 = arith.constant 0 : i32
    %c0_i32_0 = arith.constant 0 : i32
    return %arg0, %c0_i32 : i32, i32
  }
  func.func @transform_1(%arg0: i32) -> (i32, i32) {
    %c0_i32 = arith.constant 0 : i32
    %c0_i32_0 = arith.constant 0 : i32
    return %arg0, %c0_i32 : i32, i32
  }
  func.func @transform_2(%arg0: i32) -> (i32, i32) {
    %c0_i32 = arith.constant 0 : i32
    %c0_i32_0 = arith.constant 0 : i32
    %c0_i32_1 = arith.constant 0 : i32
    return %c0_i32, %c0_i32_0 : i32, i32
  }
  func.func @transform_3(%arg0: i32) -> (i32, i32) {
    %c0_i32 = arith.constant 0 : i32
    %c0_i32_0 = arith.constant 0 : i32
    %c0_i32_1 = arith.constant 0 : i32
    return %c0_i32, %c0_i32_0 : i32, i32
  }
  func.func @transform_4(%arg0: i32) -> (i32, i32) {
    %c0_i32 = arith.constant 0 : i32
    %c0_i32_0 = arith.constant 0 : i32
    %c0_i32_1 = arith.constant 0 : i32
    return %c0_i32, %c0_i32_0 : i32, i32
  }
  func.func @transform_5(%arg0: i32) -> (i32, i32) {
    %c0_i32 = arith.constant 0 : i32
    %c0_i32_0 = arith.constant 0 : i32
    return %arg0, %c0_i32 : i32, i32
  }
}

module attributes {stable_mosaic.version = 11 : i64} {
  func.func @_mm_kernel(%arg0: i32, %arg1: memref<128x64xbf16, #tpu.memory_space<vmem>>, %arg2: memref<64x2xbf16, #tpu.memory_space<vmem>>, %arg3: memref<1x2xf32, #tpu.memory_space<vmem>>, %arg4: memref<128x2xbf16, #tpu.memory_space<vmem>>) attributes {dimension_semantics = [#tpu.dimension_semantics<parallel>], iteration_bounds = array<i64: 1>, scalar_prefetch = 0 : i64, scratch_operands = 0 : i64, tpu.core_type = #tpu.core_type<tc>, window_params = [{transform_indices = @transform_0, window_bounds = array<i64: 128, 64>}, {pipeline_mode = #tpu.pipeline_mode<synchronous>, transform_indices = @transform_1, window_bounds = array<i64: 64, 2>}, {pipeline_mode = #tpu.pipeline_mode<synchronous>, transform_indices = @transform_2, window_bounds = array<i64: 1, 2>}, {transform_indices = @transform_3, window_bounds = array<i64: 128, 2>}]} {
    %c0 = arith.constant 0 : index
    %c0_0 = arith.constant 0 : index
    %0 = vector.load %arg1[%c0, %c0_0] : memref<128x64xbf16, #tpu.memory_space<vmem>>, vector<128x64xbf16>
    %c0_1 = arith.constant 0 : index
    %c0_2 = arith.constant 0 : index
    %1 = vector.load %arg2[%c0_1, %c0_2] : memref<64x2xbf16, #tpu.memory_space<vmem>>, vector<64x2xbf16>
    %cst = arith.constant dense<0.000000e+00> : vector<128x2xf32>
    %2 = tpu.matmul %0, %1, %cst {dimension_numbers = #tpu.dot_dimension_numbers<[1], [0], [0], [1], [0, 0, 1, 1], [], []>} : vector<128x64xbf16>, vector<64x2xbf16>, vector<128x2xf32> -> vector<128x2xf32>
    %c0_3 = arith.constant 0 : index
    %c0_4 = arith.constant 0 : index
    %3 = vector.load %arg3[%c0_3, %c0_4] : memref<1x2xf32, #tpu.memory_space<vmem>>, vector<1x2xf32>
    %4 = vector.broadcast %3 : vector<1x2xf32> to vector<128x2xf32>
    %5 = arith.addf %2, %4 : vector<128x2xf32>
    %6 = arith.truncf %5 : vector<128x2xf32> to vector<128x2xbf16>
    %c0_5 = arith.constant 0 : index
    %c0_6 = arith.constant 0 : index
    %7 = vector.load %arg4[%c0_5, %c0_6] : memref<128x2xbf16, #tpu.memory_space<vmem>>, vector<128x2xbf16>
    tpu.vector_store %arg4[%c0_5, %c0_6], %6 {strides = array<i32>} : memref<128x2xbf16, #tpu.memory_space<vmem>>, vector<128x2xbf16>,
    return
  }
  func.func @transform_0(%arg0: i32) -> (i32, i32) {
    %c0_i32 = arith.constant 0 : i32
    %c0_i32_0 = arith.constant 0 : i32
    return %arg0, %c0_i32 : i32, i32
  }
  func.func @transform_1(%arg0: i32) -> (i32, i32) {
    %c0_i32 = arith.constant 0 : i32
    %c0_i32_0 = arith.constant 0 : i32
    %c0_i32_1 = arith.constant 0 : i32
    return %c0_i32, %c0_i32_0 : i32, i32
  }
  func.func @transform_2(%arg0: i32) -> (i32, i32) {
    %c0_i32 = arith.constant 0 : i32
    %c0_i32_0 = arith.constant 0 : i32
    %c0_i32_1 = arith.constant 0 : i32
    return %c0_i32, %c0_i32_0 : i32, i32
  }
  func.func @transform_3(%arg0: i32) -> (i32, i32) {
    %c0_i32 = arith.constant 0 : i32
    %c0_i32_0 = arith.constant 0 : i32
    return %arg0, %c0_i32 : i32, i32
  }
}

</mosaic_0001>

<llo_original>
// kernel: stmamba_bcd_forward.25
$region0: #{stmamba_bcd_forward.25}
  #allocation0 [shape = 'u32[]', space=smem, size = 0x4, offset = 0x4, fixed_abs, tag = 'smem constant byte address 0x4 - core index']
  #allocation1 [shape = 'u32[72,128]{1,0:T(1,128)}', space=vmem, size = 0x9000, scoped, tag = 'internal scratch']
  %s0 = inlined_call_operand.vmem [shape: bf16[256,64], index: 0, kind: input, shape index: {}]
  %s1 = inlined_call_operand.vmem [shape: bf16[64,16], index: 1, kind: input, shape index: {}]
  %s2 = inlined_call_operand.vmem [shape: f32[1,16], index: 2, kind: input, shape index: {}]
  %s3 = inlined_call_operand.vmem [shape: f32[1,16], index: 3, kind: input, shape index: {}]
  %s4 = inlined_call_operand.vmem [shape: f32[1,16], index: 4, kind: input, shape index: {}]
  %s5 = inlined_call_operand.vmem [shape: bf16[256,16], index: 5, kind: output, shape index: {}]
  %s6 = sld [smem:[#allocation0]]
  $region30: #{stmamba_bcd_forward.25} parent=0
    _
  %s8 = ssub.s32 1, %s6
  %s9 = scalar_select 0, %s8, %s6
  // Predicated region
  $region2: #{stmamba_bcd_forward.25} parent=0 // pred_check
    _
  $region3: #{stmamba_bcd_forward.25} parent=0 // pred_check_branch
    %11 = sbr.rel (0) target = $region5
  $region4: #{stmamba_bcd_forward.25} parent=0 // pred_region
    _
  $region5: #{stmamba_bcd_forward.25} parent=0 // pred_fallthru
    _
  // Predicated region
  $region6: #{stmamba_bcd_forward.25} parent=0 // pred_check
    _
  $region7: #{stmamba_bcd_forward.25} parent=0 // pred_check_branch
    %13 = sbr.rel (0) target = $region9
  $region8: #{stmamba_bcd_forward.25} parent=0 // pred_region
    _
  $region9: #{stmamba_bcd_forward.25} parent=0 // pred_fallthru
    _
  // Predicated region
  $region10: #{stmamba_bcd_forward.25} parent=0 // pred_check
    _
  $region11: #{stmamba_bcd_forward.25} parent=0 // pred_check_branch
    %15 = sbr.rel (0) target = $region13
  $region12: #{stmamba_bcd_forward.25} parent=0 // pred_region
    _
  $region13: #{stmamba_bcd_forward.25} parent=0 // pred_fallthru
    _
  // Predicated region
  $region14: #{stmamba_bcd_forward.25} parent=0 // pred_check
    _
  $region15: #{stmamba_bcd_forward.25} parent=0 // pred_check_branch
    %17 = sbr.rel (0) target = $region17
  $region16: #{stmamba_bcd_forward.25} parent=0 // pred_region
    _
  $region17: #{stmamba_bcd_forward.25} parent=0 // pred_fallthru
    _
  // Predicated region
  $region18: #{stmamba_bcd_forward.25} parent=0 // pred_check
    _
  $region19: #{stmamba_bcd_forward.25} parent=0 // pred_check_branch
    %19 = sbr.rel (0) target = $region21
  $region20: #{stmamba_bcd_forward.25} parent=0 // pred_region
    _
  $region21: #{stmamba_bcd_forward.25} parent=0 // pred_fallthru
    _
  %v21 = vld [vmem:[%s0] sm:$0xf]
  %v22 = vld [vmem:[%s0 + $0x4] sm:$0xf]
  %v23 = vld [vmem:[%s0 + $0x8] sm:$0xf]
  %v24 = vld [vmem:[%s0 + $0xc] sm:$0xf]
  %v25 = vld [vmem:[%s0 + $0x10] sm:$0xf]
  %v26 = vld [vmem:[%s0 + $0x14] sm:$0xf]
  %v27 = vld [vmem:[%s0 + $0x18] sm:$0xf]
  %v28 = vld [vmem:[%s0 + $0x1c] sm:$0xf]
  %v29 = vld [vmem:[%s0 + $0x20] sm:$0xf]
  %v30 = vld [vmem:[%s0 + $0x24] sm:$0xf]
  %v31 = vld [vmem:[%s0 + $0x28] sm:$0xf]
  %v32 = vld [vmem:[%s0 + $0x2c] sm:$0xf]
  %v33 = vld [vmem:[%s0 + $0x30] sm:$0xf]
  %v34 = vld [vmem:[%s0 + $0x34] sm:$0xf]
  %v35 = vld [vmem:[%s0 + $0x38] sm:$0xf]
  %v36 = vld [vmem:[%s0 + $0x3c] sm:$0xf]
  %v37 = vld [vmem:[%s0 + $0x40] sm:$0xf]
  %v38 = vld [vmem:[%s0 + $0x44] sm:$0xf]
  %v39 = vld [vmem:[%s0 + $0x48] sm:$0xf]
  %v40 = vld [vmem:[%s0 + $0x4c] sm:$0xf]
  %v41 = vld [vmem:[%s0 + $0x50] sm:$0xf]
  %v42 = vld [vmem:[%s0 + $0x54] sm:$0xf]
  %v43 = vld [vmem:[%s0 + $0x58] sm:$0xf]
  %v44 = vld [vmem:[%s0 + $0x5c] sm:$0xf]
  %v45 = vld [vmem:[%s0 + $0x60] sm:$0xf]
  %v46 = vld [vmem:[%s0 + $0x64] sm:$0xf]
  %v47 = vld [vmem:[%s0 + $0x68] sm:$0xf]
  %v48 = vld [vmem:[%s0 + $0x6c] sm:$0xf]
  %v49 = vld [vmem:[%s0 + $0x70] sm:$0xf]
  %v50 = vld [vmem:[%s0 + $0x74] sm:$0xf]
  %v51 = vld [vmem:[%s0 + $0x78] sm:$0xf]
  %v52 = vld [vmem:[%s0 + $0x7c] sm:$0xf]
  %v53 = vld [vmem:[%s1] sm:$0xf]
  %v54 = vld [vmem:[%s1 + $0x4] sm:$0xf]
  %v55 = vld [vmem:[%s1 + $0x8] sm:$0xf]
  %v56 = vld [vmem:[%s1 + $0xc] sm:$0xf]
  %v57 = vld [vmem:[%s1 + $0x10] sm:$0xf]
  %v58 = vld [vmem:[%s1 + $0x14] sm:$0xf]
  %v59 = vld [vmem:[%s1 + $0x18] sm:$0xf]
  %v60 = vld [vmem:[%s1 + $0x1c] sm:$0xf]
  %v61 = vld [vmem:[%s2] sm:$0x1]
  %v63 = vperm.slane %v61, 0
  %v97 = vunpack.c.l.b16 %v21
  %v98 = vunpack.c.l.b16 %v22
  %v99 = vunpack.c.l.b16 %v23
  %v100 = vunpack.c.l.b16 %v24
  %v101 = vunpack.c.l.b16 %v25
  %v102 = vunpack.c.l.b16 %v26
  %v103 = vunpack.c.l.b16 %v27
  %v104 = vunpack.c.l.b16 %v28
  %v105 = vunpack.c.l.b16 %v29
  %v106 = vunpack.c.l.b16 %v30
  %v107 = vunpack.c.l.b16 %v31
  %v108 = vunpack.c.l.b16 %v32
  %v109 = vunpack.c.l.b16 %v33
  %v110 = vunpack.c.l.b16 %v34
  %v111 = vunpack.c.l.b16 %v35
  %v112 = vunpack.c.l.b16 %v36
  %v113 = vunpack.c.l.b16 %v37
  %v114 = vunpack.c.l.b16 %v38
  %v115 = vunpack.c.l.b16 %v39
  %v116 = vunpack.c.l.b16 %v40
  %v117 = vunpack.c.l.b16 %v41
  %v118 = vunpack.c.l.b16 %v42
  %v119 = vunpack.c.l.b16 %v43
  %v120 = vunpack.c.l.b16 %v44
  %v121 = vunpack.c.l.b16 %v45
  %v122 = vunpack.c.l.b16 %v46
  %v123 = vunpack.c.l.b16 %v47
  %v124 = vunpack.c.l.b16 %v48
  %v125 = vunpack.c.l.b16 %v49
  %v126 = vunpack.c.l.b16 %v50
  %v127 = vunpack.c.l.b16 %v51
  %v128 = vunpack.c.l.b16 %v52
  %v129 = vpack.c.b16 %v98, %v97
  %v130 = vpack.c.b16 %v100, %v99
  %v131 = vpack.c.b16 %v102, %v101
  %v132 = vpack.c.b16 %v104, %v103
  %v133 = vpack.c.b16 %v106, %v105
  %v134 = vpack.c.b16 %v108, %v107
  %v135 = vpack.c.b16 %v110, %v109
  %v136 = vpack.c.b16 %v112, %v111
  %v137 = vpack.c.b16 %v114, %v113
  %v138 = vpack.c.b16 %v116, %v115
  %v139 = vpack.c.b16 %v118, %v117
  %v140 = vpack.c.b16 %v120, %v119
  %v141 = vpack.c.b16 %v122, %v121
  %v142 = vpack.c.b16 %v124, %v123
  %v143 = vpack.c.b16 %v126, %v125
  %v144 = vpack.c.b16 %v128, %v127
  %v153 = vunpack.c.l.b16 %v53
  %v154 = vunpack.c.l.b16 %v54
  %v155 = vunpack.c.l.b16 %v55
  %v156 = vunpack.c.l.b16 %v56
  %v157 = vunpack.c.l.b16 %v57
  %v158 = vunpack.c.l.b16 %v58
  %v159 = vunpack.c.l.b16 %v59
  %v160 = vunpack.c.l.b16 %v60
  %v161 = vpack.c.b16 %v154, %v153
  %v162 = vpack.c.b16 %v156, %v155
  %v163 = vpack.c.b16 %v158, %v157
  %v164 = vpack.c.b16 %v160, %v159
  %vm169 = vcmask 523264
  %v171 = vsel %vm169, %v129, 0
  %v174 = vsel %vm169, %v130, 0
  %v177 = vsel %vm169, %v131, 0
  %v180 = vsel %vm169, %v132, 0
  %v183 = vsel %vm169, %v133, 0
  %v186 = vsel %vm169, %v134, 0
  %v189 = vsel %vm169, %v135, 0
  %v192 = vsel %vm169, %v136, 0
  %v195 = vsel %vm169, %v137, 0
  %v198 = vsel %vm169, %v138, 0
  %v201 = vsel %vm169, %v139, 0
  %v204 = vsel %vm169, %v140, 0
  %v207 = vsel %vm169, %v141, 0
  %v210 = vsel %vm169, %v142, 0
  %v213 = vsel %vm169, %v143, 0
  %v216 = vsel %vm169, %v144, 0
  %218 = vmatpush.bf16.msra.mxu0 0
  %219 = vmatpush.bf16.msra.mxu0 0
  %220 = vmatpush.bf16.msra.mxu0 0
  %221 = vmatpush.bf16.msra.mxu0 0
  %222 = vmatpush.bf16.msra.mxu0 %v164
  %223 = vmatpush.bf16.msra.mxu0 %v163
  %224 = vmatpush.bf16.msra.mxu0 %v162
  %225 = vmatpush.bf16.msra.mxu0 %v161
  %226 = vmatmul.bf16.gmra.mxu0 %v171
  %v227 = vpop.f32.mrf.mxu0
  %v228 = vadd.f32 %v63, %v227
  %v229 = vpop.f32.mrf.mxu0
  %v230 = vadd.f32 %v63, %v229
  %231 = vmatmul.bf16.gmra.mxu0 %v174
  %v232 = vpop.f32.mrf.mxu0
  %v233 = vadd.f32 %v63, %v232
  %v234 = vpop.f32.mrf.mxu0
  %v235 = vadd.f32 %v63, %v234
  %236 = vmatmul.bf16.gmra.mxu0 %v177
  %v237 = vpop.f32.mrf.mxu0
  %v238 = vadd.f32 %v63, %v237
  %v239 = vpop.f32.mrf.mxu0
  %v240 = vadd.f32 %v63, %v239
  %241 = vmatmul.bf16.gmra.mxu0 %v180
  %v242 = vpop.f32.mrf.mxu0
  %v243 = vadd.f32 %v63, %v242
  %v244 = vpop.f32.mrf.mxu0
  %v245 = vadd.f32 %v63, %v244
  %246 = vmatmul.bf16.gmra.mxu0 %v183
  %v247 = vpop.f32.mrf.mxu0
  %v248 = vadd.f32 %v63, %v247
  %v249 = vpop.f32.mrf.mxu0
  %v250 = vadd.f32 %v63, %v249
  %251 = vmatmul.bf16.gmra.mxu0 %v186
  %v252 = vpop.f32.mrf.mxu0
  %v253 = vadd.f32 %v63, %v252
  %v254 = vpop.f32.mrf.mxu0
  %v255 = vadd.f32 %v63, %v254
  %256 = vmatmul.bf16.gmra.mxu0 %v189
  %v257 = vpop.f32.mrf.mxu0
  %v258 = vadd.f32 %v63, %v257
  %v259 = vpop.f32.mrf.mxu0
  %v260 = vadd.f32 %v63, %v259
  %261 = vmatmul.bf16.gmra.mxu0 %v192
  %v262 = vpop.f32.mrf.mxu0
  %v263 = vadd.f32 %v63, %v262
  %v264 = vpop.f32.mrf.mxu0
  %v265 = vadd.f32 %v63, %v264
  %266 = vmatmul.bf16.gmra.mxu0 %v195
  %v267 = vpop.f32.mrf.mxu0
  %v268 = vadd.f32 %v63, %v267
  %v269 = vpop.f32.mrf.mxu0
  %v270 = vadd.f32 %v63, %v269
  %271 = vmatmul.bf16.gmra.mxu0 %v198
  %v272 = vpop.f32.mrf.mxu0
  %v273 = vadd.f32 %v63, %v272
  %v274 = vpop.f32.mrf.mxu0
  %v275 = vadd.f32 %v63, %v274
  %276 = vmatmul.bf16.gmra.mxu0 %v201
  %v277 = vpop.f32.mrf.mxu0
  %v278 = vadd.f32 %v63, %v277
  %v279 = vpop.f32.mrf.mxu0
  %v280 = vadd.f32 %v63, %v279
  %281 = vmatmul.bf16.gmra.mxu0 %v204
  %v282 = vpop.f32.mrf.mxu0
  %v283 = vadd.f32 %v63, %v282
  %v284 = vpop.f32.mrf.mxu0
  %v285 = vadd.f32 %v63, %v284
  %286 = vmatmul.bf16.gmra.mxu0 %v207
  %v287 = vpop.f32.mrf.mxu0
  %v288 = vadd.f32 %v63, %v287
  %v289 = vpop.f32.mrf.mxu0
  %v290 = vadd.f32 %v63, %v289
  %291 = vmatmul.bf16.gmra.mxu0 %v210
  %v292 = vpop.f32.mrf.mxu0
  %v293 = vadd.f32 %v63, %v292
  %v294 = vpop.f32.mrf.mxu0
  %v295 = vadd.f32 %v63, %v294
  %296 = vmatmul.bf16.gmra.mxu0 %v213
  %v297 = vpop.f32.mrf.mxu0
  %v298 = vadd.f32 %v63, %v297
  %v299 = vpop.f32.mrf.mxu0
  %v300 = vadd.f32 %v63, %v299
  %301 = vmatmul.bf16.gmra.mxu0 %v216
  %v302 = vpop.f32.mrf.mxu0
  %v303 = vadd.f32 %v63, %v302
  %v304 = vpop.f32.mrf.mxu0
  %v305 = vadd.f32 %v63, %v304
  %306 = vdwg.mxu0
  %vm307 = vcmask 130048
  %v308 = vsel %vm307, %v228, 0.0
  %309 = vadd.xlane.f32.xlu0 %v308
  %v310 = vpop.xlane.xlu0 %309
  %v311 = vsel %vm307, %v230, 0.0
  %312 = vadd.xlane.f32.xlu0 %v311
  %v313 = vpop.xlane.xlu0 %312
  %v314 = vsel %vm307, %v233, 0.0
  %315 = vadd.xlane.f32.xlu0 %v314
  %v316 = vpop.xlane.xlu0 %315
  %v317 = vsel %vm307, %v235, 0.0
  %318 = vadd.xlane.f32.xlu0 %v317
  %v319 = vpop.xlane.xlu0 %318
  %v320 = vsel %vm307, %v238, 0.0
  %321 = vadd.xlane.f32.xlu0 %v320
  %v322 = vpop.xlane.xlu0 %321
  %v323 = vsel %vm307, %v240, 0.0
  %324 = vadd.xlane.f32.xlu0 %v323
  %v325 = vpop.xlane.xlu0 %324
  %v326 = vsel %vm307, %v243, 0.0
  %327 = vadd.xlane.f32.xlu0 %v326
  %v328 = vpop.xlane.xlu0 %327
  %v329 = vsel %vm307, %v245, 0.0
  %330 = vadd.xlane.f32.xlu0 %v329
  %v331 = vpop.xlane.xlu0 %330
  %v332 = vsel %vm307, %v248, 0.0
  %333 = vadd.xlane.f32.xlu0 %v332
  %v334 = vpop.xlane.xlu0 %333
  %v335 = vsel %vm307, %v250, 0.0
  %336 = vadd.xlane.f32.xlu0 %v335
  %v337 = vpop.xlane.xlu0 %336
  %v338 = vsel %vm307, %v253, 0.0
  %339 = vadd.xlane.f32.xlu0 %v338
  %v340 = vpop.xlane.xlu0 %339
  %v341 = vsel %vm307, %v255, 0.0
  %342 = vadd.xlane.f32.xlu0 %v341
  %v343 = vpop.xlane.xlu0 %342
  %v344 = vsel %vm307, %v258, 0.0
  %345 = vadd.xlane.f32.xlu0 %v344
  %v346 = vpop.xlane.xlu0 %345
  %v347 = vsel %vm307, %v260, 0.0
  %348 = vadd.xlane.f32.xlu0 %v347
  %v349 = vpop.xlane.xlu0 %348
  %v350 = vsel %vm307, %v263, 0.0
  %351 = vadd.xlane.f32.xlu0 %v350
  %v352 = vpop.xlane.xlu0 %351
  %v353 = vsel %vm307, %v265, 0.0
  %354 = vadd.xlane.f32.xlu0 %v353
  %v355 = vpop.xlane.xlu0 %354
  %v356 = vsel %vm307, %v268, 0.0
  %357 = vadd.xlane.f32.xlu0 %v356
  %v358 = vpop.xlane.xlu0 %357
  %v359 = vsel %vm307, %v270, 0.0
  %360 = vadd.xlane.f32.xlu0 %v359
  %v361 = vpop.xlane.xlu0 %360
  %v362 = vsel %vm307, %v273, 0.0
  %363 = vadd.xlane.f32.xlu0 %v362
  %v364 = vpop.xlane.xlu0 %363
  %v365 = vsel %vm307, %v275, 0.0
  %366 = vadd.xlane.f32.xlu0 %v365
  %v367 = vpop.xlane.xlu0 %366
  %v368 = vsel %vm307, %v278, 0.0
  %369 = vadd.xlane.f32.xlu0 %v368
  %v370 = vpop.xlane.xlu0 %369
  %v371 = vsel %vm307, %v280, 0.0
  %372 = vadd.xlane.f32.xlu0 %v371
  %v373 = vpop.xlane.xlu0 %372
  %v374 = vsel %vm307, %v283, 0.0
  %375 = vadd.xlane.f32.xlu0 %v374
  %v376 = vpop.xlane.xlu0 %375
  %v377 = vsel %vm307, %v285, 0.0
  %378 = vadd.xlane.f32.xlu0 %v377
  %v379 = vpop.xlane.xlu0 %378
  %v380 = vsel %vm307, %v288, 0.0
  %381 = vadd.xlane.f32.xlu0 %v380
  %v382 = vpop.xlane.xlu0 %381
  %v383 = vsel %vm307, %v290, 0.0
  %384 = vadd.xlane.f32.xlu0 %v383
  %v385 = vpop.xlane.xlu0 %384
  %v386 = vsel %vm307, %v293, 0.0
  %387 = vadd.xlane.f32.xlu0 %v386
  %v388 = vpop.xlane.xlu0 %387
  %v389 = vsel %vm307, %v295, 0.0
  %390 = vadd.xlane.f32.xlu0 %v389
  %v391 = vpop.xlane.xlu0 %390
  %v392 = vsel %vm307, %v298, 0.0
  %393 = vadd.xlane.f32.xlu0 %v392
  %v394 = vpop.xlane.xlu0 %393
  %v395 = vsel %vm307, %v300, 0.0
  %396 = vadd.xlane.f32.xlu0 %v395
  %v397 = vpop.xlane.xlu0 %396
  %v398 = vsel %vm307, %v303, 0.0
  %399 = vadd.xlane.f32.xlu0 %v398
  %v400 = vpop.xlane.xlu0 %399
  %v401 = vsel %vm307, %v305, 0.0
  %402 = vadd.xlane.f32.xlu0 %v401
  %v403 = vpop.xlane.xlu0 %402
  %v404 = vrcp.pop 16.0
  %v405 = vmul.f32 16.0, %v404
  %v406 = vsub.f32 1.0, %v405
  %v407 = vmul.f32 %v404, %v406
  %v408 = vadd.f32 %v404, %v407
  %vm409 = vweird.f32 %v404
  %v410 = vsel %vm409, %v404, %v408
  %v411 = vmul.f32 %v310, %v410
  %v412 = vmul.f32 %v313, %v410
  %v413 = vmul.f32 %v316, %v410
  %v414 = vmul.f32 %v319, %v410
  %v415 = vmul.f32 %v322, %v410
  %v416 = vmul.f32 %v325, %v410
  %v417 = vmul.f32 %v328, %v410
  %v418 = vmul.f32 %v331, %v410
  %v419 = vmul.f32 %v334, %v410
  %v420 = vmul.f32 %v337, %v410
  %v421 = vmul.f32 %v340, %v410
  %v422 = vmul.f32 %v343, %v410
  %v423 = vmul.f32 %v346, %v410
  %v424 = vmul.f32 %v349, %v410
  %v425 = vmul.f32 %v352, %v410
  %v426 = vmul.f32 %v355, %v410
  %v427 = vmul.f32 %v358, %v410
  %v428 = vmul.f32 %v361, %v410
  %v429 = vmul.f32 %v364, %v410
  %v430 = vmul.f32 %v367, %v410
  %v431 = vmul.f32 %v370, %v410
  %v432 = vmul.f32 %v373, %v410
  %v433 = vmul.f32 %v376, %v410
  %v434 = vmul.f32 %v379, %v410
  %v435 = vmul.f32 %v382, %v410
  %v436 = vmul.f32 %v385, %v410
  %v437 = vmul.f32 %v388, %v410
  %v438 = vmul.f32 %v391, %v410
  %v439 = vmul.f32 %v394, %v410
  %v440 = vmul.f32 %v397, %v410
  %v441 = vmul.f32 %v400, %v410
  %v442 = vmul.f32 %v403, %v410
  %v443 = vsub.f32 %v228, %v411
  %v444 = vsub.f32 %v230, %v412
  %v445 = vsub.f32 %v233, %v413
  %v446 = vsub.f32 %v235, %v414
  %v447 = vsub.f32 %v238, %v415
  %v448 = vsub.f32 %v240, %v416
  %v449 = vsub.f32 %v243, %v417
  %v450 = vsub.f32 %v245, %v418
  %v451 = vsub.f32 %v248, %v419
  %v452 = vsub.f32 %v250, %v420
  %v453 = vsub.f32 %v253, %v421
  %v454 = vsub.f32 %v255, %v422
  %v455 = vsub.f32 %v258, %v423
  %v456 = vsub.f32 %v260, %v424
  %v457 = vsub.f32 %v263, %v425
  %v458 = vsub.f32 %v265, %v426
  %v459 = vsub.f32 %v268, %v427
  %v460 = vsub.f32 %v270, %v428
  %v461 = vsub.f32 %v273, %v429
  %v462 = vsub.f32 %v275, %v430
  %v463 = vsub.f32 %v278, %v431
  %v464 = vsub.f32 %v280, %v432
  %v465 = vsub.f32 %v283, %v433
  %v466 = vsub.f32 %v285, %v434
  %v467 = vsub.f32 %v288, %v435
  %v468 = vsub.f32 %v290, %v436
  %v469 = vsub.f32 %v293, %v437
  %v470 = vsub.f32 %v295, %v438
  %v471 = vsub.f32 %v298, %v439
  %v472 = vsub.f32 %v300, %v440
  %v473 = vsub.f32 %v303, %v441
  %v474 = vsub.f32 %v305, %v442
  %v475 = vmul.f32 %v443, %v443
  %v476 = vmul.f32 %v444, %v444
  %v477 = vmul.f32 %v445, %v445
  %v478 = vmul.f32 %v446, %v446
  %v479 = vmul.f32 %v447, %v447
  %v480 = vmul.f32 %v448, %v448
  %v481 = vmul.f32 %v449, %v449
  %v482 = vmul.f32 %v450, %v450
  %v483 = vmul.f32 %v451, %v451
  %v484 = vmul.f32 %v452, %v452
  %v485 = vmul.f32 %v453, %v453
  %v486 = vmul.f32 %v454, %v454
  %v487 = vmul.f32 %v455, %v455
  %v488 = vmul.f32 %v456, %v456
  %v489 = vmul.f32 %v457, %v457
  %v490 = vmul.f32 %v458, %v458
  %v491 = vmul.f32 %v459, %v459
  %v492 = vmul.f32 %v460, %v460
  %v493 = vmul.f32 %v461, %v461
  %v494 = vmul.f32 %v462, %v462
  %v495 = vmul.f32 %v463, %v463
  %v496 = vmul.f32 %v464, %v464
  %v497 = vmul.f32 %v465, %v465
  %v498 = vmul.f32 %v466, %v466
  %v499 = vmul.f32 %v467, %v467
  %v500 = vmul.f32 %v468, %v468
  %v501 = vmul.f32 %v469, %v469
  %v502 = vmul.f32 %v470, %v470
  %v503 = vmul.f32 %v471, %v471
  %v504 = vmul.f32 %v472, %v472
  %v505 = vmul.f32 %v473, %v473
  %v506 = vmul.f32 %v474, %v474
  %v507 = vsel %vm307, %v475, 0.0
  %508 = vadd.xlane.f32.xlu0 %v507
  %v509 = vpop.xlane.xlu0 %508
  %v510 = vsel %vm307, %v476, 0.0
  %511 = vadd.xlane.f32.xlu0 %v510
  %v512 = vpop.xlane.xlu0 %511
  %v513 = vsel %vm307, %v477, 0.0
  %514 = vadd.xlane.f32.xlu0 %v513
  %v515 = vpop.xlane.xlu0 %514
  %v516 = vsel %vm307, %v478, 0.0
  %517 = vadd.xlane.f32.xlu0 %v516
  %v518 = vpop.xlane.xlu0 %517
  %v519 = vsel %vm307, %v479, 0.0
  %520 = vadd.xlane.f32.xlu0 %v519
  %v521 = vpop.xlane.xlu0 %520
  %v522 = vsel %vm307, %v480, 0.0
  %523 = vadd.xlane.f32.xlu0 %v522
  %v524 = vpop.xlane.xlu0 %523
  %v525 = vsel %vm307, %v481, 0.0
  %526 = vadd.xlane.f32.xlu0 %v525
  %v527 = vpop.xlane.xlu0 %526
  %v528 = vsel %vm307, %v482, 0.0
  %529 = vadd.xlane.f32.xlu0 %v528
  %v530 = vpop.xlane.xlu0 %529
  %v531 = vsel %vm307, %v483, 0.0
  %532 = vadd.xlane.f32.xlu0 %v531
  %v533 = vpop.xlane.xlu0 %532
  %v534 = vsel %vm307, %v484, 0.0
  %535 = vadd.xlane.f32.xlu0 %v534
  %v536 = vpop.xlane.xlu0 %535
  %v537 = vsel %vm307, %v485, 0.0
  %538 = vadd.xlane.f32.xlu0 %v537
  %v539 = vpop.xlane.xlu0 %538
  %v540 = vsel %vm307, %v486, 0.0
  %541 = vadd.xlane.f32.xlu0 %v540
  %v542 = vpop.xlane.xlu0 %541
  %v543 = vsel %vm307, %v487, 0.0
  %544 = vadd.xlane.f32.xlu0 %v543
  %v545 = vpop.xlane.xlu0 %544
  %v546 = vsel %vm307, %v488, 0.0
  %547 = vadd.xlane.f32.xlu0 %v546
  %v548 = vpop.xlane.xlu0 %547
  %v549 = vsel %vm307, %v489, 0.0
  %550 = vadd.xlane.f32.xlu0 %v549
  %v551 = vpop.xlane.xlu0 %550
  %v552 = vsel %vm307, %v490, 0.0
  %553 = vadd.xlane.f32.xlu0 %v552
  %v554 = vpop.xlane.xlu0 %553
  %v555 = vsel %vm307, %v491, 0.0
  %556 = vadd.xlane.f32.xlu0 %v555
  %v557 = vpop.xlane.xlu0 %556
  %v558 = vsel %vm307, %v492, 0.0
  %559 = vadd.xlane.f32.xlu0 %v558
  %v560 = vpop.xlane.xlu0 %559
  %v561 = vsel %vm307, %v493, 0.0
  %562 = vadd.xlane.f32.xlu0 %v561
  %v563 = vpop.xlane.xlu0 %562
  %v564 = vsel %vm307, %v494, 0.0
  %565 = vadd.xlane.f32.xlu0 %v564
  %v566 = vpop.xlane.xlu0 %565
  %v567 = vsel %vm307, %v495, 0.0
  %568 = vadd.xlane.f32.xlu0 %v567
  %v569 = vpop.xlane.xlu0 %568
  %v570 = vsel %vm307, %v496, 0.0
  %571 = vadd.xlane.f32.xlu0 %v570
  %v572 = vpop.xlane.xlu0 %571
  %v573 = vsel %vm307, %v497, 0.0
  %574 = vadd.xlane.f32.xlu0 %v573
  %v575 = vpop.xlane.xlu0 %574
  %v576 = vsel %vm307, %v498, 0.0
  %577 = vadd.xlane.f32.xlu0 %v576
  %v578 = vpop.xlane.xlu0 %577
  %v579 = vsel %vm307, %v499, 0.0
  %580 = vadd.xlane.f32.xlu0 %v579
  %v581 = vpop.xlane.xlu0 %580
  %v582 = vsel %vm307, %v500, 0.0
  %583 = vadd.xlane.f32.xlu0 %v582
  %v584 = vpop.xlane.xlu0 %583
  %v585 = vsel %vm307, %v501, 0.0
  %586 = vadd.xlane.f32.xlu0 %v585
  %v587 = vpop.xlane.xlu0 %586
  %v588 = vsel %vm307, %v502, 0.0
  %589 = vadd.xlane.f32.xlu0 %v588
  %v590 = vpop.xlane.xlu0 %589
  %v591 = vsel %vm307, %v503, 0.0
  %592 = vadd.xlane.f32.xlu0 %v591
  %v593 = vpop.xlane.xlu0 %592
  %v594 = vsel %vm307, %v504, 0.0
  %595 = vadd.xlane.f32.xlu0 %v594
  %v596 = vpop.xlane.xlu0 %595
  %v597 = vsel %vm307, %v505, 0.0
  %598 = vadd.xlane.f32.xlu0 %v597
  %v599 = vpop.xlane.xlu0 %598
  %v600 = vsel %vm307, %v506, 0.0
  %601 = vadd.xlane.f32.xlu0 %v600
  %v602 = vpop.xlane.xlu0 %601
  %v603 = vmul.f32 %v509, %v410
  %v604 = vmul.f32 %v512, %v410
  %v605 = vmul.f32 %v515, %v410
  %v606 = vmul.f32 %v518, %v410
  %v607 = vmul.f32 %v521, %v410
  %v608 = vmul.f32 %v524, %v410
  %v609 = vmul.f32 %v527, %v410
  %v610 = vmul.f32 %v530, %v410
  %v611 = vmul.f32 %v533, %v410
  %v612 = vmul.f32 %v536, %v410
  %v613 = vmul.f32 %v539, %v410
  %v614 = vmul.f32 %v542, %v410
  %v615 = vmul.f32 %v545, %v410
  %v616 = vmul.f32 %v548, %v410
  %v617 = vmul.f32 %v551, %v410
  %v618 = vmul.f32 %v554, %v410
  %v619 = vmul.f32 %v557, %v410
  %v620 = vmul.f32 %v560, %v410
  %v621 = vmul.f32 %v563, %v410
  %v622 = vmul.f32 %v566, %v410
  %v623 = vmul.f32 %v569, %v410
  %v624 = vmul.f32 %v572, %v410
  %v625 = vmul.f32 %v575, %v410
  %v626 = vmul.f32 %v578, %v410
  %v627 = vmul.f32 %v581, %v410
  %v628 = vmul.f32 %v584, %v410
  %v629 = vmul.f32 %v587, %v410
  %v630 = vmul.f32 %v590, %v410
  %v631 = vmul.f32 %v593, %v410
  %v632 = vmul.f32 %v596, %v410
  %v633 = vmul.f32 %v599, %v410
  %v634 = vmul.f32 %v602, %v410
  %v635 = vadd.f32 %v603, 1e-05
  %v636 = vadd.f32 %v604, 1e-05
  %v637 = vadd.f32 %v605, 1e-05
  %v638 = vadd.f32 %v606, 1e-05
  %v639 = vadd.f32 %v607, 1e-05
  %v640 = vadd.f32 %v608, 1e-05
  %v641 = vadd.f32 %v609, 1e-05
  %v642 = vadd.f32 %v610, 1e-05
  %v643 = vadd.f32 %v611, 1e-05
  %v644 = vadd.f32 %v612, 1e-05
  %v645 = vadd.f32 %v613, 1e-05
  %v646 = vadd.f32 %v614, 1e-05
  %v647 = vadd.f32 %v615, 1e-05
  %v648 = vadd.f32 %v616, 1e-05
  %v649 = vadd.f32 %v617, 1e-05
  %v650 = vadd.f32 %v618, 1e-05
  %v651 = vadd.f32 %v619, 1e-05
  %v652 = vadd.f32 %v620, 1e-05
  %v653 = vadd.f32 %v621, 1e-05
  %v654 = vadd.f32 %v622, 1e-05
  %v655 = vadd.f32 %v623, 1e-05
  %v656 = vadd.f32 %v624, 1e-05
  %v657 = vadd.f32 %v625, 1e-05
  %v658 = vadd.f32 %v626, 1e-05
  %v659 = vadd.f32 %v627, 1e-05
  %v660 = vadd.f32 %v628, 1e-05
  %v661 = vadd.f32 %v629, 1e-05
  %v662 = vadd.f32 %v630, 1e-05
  %v663 = vadd.f32 %v631, 1e-05
  %v664 = vadd.f32 %v632, 1e-05
  %v665 = vadd.f32 %v633, 1e-05
  %v666 = vadd.f32 %v634, 1e-05
  %v667 = vrsqrt.pop %v635
  %v668 = vmul.f32 %v667, %v635
  %v669 = vmul.f32 %v668, %v667
  %v670 = vmul.f32 0.5, %v669
  %v671 = vsub.f32 1.5, %v670
  %v672 = vmul.f32 %v667, %v671
  %vm673 = vweird.f32 %v635
  %vm674 = vweird.f32 %v667
  %vm675 = vmor %vm673, %vm674
  %v676 = vsel %vm675, %v667, %v672
  %v677 = vrsqrt.pop %v636
  %v678 = vmul.f32 %v677, %v636
  %v679 = vmul.f32 %v678, %v677
  %v680 = vmul.f32 0.5, %v679
  %v681 = vsub.f32 1.5, %v680
  %v682 = vmul.f32 %v677, %v681
  %vm683 = vweird.f32 %v636
  %vm684 = vweird.f32 %v677
  %vm685 = vmor %vm683, %vm684
  %v686 = vsel %vm685, %v677, %v682
  %v687 = vrsqrt.pop %v637
  %v688 = vmul.f32 %v687, %v637
  %v689 = vmul.f32 %v688, %v687
  %v690 = vmul.f32 0.5, %v689
  %v691 = vsub.f32 1.5, %v690
  %v692 = vmul.f32 %v687, %v691
  %vm693 = vweird.f32 %v637
  %vm694 = vweird.f32 %v687
  %vm695 = vmor %vm693, %vm694
  %v696 = vsel %vm695, %v687, %v692
  %v697 = vrsqrt.pop %v638
  %v698 = vmul.f32 %v697, %v638
  %v699 = vmul.f32 %v698, %v697
  %v700 = vmul.f32 0.5, %v699
  %v701 = vsub.f32 1.5, %v700
  %v702 = vmul.f32 %v697, %v701
  %vm703 = vweird.f32 %v638
  %vm704 = vweird.f32 %v697
  %vm705 = vmor %vm703, %vm704
  %v706 = vsel %vm705, %v697, %v702
  %v707 = vrsqrt.pop %v639
  %v708 = vmul.f32 %v707, %v639
  %v709 = vmul.f32 %v708, %v707
  %v710 = vmul.f32 0.5, %v709
  %v711 = vsub.f32 1.5, %v710
  %v712 = vmul.f32 %v707, %v711
  %vm713 = vweird.f32 %v639
  %vm714 = vweird.f32 %v707
  %vm715 = vmor %vm713, %vm714
  %v716 = vsel %vm715, %v707, %v712
  %v717 = vrsqrt.pop %v640
  %v718 = vmul.f32 %v717, %v640
  %v719 = vmul.f32 %v718, %v717
  %v720 = vmul.f32 0.5, %v719
  %v721 = vsub.f32 1.5, %v720
  %v722 = vmul.f32 %v717, %v721
  %vm723 = vweird.f32 %v640
  %vm724 = vweird.f32 %v717
  %vm725 = vmor %vm723, %vm724
  %v726 = vsel %vm725, %v717, %v722
  %v727 = vrsqrt.pop %v641
  %v728 = vmul.f32 %v727, %v641
  %v729 = vmul.f32 %v728, %v727
  %v730 = vmul.f32 0.5, %v729
  %v731 = vsub.f32 1.5, %v730
  %v732 = vmul.f32 %v727, %v731
  %vm733 = vweird.f32 %v641
  %vm734 = vweird.f32 %v727
  %vm735 = vmor %vm733, %vm734
  %v736 = vsel %vm735, %v727, %v732
  %v737 = vrsqrt.pop %v642
  %v738 = vmul.f32 %v737, %v642
  %v739 = vmul.f32 %v738, %v737
  %v740 = vmul.f32 0.5, %v739
  %v741 = vsub.f32 1.5, %v740
  %v742 = vmul.f32 %v737, %v741
  %vm743 = vweird.f32 %v642
  %vm744 = vweird.f32 %v737
  %vm745 = vmor %vm743, %vm744
  %v746 = vsel %vm745, %v737, %v742
  %v747 = vrsqrt.pop %v643
  %v748 = vmul.f32 %v747, %v643
  %v749 = vmul.f32 %v748, %v747
  %v750 = vmul.f32 0.5, %v749
  %v751 = vsub.f32 1.5, %v750
  %v752 = vmul.f32 %v747, %v751
  %vm753 = vweird.f32 %v643
  %vm754 = vweird.f32 %v747
  %vm755 = vmor %vm753, %vm754
  %v756 = vsel %vm755, %v747, %v752
  %v757 = vrsqrt.pop %v644
  %v758 = vmul.f32 %v757, %v644
  %v759 = vmul.f32 %v758, %v757
  %v760 = vmul.f32 0.5, %v759
  %v761 = vsub.f32 1.5, %v760
  %v762 = vmul.f32 %v757, %v761
  %vm763 = vweird.f32 %v644
  %vm764 = vweird.f32 %v757
  %vm765 = vmor %vm763, %vm764
  %v766 = vsel %vm765, %v757, %v762
  %v767 = vrsqrt.pop %v645
  %v768 = vmul.f32 %v767, %v645
  %v769 = vmul.f32 %v768, %v767
  %v770 = vmul.f32 0.5, %v769
  %v771 = vsub.f32 1.5, %v770
  %v772 = vmul.f32 %v767, %v771
  %vm773 = vweird.f32 %v645
  %vm774 = vweird.f32 %v767
  %vm775 = vmor %vm773, %vm774
  %v776 = vsel %vm775, %v767, %v772
  %v777 = vrsqrt.pop %v646
  %v778 = vmul.f32 %v777, %v646
  %v779 = vmul.f32 %v778, %v777
  %v780 = vmul.f32 0.5, %v779
  %v781 = vsub.f32 1.5, %v780
  %v782 = vmul.f32 %v777, %v781
  %vm783 = vweird.f32 %v646
  %vm784 = vweird.f32 %v777
  %vm785 = vmor %vm783, %vm784
  %v786 = vsel %vm785, %v777, %v782
  %v787 = vrsqrt.pop %v647
  %v788 = vmul.f32 %v787, %v647
  %v789 = vmul.f32 %v788, %v787
  %v790 = vmul.f32 0.5, %v789
  %v791 = vsub.f32 1.5, %v790
  %v792 = vmul.f32 %v787, %v791
  %vm793 = vweird.f32 %v647
  %vm794 = vweird.f32 %v787
  %vm795 = vmor %vm793, %vm794
  %v796 = vsel %vm795, %v787, %v792
  %v797 = vrsqrt.pop %v648
  %v798 = vmul.f32 %v797, %v648
  %v799 = vmul.f32 %v798, %v797
  %v800 = vmul.f32 0.5, %v799
  %v801 = vsub.f32 1.5, %v800
  %v802 = vmul.f32 %v797, %v801
  %vm803 = vweird.f32 %v648
  %vm804 = vweird.f32 %v797
  %vm805 = vmor %vm803, %vm804
  %v806 = vsel %vm805, %v797, %v802
  %v807 = vrsqrt.pop %v649
  %v808 = vmul.f32 %v807, %v649
  %v809 = vmul.f32 %v808, %v807
  %v810 = vmul.f32 0.5, %v809
  %v811 = vsub.f32 1.5, %v810
  %v812 = vmul.f32 %v807, %v811
  %vm813 = vweird.f32 %v649
  %vm814 = vweird.f32 %v807
  %vm815 = vmor %vm813, %vm814
  %v816 = vsel %vm815, %v807, %v812
  %v817 = vrsqrt.pop %v650
  %v818 = vmul.f32 %v817, %v650
  %v819 = vmul.f32 %v818, %v817
  %v820 = vmul.f32 0.5, %v819
  %v821 = vsub.f32 1.5, %v820
  %v822 = vmul.f32 %v817, %v821
  %vm823 = vweird.f32 %v650
  %vm824 = vweird.f32 %v817
  %vm825 = vmor %vm823, %vm824
  %v826 = vsel %vm825, %v817, %v822
  %v827 = vrsqrt.pop %v651
  %v828 = vmul.f32 %v827, %v651
  %v829 = vmul.f32 %v828, %v827
  %v830 = vmul.f32 0.5, %v829
  %v831 = vsub.f32 1.5, %v830
  %v832 = vmul.f32 %v827, %v831
  %vm833 = vweird.f32 %v651
  %vm834 = vweird.f32 %v827
  %vm835 = vmor %vm833, %vm834
  %v836 = vsel %vm835, %v827, %v832
  %v837 = vrsqrt.pop %v652
  %v838 = vmul.f32 %v837, %v652
  %v839 = vmul.f32 %v838, %v837
  %v840 = vmul.f32 0.5, %v839
  %v841 = vsub.f32 1.5, %v840
  %v842 = vmul.f32 %v837, %v841
  %vm843 = vweird.f32 %v652
  %vm844 = vweird.f32 %v837
  %vm845 = vmor %vm843, %vm844
  %v846 = vsel %vm845, %v837, %v842
  %v847 = vrsqrt.pop %v653
  %v848 = vmul.f32 %v847, %v653
  %v849 = vmul.f32 %v848, %v847
  %v850 = vmul.f32 0.5, %v849
  %v851 = vsub.f32 1.5, %v850
  %v852 = vmul.f32 %v847, %v851
  %vm853 = vweird.f32 %v653
  %vm854 = vweird.f32 %v847
  %vm855 = vmor %vm853, %vm854
  %v856 = vsel %vm855, %v847, %v852
  %v857 = vrsqrt.pop %v654
  %v858 = vmul.f32 %v857, %v654
  %v859 = vmul.f32 %v858, %v857
  %v860 = vmul.f32 0.5, %v859
  %v861 = vsub.f32 1.5, %v860
  %v862 = vmul.f32 %v857, %v861
  %vm863 = vweird.f32 %v654
  %vm864 = vweird.f32 %v857
  %vm865 = vmor %vm863, %vm864
  %v866 = vsel %vm865, %v857, %v862
  %v867 = vrsqrt.pop %v655
  %v868 = vmul.f32 %v867, %v655
  %v869 = vmul.f32 %v868, %v867
  %v870 = vmul.f32 0.5, %v869
  %v871 = vsub.f32 1.5, %v870
  %v872 = vmul.f32 %v867, %v871
  %vm873 = vweird.f32 %v655
  %vm874 = vweird.f32 %v867
  %vm875 = vmor %vm873, %vm874
  %v876 = vsel %vm875, %v867, %v872
  %v877 = vrsqrt.pop %v656
  %v878 = vmul.f32 %v877, %v656
  %v879 = vmul.f32 %v878, %v877
  %v880 = vmul.f32 0.5, %v879
  %v881 = vsub.f32 1.5, %v880
  %v882 = vmul.f32 %v877, %v881
  %vm883 = vweird.f32 %v656
  %vm884 = vweird.f32 %v877
  %vm885 = vmor %vm883, %vm884
  %v886 = vsel %vm885, %v877, %v882
  %v887 = vrsqrt.pop %v657
  %v888 = vmul.f32 %v887, %v657
  %v889 = vmul.f32 %v888, %v887
  %v890 = vmul.f32 0.5, %v889
  %v891 = vsub.f32 1.5, %v890
  %v892 = vmul.f32 %v887, %v891
  %vm893 = vweird.f32 %v657
  %vm894 = vweird.f32 %v887
  %vm895 = vmor %vm893, %vm894
  %v896 = vsel %vm895, %v887, %v892
  %v897 = vrsqrt.pop %v658
  %v898 = vmul.f32 %v897, %v658
  %v899 = vmul.f32 %v898, %v897
  %v900 = vmul.f32 0.5, %v899
  %v901 = vsub.f32 1.5, %v900
  %v902 = vmul.f32 %v897, %v901
  %vm903 = vweird.f32 %v658
  %vm904 = vweird.f32 %v897
  %vm905 = vmor %vm903, %vm904
  %v906 = vsel %vm905, %v897, %v902
  %v907 = vrsqrt.pop %v659
  %v908 = vmul.f32 %v907, %v659
  %v909 = vmul.f32 %v908, %v907
  %v910 = vmul.f32 0.5, %v909
  %v911 = vsub.f32 1.5, %v910
  %v912 = vmul.f32 %v907, %v911
  %vm913 = vweird.f32 %v659
  %vm914 = vweird.f32 %v907
  %vm915 = vmor %vm913, %vm914
  %v916 = vsel %vm915, %v907, %v912
  %v917 = vrsqrt.pop %v660
  %v918 = vmul.f32 %v917, %v660
  %v919 = vmul.f32 %v918, %v917
  %v920 = vmul.f32 0.5, %v919
  %v921 = vsub.f32 1.5, %v920
  %v922 = vmul.f32 %v917, %v921
  %vm923 = vweird.f32 %v660
  %vm924 = vweird.f32 %v917
  %vm925 = vmor %vm923, %vm924
  %v926 = vsel %vm925, %v917, %v922
  %v927 = vrsqrt.pop %v661
  %v928 = vmul.f32 %v927, %v661
  %v929 = vmul.f32 %v928, %v927
  %v930 = vmul.f32 0.5, %v929
  %v931 = vsub.f32 1.5, %v930
  %v932 = vmul.f32 %v927, %v931
  %vm933 = vweird.f32 %v661
  %vm934 = vweird.f32 %v927
  %vm935 = vmor %vm933, %vm934
  %v936 = vsel %vm935, %v927, %v932
  %v937 = vrsqrt.pop %v662
  %v938 = vmul.f32 %v937, %v662
  %v939 = vmul.f32 %v938, %v937
  %v940 = vmul.f32 0.5, %v939
  %v941 = vsub.f32 1.5, %v940
  %v942 = vmul.f32 %v937, %v941
  %vm943 = vweird.f32 %v662
  %vm944 = vweird.f32 %v937
  %vm945 = vmor %vm943, %vm944
  %v946 = vsel %vm945, %v937, %v942
  %v947 = vrsqrt.pop %v663
  %v948 = vmul.f32 %v947, %v663
  %v949 = vmul.f32 %v948, %v947
  %v950 = vmul.f32 0.5, %v949
  %v951 = vsub.f32 1.5, %v950
  %v952 = vmul.f32 %v947, %v951
  %vm953 = vweird.f32 %v663
  %vm954 = vweird.f32 %v947
  %vm955 = vmor %vm953, %vm954
  %v956 = vsel %vm955, %v947, %v952
  %v957 = vrsqrt.pop %v664
  %v958 = vmul.f32 %v957, %v664
  %v959 = vmul.f32 %v958, %v957
  %v960 = vmul.f32 0.5, %v959
  %v961 = vsub.f32 1.5, %v960
  %v962 = vmul.f32 %v957, %v961
  %vm963 = vweird.f32 %v664
  %vm964 = vweird.f32 %v957
  %vm965 = vmor %vm963, %vm964
  %v966 = vsel %vm965, %v957, %v962
  %v967 = vrsqrt.pop %v665
  %v968 = vmul.f32 %v967, %v665
  %v969 = vmul.f32 %v968, %v967
  %v970 = vmul.f32 0.5, %v969
  %v971 = vsub.f32 1.5, %v970
  %v972 = vmul.f32 %v967, %v971
  %vm973 = vweird.f32 %v665
  %vm974 = vweird.f32 %v967
  %vm975 = vmor %vm973, %vm974
  %v976 = vsel %vm975, %v967, %v972
  %v977 = vrsqrt.pop %v666
  %v978 = vmul.f32 %v977, %v666
  %v979 = vmul.f32 %v978, %v977
  %v980 = vmul.f32 0.5, %v979
  %v981 = vsub.f32 1.5, %v980
  %v982 = vmul.f32 %v977, %v981
  %vm983 = vweird.f32 %v666
  %vm984 = vweird.f32 %v977
  %vm985 = vmor %vm983, %vm984
  %v986 = vsel %vm985, %v977, %v982
  %v987 = vmul.f32 %v443, %v676
  %v988 = vmul.f32 %v444, %v686
  %v989 = vmul.f32 %v445, %v696
  %v990 = vmul.f32 %v446, %v706
  %v991 = vmul.f32 %v447, %v716
  %v992 = vmul.f32 %v448, %v726
  %v993 = vmul.f32 %v449, %v736
  %v994 = vmul.f32 %v450, %v746
  %v995 = vmul.f32 %v451, %v756
  %v996 = vmul.f32 %v452, %v766
  %v997 = vmul.f32 %v453, %v776
  %v998 = vmul.f32 %v454, %v786
  %v999 = vmul.f32 %v455, %v796
  %v1000 = vmul.f32 %v456, %v806
  %v1001 = vmul.f32 %v457, %v816
  %v1002 = vmul.f32 %v458, %v826
  %v1003 = vmul.f32 %v459, %v836
  %v1004 = vmul.f32 %v460, %v846
  %v1005 = vmul.f32 %v461, %v856
  %v1006 = vmul.f32 %v462, %v866
  %v1007 = vmul.f32 %v463, %v876
  %v1008 = vmul.f32 %v464, %v886
  %v1009 = vmul.f32 %v465, %v896
  %v1010 = vmul.f32 %v466, %v906
  %v1011 = vmul.f32 %v467, %v916
  %v1012 = vmul.f32 %v468, %v926
  %v1013 = vmul.f32 %v469, %v936
  %v1014 = vmul.f32 %v470, %v946
  %v1015 = vmul.f32 %v471, %v956
  %v1016 = vmul.f32 %v472, %v966
  %v1017 = vmul.f32 %v473, %v976
  %v1018 = vmul.f32 %v474, %v986
  %v1019 = vld [vmem:[%s3] sm:$0x1]
  %v1021 = vperm.slane %v1019, 0
  %v1023 = vmul.f32 %v987, %v1021
  %v1024 = vmul.f32 %v988, %v1021
  %v1025 = vmul.f32 %v989, %v1021
  %v1026 = vmul.f32 %v990, %v1021
  %v1027 = vmul.f32 %v991, %v1021
  %v1028 = vmul.f32 %v992, %v1021
  %v1029 = vmul.f32 %v993, %v1021
  %v1030 = vmul.f32 %v994, %v1021
  %v1031 = vmul.f32 %v995, %v1021
  %v1032 = vmul.f32 %v996, %v1021
  %v1033 = vmul.f32 %v997, %v1021
  %v1034 = vmul.f32 %v998, %v1021
  %v1035 = vmul.f32 %v999, %v1021
  %v1036 = vmul.f32 %v1000, %v1021
  %v1037 = vmul.f32 %v1001, %v1021
  %v1038 = vmul.f32 %v1002, %v1021
  %v1039 = vmul.f32 %v1003, %v1021
  %v1040 = vmul.f32 %v1004, %v1021
  %v1041 = vmul.f32 %v1005, %v1021
  %v1042 = vmul.f32 %v1006, %v1021
  %v1043 = vmul.f32 %v1007, %v1021
  %v1044 = vmul.f32 %v1008, %v1021
  %v1045 = vmul.f32 %v1009, %v1021
  %v1046 = vmul.f32 %v1010, %v1021
  %v1047 = vmul.f32 %v1011, %v1021
  %v1048 = vmul.f32 %v1012, %v1021
  %v1049 = vmul.f32 %v1013, %v1021
  %v1050 = vmul.f32 %v1014, %v1021
  %v1051 = vmul.f32 %v1015, %v1021
  %v1052 = vmul.f32 %v1016, %v1021
  %v1053 = vmul.f32 %v1017, %v1021
  %v1054 = vmul.f32 %v1018, %v1021
  %v1055 = vld [vmem:[%s4] sm:$0x1]
  %v1057 = vperm.slane %v1055, 0
  %v1059 = vadd.f32 %v1023, %v1057
  %v1060 = vadd.f32 %v1024, %v1057
  %v1061 = vadd.f32 %v1025, %v1057
  %v1062 = vadd.f32 %v1026, %v1057
  %v1063 = vadd.f32 %v1027, %v1057
  %v1064 = vadd.f32 %v1028, %v1057
  %v1065 = vadd.f32 %v1029, %v1057
  %v1066 = vadd.f32 %v1030, %v1057
  %v1067 = vadd.f32 %v1031, %v1057
  %v1068 = vadd.f32 %v1032, %v1057
  %v1069 = vadd.f32 %v1033, %v1057
  %v1070 = vadd.f32 %v1034, %v1057
  %v1071 = vadd.f32 %v1035, %v1057
  %v1072 = vadd.f32 %v1036, %v1057
  %v1073 = vadd.f32 %v1037, %v1057
  %v1074 = vadd.f32 %v1038, %v1057
  %v1075 = vadd.f32 %v1039, %v1057
  %v1076 = vadd.f32 %v1040, %v1057
  %v1077 = vadd.f32 %v1041, %v1057
  %v1078 = vadd.f32 %v1042, %v1057
  %v1079 = vadd.f32 %v1043, %v1057
  %v1080 = vadd.f32 %v1044, %v1057
  %v1081 = vadd.f32 %v1045, %v1057
  %v1082 = vadd.f32 %v1046, %v1057
  %v1083 = vadd.f32 %v1047, %v1057
  %v1084 = vadd.f32 %v1048, %v1057
  %v1085 = vadd.f32 %v1049, %v1057
  %v1086 = vadd.f32 %v1050, %v1057
  %v1087 = vadd.f32 %v1051, %v1057
  %v1088 = vadd.f32 %v1052, %v1057
  %v1089 = vadd.f32 %v1053, %v1057
  %v1090 = vadd.f32 %v1054, %v1057
  %v1091 = vpack.c.bf16 %v1059, %v1059
  %v1092 = vpack.c.bf16 %v1060, %v1060
  %v1093 = vpack.c.bf16 %v1061, %v1061
  %v1094 = vpack.c.bf16 %v1062, %v1062
  %v1095 = vpack.c.bf16 %v1063, %v1063
  %v1096 = vpack.c.bf16 %v1064, %v1064
  %v1097 = vpack.c.bf16 %v1065, %v1065
  %v1098 = vpack.c.bf16 %v1066, %v1066
  %v1099 = vpack.c.bf16 %v1067, %v1067
  %v1100 = vpack.c.bf16 %v1068, %v1068
  %v1101 = vpack.c.bf16 %v1069, %v1069
  %v1102 = vpack.c.bf16 %v1070, %v1070
  %v1103 = vpack.c.bf16 %v1071, %v1071
  %v1104 = vpack.c.bf16 %v1072, %v1072
  %v1105 = vpack.c.bf16 %v1073, %v1073
  %v1106 = vpack.c.bf16 %v1074, %v1074
  %v1107 = vpack.c.bf16 %v1075, %v1075
  %v1108 = vpack.c.bf16 %v1076, %v1076
  %v1109 = vpack.c.bf16 %v1077, %v1077
  %v1110 = vpack.c.bf16 %v1078, %v1078
  %v1111 = vpack.c.bf16 %v1079, %v1079
  %v1112 = vpack.c.bf16 %v1080, %v1080
  %v1113 = vpack.c.bf16 %v1081, %v1081
  %v1114 = vpack.c.bf16 %v1082, %v1082
  %v1115 = vpack.c.bf16 %v1083, %v1083
  %v1116 = vpack.c.bf16 %v1084, %v1084
  %v1117 = vpack.c.bf16 %v1085, %v1085
  %v1118 = vpack.c.bf16 %v1086, %v1086
  %v1119 = vpack.c.bf16 %v1087, %v1087
  %v1120 = vpack.c.bf16 %v1088, %v1088
  %v1121 = vpack.c.bf16 %v1089, %v1089
  %v1122 = vpack.c.bf16 %v1090, %v1090
  %vm1123 = vcmask 125952
  %1124 = vst.msk [vmem:[%s5] sm:$0xf] %vm1123, %v1091
  %1125 = vst.msk [vmem:[%s5 + $0x4] sm:$0xf] %vm1123, %v1092
  %1126 = vst.msk [vmem:[%s5 + $0x8] sm:$0xf] %vm1123, %v1093
  %1127 = vst.msk [vmem:[%s5 + $0xc] sm:$0xf] %vm1123, %v1094
  %1128 = vst.msk [vmem:[%s5 + $0x10] sm:$0xf] %vm1123, %v1095
  %1129 = vst.msk [vmem:[%s5 + $0x14] sm:$0xf] %vm1123, %v1096
  %1130 = vst.msk [vmem:[%s5 + $0x18] sm:$0xf] %vm1123, %v1097
  %1131 = vst.msk [vmem:[%s5 + $0x1c] sm:$0xf] %vm1123, %v1098
  %1132 = vst.msk [vmem:[%s5 + $0x20] sm:$0xf] %vm1123, %v1099
  %1133 = vst.msk [vmem:[%s5 + $0x24] sm:$0xf] %vm1123, %v1100
  %1134 = vst.msk [vmem:[%s5 + $0x28] sm:$0xf] %vm1123, %v1101
  %1135 = vst.msk [vmem:[%s5 + $0x2c] sm:$0xf] %vm1123, %v1102
  %1136 = vst.msk [vmem:[%s5 + $0x30] sm:$0xf] %vm1123, %v1103
  %1137 = vst.msk [vmem:[%s5 + $0x34] sm:$0xf] %vm1123, %v1104
  %1138 = vst.msk [vmem:[%s5 + $0x38] sm:$0xf] %vm1123, %v1105
  %1139 = vst.msk [vmem:[%s5 + $0x3c] sm:$0xf] %vm1123, %v1106
  %1140 = vst.msk [vmem:[%s5 + $0x40] sm:$0xf] %vm1123, %v1107
  %1141 = vst.msk [vmem:[%s5 + $0x44] sm:$0xf] %vm1123, %v1108
  %1142 = vst.msk [vmem:[%s5 + $0x48] sm:$0xf] %vm1123, %v1109
  %1143 = vst.msk [vmem:[%s5 + $0x4c] sm:$0xf] %vm1123, %v1110
  %1144 = vst.msk [vmem:[%s5 + $0x50] sm:$0xf] %vm1123, %v1111
  %1145 = vst.msk [vmem:[%s5 + $0x54] sm:$0xf] %vm1123, %v1112
  %1146 = vst.msk [vmem:[%s5 + $0x58] sm:$0xf] %vm1123, %v1113
  %1147 = vst.msk [vmem:[%s5 + $0x5c] sm:$0xf] %vm1123, %v1114
  %1148 = vst.msk [vmem:[%s5 + $0x60] sm:$0xf] %vm1123, %v1115
  %1149 = vst.msk [vmem:[%s5 + $0x64] sm:$0xf] %vm1123, %v1116
  %1150 = vst.msk [vmem:[%s5 + $0x68] sm:$0xf] %vm1123, %v1117
  %1151 = vst.msk [vmem:[%s5 + $0x6c] sm:$0xf] %vm1123, %v1118
  %1152 = vst.msk [vmem:[%s5 + $0x70] sm:$0xf] %vm1123, %v1119
  %1153 = vst.msk [vmem:[%s5 + $0x74] sm:$0xf] %vm1123, %v1120
  %1154 = vst.msk [vmem:[%s5 + $0x78] sm:$0xf] %vm1123, %v1121
  %1155 = vst.msk [vmem:[%s5 + $0x7c] sm:$0xf] %vm1123, %v1122
  // Predicated region
  $region22: #{stmamba_bcd_forward.25} parent=0 // pred_check
    _
  $region23: #{stmamba_bcd_forward.25} parent=0 // pred_check_branch
    %1157 = sbr.rel (0) target = $region25
  $region24: #{stmamba_bcd_forward.25} parent=0 // pred_region
    _
  $region25: #{stmamba_bcd_forward.25} parent=0 // pred_fallthru
    _
  // Predicated region
  $region26: #{stmamba_bcd_forward.25} parent=0 // pred_check
    _
  $region27: #{stmamba_bcd_forward.25} parent=0 // pred_check_branch
    %1159 = sbr.rel (0) target = $region29
  $region28: #{stmamba_bcd_forward.25} parent=0 // pred_region
    _
  $region29: #{stmamba_bcd_forward.25} parent=0 // pred_fallthru
    _

// kernel: stmamba_bcd_forward.26
$region0: #{stmamba_bcd_forward.26}
  #allocation0 [shape = 'u32[]', space=smem, size = 0x4, offset = 0x4, fixed_abs, tag = 'smem constant byte address 0x4 - core index']
  #allocation1 [shape = 'u32[72,128]{1,0:T(1,128)}', space=vmem, size = 0x9000, scoped, tag = 'internal scratch']
  %s0 = inlined_call_operand.vmem [shape: bf16[256,16], index: 0, kind: input, shape index: {}]
  %s1 = inlined_call_operand.vmem [shape: f32[1,16], index: 1, kind: input, shape index: {}]
  %s2 = inlined_call_operand.vmem [shape: f32[1,16], index: 2, kind: input, shape index: {}]
  %s3 = inlined_call_operand.vmem [shape: bf16[16,32], index: 3, kind: input, shape index: {}]
  %s4 = inlined_call_operand.vmem [shape: f32[1,32], index: 4, kind: input, shape index: {}]
  %s5 = inlined_call_operand.vmem [shape: bf16[32,16], index: 5, kind: input, shape index: {}]
  %s6 = inlined_call_operand.vmem [shape: f32[1,16], index: 6, kind: input, shape index: {}]
  %s7 = inlined_call_operand.vmem [shape: bf16[256,16], index: 7, kind: output, shape index: {}]
  %s8 = sld [smem:[#allocation0]]
  $region38: #{stmamba_bcd_forward.26} parent=0
    _
  %s10 = ssub.s32 1, %s8
  %s11 = scalar_select 0, %s10, %s8
  // Predicated region
  $region2: #{stmamba_bcd_forward.26} parent=0 // pred_check
    _
  $region3: #{stmamba_bcd_forward.26} parent=0 // pred_check_branch
    %13 = sbr.rel (0) target = $region5
  $region4: #{stmamba_bcd_forward.26} parent=0 // pred_region
    _
  $region5: #{stmamba_bcd_forward.26} parent=0 // pred_fallthru
    _
  // Predicated region
  $region6: #{stmamba_bcd_forward.26} parent=0 // pred_check
    _
  $region7: #{stmamba_bcd_forward.26} parent=0 // pred_check_branch
    %15 = sbr.rel (0) target = $region9
  $region8: #{stmamba_bcd_forward.26} parent=0 // pred_region
    _
  $region9: #{stmamba_bcd_forward.26} parent=0 // pred_fallthru
    _
  // Predicated region
  $region10: #{stmamba_bcd_forward.26} parent=0 // pred_check
    _
  $region11: #{stmamba_bcd_forward.26} parent=0 // pred_check_branch
    %17 = sbr.rel (0) target = $region13
  $region12: #{stmamba_bcd_forward.26} parent=0 // pred_region
    _
  $region13: #{stmamba_bcd_forward.26} parent=0 // pred_fallthru
    _
  // Predicated region
  $region14: #{stmamba_bcd_forward.26} parent=0 // pred_check
    _
  $region15: #{stmamba_bcd_forward.26} parent=0 // pred_check_branch
    %19 = sbr.rel (0) target = $region17
  $region16: #{stmamba_bcd_forward.26} parent=0 // pred_region
    _
  $region17: #{stmamba_bcd_forward.26} parent=0 // pred_fallthru
    _
  // Predicated region
  $region18: #{stmamba_bcd_forward.26} parent=0 // pred_check
    _
  $region19: #{stmamba_bcd_forward.26} parent=0 // pred_check_branch
    %21 = sbr.rel (0) target = $region21
  $region20: #{stmamba_bcd_forward.26} parent=0 // pred_region
    _
  $region21: #{stmamba_bcd_forward.26} parent=0 // pred_fallthru
    _
  // Predicated region
  $region22: #{stmamba_bcd_forward.26} parent=0 // pred_check
    _
  $region23: #{stmamba_bcd_forward.26} parent=0 // pred_check_branch
    %23 = sbr.rel (0) target = $region25
  $region24: #{stmamba_bcd_forward.26} parent=0 // pred_region
    _
  $region25: #{stmamba_bcd_forward.26} parent=0 // pred_fallthru
    _
  // Predicated region
  $region26: #{stmamba_bcd_forward.26} parent=0 // pred_check
    _
  $region27: #{stmamba_bcd_forward.26} parent=0 // pred_check_branch
    %25 = sbr.rel (0) target = $region29
  $region28: #{stmamba_bcd_forward.26} parent=0 // pred_region
    _
  $region29: #{stmamba_bcd_forward.26} parent=0 // pred_fallthru
    _
  %v27 = vld [vmem:[%s0] sm:$0xf]
  %v28 = vld [vmem:[%s0 + $0x4] sm:$0xf]
  %v29 = vld [vmem:[%s0 + $0x8] sm:$0xf]
  %v30 = vld [vmem:[%s0 + $0xc] sm:$0xf]
  %v31 = vld [vmem:[%s0 + $0x10] sm:$0xf]
  %v32 = vld [vmem:[%s0 + $0x14] sm:$0xf]
  %v33 = vld [vmem:[%s0 + $0x18] sm:$0xf]
  %v34 = vld [vmem:[%s0 + $0x1c] sm:$0xf]
  %v35 = vld [vmem:[%s0 + $0x20] sm:$0xf]
  %v36 = vld [vmem:[%s0 + $0x24] sm:$0xf]
  %v37 = vld [vmem:[%s0 + $0x28] sm:$0xf]
  %v38 = vld [vmem:[%s0 + $0x2c] sm:$0xf]
  %v39 = vld [vmem:[%s0 + $0x30] sm:$0xf]
  %v40 = vld [vmem:[%s0 + $0x34] sm:$0xf]
  %v41 = vld [vmem:[%s0 + $0x38] sm:$0xf]
  %v42 = vld [vmem:[%s0 + $0x3c] sm:$0xf]
  %v43 = vld [vmem:[%s0 + $0x40] sm:$0xf]
  %v44 = vld [vmem:[%s0 + $0x44] sm:$0xf]
  %v45 = vld [vmem:[%s0 + $0x48] sm:$0xf]
  %v46 = vld [vmem:[%s0 + $0x4c] sm:$0xf]
  %v47 = vld [vmem:[%s0 + $0x50] sm:$0xf]
  %v48 = vld [vmem:[%s0 + $0x54] sm:$0xf]
  %v49 = vld [vmem:[%s0 + $0x58] sm:$0xf]
  %v50 = vld [vmem:[%s0 + $0x5c] sm:$0xf]
  %v51 = vld [vmem:[%s0 + $0x60] sm:$0xf]
  %v52 = vld [vmem:[%s0 + $0x64] sm:$0xf]
  %v53 = vld [vmem:[%s0 + $0x68] sm:$0xf]
  %v54 = vld [vmem:[%s0 + $0x6c] sm:$0xf]
  %v55 = vld [vmem:[%s0 + $0x70] sm:$0xf]
  %v56 = vld [vmem:[%s0 + $0x74] sm:$0xf]
  %v57 = vld [vmem:[%s0 + $0x78] sm:$0xf]
  %v58 = vld [vmem:[%s0 + $0x7c] sm:$0xf]
  %v59 = vunpack.c.l.bf16 %v27
  %v60 = vunpack.c.l.bf16 %v28
  %v61 = vunpack.c.l.bf16 %v29
  %v62 = vunpack.c.l.bf16 %v30
  %v63 = vunpack.c.l.bf16 %v31
  %v64 = vunpack.c.l.bf16 %v32
  %v65 = vunpack.c.l.bf16 %v33
  %v66 = vunpack.c.l.bf16 %v34
  %v67 = vunpack.c.l.bf16 %v35
  %v68 = vunpack.c.l.bf16 %v36
  %v69 = vunpack.c.l.bf16 %v37
  %v70 = vunpack.c.l.bf16 %v38
  %v71 = vunpack.c.l.bf16 %v39
  %v72 = vunpack.c.l.bf16 %v40
  %v73 = vunpack.c.l.bf16 %v41
  %v74 = vunpack.c.l.bf16 %v42
  %v75 = vunpack.c.l.bf16 %v43
  %v76 = vunpack.c.l.bf16 %v44
  %v77 = vunpack.c.l.bf16 %v45
  %v78 = vunpack.c.l.bf16 %v46
  %v79 = vunpack.c.l.bf16 %v47
  %v80 = vunpack.c.l.bf16 %v48
  %v81 = vunpack.c.l.bf16 %v49
  %v82 = vunpack.c.l.bf16 %v50
  %v83 = vunpack.c.l.bf16 %v51
  %v84 = vunpack.c.l.bf16 %v52
  %v85 = vunpack.c.l.bf16 %v53
  %v86 = vunpack.c.l.bf16 %v54
  %v87 = vunpack.c.l.bf16 %v55
  %v88 = vunpack.c.l.bf16 %v56
  %v89 = vunpack.c.l.bf16 %v57
  %v90 = vunpack.c.l.bf16 %v58
  %vm91 = vcmask 130048
  %v92 = vsel %vm91, %v59, 0.0
  %93 = vadd.xlane.f32.xlu0 %v92
  %v94 = vpop.xlane.xlu0 %93
  %v95 = vsel %vm91, %v60, 0.0
  %96 = vadd.xlane.f32.xlu0 %v95
  %v97 = vpop.xlane.xlu0 %96
  %v98 = vsel %vm91, %v61, 0.0
  %99 = vadd.xlane.f32.xlu0 %v98
  %v100 = vpop.xlane.xlu0 %99
  %v101 = vsel %vm91, %v62, 0.0
  %102 = vadd.xlane.f32.xlu0 %v101
  %v103 = vpop.xlane.xlu0 %102
  %v104 = vsel %vm91, %v63, 0.0
  %105 = vadd.xlane.f32.xlu0 %v104
  %v106 = vpop.xlane.xlu0 %105
  %v107 = vsel %vm91, %v64, 0.0
  %108 = vadd.xlane.f32.xlu0 %v107
  %v109 = vpop.xlane.xlu0 %108
  %v110 = vsel %vm91, %v65, 0.0
  %111 = vadd.xlane.f32.xlu0 %v110
  %v112 = vpop.xlane.xlu0 %111
  %v113 = vsel %vm91, %v66, 0.0
  %114 = vadd.xlane.f32.xlu0 %v113
  %v115 = vpop.xlane.xlu0 %114
  %v116 = vsel %vm91, %v67, 0.0
  %117 = vadd.xlane.f32.xlu0 %v116
  %v118 = vpop.xlane.xlu0 %117
  %v119 = vsel %vm91, %v68, 0.0
  %120 = vadd.xlane.f32.xlu0 %v119
  %v121 = vpop.xlane.xlu0 %120
  %v122 = vsel %vm91, %v69, 0.0
  %123 = vadd.xlane.f32.xlu0 %v122
  %v124 = vpop.xlane.xlu0 %123
  %v125 = vsel %vm91, %v70, 0.0
  %126 = vadd.xlane.f32.xlu0 %v125
  %v127 = vpop.xlane.xlu0 %126
  %v128 = vsel %vm91, %v71, 0.0
  %129 = vadd.xlane.f32.xlu0 %v128
  %v130 = vpop.xlane.xlu0 %129
  %v131 = vsel %vm91, %v72, 0.0
  %132 = vadd.xlane.f32.xlu0 %v131
  %v133 = vpop.xlane.xlu0 %132
  %v134 = vsel %vm91, %v73, 0.0
  %135 = vadd.xlane.f32.xlu0 %v134
  %v136 = vpop.xlane.xlu0 %135
  %v137 = vsel %vm91, %v74, 0.0
  %138 = vadd.xlane.f32.xlu0 %v137
  %v139 = vpop.xlane.xlu0 %138
  %v140 = vsel %vm91, %v75, 0.0
  %141 = vadd.xlane.f32.xlu0 %v140
  %v142 = vpop.xlane.xlu0 %141
  %v143 = vsel %vm91, %v76, 0.0
  %144 = vadd.xlane.f32.xlu0 %v143
  %v145 = vpop.xlane.xlu0 %144
  %v146 = vsel %vm91, %v77, 0.0
  %147 = vadd.xlane.f32.xlu0 %v146
  %v148 = vpop.xlane.xlu0 %147
  %v149 = vsel %vm91, %v78, 0.0
  %150 = vadd.xlane.f32.xlu0 %v149
  %v151 = vpop.xlane.xlu0 %150
  %v152 = vsel %vm91, %v79, 0.0
  %153 = vadd.xlane.f32.xlu0 %v152
  %v154 = vpop.xlane.xlu0 %153
  %v155 = vsel %vm91, %v80, 0.0
  %156 = vadd.xlane.f32.xlu0 %v155
  %v157 = vpop.xlane.xlu0 %156
  %v158 = vsel %vm91, %v81, 0.0
  %159 = vadd.xlane.f32.xlu0 %v158
  %v160 = vpop.xlane.xlu0 %159
  %v161 = vsel %vm91, %v82, 0.0
  %162 = vadd.xlane.f32.xlu0 %v161
  %v163 = vpop.xlane.xlu0 %162
  %v164 = vsel %vm91, %v83, 0.0
  %165 = vadd.xlane.f32.xlu0 %v164
  %v166 = vpop.xlane.xlu0 %165
  %v167 = vsel %vm91, %v84, 0.0
  %168 = vadd.xlane.f32.xlu0 %v167
  %v169 = vpop.xlane.xlu0 %168
  %v170 = vsel %vm91, %v85, 0.0
  %171 = vadd.xlane.f32.xlu0 %v170
  %v172 = vpop.xlane.xlu0 %171
  %v173 = vsel %vm91, %v86, 0.0
  %174 = vadd.xlane.f32.xlu0 %v173
  %v175 = vpop.xlane.xlu0 %174
  %v176 = vsel %vm91, %v87, 0.0
  %177 = vadd.xlane.f32.xlu0 %v176
  %v178 = vpop.xlane.xlu0 %177
  %v179 = vsel %vm91, %v88, 0.0
  %180 = vadd.xlane.f32.xlu0 %v179
  %v181 = vpop.xlane.xlu0 %180
  %v182 = vsel %vm91, %v89, 0.0
  %183 = vadd.xlane.f32.xlu0 %v182
  %v184 = vpop.xlane.xlu0 %183
  %v185 = vsel %vm91, %v90, 0.0
  %186 = vadd.xlane.f32.xlu0 %v185
  %v187 = vpop.xlane.xlu0 %186
  %v188 = vrcp.pop 16.0
  %v189 = vmul.f32 16.0, %v188
  %v190 = vsub.f32 1.0, %v189
  %v191 = vmul.f32 %v188, %v190
  %v192 = vadd.f32 %v188, %v191
  %vm193 = vweird.f32 %v188
  %v194 = vsel %vm193, %v188, %v192
  %v195 = vmul.f32 %v94, %v194
  %v196 = vmul.f32 %v97, %v194
  %v197 = vmul.f32 %v100, %v194
  %v198 = vmul.f32 %v103, %v194
  %v199 = vmul.f32 %v106, %v194
  %v200 = vmul.f32 %v109, %v194
  %v201 = vmul.f32 %v112, %v194
  %v202 = vmul.f32 %v115, %v194
  %v203 = vmul.f32 %v118, %v194
  %v204 = vmul.f32 %v121, %v194
  %v205 = vmul.f32 %v124, %v194
  %v206 = vmul.f32 %v127, %v194
  %v207 = vmul.f32 %v130, %v194
  %v208 = vmul.f32 %v133, %v194
  %v209 = vmul.f32 %v136, %v194
  %v210 = vmul.f32 %v139, %v194
  %v211 = vmul.f32 %v142, %v194
  %v212 = vmul.f32 %v145, %v194
  %v213 = vmul.f32 %v148, %v194
  %v214 = vmul.f32 %v151, %v194
  %v215 = vmul.f32 %v154, %v194
  %v216 = vmul.f32 %v157, %v194
  %v217 = vmul.f32 %v160, %v194
  %v218 = vmul.f32 %v163, %v194
  %v219 = vmul.f32 %v166, %v194
  %v220 = vmul.f32 %v169, %v194
  %v221 = vmul.f32 %v172, %v194
  %v222 = vmul.f32 %v175, %v194
  %v223 = vmul.f32 %v178, %v194
  %v224 = vmul.f32 %v181, %v194
  %v225 = vmul.f32 %v184, %v194
  %v226 = vmul.f32 %v187, %v194
  %v227 = vsub.f32 %v59, %v195
  %v228 = vsub.f32 %v60, %v196
  %v229 = vsub.f32 %v61, %v197
  %v230 = vsub.f32 %v62, %v198
  %v231 = vsub.f32 %v63, %v199
  %v232 = vsub.f32 %v64, %v200
  %v233 = vsub.f32 %v65, %v201
  %v234 = vsub.f32 %v66, %v202
  %v235 = vsub.f32 %v67, %v203
  %v236 = vsub.f32 %v68, %v204
  %v237 = vsub.f32 %v69, %v205
  %v238 = vsub.f32 %v70, %v206
  %v239 = vsub.f32 %v71, %v207
  %v240 = vsub.f32 %v72, %v208
  %v241 = vsub.f32 %v73, %v209
  %v242 = vsub.f32 %v74, %v210
  %v243 = vsub.f32 %v75, %v211
  %v244 = vsub.f32 %v76, %v212
  %v245 = vsub.f32 %v77, %v213
  %v246 = vsub.f32 %v78, %v214
  %v247 = vsub.f32 %v79, %v215
  %v248 = vsub.f32 %v80, %v216
  %v249 = vsub.f32 %v81, %v217
  %v250 = vsub.f32 %v82, %v218
  %v251 = vsub.f32 %v83, %v219
  %v252 = vsub.f32 %v84, %v220
  %v253 = vsub.f32 %v85, %v221
  %v254 = vsub.f32 %v86, %v222
  %v255 = vsub.f32 %v87, %v223
  %v256 = vsub.f32 %v88, %v224
  %v257 = vsub.f32 %v89, %v225
  %v258 = vsub.f32 %v90, %v226
  %v259 = vmul.f32 %v227, %v227
  %v260 = vmul.f32 %v228, %v228
  %v261 = vmul.f32 %v229, %v229
  %v262 = vmul.f32 %v230, %v230
  %v263 = vmul.f32 %v231, %v231
  %v264 = vmul.f32 %v232, %v232
  %v265 = vmul.f32 %v233, %v233
  %v266 = vmul.f32 %v234, %v234
  %v267 = vmul.f32 %v235, %v235
  %v268 = vmul.f32 %v236, %v236
  %v269 = vmul.f32 %v237, %v237
  %v270 = vmul.f32 %v238, %v238
  %v271 = vmul.f32 %v239, %v239
  %v272 = vmul.f32 %v240, %v240
  %v273 = vmul.f32 %v241, %v241
  %v274 = vmul.f32 %v242, %v242
  %v275 = vmul.f32 %v243, %v243
  %v276 = vmul.f32 %v244, %v244
  %v277 = vmul.f32 %v245, %v245
  %v278 = vmul.f32 %v246, %v246
  %v279 = vmul.f32 %v247, %v247
  %v280 = vmul.f32 %v248, %v248
  %v281 = vmul.f32 %v249, %v249
  %v282 = vmul.f32 %v250, %v250
  %v283 = vmul.f32 %v251, %v251
  %v284 = vmul.f32 %v252, %v252
  %v285 = vmul.f32 %v253, %v253
  %v286 = vmul.f32 %v254, %v254
  %v287 = vmul.f32 %v255, %v255
  %v288 = vmul.f32 %v256, %v256
  %v289 = vmul.f32 %v257, %v257
  %v290 = vmul.f32 %v258, %v258
  %v291 = vsel %vm91, %v259, 0.0
  %292 = vadd.xlane.f32.xlu0 %v291
  %v293 = vpop.xlane.xlu0 %292
  %v294 = vsel %vm91, %v260, 0.0
  %295 = vadd.xlane.f32.xlu0 %v294
  %v296 = vpop.xlane.xlu0 %295
  %v297 = vsel %vm91, %v261, 0.0
  %298 = vadd.xlane.f32.xlu0 %v297
  %v299 = vpop.xlane.xlu0 %298
  %v300 = vsel %vm91, %v262, 0.0
  %301 = vadd.xlane.f32.xlu0 %v300
  %v302 = vpop.xlane.xlu0 %301
  %v303 = vsel %vm91, %v263, 0.0
  %304 = vadd.xlane.f32.xlu0 %v303
  %v305 = vpop.xlane.xlu0 %304
  %v306 = vsel %vm91, %v264, 0.0
  %307 = vadd.xlane.f32.xlu0 %v306
  %v308 = vpop.xlane.xlu0 %307
  %v309 = vsel %vm91, %v265, 0.0
  %310 = vadd.xlane.f32.xlu0 %v309
  %v311 = vpop.xlane.xlu0 %310
  %v312 = vsel %vm91, %v266, 0.0
  %313 = vadd.xlane.f32.xlu0 %v312
  %v314 = vpop.xlane.xlu0 %313
  %v315 = vsel %vm91, %v267, 0.0
  %316 = vadd.xlane.f32.xlu0 %v315
  %v317 = vpop.xlane.xlu0 %316
  %v318 = vsel %vm91, %v268, 0.0
  %319 = vadd.xlane.f32.xlu0 %v318
  %v320 = vpop.xlane.xlu0 %319
  %v321 = vsel %vm91, %v269, 0.0
  %322 = vadd.xlane.f32.xlu0 %v321
  %v323 = vpop.xlane.xlu0 %322
  %v324 = vsel %vm91, %v270, 0.0
  %325 = vadd.xlane.f32.xlu0 %v324
  %v326 = vpop.xlane.xlu0 %325
  %v327 = vsel %vm91, %v271, 0.0
  %328 = vadd.xlane.f32.xlu0 %v327
  %v329 = vpop.xlane.xlu0 %328
  %v330 = vsel %vm91, %v272, 0.0
  %331 = vadd.xlane.f32.xlu0 %v330
  %v332 = vpop.xlane.xlu0 %331
  %v333 = vsel %vm91, %v273, 0.0
  %334 = vadd.xlane.f32.xlu0 %v333
  %v335 = vpop.xlane.xlu0 %334
  %v336 = vsel %vm91, %v274, 0.0
  %337 = vadd.xlane.f32.xlu0 %v336
  %v338 = vpop.xlane.xlu0 %337
  %v339 = vsel %vm91, %v275, 0.0
  %340 = vadd.xlane.f32.xlu0 %v339
  %v341 = vpop.xlane.xlu0 %340
  %v342 = vsel %vm91, %v276, 0.0
  %343 = vadd.xlane.f32.xlu0 %v342
  %v344 = vpop.xlane.xlu0 %343
  %v345 = vsel %vm91, %v277, 0.0
  %346 = vadd.xlane.f32.xlu0 %v345
  %v347 = vpop.xlane.xlu0 %346
  %v348 = vsel %vm91, %v278, 0.0
  %349 = vadd.xlane.f32.xlu0 %v348
  %v350 = vpop.xlane.xlu0 %349
  %v351 = vsel %vm91, %v279, 0.0
  %352 = vadd.xlane.f32.xlu0 %v351
  %v353 = vpop.xlane.xlu0 %352
  %v354 = vsel %vm91, %v280, 0.0
  %355 = vadd.xlane.f32.xlu0 %v354
  %v356 = vpop.xlane.xlu0 %355
  %v357 = vsel %vm91, %v281, 0.0
  %358 = vadd.xlane.f32.xlu0 %v357
  %v359 = vpop.xlane.xlu0 %358
  %v360 = vsel %vm91, %v282, 0.0
  %361 = vadd.xlane.f32.xlu0 %v360
  %v362 = vpop.xlane.xlu0 %361
  %v363 = vsel %vm91, %v283, 0.0
  %364 = vadd.xlane.f32.xlu0 %v363
  %v365 = vpop.xlane.xlu0 %364
  %v366 = vsel %vm91, %v284, 0.0
  %367 = vadd.xlane.f32.xlu0 %v366
  %v368 = vpop.xlane.xlu0 %367
  %v369 = vsel %vm91, %v285, 0.0
  %370 = vadd.xlane.f32.xlu0 %v369
  %v371 = vpop.xlane.xlu0 %370
  %v372 = vsel %vm91, %v286, 0.0
  %373 = vadd.xlane.f32.xlu0 %v372
  %v374 = vpop.xlane.xlu0 %373
  %v375 = vsel %vm91, %v287, 0.0
  %376 = vadd.xlane.f32.xlu0 %v375
  %v377 = vpop.xlane.xlu0 %376
  %v378 = vsel %vm91, %v288, 0.0
  %379 = vadd.xlane.f32.xlu0 %v378
  %v380 = vpop.xlane.xlu0 %379
  %v381 = vsel %vm91, %v289, 0.0
  %382 = vadd.xlane.f32.xlu0 %v381
  %v383 = vpop.xlane.xlu0 %382
  %v384 = vsel %vm91, %v290, 0.0
  %385 = vadd.xlane.f32.xlu0 %v384
  %v386 = vpop.xlane.xlu0 %385
  %v387 = vmul.f32 %v293, %v194
  %v388 = vmul.f32 %v296, %v194
  %v389 = vmul.f32 %v299, %v194
  %v390 = vmul.f32 %v302, %v194
  %v391 = vmul.f32 %v305, %v194
  %v392 = vmul.f32 %v308, %v194
  %v393 = vmul.f32 %v311, %v194
  %v394 = vmul.f32 %v314, %v194
  %v395 = vmul.f32 %v317, %v194
  %v396 = vmul.f32 %v320, %v194
  %v397 = vmul.f32 %v323, %v194
  %v398 = vmul.f32 %v326, %v194
  %v399 = vmul.f32 %v329, %v194
  %v400 = vmul.f32 %v332, %v194
  %v401 = vmul.f32 %v335, %v194
  %v402 = vmul.f32 %v338, %v194
  %v403 = vmul.f32 %v341, %v194
  %v404 = vmul.f32 %v344, %v194
  %v405 = vmul.f32 %v347, %v194
  %v406 = vmul.f32 %v350, %v194
  %v407 = vmul.f32 %v353, %v194
  %v408 = vmul.f32 %v356, %v194
  %v409 = vmul.f32 %v359, %v194
  %v410 = vmul.f32 %v362, %v194
  %v411 = vmul.f32 %v365, %v194
  %v412 = vmul.f32 %v368, %v194
  %v413 = vmul.f32 %v371, %v194
  %v414 = vmul.f32 %v374, %v194
  %v415 = vmul.f32 %v377, %v194
  %v416 = vmul.f32 %v380, %v194
  %v417 = vmul.f32 %v383, %v194
  %v418 = vmul.f32 %v386, %v194
  %v419 = vadd.f32 %v387, 1e-05
  %v420 = vadd.f32 %v388, 1e-05
  %v421 = vadd.f32 %v389, 1e-05
  %v422 = vadd.f32 %v390, 1e-05
  %v423 = vadd.f32 %v391, 1e-05
  %v424 = vadd.f32 %v392, 1e-05
  %v425 = vadd.f32 %v393, 1e-05
  %v426 = vadd.f32 %v394, 1e-05
  %v427 = vadd.f32 %v395, 1e-05
  %v428 = vadd.f32 %v396, 1e-05
  %v429 = vadd.f32 %v397, 1e-05
  %v430 = vadd.f32 %v398, 1e-05
  %v431 = vadd.f32 %v399, 1e-05
  %v432 = vadd.f32 %v400, 1e-05
  %v433 = vadd.f32 %v401, 1e-05
  %v434 = vadd.f32 %v402, 1e-05
  %v435 = vadd.f32 %v403, 1e-05
  %v436 = vadd.f32 %v404, 1e-05
  %v437 = vadd.f32 %v405, 1e-05
  %v438 = vadd.f32 %v406, 1e-05
  %v439 = vadd.f32 %v407, 1e-05
  %v440 = vadd.f32 %v408, 1e-05
  %v441 = vadd.f32 %v409, 1e-05
  %v442 = vadd.f32 %v410, 1e-05
  %v443 = vadd.f32 %v411, 1e-05
  %v444 = vadd.f32 %v412, 1e-05
  %v445 = vadd.f32 %v413, 1e-05
  %v446 = vadd.f32 %v414, 1e-05
  %v447 = vadd.f32 %v415, 1e-05
  %v448 = vadd.f32 %v416, 1e-05
  %v449 = vadd.f32 %v417, 1e-05
  %v450 = vadd.f32 %v418, 1e-05
  %v451 = vrsqrt.pop %v419
  %v452 = vmul.f32 %v451, %v419
  %v453 = vmul.f32 %v452, %v451
  %v454 = vmul.f32 0.5, %v453
  %v455 = vsub.f32 1.5, %v454
  %v456 = vmul.f32 %v451, %v455
  %vm457 = vweird.f32 %v419
  %vm458 = vweird.f32 %v451
  %vm459 = vmor %vm457, %vm458
  %v460 = vsel %vm459, %v451, %v456
  %v461 = vrsqrt.pop %v420
  %v462 = vmul.f32 %v461, %v420
  %v463 = vmul.f32 %v462, %v461
  %v464 = vmul.f32 0.5, %v463
  %v465 = vsub.f32 1.5, %v464
  %v466 = vmul.f32 %v461, %v465
  %vm467 = vweird.f32 %v420
  %vm468 = vweird.f32 %v461
  %vm469 = vmor %vm467, %vm468
  %v470 = vsel %vm469, %v461, %v466
  %v471 = vrsqrt.pop %v421
  %v472 = vmul.f32 %v471, %v421
  %v473 = vmul.f32 %v472, %v471
  %v474 = vmul.f32 0.5, %v473
  %v475 = vsub.f32 1.5, %v474
  %v476 = vmul.f32 %v471, %v475
  %vm477 = vweird.f32 %v421
  %vm478 = vweird.f32 %v471
  %vm479 = vmor %vm477, %vm478
  %v480 = vsel %vm479, %v471, %v476
  %v481 = vrsqrt.pop %v422
  %v482 = vmul.f32 %v481, %v422
  %v483 = vmul.f32 %v482, %v481
  %v484 = vmul.f32 0.5, %v483
  %v485 = vsub.f32 1.5, %v484
  %v486 = vmul.f32 %v481, %v485
  %vm487 = vweird.f32 %v422
  %vm488 = vweird.f32 %v481
  %vm489 = vmor %vm487, %vm488
  %v490 = vsel %vm489, %v481, %v486
  %v491 = vrsqrt.pop %v423
  %v492 = vmul.f32 %v491, %v423
  %v493 = vmul.f32 %v492, %v491
  %v494 = vmul.f32 0.5, %v493
  %v495 = vsub.f32 1.5, %v494
  %v496 = vmul.f32 %v491, %v495
  %vm497 = vweird.f32 %v423
  %vm498 = vweird.f32 %v491
  %vm499 = vmor %vm497, %vm498
  %v500 = vsel %vm499, %v491, %v496
  %v501 = vrsqrt.pop %v424
  %v502 = vmul.f32 %v501, %v424
  %v503 = vmul.f32 %v502, %v501
  %v504 = vmul.f32 0.5, %v503
  %v505 = vsub.f32 1.5, %v504
  %v506 = vmul.f32 %v501, %v505
  %vm507 = vweird.f32 %v424
  %vm508 = vweird.f32 %v501
  %vm509 = vmor %vm507, %vm508
  %v510 = vsel %vm509, %v501, %v506
  %v511 = vrsqrt.pop %v425
  %v512 = vmul.f32 %v511, %v425
  %v513 = vmul.f32 %v512, %v511
  %v514 = vmul.f32 0.5, %v513
  %v515 = vsub.f32 1.5, %v514
  %v516 = vmul.f32 %v511, %v515
  %vm517 = vweird.f32 %v425
  %vm518 = vweird.f32 %v511
  %vm519 = vmor %vm517, %vm518
  %v520 = vsel %vm519, %v511, %v516
  %v521 = vrsqrt.pop %v426
  %v522 = vmul.f32 %v521, %v426
  %v523 = vmul.f32 %v522, %v521
  %v524 = vmul.f32 0.5, %v523
  %v525 = vsub.f32 1.5, %v524
  %v526 = vmul.f32 %v521, %v525
  %vm527 = vweird.f32 %v426
  %vm528 = vweird.f32 %v521
  %vm529 = vmor %vm527, %vm528
  %v530 = vsel %vm529, %v521, %v526
  %v531 = vrsqrt.pop %v427
  %v532 = vmul.f32 %v531, %v427
  %v533 = vmul.f32 %v532, %v531
  %v534 = vmul.f32 0.5, %v533
  %v535 = vsub.f32 1.5, %v534
  %v536 = vmul.f32 %v531, %v535
  %vm537 = vweird.f32 %v427
  %vm538 = vweird.f32 %v531
  %vm539 = vmor %vm537, %vm538
  %v540 = vsel %vm539, %v531, %v536
  %v541 = vrsqrt.pop %v428
  %v542 = vmul.f32 %v541, %v428
  %v543 = vmul.f32 %v542, %v541
  %v544 = vmul.f32 0.5, %v543
  %v545 = vsub.f32 1.5, %v544
  %v546 = vmul.f32 %v541, %v545
  %vm547 = vweird.f32 %v428
  %vm548 = vweird.f32 %v541
  %vm549 = vmor %vm547, %vm548
  %v550 = vsel %vm549, %v541, %v546
  %v551 = vrsqrt.pop %v429
  %v552 = vmul.f32 %v551, %v429
  %v553 = vmul.f32 %v552, %v551
  %v554 = vmul.f32 0.5, %v553
  %v555 = vsub.f32 1.5, %v554
  %v556 = vmul.f32 %v551, %v555
  %vm557 = vweird.f32 %v429
  %vm558 = vweird.f32 %v551
  %vm559 = vmor %vm557, %vm558
  %v560 = vsel %vm559, %v551, %v556
  %v561 = vrsqrt.pop %v430
  %v562 = vmul.f32 %v561, %v430
  %v563 = vmul.f32 %v562, %v561
  %v564 = vmul.f32 0.5, %v563
  %v565 = vsub.f32 1.5, %v564
  %v566 = vmul.f32 %v561, %v565
  %vm567 = vweird.f32 %v430
  %vm568 = vweird.f32 %v561
  %vm569 = vmor %vm567, %vm568
  %v570 = vsel %vm569, %v561, %v566
  %v571 = vrsqrt.pop %v431
  %v572 = vmul.f32 %v571, %v431
  %v573 = vmul.f32 %v572, %v571
  %v574 = vmul.f32 0.5, %v573
  %v575 = vsub.f32 1.5, %v574
  %v576 = vmul.f32 %v571, %v575
  %vm577 = vweird.f32 %v431
  %vm578 = vweird.f32 %v571
  %vm579 = vmor %vm577, %vm578
  %v580 = vsel %vm579, %v571, %v576
  %v581 = vrsqrt.pop %v432
  %v582 = vmul.f32 %v581, %v432
  %v583 = vmul.f32 %v582, %v581
  %v584 = vmul.f32 0.5, %v583
  %v585 = vsub.f32 1.5, %v584
  %v586 = vmul.f32 %v581, %v585
  %vm587 = vweird.f32 %v432
  %vm588 = vweird.f32 %v581
  %vm589 = vmor %vm587, %vm588
  %v590 = vsel %vm589, %v581, %v586
  %v591 = vrsqrt.pop %v433
  %v592 = vmul.f32 %v591, %v433
  %v593 = vmul.f32 %v592, %v591
  %v594 = vmul.f32 0.5, %v593
  %v595 = vsub.f32 1.5, %v594
  %v596 = vmul.f32 %v591, %v595
  %vm597 = vweird.f32 %v433
  %vm598 = vweird.f32 %v591
  %vm599 = vmor %vm597, %vm598
  %v600 = vsel %vm599, %v591, %v596
  %v601 = vrsqrt.pop %v434
  %v602 = vmul.f32 %v601, %v434
  %v603 = vmul.f32 %v602, %v601
  %v604 = vmul.f32 0.5, %v603
  %v605 = vsub.f32 1.5, %v604
  %v606 = vmul.f32 %v601, %v605
  %vm607 = vweird.f32 %v434
  %vm608 = vweird.f32 %v601
  %vm609 = vmor %vm607, %vm608
  %v610 = vsel %vm609, %v601, %v606
  %v611 = vrsqrt.pop %v435
  %v612 = vmul.f32 %v611, %v435
  %v613 = vmul.f32 %v612, %v611
  %v614 = vmul.f32 0.5, %v613
  %v615 = vsub.f32 1.5, %v614
  %v616 = vmul.f32 %v611, %v615
  %vm617 = vweird.f32 %v435
  %vm618 = vweird.f32 %v611
  %vm619 = vmor %vm617, %vm618
  %v620 = vsel %vm619, %v611, %v616
  %v621 = vrsqrt.pop %v436
  %v622 = vmul.f32 %v621, %v436
  %v623 = vmul.f32 %v622, %v621
  %v624 = vmul.f32 0.5, %v623
  %v625 = vsub.f32 1.5, %v624
  %v626 = vmul.f32 %v621, %v625
  %vm627 = vweird.f32 %v436
  %vm628 = vweird.f32 %v621
  %vm629 = vmor %vm627, %vm628
  %v630 = vsel %vm629, %v621, %v626
  %v631 = vrsqrt.pop %v437
  %v632 = vmul.f32 %v631, %v437
  %v633 = vmul.f32 %v632, %v631
  %v634 = vmul.f32 0.5, %v633
  %v635 = vsub.f32 1.5, %v634
  %v636 = vmul.f32 %v631, %v635
  %vm637 = vweird.f32 %v437
  %vm638 = vweird.f32 %v631
  %vm639 = vmor %vm637, %vm638
  %v640 = vsel %vm639, %v631, %v636
  %v641 = vrsqrt.pop %v438
  %v642 = vmul.f32 %v641, %v438
  %v643 = vmul.f32 %v642, %v641
  %v644 = vmul.f32 0.5, %v643
  %v645 = vsub.f32 1.5, %v644
  %v646 = vmul.f32 %v641, %v645
  %vm647 = vweird.f32 %v438
  %vm648 = vweird.f32 %v641
  %vm649 = vmor %vm647, %vm648
  %v650 = vsel %vm649, %v641, %v646
  %v651 = vrsqrt.pop %v439
  %v652 = vmul.f32 %v651, %v439
  %v653 = vmul.f32 %v652, %v651
  %v654 = vmul.f32 0.5, %v653
  %v655 = vsub.f32 1.5, %v654
  %v656 = vmul.f32 %v651, %v655
  %vm657 = vweird.f32 %v439
  %vm658 = vweird.f32 %v651
  %vm659 = vmor %vm657, %vm658
  %v660 = vsel %vm659, %v651, %v656
  %v661 = vrsqrt.pop %v440
  %v662 = vmul.f32 %v661, %v440
  %v663 = vmul.f32 %v662, %v661
  %v664 = vmul.f32 0.5, %v663
  %v665 = vsub.f32 1.5, %v664
  %v666 = vmul.f32 %v661, %v665
  %vm667 = vweird.f32 %v440
  %vm668 = vweird.f32 %v661
  %vm669 = vmor %vm667, %vm668
  %v670 = vsel %vm669, %v661, %v666
  %v671 = vrsqrt.pop %v441
  %v672 = vmul.f32 %v671, %v441
  %v673 = vmul.f32 %v672, %v671
  %v674 = vmul.f32 0.5, %v673
  %v675 = vsub.f32 1.5, %v674
  %v676 = vmul.f32 %v671, %v675
  %vm677 = vweird.f32 %v441
  %vm678 = vweird.f32 %v671
  %vm679 = vmor %vm677, %vm678
  %v680 = vsel %vm679, %v671, %v676
  %v681 = vrsqrt.pop %v442
  %v682 = vmul.f32 %v681, %v442
  %v683 = vmul.f32 %v682, %v681
  %v684 = vmul.f32 0.5, %v683
  %v685 = vsub.f32 1.5, %v684
  %v686 = vmul.f32 %v681, %v685
  %vm687 = vweird.f32 %v442
  %vm688 = vweird.f32 %v681
  %vm689 = vmor %vm687, %vm688
  %v690 = vsel %vm689, %v681, %v686
  %v691 = vrsqrt.pop %v443
  %v692 = vmul.f32 %v691, %v443
  %v693 = vmul.f32 %v692, %v691
  %v694 = vmul.f32 0.5, %v693
  %v695 = vsub.f32 1.5, %v694
  %v696 = vmul.f32 %v691, %v695
  %vm697 = vweird.f32 %v443
  %vm698 = vweird.f32 %v691
  %vm699 = vmor %vm697, %vm698
  %v700 = vsel %vm699, %v691, %v696
  %v701 = vrsqrt.pop %v444
  %v702 = vmul.f32 %v701, %v444
  %v703 = vmul.f32 %v702, %v701
  %v704 = vmul.f32 0.5, %v703
  %v705 = vsub.f32 1.5, %v704
  %v706 = vmul.f32 %v701, %v705
  %vm707 = vweird.f32 %v444
  %vm708 = vweird.f32 %v701
  %vm709 = vmor %vm707, %vm708
  %v710 = vsel %vm709, %v701, %v706
  %v711 = vrsqrt.pop %v445
  %v712 = vmul.f32 %v711, %v445
  %v713 = vmul.f32 %v712, %v711
  %v714 = vmul.f32 0.5, %v713
  %v715 = vsub.f32 1.5, %v714
  %v716 = vmul.f32 %v711, %v715
  %vm717 = vweird.f32 %v445
  %vm718 = vweird.f32 %v711
  %vm719 = vmor %vm717, %vm718
  %v720 = vsel %vm719, %v711, %v716
  %v721 = vrsqrt.pop %v446
  %v722 = vmul.f32 %v721, %v446
  %v723 = vmul.f32 %v722, %v721
  %v724 = vmul.f32 0.5, %v723
  %v725 = vsub.f32 1.5, %v724
  %v726 = vmul.f32 %v721, %v725
  %vm727 = vweird.f32 %v446
  %vm728 = vweird.f32 %v721
  %vm729 = vmor %vm727, %vm728
  %v730 = vsel %vm729, %v721, %v726
  %v731 = vrsqrt.pop %v447
  %v732 = vmul.f32 %v731, %v447
  %v733 = vmul.f32 %v732, %v731
  %v734 = vmul.f32 0.5, %v733
  %v735 = vsub.f32 1.5, %v734
  %v736 = vmul.f32 %v731, %v735
  %vm737 = vweird.f32 %v447
  %vm738 = vweird.f32 %v731
  %vm739 = vmor %vm737, %vm738
  %v740 = vsel %vm739, %v731, %v736
  %v741 = vrsqrt.pop %v448
  %v742 = vmul.f32 %v741, %v448
  %v743 = vmul.f32 %v742, %v741
  %v744 = vmul.f32 0.5, %v743
  %v745 = vsub.f32 1.5, %v744
  %v746 = vmul.f32 %v741, %v745
  %vm747 = vweird.f32 %v448
  %vm748 = vweird.f32 %v741
  %vm749 = vmor %vm747, %vm748
  %v750 = vsel %vm749, %v741, %v746
  %v751 = vrsqrt.pop %v449
  %v752 = vmul.f32 %v751, %v449
  %v753 = vmul.f32 %v752, %v751
  %v754 = vmul.f32 0.5, %v753
  %v755 = vsub.f32 1.5, %v754
  %v756 = vmul.f32 %v751, %v755
  %vm757 = vweird.f32 %v449
  %vm758 = vweird.f32 %v751
  %vm759 = vmor %vm757, %vm758
  %v760 = vsel %vm759, %v751, %v756
  %v761 = vrsqrt.pop %v450
  %v762 = vmul.f32 %v761, %v450
  %v763 = vmul.f32 %v762, %v761
  %v764 = vmul.f32 0.5, %v763
  %v765 = vsub.f32 1.5, %v764
  %v766 = vmul.f32 %v761, %v765
  %vm767 = vweird.f32 %v450
  %vm768 = vweird.f32 %v761
  %vm769 = vmor %vm767, %vm768
  %v770 = vsel %vm769, %v761, %v766
  %v771 = vmul.f32 %v227, %v460
  %v772 = vmul.f32 %v228, %v470
  %v773 = vmul.f32 %v229, %v480
  %v774 = vmul.f32 %v230, %v490
  %v775 = vmul.f32 %v231, %v500
  %v776 = vmul.f32 %v232, %v510
  %v777 = vmul.f32 %v233, %v520
  %v778 = vmul.f32 %v234, %v530
  %v779 = vmul.f32 %v235, %v540
  %v780 = vmul.f32 %v236, %v550
  %v781 = vmul.f32 %v237, %v560
  %v782 = vmul.f32 %v238, %v570
  %v783 = vmul.f32 %v239, %v580
  %v784 = vmul.f32 %v240, %v590
  %v785 = vmul.f32 %v241, %v600
  %v786 = vmul.f32 %v242, %v610
  %v787 = vmul.f32 %v243, %v620
  %v788 = vmul.f32 %v244, %v630
  %v789 = vmul.f32 %v245, %v640
  %v790 = vmul.f32 %v246, %v650
  %v791 = vmul.f32 %v247, %v660
  %v792 = vmul.f32 %v248, %v670
  %v793 = vmul.f32 %v249, %v680
  %v794 = vmul.f32 %v250, %v690
  %v795 = vmul.f32 %v251, %v700
  %v796 = vmul.f32 %v252, %v710
  %v797 = vmul.f32 %v253, %v720
  %v798 = vmul.f32 %v254, %v730
  %v799 = vmul.f32 %v255, %v740
  %v800 = vmul.f32 %v256, %v750
  %v801 = vmul.f32 %v257, %v760
  %v802 = vmul.f32 %v258, %v770
  %v803 = vld [vmem:[%s1] sm:$0x1]
  %v805 = vperm.slane %v803, 0
  %v807 = vmul.f32 %v771, %v805
  %v808 = vmul.f32 %v772, %v805
  %v809 = vmul.f32 %v773, %v805
  %v810 = vmul.f32 %v774, %v805
  %v811 = vmul.f32 %v775, %v805
  %v812 = vmul.f32 %v776, %v805
  %v813 = vmul.f32 %v777, %v805
  %v814 = vmul.f32 %v778, %v805
  %v815 = vmul.f32 %v779, %v805
  %v816 = vmul.f32 %v780, %v805
  %v817 = vmul.f32 %v781, %v805
  %v818 = vmul.f32 %v782, %v805
  %v819 = vmul.f32 %v783, %v805
  %v820 = vmul.f32 %v784, %v805
  %v821 = vmul.f32 %v785, %v805
  %v822 = vmul.f32 %v786, %v805
  %v823 = vmul.f32 %v787, %v805
  %v824 = vmul.f32 %v788, %v805
  %v825 = vmul.f32 %v789, %v805
  %v826 = vmul.f32 %v790, %v805
  %v827 = vmul.f32 %v791, %v805
  %v828 = vmul.f32 %v792, %v805
  %v829 = vmul.f32 %v793, %v805
  %v830 = vmul.f32 %v794, %v805
  %v831 = vmul.f32 %v795, %v805
  %v832 = vmul.f32 %v796, %v805
  %v833 = vmul.f32 %v797, %v805
  %v834 = vmul.f32 %v798, %v805
  %v835 = vmul.f32 %v799, %v805
  %v836 = vmul.f32 %v800, %v805
  %v837 = vmul.f32 %v801, %v805
  %v838 = vmul.f32 %v802, %v805
  %v839 = vld [vmem:[%s2] sm:$0x1]
  %v841 = vperm.slane %v839, 0
  %v843 = vadd.f32 %v807, %v841
  %v844 = vadd.f32 %v808, %v841
  %v845 = vadd.f32 %v809, %v841
  %v846 = vadd.f32 %v810, %v841
  %v847 = vadd.f32 %v811, %v841
  %v848 = vadd.f32 %v812, %v841
  %v849 = vadd.f32 %v813, %v841
  %v850 = vadd.f32 %v814, %v841
  %v851 = vadd.f32 %v815, %v841
  %v852 = vadd.f32 %v816, %v841
  %v853 = vadd.f32 %v817, %v841
  %v854 = vadd.f32 %v818, %v841
  %v855 = vadd.f32 %v819, %v841
  %v856 = vadd.f32 %v820, %v841
  %v857 = vadd.f32 %v821, %v841
  %v858 = vadd.f32 %v822, %v841
  %v859 = vadd.f32 %v823, %v841
  %v860 = vadd.f32 %v824, %v841
  %v861 = vadd.f32 %v825, %v841
  %v862 = vadd.f32 %v826, %v841
  %v863 = vadd.f32 %v827, %v841
  %v864 = vadd.f32 %v828, %v841
  %v865 = vadd.f32 %v829, %v841
  %v866 = vadd.f32 %v830, %v841
  %v867 = vadd.f32 %v831, %v841
  %v868 = vadd.f32 %v832, %v841
  %v869 = vadd.f32 %v833, %v841
  %v870 = vadd.f32 %v834, %v841
  %v871 = vadd.f32 %v835, %v841
  %v872 = vadd.f32 %v836, %v841
  %v873 = vadd.f32 %v837, %v841
  %v874 = vadd.f32 %v838, %v841
  %v875 = vpack.c.bf16 %v844, %v843
  %v876 = vpack.c.bf16 %v846, %v845
  %v877 = vpack.c.bf16 %v848, %v847
  %v878 = vpack.c.bf16 %v850, %v849
  %v879 = vpack.c.bf16 %v852, %v851
  %v880 = vpack.c.bf16 %v854, %v853
  %v881 = vpack.c.bf16 %v856, %v855
  %v882 = vpack.c.bf16 %v858, %v857
  %v883 = vpack.c.bf16 %v860, %v859
  %v884 = vpack.c.bf16 %v862, %v861
  %v885 = vpack.c.bf16 %v864, %v863
  %v886 = vpack.c.bf16 %v866, %v865
  %v887 = vpack.c.bf16 %v868, %v867
  %v888 = vpack.c.bf16 %v870, %v869
  %v889 = vpack.c.bf16 %v872, %v871
  %v890 = vpack.c.bf16 %v874, %v873
  %v891 = vld [vmem:[%s3] sm:$0xf]
  %v892 = vld [vmem:[%s3 + $0x4] sm:$0xf]
  %v893 = vld [vmem:[%s4] sm:$0x1]
  %v895 = vperm.slane %v893, 0
  %v899 = vunpack.c.l.b16 %v891
  %v900 = vunpack.c.l.b16 %v892
  %v901 = vpack.c.b16 %v900, %v899
  %v904 = vsel %vm91, %v875, 0
  %v907 = vsel %vm91, %v876, 0
  %v910 = vsel %vm91, %v877, 0
  %v913 = vsel %vm91, %v878, 0
  %v916 = vsel %vm91, %v879, 0
  %v919 = vsel %vm91, %v880, 0
  %v922 = vsel %vm91, %v881, 0
  %v925 = vsel %vm91, %v882, 0
  %v928 = vsel %vm91, %v883, 0
  %v931 = vsel %vm91, %v884, 0
  %v934 = vsel %vm91, %v885, 0
  %v937 = vsel %vm91, %v886, 0
  %v940 = vsel %vm91, %v887, 0
  %v943 = vsel %vm91, %v888, 0
  %v946 = vsel %vm91, %v889, 0
  %v949 = vsel %vm91, %v890, 0
  %951 = vmatpush.bf16.msra.mxu0 0
  %952 = vmatpush.bf16.msra.mxu0 0
  %953 = vmatpush.bf16.msra.mxu0 0
  %954 = vmatpush.bf16.msra.mxu0 0
  %955 = vmatpush.bf16.msra.mxu0 0
  %956 = vmatpush.bf16.msra.mxu0 0
  %957 = vmatpush.bf16.msra.mxu0 0
  %958 = vmatpush.bf16.msra.mxu0 %v901
  %959 = vmatmul.bf16.gmra.mxu0 %v904
  %v960 = vpop.f32.mrf.mxu0
  %v961 = vadd.f32 %v895, %v960
  %v962 = vpop.f32.mrf.mxu0
  %v963 = vadd.f32 %v895, %v962
  %964 = vmatmul.bf16.gmra.mxu0 %v907
  %v965 = vpop.f32.mrf.mxu0
  %v966 = vadd.f32 %v895, %v965
  %v967 = vpop.f32.mrf.mxu0
  %v968 = vadd.f32 %v895, %v967
  %969 = vmatmul.bf16.gmra.mxu0 %v910
  %v970 = vpop.f32.mrf.mxu0
  %v971 = vadd.f32 %v895, %v970
  %v972 = vpop.f32.mrf.mxu0
  %v973 = vadd.f32 %v895, %v972
  %974 = vmatmul.bf16.gmra.mxu0 %v913
  %v975 = vpop.f32.mrf.mxu0
  %v976 = vadd.f32 %v895, %v975
  %v977 = vpop.f32.mrf.mxu0
  %v978 = vadd.f32 %v895, %v977
  %979 = vmatmul.bf16.gmra.mxu0 %v916
  %v980 = vpop.f32.mrf.mxu0
  %v981 = vadd.f32 %v895, %v980
  %v982 = vpop.f32.mrf.mxu0
  %v983 = vadd.f32 %v895, %v982
  %984 = vmatmul.bf16.gmra.mxu0 %v919
  %v985 = vpop.f32.mrf.mxu0
  %v986 = vadd.f32 %v895, %v985
  %v987 = vpop.f32.mrf.mxu0
  %v988 = vadd.f32 %v895, %v987
  %989 = vmatmul.bf16.gmra.mxu0 %v922
  %v990 = vpop.f32.mrf.mxu0
  %v991 = vadd.f32 %v895, %v990
  %v992 = vpop.f32.mrf.mxu0
  %v993 = vadd.f32 %v895, %v992
  %994 = vmatmul.bf16.gmra.mxu0 %v925
  %v995 = vpop.f32.mrf.mxu0
  %v996 = vadd.f32 %v895, %v995
  %v997 = vpop.f32.mrf.mxu0
  %v998 = vadd.f32 %v895, %v997
  %999 = vmatmul.bf16.gmra.mxu0 %v928
  %v1000 = vpop.f32.mrf.mxu0
  %v1001 = vadd.f32 %v895, %v1000
  %v1002 = vpop.f32.mrf.mxu0
  %v1003 = vadd.f32 %v895, %v1002
  %1004 = vmatmul.bf16.gmra.mxu0 %v931
  %v1005 = vpop.f32.mrf.mxu0
  %v1006 = vadd.f32 %v895, %v1005
  %v1007 = vpop.f32.mrf.mxu0
  %v1008 = vadd.f32 %v895, %v1007
  %1009 = vmatmul.bf16.gmra.mxu0 %v934
  %v1010 = vpop.f32.mrf.mxu0
  %v1011 = vadd.f32 %v895, %v1010
  %v1012 = vpop.f32.mrf.mxu0
  %v1013 = vadd.f32 %v895, %v1012
  %1014 = vmatmul.bf16.gmra.mxu0 %v937
  %v1015 = vpop.f32.mrf.mxu0
  %v1016 = vadd.f32 %v895, %v1015
  %v1017 = vpop.f32.mrf.mxu0
  %v1018 = vadd.f32 %v895, %v1017
  %1019 = vmatmul.bf16.gmra.mxu0 %v940
  %v1020 = vpop.f32.mrf.mxu0
  %v1021 = vadd.f32 %v895, %v1020
  %v1022 = vpop.f32.mrf.mxu0
  %v1023 = vadd.f32 %v895, %v1022
  %1024 = vmatmul.bf16.gmra.mxu0 %v943
  %v1025 = vpop.f32.mrf.mxu0
  %v1026 = vadd.f32 %v895, %v1025
  %v1027 = vpop.f32.mrf.mxu0
  %v1028 = vadd.f32 %v895, %v1027
  %1029 = vmatmul.bf16.gmra.mxu0 %v946
  %v1030 = vpop.f32.mrf.mxu0
  %v1031 = vadd.f32 %v895, %v1030
  %v1032 = vpop.f32.mrf.mxu0
  %v1033 = vadd.f32 %v895, %v1032
  %1034 = vmatmul.bf16.gmra.mxu0 %v949
  %v1035 = vpop.f32.mrf.mxu0
  %v1036 = vadd.f32 %v895, %v1035
  %v1037 = vpop.f32.mrf.mxu0
  %v1038 = vadd.f32 %v895, %v1037
  %1039 = vdwg.mxu0
  %v1040 = vxor.u32 %v961, 2147483648
  %v1041 = vxor.u32 %v963, 2147483648
  %v1042 = vxor.u32 %v966, 2147483648
  %v1043 = vxor.u32 %v968, 2147483648
  %v1044 = vxor.u32 %v971, 2147483648
  %v1045 = vxor.u32 %v973, 2147483648
  %v1046 = vxor.u32 %v976, 2147483648
  %v1047 = vxor.u32 %v978, 2147483648
  %v1048 = vxor.u32 %v981, 2147483648
  %v1049 = vxor.u32 %v983, 2147483648
  %v1050 = vxor.u32 %v986, 2147483648
  %v1051 = vxor.u32 %v988, 2147483648
  %v1052 = vxor.u32 %v991, 2147483648
  %v1053 = vxor.u32 %v993, 2147483648
  %v1054 = vxor.u32 %v996, 2147483648
  %v1055 = vxor.u32 %v998, 2147483648
  %v1056 = vxor.u32 %v1001, 2147483648
  %v1057 = vxor.u32 %v1003, 2147483648
  %v1058 = vxor.u32 %v1006, 2147483648
  %v1059 = vxor.u32 %v1008, 2147483648
  %v1060 = vxor.u32 %v1011, 2147483648
  %v1061 = vxor.u32 %v1013, 2147483648
  %v1062 = vxor.u32 %v1016, 2147483648
  %v1063 = vxor.u32 %v1018, 2147483648
  %v1064 = vxor.u32 %v1021, 2147483648
  %v1065 = vxor.u32 %v1023, 2147483648
  %v1066 = vxor.u32 %v1026, 2147483648
  %v1067 = vxor.u32 %v1028, 2147483648
  %v1068 = vxor.u32 %v1031, 2147483648
  %v1069 = vxor.u32 %v1033, 2147483648
  %v1070 = vxor.u32 %v1036, 2147483648
  %v1071 = vxor.u32 %v1038, 2147483648
  %v1072 = vmul.f32 %v1040, 1.442695
  %v1073 = vpow.pop %v1072
  %v1074 = vmul.f32 %v1041, 1.442695
  %v1075 = vpow.pop %v1074
  %v1076 = vmul.f32 %v1042, 1.442695
  %v1077 = vpow.pop %v1076
  %v1078 = vmul.f32 %v1043, 1.442695
  %v1079 = vpow.pop %v1078
  %v1080 = vmul.f32 %v1044, 1.442695
  %v1081 = vpow.pop %v1080
  %v1082 = vmul.f32 %v1045, 1.442695
  %v1083 = vpow.pop %v1082
  %v1084 = vmul.f32 %v1046, 1.442695
  %v1085 = vpow.pop %v1084
  %v1086 = vmul.f32 %v1047, 1.442695
  %v1087 = vpow.pop %v1086
  %v1088 = vmul.f32 %v1048, 1.442695
  %v1089 = vpow.pop %v1088
  %v1090 = vmul.f32 %v1049, 1.442695
  %v1091 = vpow.pop %v1090
  %v1092 = vmul.f32 %v1050, 1.442695
  %v1093 = vpow.pop %v1092
  %v1094 = vmul.f32 %v1051, 1.442695
  %v1095 = vpow.pop %v1094
  %v1096 = vmul.f32 %v1052, 1.442695
  %v1097 = vpow.pop %v1096
  %v1098 = vmul.f32 %v1053, 1.442695
  %v1099 = vpow.pop %v1098
  %v1100 = vmul.f32 %v1054, 1.442695
  %v1101 = vpow.pop %v1100
  %v1102 = vmul.f32 %v1055, 1.442695
  %v1103 = vpow.pop %v1102
  %v1104 = vmul.f32 %v1056, 1.442695
  %v1105 = vpow.pop %v1104
  %v1106 = vmul.f32 %v1057, 1.442695
  %v1107 = vpow.pop %v1106
  %v1108 = vmul.f32 %v1058, 1.442695
  %v1109 = vpow.pop %v1108
  %v1110 = vmul.f32 %v1059, 1.442695
  %v1111 = vpow.pop %v1110
  %v1112 = vmul.f32 %v1060, 1.442695
  %v1113 = vpow.pop %v1112
  %v1114 = vmul.f32 %v1061, 1.442695
  %v1115 = vpow.pop %v1114
  %v1116 = vmul.f32 %v1062, 1.442695
  %v1117 = vpow.pop %v1116
  %v1118 = vmul.f32 %v1063, 1.442695
  %v1119 = vpow.pop %v1118
  %v1120 = vmul.f32 %v1064, 1.442695
  %v1121 = vpow.pop %v1120
  %v1122 = vmul.f32 %v1065, 1.442695
  %v1123 = vpow.pop %v1122
  %v1124 = vmul.f32 %v1066, 1.442695
  %v1125 = vpow.pop %v1124
  %v1126 = vmul.f32 %v1067, 1.442695
  %v1127 = vpow.pop %v1126
  %v1128 = vmul.f32 %v1068, 1.442695
  %v1129 = vpow.pop %v1128
  %v1130 = vmul.f32 %v1069, 1.442695
  %v1131 = vpow.pop %v1130
  %v1132 = vmul.f32 %v1070, 1.442695
  %v1133 = vpow.pop %v1132
  %v1134 = vmul.f32 %v1071, 1.442695
  %v1135 = vpow.pop %v1134
  %v1136 = vadd.f32 %v1073, 1.0
  %v1137 = vadd.f32 %v1075, 1.0
  %v1138 = vadd.f32 %v1077, 1.0
  %v1139 = vadd.f32 %v1079, 1.0
  %v1140 = vadd.f32 %v1081, 1.0
  %v1141 = vadd.f32 %v1083, 1.0
  %v1142 = vadd.f32 %v1085, 1.0
  %v1143 = vadd.f32 %v1087, 1.0
  %v1144 = vadd.f32 %v1089, 1.0
  %v1145 = vadd.f32 %v1091, 1.0
  %v1146 = vadd.f32 %v1093, 1.0
  %v1147 = vadd.f32 %v1095, 1.0
  %v1148 = vadd.f32 %v1097, 1.0
  %v1149 = vadd.f32 %v1099, 1.0
  %v1150 = vadd.f32 %v1101, 1.0
  %v1151 = vadd.f32 %v1103, 1.0
  %v1152 = vadd.f32 %v1105, 1.0
  %v1153 = vadd.f32 %v1107, 1.0
  %v1154 = vadd.f32 %v1109, 1.0
  %v1155 = vadd.f32 %v1111, 1.0
  %v1156 = vadd.f32 %v1113, 1.0
  %v1157 = vadd.f32 %v1115, 1.0
  %v1158 = vadd.f32 %v1117, 1.0
  %v1159 = vadd.f32 %v1119, 1.0
  %v1160 = vadd.f32 %v1121, 1.0
  %v1161 = vadd.f32 %v1123, 1.0
  %v1162 = vadd.f32 %v1125, 1.0
  %v1163 = vadd.f32 %v1127, 1.0
  %v1164 = vadd.f32 %v1129, 1.0
  %v1165 = vadd.f32 %v1131, 1.0
  %v1166 = vadd.f32 %v1133, 1.0
  %v1167 = vadd.f32 %v1135, 1.0
  %v1168 = vrcp.pop %v1136
  %v1169 = vmul.f32 %v1136, %v1168
  %v1170 = vsub.f32 1.0, %v1169
  %v1171 = vmul.f32 %v1168, %v1170
  %v1172 = vadd.f32 %v1168, %v1171
  %vm1173 = vweird.f32 %v1136
  %vm1174 = vweird.f32 %v1168
  %vm1175 = vmor %vm1173, %vm1174
  %v1176 = vsel %vm1175, %v1168, %v1172
  %v1177 = vand.u32 2147483647, %v1136
  %vm1178 = vcmp.eq.f32.partialorder %v1177, 8.507059e+37
  %v1179 = vand.u32 %v1136, 2147483648
  %v1180 = vor.u32 1.1754944e-38, %v1179
  %v1181 = vsel %vm1178, %v1180, %v1176
  %v1182 = vmul.f32 1.0, %v1181
  %v1183 = vrcp.pop %v1137
  %v1184 = vmul.f32 %v1137, %v1183
  %v1185 = vsub.f32 1.0, %v1184
  %v1186 = vmul.f32 %v1183, %v1185
  %v1187 = vadd.f32 %v1183, %v1186
  %vm1188 = vweird.f32 %v1137
  %vm1189 = vweird.f32 %v1183
  %vm1190 = vmor %vm1188, %vm1189
  %v1191 = vsel %vm1190, %v1183, %v1187
  %v1192 = vand.u32 2147483647, %v1137
  %vm1193 = vcmp.eq.f32.partialorder %v1192, 8.507059e+37
  %v1194 = vand.u32 %v1137, 2147483648
  %v1195 = vor.u32 1.1754944e-38, %v1194
  %v1196 = vsel %vm1193, %v1195, %v1191
  %v1197 = vmul.f32 1.0, %v1196
  %v1198 = vrcp.pop %v1138
  %v1199 = vmul.f32 %v1138, %v1198
  %v1200 = vsub.f32 1.0, %v1199
  %v1201 = vmul.f32 %v1198, %v1200
  %v1202 = vadd.f32 %v1198, %v1201
  %vm1203 = vweird.f32 %v1138
  %vm1204 = vweird.f32 %v1198
  %vm1205 = vmor %vm1203, %vm1204
  %v1206 = vsel %vm1205, %v1198, %v1202
  %v1207 = vand.u32 2147483647, %v1138
  %vm1208 = vcmp.eq.f32.partialorder %v1207, 8.507059e+37
  %v1209 = vand.u32 %v1138, 2147483648
  %v1210 = vor.u32 1.1754944e-38, %v1209
  %v1211 = vsel %vm1208, %v1210, %v1206
  %v1212 = vmul.f32 1.0, %v1211
  %v1213 = vrcp.pop %v1139
  %v1214 = vmul.f32 %v1139, %v1213
  %v1215 = vsub.f32 1.0, %v1214
  %v1216 = vmul.f32 %v1213, %v1215
  %v1217 = vadd.f32 %v1213, %v1216
  %vm1218 = vweird.f32 %v1139
  %vm1219 = vweird.f32 %v1213
  %vm1220 = vmor %vm1218, %vm1219
  %v1221 = vsel %vm1220, %v1213, %v1217
  %v1222 = vand.u32 2147483647, %v1139
  %vm1223 = vcmp.eq.f32.partialorder %v1222, 8.507059e+37
  %v1224 = vand.u32 %v1139, 2147483648
  %v1225 = vor.u32 1.1754944e-38, %v1224
  %v1226 = vsel %vm1223, %v1225, %v1221
  %v1227 = vmul.f32 1.0, %v1226
  %v1228 = vrcp.pop %v1140
  %v1229 = vmul.f32 %v1140, %v1228
  %v1230 = vsub.f32 1.0, %v1229
  %v1231 = vmul.f32 %v1228, %v1230
  %v1232 = vadd.f32 %v1228, %v1231
  %vm1233 = vweird.f32 %v1140
  %vm1234 = vweird.f32 %v1228
  %vm1235 = vmor %vm1233, %vm1234
  %v1236 = vsel %vm1235, %v1228, %v1232
  %v1237 = vand.u32 2147483647, %v1140
  %vm1238 = vcmp.eq.f32.partialorder %v1237, 8.507059e+37
  %v1239 = vand.u32 %v1140, 2147483648
  %v1240 = vor.u32 1.1754944e-38, %v1239
  %v1241 = vsel %vm1238, %v1240, %v1236
  %v1242 = vmul.f32 1.0, %v1241
  %v1243 = vrcp.pop %v1141
  %v1244 = vmul.f32 %v1141, %v1243
  %v1245 = vsub.f32 1.0, %v1244
  %v1246 = vmul.f32 %v1243, %v1245
  %v1247 = vadd.f32 %v1243, %v1246
  %vm1248 = vweird.f32 %v1141
  %vm1249 = vweird.f32 %v1243
  %vm1250 = vmor %vm1248, %vm1249
  %v1251 = vsel %vm1250, %v1243, %v1247
  %v1252 = vand.u32 2147483647, %v1141
  %vm1253 = vcmp.eq.f32.partialorder %v1252, 8.507059e+37
  %v1254 = vand.u32 %v1141, 2147483648
  %v1255 = vor.u32 1.1754944e-38, %v1254
  %v1256 = vsel %vm1253, %v1255, %v1251
  %v1257 = vmul.f32 1.0, %v1256
  %v1258 = vrcp.pop %v1142
  %v1259 = vmul.f32 %v1142, %v1258
  %v1260 = vsub.f32 1.0, %v1259
  %v1261 = vmul.f32 %v1258, %v1260
  %v1262 = vadd.f32 %v1258, %v1261
  %vm1263 = vweird.f32 %v1142
  %vm1264 = vweird.f32 %v1258
  %vm1265 = vmor %vm1263, %vm1264
  %v1266 = vsel %vm1265, %v1258, %v1262
  %v1267 = vand.u32 2147483647, %v1142
  %vm1268 = vcmp.eq.f32.partialorder %v1267, 8.507059e+37
  %v1269 = vand.u32 %v1142, 2147483648
  %v1270 = vor.u32 1.1754944e-38, %v1269
  %v1271 = vsel %vm1268, %v1270, %v1266
  %v1272 = vmul.f32 1.0, %v1271
  %v1273 = vrcp.pop %v1143
  %v1274 = vmul.f32 %v1143, %v1273
  %v1275 = vsub.f32 1.0, %v1274
  %v1276 = vmul.f32 %v1273, %v1275
  %v1277 = vadd.f32 %v1273, %v1276
  %vm1278 = vweird.f32 %v1143
  %vm1279 = vweird.f32 %v1273
  %vm1280 = vmor %vm1278, %vm1279
  %v1281 = vsel %vm1280, %v1273, %v1277
  %v1282 = vand.u32 2147483647, %v1143
  %vm1283 = vcmp.eq.f32.partialorder %v1282, 8.507059e+37
  %v1284 = vand.u32 %v1143, 2147483648
  %v1285 = vor.u32 1.1754944e-38, %v1284
  %v1286 = vsel %vm1283, %v1285, %v1281
  %v1287 = vmul.f32 1.0, %v1286
  %v1288 = vrcp.pop %v1144
  %v1289 = vmul.f32 %v1144, %v1288
  %v1290 = vsub.f32 1.0, %v1289
  %v1291 = vmul.f32 %v1288, %v1290
  %v1292 = vadd.f32 %v1288, %v1291
  %vm1293 = vweird.f32 %v1144
  %vm1294 = vweird.f32 %v1288
  %vm1295 = vmor %vm1293, %vm1294
  %v1296 = vsel %vm1295, %v1288, %v1292
  %v1297 = vand.u32 2147483647, %v1144
  %vm1298 = vcmp.eq.f32.partialorder %v1297, 8.507059e+37
  %v1299 = vand.u32 %v1144, 2147483648
  %v1300 = vor.u32 1.1754944e-38, %v1299
  %v1301 = vsel %vm1298, %v1300, %v1296
  %v1302 = vmul.f32 1.0, %v1301
  %v1303 = vrcp.pop %v1145
  %v1304 = vmul.f32 %v1145, %v1303
  %v1305 = vsub.f32 1.0, %v1304
  %v1306 = vmul.f32 %v1303, %v1305
  %v1307 = vadd.f32 %v1303, %v1306
  %vm1308 = vweird.f32 %v1145
  %vm1309 = vweird.f32 %v1303
  %vm1310 = vmor %vm1308, %vm1309
  %v1311 = vsel %vm1310, %v1303, %v1307
  %v1312 = vand.u32 2147483647, %v1145
  %vm1313 = vcmp.eq.f32.partialorder %v1312, 8.507059e+37
  %v1314 = vand.u32 %v1145, 2147483648
  %v1315 = vor.u32 1.1754944e-38, %v1314
  %v1316 = vsel %vm1313, %v1315, %v1311
  %v1317 = vmul.f32 1.0, %v1316
  %v1318 = vrcp.pop %v1146
  %v1319 = vmul.f32 %v1146, %v1318
  %v1320 = vsub.f32 1.0, %v1319
  %v1321 = vmul.f32 %v1318, %v1320
  %v1322 = vadd.f32 %v1318, %v1321
  %vm1323 = vweird.f32 %v1146
  %vm1324 = vweird.f32 %v1318
  %vm1325 = vmor %vm1323, %vm1324
  %v1326 = vsel %vm1325, %v1318, %v1322
  %v1327 = vand.u32 2147483647, %v1146
  %vm1328 = vcmp.eq.f32.partialorder %v1327, 8.507059e+37
  %v1329 = vand.u32 %v1146, 2147483648
  %v1330 = vor.u32 1.1754944e-38, %v1329
  %v1331 = vsel %vm1328, %v1330, %v1326
  %v1332 = vmul.f32 1.0, %v1331
  %v1333 = vrcp.pop %v1147
  %v1334 = vmul.f32 %v1147, %v1333
  %v1335 = vsub.f32 1.0, %v1334
  %v1336 = vmul.f32 %v1333, %v1335
  %v1337 = vadd.f32 %v1333, %v1336
  %vm1338 = vweird.f32 %v1147
  %vm1339 = vweird.f32 %v1333
  %vm1340 = vmor %vm1338, %vm1339
  %v1341 = vsel %vm1340, %v1333, %v1337
  %v1342 = vand.u32 2147483647, %v1147
  %vm1343 = vcmp.eq.f32.partialorder %v1342, 8.507059e+37
  %v1344 = vand.u32 %v1147, 2147483648
  %v1345 = vor.u32 1.1754944e-38, %v1344
  %v1346 = vsel %vm1343, %v1345, %v1341
  %v1347 = vmul.f32 1.0, %v1346
  %v1348 = vrcp.pop %v1148
  %v1349 = vmul.f32 %v1148, %v1348
  %v1350 = vsub.f32 1.0, %v1349
  %v1351 = vmul.f32 %v1348, %v1350
  %v1352 = vadd.f32 %v1348, %v1351
  %vm1353 = vweird.f32 %v1148
  %vm1354 = vweird.f32 %v1348
  %vm1355 = vmor %vm1353, %vm1354
  %v1356 = vsel %vm1355, %v1348, %v1352
  %v1357 = vand.u32 2147483647, %v1148
  %vm1358 = vcmp.eq.f32.partialorder %v1357, 8.507059e+37
  %v1359 = vand.u32 %v1148, 2147483648
  %v1360 = vor.u32 1.1754944e-38, %v1359
  %v1361 = vsel %vm1358, %v1360, %v1356
  %v1362 = vmul.f32 1.0, %v1361
  %v1363 = vrcp.pop %v1149
  %v1364 = vmul.f32 %v1149, %v1363
  %v1365 = vsub.f32 1.0, %v1364
  %v1366 = vmul.f32 %v1363, %v1365
  %v1367 = vadd.f32 %v1363, %v1366
  %vm1368 = vweird.f32 %v1149
  %vm1369 = vweird.f32 %v1363
  %vm1370 = vmor %vm1368, %vm1369
  %v1371 = vsel %vm1370, %v1363, %v1367
  %v1372 = vand.u32 2147483647, %v1149
  %vm1373 = vcmp.eq.f32.partialorder %v1372, 8.507059e+37
  %v1374 = vand.u32 %v1149, 2147483648
  %v1375 = vor.u32 1.1754944e-38, %v1374
  %v1376 = vsel %vm1373, %v1375, %v1371
  %v1377 = vmul.f32 1.0, %v1376
  %v1378 = vrcp.pop %v1150
  %v1379 = vmul.f32 %v1150, %v1378
  %v1380 = vsub.f32 1.0, %v1379
  %v1381 = vmul.f32 %v1378, %v1380
  %v1382 = vadd.f32 %v1378, %v1381
  %vm1383 = vweird.f32 %v1150
  %vm1384 = vweird.f32 %v1378
  %vm1385 = vmor %vm1383, %vm1384
  %v1386 = vsel %vm1385, %v1378, %v1382
  %v1387 = vand.u32 2147483647, %v1150
  %vm1388 = vcmp.eq.f32.partialorder %v1387, 8.507059e+37
  %v1389 = vand.u32 %v1150, 2147483648
  %v1390 = vor.u32 1.1754944e-38, %v1389
  %v1391 = vsel %vm1388, %v1390, %v1386
  %v1392 = vmul.f32 1.0, %v1391
  %v1393 = vrcp.pop %v1151
  %v1394 = vmul.f32 %v1151, %v1393
  %v1395 = vsub.f32 1.0, %v1394
  %v1396 = vmul.f32 %v1393, %v1395
  %v1397 = vadd.f32 %v1393, %v1396
  %vm1398 = vweird.f32 %v1151
  %vm1399 = vweird.f32 %v1393
  %vm1400 = vmor %vm1398, %vm1399
  %v1401 = vsel %vm1400, %v1393, %v1397
  %v1402 = vand.u32 2147483647, %v1151
  %vm1403 = vcmp.eq.f32.partialorder %v1402, 8.507059e+37
  %v1404 = vand.u32 %v1151, 2147483648
  %v1405 = vor.u32 1.1754944e-38, %v1404
  %v1406 = vsel %vm1403, %v1405, %v1401
  %v1407 = vmul.f32 1.0, %v1406
  %v1408 = vrcp.pop %v1152
  %v1409 = vmul.f32 %v1152, %v1408
  %v1410 = vsub.f32 1.0, %v1409
  %v1411 = vmul.f32 %v1408, %v1410
  %v1412 = vadd.f32 %v1408, %v1411
  %vm1413 = vweird.f32 %v1152
  %vm1414 = vweird.f32 %v1408
  %vm1415 = vmor %vm1413, %vm1414
  %v1416 = vsel %vm1415, %v1408, %v1412
  %v1417 = vand.u32 2147483647, %v1152
  %vm1418 = vcmp.eq.f32.partialorder %v1417, 8.507059e+37
  %v1419 = vand.u32 %v1152, 2147483648
  %v1420 = vor.u32 1.1754944e-38, %v1419
  %v1421 = vsel %vm1418, %v1420, %v1416
  %v1422 = vmul.f32 1.0, %v1421
  %v1423 = vrcp.pop %v1153
  %v1424 = vmul.f32 %v1153, %v1423
  %v1425 = vsub.f32 1.0, %v1424
  %v1426 = vmul.f32 %v1423, %v1425
  %v1427 = vadd.f32 %v1423, %v1426
  %vm1428 = vweird.f32 %v1153
  %vm1429 = vweird.f32 %v1423
  %vm1430 = vmor %vm1428, %vm1429
  %v1431 = vsel %vm1430, %v1423, %v1427
  %v1432 = vand.u32 2147483647, %v1153
  %vm1433 = vcmp.eq.f32.partialorder %v1432, 8.507059e+37
  %v1434 = vand.u32 %v1153, 2147483648
  %v1435 = vor.u32 1.1754944e-38, %v1434
  %v1436 = vsel %vm1433, %v1435, %v1431
  %v1437 = vmul.f32 1.0, %v1436
  %v1438 = vrcp.pop %v1154
  %v1439 = vmul.f32 %v1154, %v1438
  %v1440 = vsub.f32 1.0, %v1439
  %v1441 = vmul.f32 %v1438, %v1440
  %v1442 = vadd.f32 %v1438, %v1441
  %vm1443 = vweird.f32 %v1154
  %vm1444 = vweird.f32 %v1438
  %vm1445 = vmor %vm1443, %vm1444
  %v1446 = vsel %vm1445, %v1438, %v1442
  %v1447 = vand.u32 2147483647, %v1154
  %vm1448 = vcmp.eq.f32.partialorder %v1447, 8.507059e+37
  %v1449 = vand.u32 %v1154, 2147483648
  %v1450 = vor.u32 1.1754944e-38, %v1449
  %v1451 = vsel %vm1448, %v1450, %v1446
  %v1452 = vmul.f32 1.0, %v1451
  %v1453 = vrcp.pop %v1155
  %v1454 = vmul.f32 %v1155, %v1453
  %v1455 = vsub.f32 1.0, %v1454
  %v1456 = vmul.f32 %v1453, %v1455
  %v1457 = vadd.f32 %v1453, %v1456
  %vm1458 = vweird.f32 %v1155
  %vm1459 = vweird.f32 %v1453
  %vm1460 = vmor %vm1458, %vm1459
  %v1461 = vsel %vm1460, %v1453, %v1457
  %v1462 = vand.u32 2147483647, %v1155
  %vm1463 = vcmp.eq.f32.partialorder %v1462, 8.507059e+37
  %v1464 = vand.u32 %v1155, 2147483648
  %v1465 = vor.u32 1.1754944e-38, %v1464
  %v1466 = vsel %vm1463, %v1465, %v1461
  %v1467 = vmul.f32 1.0, %v1466
  %v1468 = vrcp.pop %v1156
  %v1469 = vmul.f32 %v1156, %v1468
  %v1470 = vsub.f32 1.0, %v1469
  %v1471 = vmul.f32 %v1468, %v1470
  %v1472 = vadd.f32 %v1468, %v1471
  %vm1473 = vweird.f32 %v1156
  %vm1474 = vweird.f32 %v1468
  %vm1475 = vmor %vm1473, %vm1474
  %v1476 = vsel %vm1475, %v1468, %v1472
  %v1477 = vand.u32 2147483647, %v1156
  %vm1478 = vcmp.eq.f32.partialorder %v1477, 8.507059e+37
  %v1479 = vand.u32 %v1156, 2147483648
  %v1480 = vor.u32 1.1754944e-38, %v1479
  %v1481 = vsel %vm1478, %v1480, %v1476
  %v1482 = vmul.f32 1.0, %v1481
  %v1483 = vrcp.pop %v1157
  %v1484 = vmul.f32 %v1157, %v1483
  %v1485 = vsub.f32 1.0, %v1484
  %v1486 = vmul.f32 %v1483, %v1485
  %v1487 = vadd.f32 %v1483, %v1486
  %vm1488 = vweird.f32 %v1157
  %vm1489 = vweird.f32 %v1483
  %vm1490 = vmor %vm1488, %vm1489
  %v1491 = vsel %vm1490, %v1483, %v1487
  %v1492 = vand.u32 2147483647, %v1157
  %vm1493 = vcmp.eq.f32.partialorder %v1492, 8.507059e+37
  %v1494 = vand.u32 %v1157, 2147483648
  %v1495 = vor.u32 1.1754944e-38, %v1494
  %v1496 = vsel %vm1493, %v1495, %v1491
  %v1497 = vmul.f32 1.0, %v1496
  %v1498 = vrcp.pop %v1158
  %v1499 = vmul.f32 %v1158, %v1498
  %v1500 = vsub.f32 1.0, %v1499
  %v1501 = vmul.f32 %v1498, %v1500
  %v1502 = vadd.f32 %v1498, %v1501
  %vm1503 = vweird.f32 %v1158
  %vm1504 = vweird.f32 %v1498
  %vm1505 = vmor %vm1503, %vm1504
  %v1506 = vsel %vm1505, %v1498, %v1502
  %v1507 = vand.u32 2147483647, %v1158
  %vm1508 = vcmp.eq.f32.partialorder %v1507, 8.507059e+37
  %v1509 = vand.u32 %v1158, 2147483648
  %v1510 = vor.u32 1.1754944e-38, %v1509
  %v1511 = vsel %vm1508, %v1510, %v1506
  %v1512 = vmul.f32 1.0, %v1511
  %v1513 = vrcp.pop %v1159
  %v1514 = vmul.f32 %v1159, %v1513
  %v1515 = vsub.f32 1.0, %v1514
  %v1516 = vmul.f32 %v1513, %v1515
  %v1517 = vadd.f32 %v1513, %v1516
  %vm1518 = vweird.f32 %v1159
  %vm1519 = vweird.f32 %v1513
  %vm1520 = vmor %vm1518, %vm1519
  %v1521 = vsel %vm1520, %v1513, %v1517
  %v1522 = vand.u32 2147483647, %v1159
  %vm1523 = vcmp.eq.f32.partialorder %v1522, 8.507059e+37
  %v1524 = vand.u32 %v1159, 2147483648
  %v1525 = vor.u32 1.1754944e-38, %v1524
  %v1526 = vsel %vm1523, %v1525, %v1521
  %v1527 = vmul.f32 1.0, %v1526
  %v1528 = vrcp.pop %v1160
  %v1529 = vmul.f32 %v1160, %v1528
  %v1530 = vsub.f32 1.0, %v1529
  %v1531 = vmul.f32 %v1528, %v1530
  %v1532 = vadd.f32 %v1528, %v1531
  %vm1533 = vweird.f32 %v1160
  %vm1534 = vweird.f32 %v1528
  %vm1535 = vmor %vm1533, %vm1534
  %v1536 = vsel %vm1535, %v1528, %v1532
  %v1537 = vand.u32 2147483647, %v1160
  %vm1538 = vcmp.eq.f32.partialorder %v1537, 8.507059e+37
  %v1539 = vand.u32 %v1160, 2147483648
  %v1540 = vor.u32 1.1754944e-38, %v1539
  %v1541 = vsel %vm1538, %v1540, %v1536
  %v1542 = vmul.f32 1.0, %v1541
  %v1543 = vrcp.pop %v1161
  %v1544 = vmul.f32 %v1161, %v1543
  %v1545 = vsub.f32 1.0, %v1544
  %v1546 = vmul.f32 %v1543, %v1545
  %v1547 = vadd.f32 %v1543, %v1546
  %vm1548 = vweird.f32 %v1161
  %vm1549 = vweird.f32 %v1543
  %vm1550 = vmor %vm1548, %vm1549
  %v1551 = vsel %vm1550, %v1543, %v1547
  %v1552 = vand.u32 2147483647, %v1161
  %vm1553 = vcmp.eq.f32.partialorder %v1552, 8.507059e+37
  %v1554 = vand.u32 %v1161, 2147483648
  %v1555 = vor.u32 1.1754944e-38, %v1554
  %v1556 = vsel %vm1553, %v1555, %v1551
  %v1557 = vmul.f32 1.0, %v1556
  %v1558 = vrcp.pop %v1162
  %v1559 = vmul.f32 %v1162, %v1558
  %v1560 = vsub.f32 1.0, %v1559
  %v1561 = vmul.f32 %v1558, %v1560
  %v1562 = vadd.f32 %v1558, %v1561
  %vm1563 = vweird.f32 %v1162
  %vm1564 = vweird.f32 %v1558
  %vm1565 = vmor %vm1563, %vm1564
  %v1566 = vsel %vm1565, %v1558, %v1562
  %v1567 = vand.u32 2147483647, %v1162
  %vm1568 = vcmp.eq.f32.partialorder %v1567, 8.507059e+37
  %v1569 = vand.u32 %v1162, 2147483648
  %v1570 = vor.u32 1.1754944e-38, %v1569
  %v1571 = vsel %vm1568, %v1570, %v1566
  %v1572 = vmul.f32 1.0, %v1571
  %v1573 = vrcp.pop %v1163
  %v1574 = vmul.f32 %v1163, %v1573
  %v1575 = vsub.f32 1.0, %v1574
  %v1576 = vmul.f32 %v1573, %v1575
  %v1577 = vadd.f32 %v1573, %v1576
  %vm1578 = vweird.f32 %v1163
  %vm1579 = vweird.f32 %v1573
  %vm1580 = vmor %vm1578, %vm1579
  %v1581 = vsel %vm1580, %v1573, %v1577
  %v1582 = vand.u32 2147483647, %v1163
  %vm1583 = vcmp.eq.f32.partialorder %v1582, 8.507059e+37
  %v1584 = vand.u32 %v1163, 2147483648
  %v1585 = vor.u32 1.1754944e-38, %v1584
  %v1586 = vsel %vm1583, %v1585, %v1581
  %v1587 = vmul.f32 1.0, %v1586
  %v1588 = vrcp.pop %v1164
  %v1589 = vmul.f32 %v1164, %v1588
  %v1590 = vsub.f32 1.0, %v1589
  %v1591 = vmul.f32 %v1588, %v1590
  %v1592 = vadd.f32 %v1588, %v1591
  %vm1593 = vweird.f32 %v1164
  %vm1594 = vweird.f32 %v1588
  %vm1595 = vmor %vm1593, %vm1594
  %v1596 = vsel %vm1595, %v1588, %v1592
  %v1597 = vand.u32 2147483647, %v1164
  %vm1598 = vcmp.eq.f32.partialorder %v1597, 8.507059e+37
  %v1599 = vand.u32 %v1164, 2147483648
  %v1600 = vor.u32 1.1754944e-38, %v1599
  %v1601 = vsel %vm1598, %v1600, %v1596
  %v1602 = vmul.f32 1.0, %v1601
  %v1603 = vrcp.pop %v1165
  %v1604 = vmul.f32 %v1165, %v1603
  %v1605 = vsub.f32 1.0, %v1604
  %v1606 = vmul.f32 %v1603, %v1605
  %v1607 = vadd.f32 %v1603, %v1606
  %vm1608 = vweird.f32 %v1165
  %vm1609 = vweird.f32 %v1603
  %vm1610 = vmor %vm1608, %vm1609
  %v1611 = vsel %vm1610, %v1603, %v1607
  %v1612 = vand.u32 2147483647, %v1165
  %vm1613 = vcmp.eq.f32.partialorder %v1612, 8.507059e+37
  %v1614 = vand.u32 %v1165, 2147483648
  %v1615 = vor.u32 1.1754944e-38, %v1614
  %v1616 = vsel %vm1613, %v1615, %v1611
  %v1617 = vmul.f32 1.0, %v1616
  %v1618 = vrcp.pop %v1166
  %v1619 = vmul.f32 %v1166, %v1618
  %v1620 = vsub.f32 1.0, %v1619
  %v1621 = vmul.f32 %v1618, %v1620
  %v1622 = vadd.f32 %v1618, %v1621
  %vm1623 = vweird.f32 %v1166
  %vm1624 = vweird.f32 %v1618
  %vm1625 = vmor %vm1623, %vm1624
  %v1626 = vsel %vm1625, %v1618, %v1622
  %v1627 = vand.u32 2147483647, %v1166
  %vm1628 = vcmp.eq.f32.partialorder %v1627, 8.507059e+37
  %v1629 = vand.u32 %v1166, 2147483648
  %v1630 = vor.u32 1.1754944e-38, %v1629
  %v1631 = vsel %vm1628, %v1630, %v1626
  %v1632 = vmul.f32 1.0, %v1631
  %v1633 = vrcp.pop %v1167
  %v1634 = vmul.f32 %v1167, %v1633
  %v1635 = vsub.f32 1.0, %v1634
  %v1636 = vmul.f32 %v1633, %v1635
  %v1637 = vadd.f32 %v1633, %v1636
  %vm1638 = vweird.f32 %v1167
  %vm1639 = vweird.f32 %v1633
  %vm1640 = vmor %vm1638, %vm1639
  %v1641 = vsel %vm1640, %v1633, %v1637
  %v1642 = vand.u32 2147483647, %v1167
  %vm1643 = vcmp.eq.f32.partialorder %v1642, 8.507059e+37
  %v1644 = vand.u32 %v1167, 2147483648
  %v1645 = vor.u32 1.1754944e-38, %v1644
  %v1646 = vsel %vm1643, %v1645, %v1641
  %v1647 = vmul.f32 1.0, %v1646
  %v1648 = vmul.f32 %v961, %v1182
  %v1649 = vmul.f32 %v963, %v1197
  %v1650 = vmul.f32 %v966, %v1212
  %v1651 = vmul.f32 %v968, %v1227
  %v1652 = vmul.f32 %v971, %v1242
  %v1653 = vmul.f32 %v973, %v1257
  %v1654 = vmul.f32 %v976, %v1272
  %v1655 = vmul.f32 %v978, %v1287
  %v1656 = vmul.f32 %v981, %v1302
  %v1657 = vmul.f32 %v983, %v1317
  %v1658 = vmul.f32 %v986, %v1332
  %v1659 = vmul.f32 %v988, %v1347
  %v1660 = vmul.f32 %v991, %v1362
  %v1661 = vmul.f32 %v993, %v1377
  %v1662 = vmul.f32 %v996, %v1392
  %v1663 = vmul.f32 %v998, %v1407
  %v1664 = vmul.f32 %v1001, %v1422
  %v1665 = vmul.f32 %v1003, %v1437
  %v1666 = vmul.f32 %v1006, %v1452
  %v1667 = vmul.f32 %v1008, %v1467
  %v1668 = vmul.f32 %v1011, %v1482
  %v1669 = vmul.f32 %v1013, %v1497
  %v1670 = vmul.f32 %v1016, %v1512
  %v1671 = vmul.f32 %v1018, %v1527
  %v1672 = vmul.f32 %v1021, %v1542
  %v1673 = vmul.f32 %v1023, %v1557
  %v1674 = vmul.f32 %v1026, %v1572
  %v1675 = vmul.f32 %v1028, %v1587
  %v1676 = vmul.f32 %v1031, %v1602
  %v1677 = vmul.f32 %v1033, %v1617
  %v1678 = vmul.f32 %v1036, %v1632
  %v1679 = vmul.f32 %v1038, %v1647
  %v1680 = vpack.c.bf16 %v1649, %v1648
  %v1681 = vpack.c.bf16 %v1651, %v1650
  %v1682 = vpack.c.bf16 %v1653, %v1652
  %v1683 = vpack.c.bf16 %v1655, %v1654
  %v1684 = vpack.c.bf16 %v1657, %v1656
  %v1685 = vpack.c.bf16 %v1659, %v1658
  %v1686 = vpack.c.bf16 %v1661, %v1660
  %v1687 = vpack.c.bf16 %v1663, %v1662
  %v1688 = vpack.c.bf16 %v1665, %v1664
  %v1689 = vpack.c.bf16 %v1667, %v1666
  %v1690 = vpack.c.bf16 %v1669, %v1668
  %v1691 = vpack.c.bf16 %v1671, %v1670
  %v1692 = vpack.c.bf16 %v1673, %v1672
  %v1693 = vpack.c.bf16 %v1675, %v1674
  %v1694 = vpack.c.bf16 %v1677, %v1676
  %v1695 = vpack.c.bf16 %v1679, %v1678
  %v1696 = vld [vmem:[%s5] sm:$0xf]
  %v1697 = vld [vmem:[%s5 + $0x4] sm:$0xf]
  %v1698 = vld [vmem:[%s5 + $0x8] sm:$0xf]
  %v1699 = vld [vmem:[%s5 + $0xc] sm:$0xf]
  %v1700 = vld [vmem:[%s6] sm:$0x1]
  %v1702 = vperm.slane %v1700, 0
  %v1708 = vunpack.c.l.b16 %v1696
  %v1709 = vunpack.c.l.b16 %v1697
  %v1710 = vunpack.c.l.b16 %v1698
  %v1711 = vunpack.c.l.b16 %v1699
  %v1712 = vpack.c.b16 %v1709, %v1708
  %v1713 = vpack.c.b16 %v1711, %v1710
  %vm1716 = vcmask 261120
  %v1718 = vsel %vm1716, %v1680, 0
  %v1721 = vsel %vm1716, %v1681, 0
  %v1724 = vsel %vm1716, %v1682, 0
  %v1727 = vsel %vm1716, %v1683, 0
  %v1730 = vsel %vm1716, %v1684, 0
  %v1733 = vsel %vm1716, %v1685, 0
  %v1736 = vsel %vm1716, %v1686, 0
  %v1739 = vsel %vm1716, %v1687, 0
  %v1742 = vsel %vm1716, %v1688, 0
  %v1745 = vsel %vm1716, %v1689, 0
  %v1748 = vsel %vm1716, %v1690, 0
  %v1751 = vsel %vm1716, %v1691, 0
  %v1754 = vsel %vm1716, %v1692, 0
  %v1757 = vsel %vm1716, %v1693, 0
  %v1760 = vsel %vm1716, %v1694, 0
  %v1763 = vsel %vm1716, %v1695, 0
  %1765 = vmatpush.bf16.msra.mxu0 0
  %1766 = vmatpush.bf16.msra.mxu0 0
  %1767 = vmatpush.bf16.msra.mxu0 0
  %1768 = vmatpush.bf16.msra.mxu0 0
  %1769 = vmatpush.bf16.msra.mxu0 0
  %1770 = vmatpush.bf16.msra.mxu0 0
  %1771 = vmatpush.bf16.msra.mxu0 %v1713
  %1772 = vmatpush.bf16.msra.mxu0 %v1712
  %1773 = vmatmul.bf16.gmra.mxu0 %v1718
  %v1774 = vpop.f32.mrf.mxu0
  %v1775 = vadd.f32 %v1702, %v1774
  %v1776 = vpop.f32.mrf.mxu0
  %v1777 = vadd.f32 %v1702, %v1776
  %1778 = vmatmul.bf16.gmra.mxu0 %v1721
  %v1779 = vpop.f32.mrf.mxu0
  %v1780 = vadd.f32 %v1702, %v1779
  %v1781 = vpop.f32.mrf.mxu0
  %v1782 = vadd.f32 %v1702, %v1781
  %1783 = vmatmul.bf16.gmra.mxu0 %v1724
  %v1784 = vpop.f32.mrf.mxu0
  %v1785 = vadd.f32 %v1702, %v1784
  %v1786 = vpop.f32.mrf.mxu0
  %v1787 = vadd.f32 %v1702, %v1786
  %1788 = vmatmul.bf16.gmra.mxu0 %v1727
  %v1789 = vpop.f32.mrf.mxu0
  %v1790 = vadd.f32 %v1702, %v1789
  %v1791 = vpop.f32.mrf.mxu0
  %v1792 = vadd.f32 %v1702, %v1791
  %1793 = vmatmul.bf16.gmra.mxu0 %v1730
  %v1794 = vpop.f32.mrf.mxu0
  %v1795 = vadd.f32 %v1702, %v1794
  %v1796 = vpop.f32.mrf.mxu0
  %v1797 = vadd.f32 %v1702, %v1796
  %1798 = vmatmul.bf16.gmra.mxu0 %v1733
  %v1799 = vpop.f32.mrf.mxu0
  %v1800 = vadd.f32 %v1702, %v1799
  %v1801 = vpop.f32.mrf.mxu0
  %v1802 = vadd.f32 %v1702, %v1801
  %1803 = vmatmul.bf16.gmra.mxu0 %v1736
  %v1804 = vpop.f32.mrf.mxu0
  %v1805 = vadd.f32 %v1702, %v1804
  %v1806 = vpop.f32.mrf.mxu0
  %v1807 = vadd.f32 %v1702, %v1806
  %1808 = vmatmul.bf16.gmra.mxu0 %v1739
  %v1809 = vpop.f32.mrf.mxu0
  %v1810 = vadd.f32 %v1702, %v1809
  %v1811 = vpop.f32.mrf.mxu0
  %v1812 = vadd.f32 %v1702, %v1811
  %1813 = vmatmul.bf16.gmra.mxu0 %v1742
  %v1814 = vpop.f32.mrf.mxu0
  %v1815 = vadd.f32 %v1702, %v1814
  %v1816 = vpop.f32.mrf.mxu0
  %v1817 = vadd.f32 %v1702, %v1816
  %1818 = vmatmul.bf16.gmra.mxu0 %v1745
  %v1819 = vpop.f32.mrf.mxu0
  %v1820 = vadd.f32 %v1702, %v1819
  %v1821 = vpop.f32.mrf.mxu0
  %v1822 = vadd.f32 %v1702, %v1821
  %1823 = vmatmul.bf16.gmra.mxu0 %v1748
  %v1824 = vpop.f32.mrf.mxu0
  %v1825 = vadd.f32 %v1702, %v1824
  %v1826 = vpop.f32.mrf.mxu0
  %v1827 = vadd.f32 %v1702, %v1826
  %1828 = vmatmul.bf16.gmra.mxu0 %v1751
  %v1829 = vpop.f32.mrf.mxu0
  %v1830 = vadd.f32 %v1702, %v1829
  %v1831 = vpop.f32.mrf.mxu0
  %v1832 = vadd.f32 %v1702, %v1831
  %1833 = vmatmul.bf16.gmra.mxu0 %v1754
  %v1834 = vpop.f32.mrf.mxu0
  %v1835 = vadd.f32 %v1702, %v1834
  %v1836 = vpop.f32.mrf.mxu0
  %v1837 = vadd.f32 %v1702, %v1836
  %1838 = vmatmul.bf16.gmra.mxu0 %v1757
  %v1839 = vpop.f32.mrf.mxu0
  %v1840 = vadd.f32 %v1702, %v1839
  %v1841 = vpop.f32.mrf.mxu0
  %v1842 = vadd.f32 %v1702, %v1841
  %1843 = vmatmul.bf16.gmra.mxu0 %v1760
  %v1844 = vpop.f32.mrf.mxu0
  %v1845 = vadd.f32 %v1702, %v1844
  %v1846 = vpop.f32.mrf.mxu0
  %v1847 = vadd.f32 %v1702, %v1846
  %1848 = vmatmul.bf16.gmra.mxu0 %v1763
  %v1849 = vpop.f32.mrf.mxu0
  %v1850 = vadd.f32 %v1702, %v1849
  %v1851 = vpop.f32.mrf.mxu0
  %v1852 = vadd.f32 %v1702, %v1851
  %1853 = vdwg.mxu0
  %v1854 = vadd.f32 %v59, %v1775
  %v1855 = vadd.f32 %v60, %v1777
  %v1856 = vadd.f32 %v61, %v1780
  %v1857 = vadd.f32 %v62, %v1782
  %v1858 = vadd.f32 %v63, %v1785
  %v1859 = vadd.f32 %v64, %v1787
  %v1860 = vadd.f32 %v65, %v1790
  %v1861 = vadd.f32 %v66, %v1792
  %v1862 = vadd.f32 %v67, %v1795
  %v1863 = vadd.f32 %v68, %v1797
  %v1864 = vadd.f32 %v69, %v1800
  %v1865 = vadd.f32 %v70, %v1802
  %v1866 = vadd.f32 %v71, %v1805
  %v1867 = vadd.f32 %v72, %v1807
  %v1868 = vadd.f32 %v73, %v1810
  %v1869 = vadd.f32 %v74, %v1812
  %v1870 = vadd.f32 %v75, %v1815
  %v1871 = vadd.f32 %v76, %v1817
  %v1872 = vadd.f32 %v77, %v1820
  %v1873 = vadd.f32 %v78, %v1822
  %v1874 = vadd.f32 %v79, %v1825
  %v1875 = vadd.f32 %v80, %v1827
  %v1876 = vadd.f32 %v81, %v1830
  %v1877 = vadd.f32 %v82, %v1832
  %v1878 = vadd.f32 %v83, %v1835
  %v1879 = vadd.f32 %v84, %v1837
  %v1880 = vadd.f32 %v85, %v1840
  %v1881 = vadd.f32 %v86, %v1842
  %v1882 = vadd.f32 %v87, %v1845
  %v1883 = vadd.f32 %v88, %v1847
  %v1884 = vadd.f32 %v89, %v1850
  %v1885 = vadd.f32 %v90, %v1852
  %v1886 = vpack.c.bf16 %v1854, %v1854
  %v1887 = vpack.c.bf16 %v1855, %v1855
  %v1888 = vpack.c.bf16 %v1856, %v1856
  %v1889 = vpack.c.bf16 %v1857, %v1857
  %v1890 = vpack.c.bf16 %v1858, %v1858
  %v1891 = vpack.c.bf16 %v1859, %v1859
  %v1892 = vpack.c.bf16 %v1860, %v1860
  %v1893 = vpack.c.bf16 %v1861, %v1861
  %v1894 = vpack.c.bf16 %v1862, %v1862
  %v1895 = vpack.c.bf16 %v1863, %v1863
  %v1896 = vpack.c.bf16 %v1864, %v1864
  %v1897 = vpack.c.bf16 %v1865, %v1865
  %v1898 = vpack.c.bf16 %v1866, %v1866
  %v1899 = vpack.c.bf16 %v1867, %v1867
  %v1900 = vpack.c.bf16 %v1868, %v1868
  %v1901 = vpack.c.bf16 %v1869, %v1869
  %v1902 = vpack.c.bf16 %v1870, %v1870
  %v1903 = vpack.c.bf16 %v1871, %v1871
  %v1904 = vpack.c.bf16 %v1872, %v1872
  %v1905 = vpack.c.bf16 %v1873, %v1873
  %v1906 = vpack.c.bf16 %v1874, %v1874
  %v1907 = vpack.c.bf16 %v1875, %v1875
  %v1908 = vpack.c.bf16 %v1876, %v1876
  %v1909 = vpack.c.bf16 %v1877, %v1877
  %v1910 = vpack.c.bf16 %v1878, %v1878
  %v1911 = vpack.c.bf16 %v1879, %v1879
  %v1912 = vpack.c.bf16 %v1880, %v1880
  %v1913 = vpack.c.bf16 %v1881, %v1881
  %v1914 = vpack.c.bf16 %v1882, %v1882
  %v1915 = vpack.c.bf16 %v1883, %v1883
  %v1916 = vpack.c.bf16 %v1884, %v1884
  %v1917 = vpack.c.bf16 %v1885, %v1885
  %vm1918 = vcmask 125952
  %1919 = vst.msk [vmem:[%s7] sm:$0xf] %vm1918, %v1886
  %1920 = vst.msk [vmem:[%s7 + $0x4] sm:$0xf] %vm1918, %v1887
  %1921 = vst.msk [vmem:[%s7 + $0x8] sm:$0xf] %vm1918, %v1888
  %1922 = vst.msk [vmem:[%s7 + $0xc] sm:$0xf] %vm1918, %v1889
  %1923 = vst.msk [vmem:[%s7 + $0x10] sm:$0xf] %vm1918, %v1890
  %1924 = vst.msk [vmem:[%s7 + $0x14] sm:$0xf] %vm1918, %v1891
  %1925 = vst.msk [vmem:[%s7 + $0x18] sm:$0xf] %vm1918, %v1892
  %1926 = vst.msk [vmem:[%s7 + $0x1c] sm:$0xf] %vm1918, %v1893
  %1927 = vst.msk [vmem:[%s7 + $0x20] sm:$0xf] %vm1918, %v1894
  %1928 = vst.msk [vmem:[%s7 + $0x24] sm:$0xf] %vm1918, %v1895
  %1929 = vst.msk [vmem:[%s7 + $0x28] sm:$0xf] %vm1918, %v1896
  %1930 = vst.msk [vmem:[%s7 + $0x2c] sm:$0xf] %vm1918, %v1897
  %1931 = vst.msk [vmem:[%s7 + $0x30] sm:$0xf] %vm1918, %v1898
  %1932 = vst.msk [vmem:[%s7 + $0x34] sm:$0xf] %vm1918, %v1899
  %1933 = vst.msk [vmem:[%s7 + $0x38] sm:$0xf] %vm1918, %v1900
  %1934 = vst.msk [vmem:[%s7 + $0x3c] sm:$0xf] %vm1918, %v1901
  %1935 = vst.msk [vmem:[%s7 + $0x40] sm:$0xf] %vm1918, %v1902
  %1936 = vst.msk [vmem:[%s7 + $0x44] sm:$0xf] %vm1918, %v1903
  %1937 = vst.msk [vmem:[%s7 + $0x48] sm:$0xf] %vm1918, %v1904
  %1938 = vst.msk [vmem:[%s7 + $0x4c] sm:$0xf] %vm1918, %v1905
  %1939 = vst.msk [vmem:[%s7 + $0x50] sm:$0xf] %vm1918, %v1906
  %1940 = vst.msk [vmem:[%s7 + $0x54] sm:$0xf] %vm1918, %v1907
  %1941 = vst.msk [vmem:[%s7 + $0x58] sm:$0xf] %vm1918, %v1908
  %1942 = vst.msk [vmem:[%s7 + $0x5c] sm:$0xf] %vm1918, %v1909
  %1943 = vst.msk [vmem:[%s7 + $0x60] sm:$0xf] %vm1918, %v1910
  %1944 = vst.msk [vmem:[%s7 + $0x64] sm:$0xf] %vm1918, %v1911
  %1945 = vst.msk [vmem:[%s7 + $0x68] sm:$0xf] %vm1918, %v1912
  %1946 = vst.msk [vmem:[%s7 + $0x6c] sm:$0xf] %vm1918, %v1913
  %1947 = vst.msk [vmem:[%s7 + $0x70] sm:$0xf] %vm1918, %v1914
  %1948 = vst.msk [vmem:[%s7 + $0x74] sm:$0xf] %vm1918, %v1915
  %1949 = vst.msk [vmem:[%s7 + $0x78] sm:$0xf] %vm1918, %v1916
  %1950 = vst.msk [vmem:[%s7 + $0x7c] sm:$0xf] %vm1918, %v1917
  // Predicated region
  $region30: #{stmamba_bcd_forward.26} parent=0 // pred_check
    _
  $region31: #{stmamba_bcd_forward.26} parent=0 // pred_check_branch
    %1952 = sbr.rel (0) target = $region33
  $region32: #{stmamba_bcd_forward.26} parent=0 // pred_region
    _
  $region33: #{stmamba_bcd_forward.26} parent=0 // pred_fallthru
    _
  // Predicated region
  $region34: #{stmamba_bcd_forward.26} parent=0 // pred_check
    _
  $region35: #{stmamba_bcd_forward.26} parent=0 // pred_check_branch
    %1954 = sbr.rel (0) target = $region37
  $region36: #{stmamba_bcd_forward.26} parent=0 // pred_region
    _
  $region37: #{stmamba_bcd_forward.26} parent=0 // pred_fallthru
    _

// kernel: stmamba_bcd_forward.27
$region0: #{stmamba_bcd_forward.27}
  #allocation0 [shape = 'u32[]', space=smem, size = 0x4, offset = 0x4, fixed_abs, tag = 'smem constant byte address 0x4 - core index']
  #allocation1 [shape = 'u32[72,128]{1,0:T(1,128)}', space=vmem, size = 0x9000, scoped, tag = 'internal scratch']
  %s0 = inlined_call_operand.vmem [shape: bf16[64,64], index: 0, kind: input, shape index: {}]
  %s1 = inlined_call_operand.vmem [shape: bf16[64,32], index: 1, kind: input, shape index: {}]
  %s2 = inlined_call_operand.vmem [shape: f32[1,32], index: 2, kind: input, shape index: {}]
  %s3 = inlined_call_operand.vmem [shape: f32[1,32], index: 3, kind: input, shape index: {}]
  %s4 = inlined_call_operand.vmem [shape: f32[1,32], index: 4, kind: input, shape index: {}]
  %s5 = inlined_call_operand.vmem [shape: bf16[64,32], index: 5, kind: output, shape index: {}]
  %s6 = sld [smem:[#allocation0]]
  $region30: #{stmamba_bcd_forward.27} parent=0
    _
  %s8 = ssub.s32 1, %s6
  %s9 = scalar_select 0, %s8, %s6
  // Predicated region
  $region2: #{stmamba_bcd_forward.27} parent=0 // pred_check
    _
  $region3: #{stmamba_bcd_forward.27} parent=0 // pred_check_branch
    %11 = sbr.rel (0) target = $region5
  $region4: #{stmamba_bcd_forward.27} parent=0 // pred_region
    _
  $region5: #{stmamba_bcd_forward.27} parent=0 // pred_fallthru
    _
  // Predicated region
  $region6: #{stmamba_bcd_forward.27} parent=0 // pred_check
    _
  $region7: #{stmamba_bcd_forward.27} parent=0 // pred_check_branch
    %13 = sbr.rel (0) target = $region9
  $region8: #{stmamba_bcd_forward.27} parent=0 // pred_region
    _
  $region9: #{stmamba_bcd_forward.27} parent=0 // pred_fallthru
    _
  // Predicated region
  $region10: #{stmamba_bcd_forward.27} parent=0 // pred_check
    _
  $region11: #{stmamba_bcd_forward.27} parent=0 // pred_check_branch
    %15 = sbr.rel (0) target = $region13
  $region12: #{stmamba_bcd_forward.27} parent=0 // pred_region
    _
  $region13: #{stmamba_bcd_forward.27} parent=0 // pred_fallthru
    _
  // Predicated region
  $region14: #{stmamba_bcd_forward.27} parent=0 // pred_check
    _
  $region15: #{stmamba_bcd_forward.27} parent=0 // pred_check_branch
    %17 = sbr.rel (0) target = $region17
  $region16: #{stmamba_bcd_forward.27} parent=0 // pred_region
    _
  $region17: #{stmamba_bcd_forward.27} parent=0 // pred_fallthru
    _
  // Predicated region
  $region18: #{stmamba_bcd_forward.27} parent=0 // pred_check
    _
  $region19: #{stmamba_bcd_forward.27} parent=0 // pred_check_branch
    %19 = sbr.rel (0) target = $region21
  $region20: #{stmamba_bcd_forward.27} parent=0 // pred_region
    _
  $region21: #{stmamba_bcd_forward.27} parent=0 // pred_fallthru
    _
  %v21 = vld [vmem:[%s0] sm:$0xf]
  %v22 = vld [vmem:[%s0 + $0x4] sm:$0xf]
  %v23 = vld [vmem:[%s0 + $0x8] sm:$0xf]
  %v24 = vld [vmem:[%s0 + $0xc] sm:$0xf]
  %v25 = vld [vmem:[%s0 + $0x10] sm:$0xf]
  %v26 = vld [vmem:[%s0 + $0x14] sm:$0xf]
  %v27 = vld [vmem:[%s0 + $0x18] sm:$0xf]
  %v28 = vld [vmem:[%s0 + $0x1c] sm:$0xf]
  %v29 = vld [vmem:[%s1] sm:$0xf]
  %v30 = vld [vmem:[%s1 + $0x4] sm:$0xf]
  %v31 = vld [vmem:[%s1 + $0x8] sm:$0xf]
  %v32 = vld [vmem:[%s1 + $0xc] sm:$0xf]
  %v33 = vld [vmem:[%s1 + $0x10] sm:$0xf]
  %v34 = vld [vmem:[%s1 + $0x14] sm:$0xf]
  %v35 = vld [vmem:[%s1 + $0x18] sm:$0xf]
  %v36 = vld [vmem:[%s1 + $0x1c] sm:$0xf]
  %v37 = vld [vmem:[%s2] sm:$0x1]
  %v39 = vperm.slane %v37, 0
  %v49 = vunpack.c.l.b16 %v21
  %v50 = vunpack.c.l.b16 %v22
  %v51 = vunpack.c.l.b16 %v23
  %v52 = vunpack.c.l.b16 %v24
  %v53 = vunpack.c.l.b16 %v25
  %v54 = vunpack.c.l.b16 %v26
  %v55 = vunpack.c.l.b16 %v27
  %v56 = vunpack.c.l.b16 %v28
  %v57 = vpack.c.b16 %v50, %v49
  %v58 = vpack.c.b16 %v52, %v51
  %v59 = vpack.c.b16 %v54, %v53
  %v60 = vpack.c.b16 %v56, %v55
  %v69 = vunpack.c.l.b16 %v29
  %v70 = vunpack.c.l.b16 %v30
  %v71 = vunpack.c.l.b16 %v31
  %v72 = vunpack.c.l.b16 %v32
  %v73 = vunpack.c.l.b16 %v33
  %v74 = vunpack.c.l.b16 %v34
  %v75 = vunpack.c.l.b16 %v35
  %v76 = vunpack.c.l.b16 %v36
  %v77 = vpack.c.b16 %v70, %v69
  %v78 = vpack.c.b16 %v72, %v71
  %v79 = vpack.c.b16 %v74, %v73
  %v80 = vpack.c.b16 %v76, %v75
  %vm85 = vcmask 523264
  %v87 = vsel %vm85, %v57, 0
  %v90 = vsel %vm85, %v58, 0
  %v93 = vsel %vm85, %v59, 0
  %v96 = vsel %vm85, %v60, 0
  %98 = vmatpush.bf16.msra.mxu0 0
  %99 = vmatpush.bf16.msra.mxu0 0
  %100 = vmatpush.bf16.msra.mxu0 0
  %101 = vmatpush.bf16.msra.mxu0 0
  %102 = vmatpush.bf16.msra.mxu0 %v80
  %103 = vmatpush.bf16.msra.mxu0 %v79
  %104 = vmatpush.bf16.msra.mxu0 %v78
  %105 = vmatpush.bf16.msra.mxu0 %v77
  %106 = vmatmul.bf16.gmra.mxu0 %v87
  %v107 = vpop.f32.mrf.mxu0
  %v108 = vadd.f32 %v39, %v107
  %v109 = vpop.f32.mrf.mxu0
  %v110 = vadd.f32 %v39, %v109
  %111 = vmatmul.bf16.gmra.mxu0 %v90
  %v112 = vpop.f32.mrf.mxu0
  %v113 = vadd.f32 %v39, %v112
  %v114 = vpop.f32.mrf.mxu0
  %v115 = vadd.f32 %v39, %v114
  %116 = vmatmul.bf16.gmra.mxu0 %v93
  %v117 = vpop.f32.mrf.mxu0
  %v118 = vadd.f32 %v39, %v117
  %v119 = vpop.f32.mrf.mxu0
  %v120 = vadd.f32 %v39, %v119
  %121 = vmatmul.bf16.gmra.mxu0 %v96
  %v122 = vpop.f32.mrf.mxu0
  %v123 = vadd.f32 %v39, %v122
  %v124 = vpop.f32.mrf.mxu0
  %v125 = vadd.f32 %v39, %v124
  %126 = vdwg.mxu0
  %vm127 = vcmask 261120
  %v128 = vsel %vm127, %v108, 0.0
  %129 = vadd.xlane.f32.xlu0 %v128
  %v130 = vpop.xlane.xlu0 %129
  %v131 = vsel %vm127, %v110, 0.0
  %132 = vadd.xlane.f32.xlu0 %v131
  %v133 = vpop.xlane.xlu0 %132
  %v134 = vsel %vm127, %v113, 0.0
  %135 = vadd.xlane.f32.xlu0 %v134
  %v136 = vpop.xlane.xlu0 %135
  %v137 = vsel %vm127, %v115, 0.0
  %138 = vadd.xlane.f32.xlu0 %v137
  %v139 = vpop.xlane.xlu0 %138
  %v140 = vsel %vm127, %v118, 0.0
  %141 = vadd.xlane.f32.xlu0 %v140
  %v142 = vpop.xlane.xlu0 %141
  %v143 = vsel %vm127, %v120, 0.0
  %144 = vadd.xlane.f32.xlu0 %v143
  %v145 = vpop.xlane.xlu0 %144
  %v146 = vsel %vm127, %v123, 0.0
  %147 = vadd.xlane.f32.xlu0 %v146
  %v148 = vpop.xlane.xlu0 %147
  %v149 = vsel %vm127, %v125, 0.0
  %150 = vadd.xlane.f32.xlu0 %v149
  %v151 = vpop.xlane.xlu0 %150
  %v152 = vrcp.pop 32.0
  %v153 = vmul.f32 32.0, %v152
  %v154 = vsub.f32 1.0, %v153
  %v155 = vmul.f32 %v152, %v154
  %v156 = vadd.f32 %v152, %v155
  %vm157 = vweird.f32 %v152
  %v158 = vsel %vm157, %v152, %v156
  %v159 = vmul.f32 %v130, %v158
  %v160 = vmul.f32 %v133, %v158
  %v161 = vmul.f32 %v136, %v158
  %v162 = vmul.f32 %v139, %v158
  %v163 = vmul.f32 %v142, %v158
  %v164 = vmul.f32 %v145, %v158
  %v165 = vmul.f32 %v148, %v158
  %v166 = vmul.f32 %v151, %v158
  %v167 = vsub.f32 %v108, %v159
  %v168 = vsub.f32 %v110, %v160
  %v169 = vsub.f32 %v113, %v161
  %v170 = vsub.f32 %v115, %v162
  %v171 = vsub.f32 %v118, %v163
  %v172 = vsub.f32 %v120, %v164
  %v173 = vsub.f32 %v123, %v165
  %v174 = vsub.f32 %v125, %v166
  %v175 = vmul.f32 %v167, %v167
  %v176 = vmul.f32 %v168, %v168
  %v177 = vmul.f32 %v169, %v169
  %v178 = vmul.f32 %v170, %v170
  %v179 = vmul.f32 %v171, %v171
  %v180 = vmul.f32 %v172, %v172
  %v181 = vmul.f32 %v173, %v173
  %v182 = vmul.f32 %v174, %v174
  %v183 = vsel %vm127, %v175, 0.0
  %184 = vadd.xlane.f32.xlu0 %v183
  %v185 = vpop.xlane.xlu0 %184
  %v186 = vsel %vm127, %v176, 0.0
  %187 = vadd.xlane.f32.xlu0 %v186
  %v188 = vpop.xlane.xlu0 %187
  %v189 = vsel %vm127, %v177, 0.0
  %190 = vadd.xlane.f32.xlu0 %v189
  %v191 = vpop.xlane.xlu0 %190
  %v192 = vsel %vm127, %v178, 0.0
  %193 = vadd.xlane.f32.xlu0 %v192
  %v194 = vpop.xlane.xlu0 %193
  %v195 = vsel %vm127, %v179, 0.0
  %196 = vadd.xlane.f32.xlu0 %v195
  %v197 = vpop.xlane.xlu0 %196
  %v198 = vsel %vm127, %v180, 0.0
  %199 = vadd.xlane.f32.xlu0 %v198
  %v200 = vpop.xlane.xlu0 %199
  %v201 = vsel %vm127, %v181, 0.0
  %202 = vadd.xlane.f32.xlu0 %v201
  %v203 = vpop.xlane.xlu0 %202
  %v204 = vsel %vm127, %v182, 0.0
  %205 = vadd.xlane.f32.xlu0 %v204
  %v206 = vpop.xlane.xlu0 %205
  %v207 = vmul.f32 %v185, %v158
  %v208 = vmul.f32 %v188, %v158
  %v209 = vmul.f32 %v191, %v158
  %v210 = vmul.f32 %v194, %v158
  %v211 = vmul.f32 %v197, %v158
  %v212 = vmul.f32 %v200, %v158
  %v213 = vmul.f32 %v203, %v158
  %v214 = vmul.f32 %v206, %v158
  %v215 = vadd.f32 %v207, 1e-05
  %v216 = vadd.f32 %v208, 1e-05
  %v217 = vadd.f32 %v209, 1e-05
  %v218 = vadd.f32 %v210, 1e-05
  %v219 = vadd.f32 %v211, 1e-05
  %v220 = vadd.f32 %v212, 1e-05
  %v221 = vadd.f32 %v213, 1e-05
  %v222 = vadd.f32 %v214, 1e-05
  %v223 = vrsqrt.pop %v215
  %v224 = vmul.f32 %v223, %v215
  %v225 = vmul.f32 %v224, %v223
  %v226 = vmul.f32 0.5, %v225
  %v227 = vsub.f32 1.5, %v226
  %v228 = vmul.f32 %v223, %v227
  %vm229 = vweird.f32 %v215
  %vm230 = vweird.f32 %v223
  %vm231 = vmor %vm229, %vm230
  %v232 = vsel %vm231, %v223, %v228
  %v233 = vrsqrt.pop %v216
  %v234 = vmul.f32 %v233, %v216
  %v235 = vmul.f32 %v234, %v233
  %v236 = vmul.f32 0.5, %v235
  %v237 = vsub.f32 1.5, %v236
  %v238 = vmul.f32 %v233, %v237
  %vm239 = vweird.f32 %v216
  %vm240 = vweird.f32 %v233
  %vm241 = vmor %vm239, %vm240
  %v242 = vsel %vm241, %v233, %v238
  %v243 = vrsqrt.pop %v217
  %v244 = vmul.f32 %v243, %v217
  %v245 = vmul.f32 %v244, %v243
  %v246 = vmul.f32 0.5, %v245
  %v247 = vsub.f32 1.5, %v246
  %v248 = vmul.f32 %v243, %v247
  %vm249 = vweird.f32 %v217
  %vm250 = vweird.f32 %v243
  %vm251 = vmor %vm249, %vm250
  %v252 = vsel %vm251, %v243, %v248
  %v253 = vrsqrt.pop %v218
  %v254 = vmul.f32 %v253, %v218
  %v255 = vmul.f32 %v254, %v253
  %v256 = vmul.f32 0.5, %v255
  %v257 = vsub.f32 1.5, %v256
  %v258 = vmul.f32 %v253, %v257
  %vm259 = vweird.f32 %v218
  %vm260 = vweird.f32 %v253
  %vm261 = vmor %vm259, %vm260
  %v262 = vsel %vm261, %v253, %v258
  %v263 = vrsqrt.pop %v219
  %v264 = vmul.f32 %v263, %v219
  %v265 = vmul.f32 %v264, %v263
  %v266 = vmul.f32 0.5, %v265
  %v267 = vsub.f32 1.5, %v266
  %v268 = vmul.f32 %v263, %v267
  %vm269 = vweird.f32 %v219
  %vm270 = vweird.f32 %v263
  %vm271 = vmor %vm269, %vm270
  %v272 = vsel %vm271, %v263, %v268
  %v273 = vrsqrt.pop %v220
  %v274 = vmul.f32 %v273, %v220
  %v275 = vmul.f32 %v274, %v273
  %v276 = vmul.f32 0.5, %v275
  %v277 = vsub.f32 1.5, %v276
  %v278 = vmul.f32 %v273, %v277
  %vm279 = vweird.f32 %v220
  %vm280 = vweird.f32 %v273
  %vm281 = vmor %vm279, %vm280
  %v282 = vsel %vm281, %v273, %v278
  %v283 = vrsqrt.pop %v221
  %v284 = vmul.f32 %v283, %v221
  %v285 = vmul.f32 %v284, %v283
  %v286 = vmul.f32 0.5, %v285
  %v287 = vsub.f32 1.5, %v286
  %v288 = vmul.f32 %v283, %v287
  %vm289 = vweird.f32 %v221
  %vm290 = vweird.f32 %v283
  %vm291 = vmor %vm289, %vm290
  %v292 = vsel %vm291, %v283, %v288
  %v293 = vrsqrt.pop %v222
  %v294 = vmul.f32 %v293, %v222
  %v295 = vmul.f32 %v294, %v293
  %v296 = vmul.f32 0.5, %v295
  %v297 = vsub.f32 1.5, %v296
  %v298 = vmul.f32 %v293, %v297
  %vm299 = vweird.f32 %v222
  %vm300 = vweird.f32 %v293
  %vm301 = vmor %vm299, %vm300
  %v302 = vsel %vm301, %v293, %v298
  %v303 = vmul.f32 %v167, %v232
  %v304 = vmul.f32 %v168, %v242
  %v305 = vmul.f32 %v169, %v252
  %v306 = vmul.f32 %v170, %v262
  %v307 = vmul.f32 %v171, %v272
  %v308 = vmul.f32 %v172, %v282
  %v309 = vmul.f32 %v173, %v292
  %v310 = vmul.f32 %v174, %v302
  %v311 = vld [vmem:[%s3] sm:$0x1]
  %v313 = vperm.slane %v311, 0
  %v315 = vmul.f32 %v303, %v313
  %v316 = vmul.f32 %v304, %v313
  %v317 = vmul.f32 %v305, %v313
  %v318 = vmul.f32 %v306, %v313
  %v319 = vmul.f32 %v307, %v313
  %v320 = vmul.f32 %v308, %v313
  %v321 = vmul.f32 %v309, %v313
  %v322 = vmul.f32 %v310, %v313
  %v323 = vld [vmem:[%s4] sm:$0x1]
  %v325 = vperm.slane %v323, 0
  %v327 = vadd.f32 %v315, %v325
  %v328 = vadd.f32 %v316, %v325
  %v329 = vadd.f32 %v317, %v325
  %v330 = vadd.f32 %v318, %v325
  %v331 = vadd.f32 %v319, %v325
  %v332 = vadd.f32 %v320, %v325
  %v333 = vadd.f32 %v321, %v325
  %v334 = vadd.f32 %v322, %v325
  %v335 = vpack.c.bf16 %v327, %v327
  %v336 = vpack.c.bf16 %v328, %v328
  %v337 = vpack.c.bf16 %v329, %v329
  %v338 = vpack.c.bf16 %v330, %v330
  %v339 = vpack.c.bf16 %v331, %v331
  %v340 = vpack.c.bf16 %v332, %v332
  %v341 = vpack.c.bf16 %v333, %v333
  %v342 = vpack.c.bf16 %v334, %v334
  %vm343 = vcmask 257024
  %344 = vst.msk [vmem:[%s5] sm:$0xf] %vm343, %v335
  %345 = vst.msk [vmem:[%s5 + $0x4] sm:$0xf] %vm343, %v336
  %346 = vst.msk [vmem:[%s5 + $0x8] sm:$0xf] %vm343, %v337
  %347 = vst.msk [vmem:[%s5 + $0xc] sm:$0xf] %vm343, %v338
  %348 = vst.msk [vmem:[%s5 + $0x10] sm:$0xf] %vm343, %v339
  %349 = vst.msk [vmem:[%s5 + $0x14] sm:$0xf] %vm343, %v340
  %350 = vst.msk [vmem:[%s5 + $0x18] sm:$0xf] %vm343, %v341
  %351 = vst.msk [vmem:[%s5 + $0x1c] sm:$0xf] %vm343, %v342
  // Predicated region
  $region22: #{stmamba_bcd_forward.27} parent=0 // pred_check
    _
  $region23: #{stmamba_bcd_forward.27} parent=0 // pred_check_branch
    %353 = sbr.rel (0) target = $region25
  $region24: #{stmamba_bcd_forward.27} parent=0 // pred_region
    _
  $region25: #{stmamba_bcd_forward.27} parent=0 // pred_fallthru
    _
  // Predicated region
  $region26: #{stmamba_bcd_forward.27} parent=0 // pred_check
    _
  $region27: #{stmamba_bcd_forward.27} parent=0 // pred_check_branch
    %355 = sbr.rel (0) target = $region29
  $region28: #{stmamba_bcd_forward.27} parent=0 // pred_region
    _
  $region29: #{stmamba_bcd_forward.27} parent=0 // pred_fallthru
    _

// kernel: stmamba_bcd_forward.28
$region0: #{stmamba_bcd_forward.28}
  #allocation0 [shape = 'u32[]', space=smem, size = 0x4, offset = 0x4, fixed_abs, tag = 'smem constant byte address 0x4 - core index']
  #allocation1 [shape = 'u32[72,128]{1,0:T(1,128)}', space=vmem, size = 0x9000, scoped, tag = 'internal scratch']
  %s0 = inlined_call_operand.vmem [shape: bf16[64,32], index: 0, kind: input, shape index: {}]
  %s1 = inlined_call_operand.vmem [shape: f32[1,32], index: 1, kind: input, shape index: {}]
  %s2 = inlined_call_operand.vmem [shape: f32[1,32], index: 2, kind: input, shape index: {}]
  %s3 = inlined_call_operand.vmem [shape: bf16[32,64], index: 3, kind: input, shape index: {}]
  %s4 = inlined_call_operand.vmem [shape: f32[1,64], index: 4, kind: input, shape index: {}]
  %s5 = inlined_call_operand.vmem [shape: bf16[64,32], index: 5, kind: input, shape index: {}]
  %s6 = inlined_call_operand.vmem [shape: f32[1,32], index: 6, kind: input, shape index: {}]
  %s7 = inlined_call_operand.vmem [shape: bf16[64,32], index: 7, kind: output, shape index: {}]
  %s8 = sld [smem:[#allocation0]]
  $region38: #{stmamba_bcd_forward.28} parent=0
    _
  %s10 = ssub.s32 1, %s8
  %s11 = scalar_select 0, %s10, %s8
  // Predicated region
  $region2: #{stmamba_bcd_forward.28} parent=0 // pred_check
    _
  $region3: #{stmamba_bcd_forward.28} parent=0 // pred_check_branch
    %13 = sbr.rel (0) target = $region5
  $region4: #{stmamba_bcd_forward.28} parent=0 // pred_region
    _
  $region5: #{stmamba_bcd_forward.28} parent=0 // pred_fallthru
    _
  // Predicated region
  $region6: #{stmamba_bcd_forward.28} parent=0 // pred_check
    _
  $region7: #{stmamba_bcd_forward.28} parent=0 // pred_check_branch
    %15 = sbr.rel (0) target = $region9
  $region8: #{stmamba_bcd_forward.28} parent=0 // pred_region
    _
  $region9: #{stmamba_bcd_forward.28} parent=0 // pred_fallthru
    _
  // Predicated region
  $region10: #{stmamba_bcd_forward.28} parent=0 // pred_check
    _
  $region11: #{stmamba_bcd_forward.28} parent=0 // pred_check_branch
    %17 = sbr.rel (0) target = $region13
  $region12: #{stmamba_bcd_forward.28} parent=0 // pred_region
    _
  $region13: #{stmamba_bcd_forward.28} parent=0 // pred_fallthru
    _
  // Predicated region
  $region14: #{stmamba_bcd_forward.28} parent=0 // pred_check
    _
  $region15: #{stmamba_bcd_forward.28} parent=0 // pred_check_branch
    %19 = sbr.rel (0) target = $region17
  $region16: #{stmamba_bcd_forward.28} parent=0 // pred_region
    _
  $region17: #{stmamba_bcd_forward.28} parent=0 // pred_fallthru
    _
  // Predicated region
  $region18: #{stmamba_bcd_forward.28} parent=0 // pred_check
    _
  $region19: #{stmamba_bcd_forward.28} parent=0 // pred_check_branch
    %21 = sbr.rel (0) target = $region21
  $region20: #{stmamba_bcd_forward.28} parent=0 // pred_region
    _
  $region21: #{stmamba_bcd_forward.28} parent=0 // pred_fallthru
    _
  // Predicated region
  $region22: #{stmamba_bcd_forward.28} parent=0 // pred_check
    _
  $region23: #{stmamba_bcd_forward.28} parent=0 // pred_check_branch
    %23 = sbr.rel (0) target = $region25
  $region24: #{stmamba_bcd_forward.28} parent=0 // pred_region
    _
  $region25: #{stmamba_bcd_forward.28} parent=0 // pred_fallthru
    _
  // Predicated region
  $region26: #{stmamba_bcd_forward.28} parent=0 // pred_check
    _
  $region27: #{stmamba_bcd_forward.28} parent=0 // pred_check_branch
    %25 = sbr.rel (0) target = $region29
  $region28: #{stmamba_bcd_forward.28} parent=0 // pred_region
    _
  $region29: #{stmamba_bcd_forward.28} parent=0 // pred_fallthru
    _
  %v27 = vld [vmem:[%s0] sm:$0xf]
  %v28 = vld [vmem:[%s0 + $0x4] sm:$0xf]
  %v29 = vld [vmem:[%s0 + $0x8] sm:$0xf]
  %v30 = vld [vmem:[%s0 + $0xc] sm:$0xf]
  %v31 = vld [vmem:[%s0 + $0x10] sm:$0xf]
  %v32 = vld [vmem:[%s0 + $0x14] sm:$0xf]
  %v33 = vld [vmem:[%s0 + $0x18] sm:$0xf]
  %v34 = vld [vmem:[%s0 + $0x1c] sm:$0xf]
  %v35 = vunpack.c.l.bf16 %v27
  %v36 = vunpack.c.l.bf16 %v28
  %v37 = vunpack.c.l.bf16 %v29
  %v38 = vunpack.c.l.bf16 %v30
  %v39 = vunpack.c.l.bf16 %v31
  %v40 = vunpack.c.l.bf16 %v32
  %v41 = vunpack.c.l.bf16 %v33
  %v42 = vunpack.c.l.bf16 %v34
  %vm43 = vcmask 261120
  %v44 = vsel %vm43, %v35, 0.0
  %45 = vadd.xlane.f32.xlu0 %v44
  %v46 = vpop.xlane.xlu0 %45
  %v47 = vsel %vm43, %v36, 0.0
  %48 = vadd.xlane.f32.xlu0 %v47
  %v49 = vpop.xlane.xlu0 %48
  %v50 = vsel %vm43, %v37, 0.0
  %51 = vadd.xlane.f32.xlu0 %v50
  %v52 = vpop.xlane.xlu0 %51
  %v53 = vsel %vm43, %v38, 0.0
  %54 = vadd.xlane.f32.xlu0 %v53
  %v55 = vpop.xlane.xlu0 %54
  %v56 = vsel %vm43, %v39, 0.0
  %57 = vadd.xlane.f32.xlu0 %v56
  %v58 = vpop.xlane.xlu0 %57
  %v59 = vsel %vm43, %v40, 0.0
  %60 = vadd.xlane.f32.xlu0 %v59
  %v61 = vpop.xlane.xlu0 %60
  %v62 = vsel %vm43, %v41, 0.0
  %63 = vadd.xlane.f32.xlu0 %v62
  %v64 = vpop.xlane.xlu0 %63
  %v65 = vsel %vm43, %v42, 0.0
  %66 = vadd.xlane.f32.xlu0 %v65
  %v67 = vpop.xlane.xlu0 %66
  %v68 = vrcp.pop 32.0
  %v69 = vmul.f32 32.0, %v68
  %v70 = vsub.f32 1.0, %v69
  %v71 = vmul.f32 %v68, %v70
  %v72 = vadd.f32 %v68, %v71
  %vm73 = vweird.f32 %v68
  %v74 = vsel %vm73, %v68, %v72
  %v75 = vmul.f32 %v46, %v74
  %v76 = vmul.f32 %v49, %v74
  %v77 = vmul.f32 %v52, %v74
  %v78 = vmul.f32 %v55, %v74
  %v79 = vmul.f32 %v58, %v74
  %v80 = vmul.f32 %v61, %v74
  %v81 = vmul.f32 %v64, %v74
  %v82 = vmul.f32 %v67, %v74
  %v83 = vsub.f32 %v35, %v75
  %v84 = vsub.f32 %v36, %v76
  %v85 = vsub.f32 %v37, %v77
  %v86 = vsub.f32 %v38, %v78
  %v87 = vsub.f32 %v39, %v79
  %v88 = vsub.f32 %v40, %v80
  %v89 = vsub.f32 %v41, %v81
  %v90 = vsub.f32 %v42, %v82
  %v91 = vmul.f32 %v83, %v83
  %v92 = vmul.f32 %v84, %v84
  %v93 = vmul.f32 %v85, %v85
  %v94 = vmul.f32 %v86, %v86
  %v95 = vmul.f32 %v87, %v87
  %v96 = vmul.f32 %v88, %v88
  %v97 = vmul.f32 %v89, %v89
  %v98 = vmul.f32 %v90, %v90
  %v99 = vsel %vm43, %v91, 0.0
  %100 = vadd.xlane.f32.xlu0 %v99
  %v101 = vpop.xlane.xlu0 %100
  %v102 = vsel %vm43, %v92, 0.0
  %103 = vadd.xlane.f32.xlu0 %v102
  %v104 = vpop.xlane.xlu0 %103
  %v105 = vsel %vm43, %v93, 0.0
  %106 = vadd.xlane.f32.xlu0 %v105
  %v107 = vpop.xlane.xlu0 %106
  %v108 = vsel %vm43, %v94, 0.0
  %109 = vadd.xlane.f32.xlu0 %v108
  %v110 = vpop.xlane.xlu0 %109
  %v111 = vsel %vm43, %v95, 0.0
  %112 = vadd.xlane.f32.xlu0 %v111
  %v113 = vpop.xlane.xlu0 %112
  %v114 = vsel %vm43, %v96, 0.0
  %115 = vadd.xlane.f32.xlu0 %v114
  %v116 = vpop.xlane.xlu0 %115
  %v117 = vsel %vm43, %v97, 0.0
  %118 = vadd.xlane.f32.xlu0 %v117
  %v119 = vpop.xlane.xlu0 %118
  %v120 = vsel %vm43, %v98, 0.0
  %121 = vadd.xlane.f32.xlu0 %v120
  %v122 = vpop.xlane.xlu0 %121
  %v123 = vmul.f32 %v101, %v74
  %v124 = vmul.f32 %v104, %v74
  %v125 = vmul.f32 %v107, %v74
  %v126 = vmul.f32 %v110, %v74
  %v127 = vmul.f32 %v113, %v74
  %v128 = vmul.f32 %v116, %v74
  %v129 = vmul.f32 %v119, %v74
  %v130 = vmul.f32 %v122, %v74
  %v131 = vadd.f32 %v123, 1e-05
  %v132 = vadd.f32 %v124, 1e-05
  %v133 = vadd.f32 %v125, 1e-05
  %v134 = vadd.f32 %v126, 1e-05
  %v135 = vadd.f32 %v127, 1e-05
  %v136 = vadd.f32 %v128, 1e-05
  %v137 = vadd.f32 %v129, 1e-05
  %v138 = vadd.f32 %v130, 1e-05
  %v139 = vrsqrt.pop %v131
  %v140 = vmul.f32 %v139, %v131
  %v141 = vmul.f32 %v140, %v139
  %v142 = vmul.f32 0.5, %v141
  %v143 = vsub.f32 1.5, %v142
  %v144 = vmul.f32 %v139, %v143
  %vm145 = vweird.f32 %v131
  %vm146 = vweird.f32 %v139
  %vm147 = vmor %vm145, %vm146
  %v148 = vsel %vm147, %v139, %v144
  %v149 = vrsqrt.pop %v132
  %v150 = vmul.f32 %v149, %v132
  %v151 = vmul.f32 %v150, %v149
  %v152 = vmul.f32 0.5, %v151
  %v153 = vsub.f32 1.5, %v152
  %v154 = vmul.f32 %v149, %v153
  %vm155 = vweird.f32 %v132
  %vm156 = vweird.f32 %v149
  %vm157 = vmor %vm155, %vm156
  %v158 = vsel %vm157, %v149, %v154
  %v159 = vrsqrt.pop %v133
  %v160 = vmul.f32 %v159, %v133
  %v161 = vmul.f32 %v160, %v159
  %v162 = vmul.f32 0.5, %v161
  %v163 = vsub.f32 1.5, %v162
  %v164 = vmul.f32 %v159, %v163
  %vm165 = vweird.f32 %v133
  %vm166 = vweird.f32 %v159
  %vm167 = vmor %vm165, %vm166
  %v168 = vsel %vm167, %v159, %v164
  %v169 = vrsqrt.pop %v134
  %v170 = vmul.f32 %v169, %v134
  %v171 = vmul.f32 %v170, %v169
  %v172 = vmul.f32 0.5, %v171
  %v173 = vsub.f32 1.5, %v172
  %v174 = vmul.f32 %v169, %v173
  %vm175 = vweird.f32 %v134
  %vm176 = vweird.f32 %v169
  %vm177 = vmor %vm175, %vm176
  %v178 = vsel %vm177, %v169, %v174
  %v179 = vrsqrt.pop %v135
  %v180 = vmul.f32 %v179, %v135
  %v181 = vmul.f32 %v180, %v179
  %v182 = vmul.f32 0.5, %v181
  %v183 = vsub.f32 1.5, %v182
  %v184 = vmul.f32 %v179, %v183
  %vm185 = vweird.f32 %v135
  %vm186 = vweird.f32 %v179
  %vm187 = vmor %vm185, %vm186
  %v188 = vsel %vm187, %v179, %v184
  %v189 = vrsqrt.pop %v136
  %v190 = vmul.f32 %v189, %v136
  %v191 = vmul.f32 %v190, %v189
  %v192 = vmul.f32 0.5, %v191
  %v193 = vsub.f32 1.5, %v192
  %v194 = vmul.f32 %v189, %v193
  %vm195 = vweird.f32 %v136
  %vm196 = vweird.f32 %v189
  %vm197 = vmor %vm195, %vm196
  %v198 = vsel %vm197, %v189, %v194
  %v199 = vrsqrt.pop %v137
  %v200 = vmul.f32 %v199, %v137
  %v201 = vmul.f32 %v200, %v199
  %v202 = vmul.f32 0.5, %v201
  %v203 = vsub.f32 1.5, %v202
  %v204 = vmul.f32 %v199, %v203
  %vm205 = vweird.f32 %v137
  %vm206 = vweird.f32 %v199
  %vm207 = vmor %vm205, %vm206
  %v208 = vsel %vm207, %v199, %v204
  %v209 = vrsqrt.pop %v138
  %v210 = vmul.f32 %v209, %v138
  %v211 = vmul.f32 %v210, %v209
  %v212 = vmul.f32 0.5, %v211
  %v213 = vsub.f32 1.5, %v212
  %v214 = vmul.f32 %v209, %v213
  %vm215 = vweird.f32 %v138
  %vm216 = vweird.f32 %v209
  %vm217 = vmor %vm215, %vm216
  %v218 = vsel %vm217, %v209, %v214
  %v219 = vmul.f32 %v83, %v148
  %v220 = vmul.f32 %v84, %v158
  %v221 = vmul.f32 %v85, %v168
  %v222 = vmul.f32 %v86, %v178
  %v223 = vmul.f32 %v87, %v188
  %v224 = vmul.f32 %v88, %v198
  %v225 = vmul.f32 %v89, %v208
  %v226 = vmul.f32 %v90, %v218
  %v227 = vld [vmem:[%s1] sm:$0x1]
  %v229 = vperm.slane %v227, 0
  %v231 = vmul.f32 %v219, %v229
  %v232 = vmul.f32 %v220, %v229
  %v233 = vmul.f32 %v221, %v229
  %v234 = vmul.f32 %v222, %v229
  %v235 = vmul.f32 %v223, %v229
  %v236 = vmul.f32 %v224, %v229
  %v237 = vmul.f32 %v225, %v229
  %v238 = vmul.f32 %v226, %v229
  %v239 = vld [vmem:[%s2] sm:$0x1]
  %v241 = vperm.slane %v239, 0
  %v243 = vadd.f32 %v231, %v241
  %v244 = vadd.f32 %v232, %v241
  %v245 = vadd.f32 %v233, %v241
  %v246 = vadd.f32 %v234, %v241
  %v247 = vadd.f32 %v235, %v241
  %v248 = vadd.f32 %v236, %v241
  %v249 = vadd.f32 %v237, %v241
  %v250 = vadd.f32 %v238, %v241
  %v251 = vpack.c.bf16 %v244, %v243
  %v252 = vpack.c.bf16 %v246, %v245
  %v253 = vpack.c.bf16 %v248, %v247
  %v254 = vpack.c.bf16 %v250, %v249
  %v255 = vld [vmem:[%s3] sm:$0xf]
  %v256 = vld [vmem:[%s3 + $0x4] sm:$0xf]
  %v257 = vld [vmem:[%s3 + $0x8] sm:$0xf]
  %v258 = vld [vmem:[%s3 + $0xc] sm:$0xf]
  %v259 = vld [vmem:[%s4] sm:$0x1]
  %v261 = vperm.slane %v259, 0
  %v267 = vunpack.c.l.b16 %v255
  %v268 = vunpack.c.l.b16 %v256
  %v269 = vunpack.c.l.b16 %v257
  %v270 = vunpack.c.l.b16 %v258
  %v271 = vpack.c.b16 %v268, %v267
  %v272 = vpack.c.b16 %v270, %v269
  %v276 = vsel %vm43, %v251, 0
  %v279 = vsel %vm43, %v252, 0
  %v282 = vsel %vm43, %v253, 0
  %v285 = vsel %vm43, %v254, 0
  %287 = vmatpush.bf16.msra.mxu0 0
  %288 = vmatpush.bf16.msra.mxu0 0
  %289 = vmatpush.bf16.msra.mxu0 0
  %290 = vmatpush.bf16.msra.mxu0 0
  %291 = vmatpush.bf16.msra.mxu0 0
  %292 = vmatpush.bf16.msra.mxu0 0
  %293 = vmatpush.bf16.msra.mxu0 %v272
  %294 = vmatpush.bf16.msra.mxu0 %v271
  %295 = vmatmul.bf16.gmra.mxu0 %v276
  %v296 = vpop.f32.mrf.mxu0
  %v297 = vadd.f32 %v261, %v296
  %v298 = vpop.f32.mrf.mxu0
  %v299 = vadd.f32 %v261, %v298
  %300 = vmatmul.bf16.gmra.mxu0 %v279
  %v301 = vpop.f32.mrf.mxu0
  %v302 = vadd.f32 %v261, %v301
  %v303 = vpop.f32.mrf.mxu0
  %v304 = vadd.f32 %v261, %v303
  %305 = vmatmul.bf16.gmra.mxu0 %v282
  %v306 = vpop.f32.mrf.mxu0
  %v307 = vadd.f32 %v261, %v306
  %v308 = vpop.f32.mrf.mxu0
  %v309 = vadd.f32 %v261, %v308
  %310 = vmatmul.bf16.gmra.mxu0 %v285
  %v311 = vpop.f32.mrf.mxu0
  %v312 = vadd.f32 %v261, %v311
  %v313 = vpop.f32.mrf.mxu0
  %v314 = vadd.f32 %v261, %v313
  %315 = vdwg.mxu0
  %v316 = vxor.u32 %v297, 2147483648
  %v317 = vxor.u32 %v299, 2147483648
  %v318 = vxor.u32 %v302, 2147483648
  %v319 = vxor.u32 %v304, 2147483648
  %v320 = vxor.u32 %v307, 2147483648
  %v321 = vxor.u32 %v309, 2147483648
  %v322 = vxor.u32 %v312, 2147483648
  %v323 = vxor.u32 %v314, 2147483648
  %v324 = vmul.f32 %v316, 1.442695
  %v325 = vpow.pop %v324
  %v326 = vmul.f32 %v317, 1.442695
  %v327 = vpow.pop %v326
  %v328 = vmul.f32 %v318, 1.442695
  %v329 = vpow.pop %v328
  %v330 = vmul.f32 %v319, 1.442695
  %v331 = vpow.pop %v330
  %v332 = vmul.f32 %v320, 1.442695
  %v333 = vpow.pop %v332
  %v334 = vmul.f32 %v321, 1.442695
  %v335 = vpow.pop %v334
  %v336 = vmul.f32 %v322, 1.442695
  %v337 = vpow.pop %v336
  %v338 = vmul.f32 %v323, 1.442695
  %v339 = vpow.pop %v338
  %v340 = vadd.f32 %v325, 1.0
  %v341 = vadd.f32 %v327, 1.0
  %v342 = vadd.f32 %v329, 1.0
  %v343 = vadd.f32 %v331, 1.0
  %v344 = vadd.f32 %v333, 1.0
  %v345 = vadd.f32 %v335, 1.0
  %v346 = vadd.f32 %v337, 1.0
  %v347 = vadd.f32 %v339, 1.0
  %v348 = vrcp.pop %v340
  %v349 = vmul.f32 %v340, %v348
  %v350 = vsub.f32 1.0, %v349
  %v351 = vmul.f32 %v348, %v350
  %v352 = vadd.f32 %v348, %v351
  %vm353 = vweird.f32 %v340
  %vm354 = vweird.f32 %v348
  %vm355 = vmor %vm353, %vm354
  %v356 = vsel %vm355, %v348, %v352
  %v357 = vand.u32 2147483647, %v340
  %vm358 = vcmp.eq.f32.partialorder %v357, 8.507059e+37
  %v359 = vand.u32 %v340, 2147483648
  %v360 = vor.u32 1.1754944e-38, %v359
  %v361 = vsel %vm358, %v360, %v356
  %v362 = vmul.f32 1.0, %v361
  %v363 = vrcp.pop %v341
  %v364 = vmul.f32 %v341, %v363
  %v365 = vsub.f32 1.0, %v364
  %v366 = vmul.f32 %v363, %v365
  %v367 = vadd.f32 %v363, %v366
  %vm368 = vweird.f32 %v341
  %vm369 = vweird.f32 %v363
  %vm370 = vmor %vm368, %vm369
  %v371 = vsel %vm370, %v363, %v367
  %v372 = vand.u32 2147483647, %v341
  %vm373 = vcmp.eq.f32.partialorder %v372, 8.507059e+37
  %v374 = vand.u32 %v341, 2147483648
  %v375 = vor.u32 1.1754944e-38, %v374
  %v376 = vsel %vm373, %v375, %v371
  %v377 = vmul.f32 1.0, %v376
  %v378 = vrcp.pop %v342
  %v379 = vmul.f32 %v342, %v378
  %v380 = vsub.f32 1.0, %v379
  %v381 = vmul.f32 %v378, %v380
  %v382 = vadd.f32 %v378, %v381
  %vm383 = vweird.f32 %v342
  %vm384 = vweird.f32 %v378
  %vm385 = vmor %vm383, %vm384
  %v386 = vsel %vm385, %v378, %v382
  %v387 = vand.u32 2147483647, %v342
  %vm388 = vcmp.eq.f32.partialorder %v387, 8.507059e+37
  %v389 = vand.u32 %v342, 2147483648
  %v390 = vor.u32 1.1754944e-38, %v389
  %v391 = vsel %vm388, %v390, %v386
  %v392 = vmul.f32 1.0, %v391
  %v393 = vrcp.pop %v343
  %v394 = vmul.f32 %v343, %v393
  %v395 = vsub.f32 1.0, %v394
  %v396 = vmul.f32 %v393, %v395
  %v397 = vadd.f32 %v393, %v396
  %vm398 = vweird.f32 %v343
  %vm399 = vweird.f32 %v393
  %vm400 = vmor %vm398, %vm399
  %v401 = vsel %vm400, %v393, %v397
  %v402 = vand.u32 2147483647, %v343
  %vm403 = vcmp.eq.f32.partialorder %v402, 8.507059e+37
  %v404 = vand.u32 %v343, 2147483648
  %v405 = vor.u32 1.1754944e-38, %v404
  %v406 = vsel %vm403, %v405, %v401
  %v407 = vmul.f32 1.0, %v406
  %v408 = vrcp.pop %v344
  %v409 = vmul.f32 %v344, %v408
  %v410 = vsub.f32 1.0, %v409
  %v411 = vmul.f32 %v408, %v410
  %v412 = vadd.f32 %v408, %v411
  %vm413 = vweird.f32 %v344
  %vm414 = vweird.f32 %v408
  %vm415 = vmor %vm413, %vm414
  %v416 = vsel %vm415, %v408, %v412
  %v417 = vand.u32 2147483647, %v344
  %vm418 = vcmp.eq.f32.partialorder %v417, 8.507059e+37
  %v419 = vand.u32 %v344, 2147483648
  %v420 = vor.u32 1.1754944e-38, %v419
  %v421 = vsel %vm418, %v420, %v416
  %v422 = vmul.f32 1.0, %v421
  %v423 = vrcp.pop %v345
  %v424 = vmul.f32 %v345, %v423
  %v425 = vsub.f32 1.0, %v424
  %v426 = vmul.f32 %v423, %v425
  %v427 = vadd.f32 %v423, %v426
  %vm428 = vweird.f32 %v345
  %vm429 = vweird.f32 %v423
  %vm430 = vmor %vm428, %vm429
  %v431 = vsel %vm430, %v423, %v427
  %v432 = vand.u32 2147483647, %v345
  %vm433 = vcmp.eq.f32.partialorder %v432, 8.507059e+37
  %v434 = vand.u32 %v345, 2147483648
  %v435 = vor.u32 1.1754944e-38, %v434
  %v436 = vsel %vm433, %v435, %v431
  %v437 = vmul.f32 1.0, %v436
  %v438 = vrcp.pop %v346
  %v439 = vmul.f32 %v346, %v438
  %v440 = vsub.f32 1.0, %v439
  %v441 = vmul.f32 %v438, %v440
  %v442 = vadd.f32 %v438, %v441
  %vm443 = vweird.f32 %v346
  %vm444 = vweird.f32 %v438
  %vm445 = vmor %vm443, %vm444
  %v446 = vsel %vm445, %v438, %v442
  %v447 = vand.u32 2147483647, %v346
  %vm448 = vcmp.eq.f32.partialorder %v447, 8.507059e+37
  %v449 = vand.u32 %v346, 2147483648
  %v450 = vor.u32 1.1754944e-38, %v449
  %v451 = vsel %vm448, %v450, %v446
  %v452 = vmul.f32 1.0, %v451
  %v453 = vrcp.pop %v347
  %v454 = vmul.f32 %v347, %v453
  %v455 = vsub.f32 1.0, %v454
  %v456 = vmul.f32 %v453, %v455
  %v457 = vadd.f32 %v453, %v456
  %vm458 = vweird.f32 %v347
  %vm459 = vweird.f32 %v453
  %vm460 = vmor %vm458, %vm459
  %v461 = vsel %vm460, %v453, %v457
  %v462 = vand.u32 2147483647, %v347
  %vm463 = vcmp.eq.f32.partialorder %v462, 8.507059e+37
  %v464 = vand.u32 %v347, 2147483648
  %v465 = vor.u32 1.1754944e-38, %v464
  %v466 = vsel %vm463, %v465, %v461
  %v467 = vmul.f32 1.0, %v466
  %v468 = vmul.f32 %v297, %v362
  %v469 = vmul.f32 %v299, %v377
  %v470 = vmul.f32 %v302, %v392
  %v471 = vmul.f32 %v304, %v407
  %v472 = vmul.f32 %v307, %v422
  %v473 = vmul.f32 %v309, %v437
  %v474 = vmul.f32 %v312, %v452
  %v475 = vmul.f32 %v314, %v467
  %v476 = vpack.c.bf16 %v469, %v468
  %v477 = vpack.c.bf16 %v471, %v470
  %v478 = vpack.c.bf16 %v473, %v472
  %v479 = vpack.c.bf16 %v475, %v474
  %v480 = vld [vmem:[%s5] sm:$0xf]
  %v481 = vld [vmem:[%s5 + $0x4] sm:$0xf]
  %v482 = vld [vmem:[%s5 + $0x8] sm:$0xf]
  %v483 = vld [vmem:[%s5 + $0xc] sm:$0xf]
  %v484 = vld [vmem:[%s5 + $0x10] sm:$0xf]
  %v485 = vld [vmem:[%s5 + $0x14] sm:$0xf]
  %v486 = vld [vmem:[%s5 + $0x18] sm:$0xf]
  %v487 = vld [vmem:[%s5 + $0x1c] sm:$0xf]
  %v488 = vld [vmem:[%s6] sm:$0x1]
  %v490 = vperm.slane %v488, 0
  %v500 = vunpack.c.l.b16 %v480
  %v501 = vunpack.c.l.b16 %v481
  %v502 = vunpack.c.l.b16 %v482
  %v503 = vunpack.c.l.b16 %v483
  %v504 = vunpack.c.l.b16 %v484
  %v505 = vunpack.c.l.b16 %v485
  %v506 = vunpack.c.l.b16 %v486
  %v507 = vunpack.c.l.b16 %v487
  %v508 = vpack.c.b16 %v501, %v500
  %v509 = vpack.c.b16 %v503, %v502
  %v510 = vpack.c.b16 %v505, %v504
  %v511 = vpack.c.b16 %v507, %v506
  %vm516 = vcmask 523264
  %v518 = vsel %vm516, %v476, 0
  %v521 = vsel %vm516, %v477, 0
  %v524 = vsel %vm516, %v478, 0
  %v527 = vsel %vm516, %v479, 0
  %529 = vmatpush.bf16.msra.mxu0 0
  %530 = vmatpush.bf16.msra.mxu0 0
  %531 = vmatpush.bf16.msra.mxu0 0
  %532 = vmatpush.bf16.msra.mxu0 0
  %533 = vmatpush.bf16.msra.mxu0 %v511
  %534 = vmatpush.bf16.msra.mxu0 %v510
  %535 = vmatpush.bf16.msra.mxu0 %v509
  %536 = vmatpush.bf16.msra.mxu0 %v508
  %537 = vmatmul.bf16.gmra.mxu0 %v518
  %v538 = vpop.f32.mrf.mxu0
  %v539 = vadd.f32 %v490, %v538
  %v540 = vpop.f32.mrf.mxu0
  %v541 = vadd.f32 %v490, %v540
  %542 = vmatmul.bf16.gmra.mxu0 %v521
  %v543 = vpop.f32.mrf.mxu0
  %v544 = vadd.f32 %v490, %v543
  %v545 = vpop.f32.mrf.mxu0
  %v546 = vadd.f32 %v490, %v545
  %547 = vmatmul.bf16.gmra.mxu0 %v524
  %v548 = vpop.f32.mrf.mxu0
  %v549 = vadd.f32 %v490, %v548
  %v550 = vpop.f32.mrf.mxu0
  %v551 = vadd.f32 %v490, %v550
  %552 = vmatmul.bf16.gmra.mxu0 %v527
  %v553 = vpop.f32.mrf.mxu0
  %v554 = vadd.f32 %v490, %v553
  %v555 = vpop.f32.mrf.mxu0
  %v556 = vadd.f32 %v490, %v555
  %557 = vdwg.mxu0
  %v558 = vadd.f32 %v35, %v539
  %v559 = vadd.f32 %v36, %v541
  %v560 = vadd.f32 %v37, %v544
  %v561 = vadd.f32 %v38, %v546
  %v562 = vadd.f32 %v39, %v549
  %v563 = vadd.f32 %v40, %v551
  %v564 = vadd.f32 %v41, %v554
  %v565 = vadd.f32 %v42, %v556
  %v566 = vpack.c.bf16 %v558, %v558
  %v567 = vpack.c.bf16 %v559, %v559
  %v568 = vpack.c.bf16 %v560, %v560
  %v569 = vpack.c.bf16 %v561, %v561
  %v570 = vpack.c.bf16 %v562, %v562
  %v571 = vpack.c.bf16 %v563, %v563
  %v572 = vpack.c.bf16 %v564, %v564
  %v573 = vpack.c.bf16 %v565, %v565
  %vm574 = vcmask 257024
  %575 = vst.msk [vmem:[%s7] sm:$0xf] %vm574, %v566
  %576 = vst.msk [vmem:[%s7 + $0x4] sm:$0xf] %vm574, %v567
  %577 = vst.msk [vmem:[%s7 + $0x8] sm:$0xf] %vm574, %v568
  %578 = vst.msk [vmem:[%s7 + $0xc] sm:$0xf] %vm574, %v569
  %579 = vst.msk [vmem:[%s7 + $0x10] sm:$0xf] %vm574, %v570
  %580 = vst.msk [vmem:[%s7 + $0x14] sm:$0xf] %vm574, %v571
  %581 = vst.msk [vmem:[%s7 + $0x18] sm:$0xf] %vm574, %v572
  %582 = vst.msk [vmem:[%s7 + $0x1c] sm:$0xf] %vm574, %v573
  // Predicated region
  $region30: #{stmamba_bcd_forward.28} parent=0 // pred_check
    _
  $region31: #{stmamba_bcd_forward.28} parent=0 // pred_check_branch
    %584 = sbr.rel (0) target = $region33
  $region32: #{stmamba_bcd_forward.28} parent=0 // pred_region
    _
  $region33: #{stmamba_bcd_forward.28} parent=0 // pred_fallthru
    _
  // Predicated region
  $region34: #{stmamba_bcd_forward.28} parent=0 // pred_check
    _
  $region35: #{stmamba_bcd_forward.28} parent=0 // pred_check_branch
    %586 = sbr.rel (0) target = $region37
  $region36: #{stmamba_bcd_forward.28} parent=0 // pred_region
    _
  $region37: #{stmamba_bcd_forward.28} parent=0 // pred_fallthru
    _

// kernel: stmamba_bcd_forward.31
$region0: #{stmamba_bcd_forward.31}
  #allocation0 [shape = 'u32[]', space=smem, size = 0x4, offset = 0x4, fixed_abs, tag = 'smem constant byte address 0x4 - core index']
  #allocation1 [shape = 'u32[72,128]{1,0:T(1,128)}', space=vmem, size = 0x9000, scoped, tag = 'internal scratch']
  %s0 = inlined_call_operand.vmem [shape: bf16[4,256], index: 0, kind: input, shape index: {}]
  %s1 = inlined_call_operand.vmem [shape: bf16[256,128], index: 1, kind: input, shape index: {}]
  %s2 = inlined_call_operand.vmem [shape: f32[1,128], index: 2, kind: input, shape index: {}]
  %s3 = inlined_call_operand.vmem [shape: f32[1,128], index: 3, kind: input, shape index: {}]
  %s4 = inlined_call_operand.vmem [shape: f32[1,128], index: 4, kind: input, shape index: {}]
  %s5 = inlined_call_operand.vmem [shape: bf16[4,128], index: 5, kind: output, shape index: {}]
  %s6 = sld [smem:[#allocation0]]
  $region30: #{stmamba_bcd_forward.31} parent=0
    _
  %s8 = ssub.s32 1, %s6
  %s9 = scalar_select 0, %s8, %s6
  // Predicated region
  $region2: #{stmamba_bcd_forward.31} parent=0 // pred_check
    _
  $region3: #{stmamba_bcd_forward.31} parent=0 // pred_check_branch
    %11 = sbr.rel (0) target = $region5
  $region4: #{stmamba_bcd_forward.31} parent=0 // pred_region
    _
  $region5: #{stmamba_bcd_forward.31} parent=0 // pred_fallthru
    _
  // Predicated region
  $region6: #{stmamba_bcd_forward.31} parent=0 // pred_check
    _
  $region7: #{stmamba_bcd_forward.31} parent=0 // pred_check_branch
    %13 = sbr.rel (0) target = $region9
  $region8: #{stmamba_bcd_forward.31} parent=0 // pred_region
    _
  $region9: #{stmamba_bcd_forward.31} parent=0 // pred_fallthru
    _
  // Predicated region
  $region10: #{stmamba_bcd_forward.31} parent=0 // pred_check
    _
  $region11: #{stmamba_bcd_forward.31} parent=0 // pred_check_branch
    %15 = sbr.rel (0) target = $region13
  $region12: #{stmamba_bcd_forward.31} parent=0 // pred_region
    _
  $region13: #{stmamba_bcd_forward.31} parent=0 // pred_fallthru
    _
  // Predicated region
  $region14: #{stmamba_bcd_forward.31} parent=0 // pred_check
    _
  $region15: #{stmamba_bcd_forward.31} parent=0 // pred_check_branch
    %17 = sbr.rel (0) target = $region17
  $region16: #{stmamba_bcd_forward.31} parent=0 // pred_region
    _
  $region17: #{stmamba_bcd_forward.31} parent=0 // pred_fallthru
    _
  // Predicated region
  $region18: #{stmamba_bcd_forward.31} parent=0 // pred_check
    _
  $region19: #{stmamba_bcd_forward.31} parent=0 // pred_check_branch
    %19 = sbr.rel (0) target = $region21
  $region20: #{stmamba_bcd_forward.31} parent=0 // pred_region
    _
  $region21: #{stmamba_bcd_forward.31} parent=0 // pred_fallthru
    _
  %v20 = vld [vmem:[%s0] sm:$0xf]
  %v21 = vld [vmem:[%s1] sm:$0xf]
  %v22 = vld [vmem:[%s1 + $0x4] sm:$0xf]
  %v23 = vld [vmem:[%s1 + $0x8] sm:$0xf]
  %v24 = vld [vmem:[%s1 + $0xc] sm:$0xf]
  %v25 = vld [vmem:[%s1 + $0x10] sm:$0xf]
  %v26 = vld [vmem:[%s1 + $0x14] sm:$0xf]
  %v27 = vld [vmem:[%s1 + $0x18] sm:$0xf]
  %v28 = vld [vmem:[%s1 + $0x1c] sm:$0xf]
  %v29 = vld [vmem:[%s1 + $0x20] sm:$0xf]
  %v30 = vld [vmem:[%s1 + $0x24] sm:$0xf]
  %v31 = vld [vmem:[%s1 + $0x28] sm:$0xf]
  %v32 = vld [vmem:[%s1 + $0x2c] sm:$0xf]
  %v33 = vld [vmem:[%s1 + $0x30] sm:$0xf]
  %v34 = vld [vmem:[%s1 + $0x34] sm:$0xf]
  %v35 = vld [vmem:[%s1 + $0x38] sm:$0xf]
  %v36 = vld [vmem:[%s1 + $0x3c] sm:$0xf]
  %v37 = vld [vmem:[%s1 + $0x40] sm:$0xf]
  %v38 = vld [vmem:[%s1 + $0x44] sm:$0xf]
  %v39 = vld [vmem:[%s1 + $0x48] sm:$0xf]
  %v40 = vld [vmem:[%s1 + $0x4c] sm:$0xf]
  %v41 = vld [vmem:[%s1 + $0x50] sm:$0xf]
  %v42 = vld [vmem:[%s1 + $0x54] sm:$0xf]
  %v43 = vld [vmem:[%s1 + $0x58] sm:$0xf]
  %v44 = vld [vmem:[%s1 + $0x5c] sm:$0xf]
  %v45 = vld [vmem:[%s1 + $0x60] sm:$0xf]
  %v46 = vld [vmem:[%s1 + $0x64] sm:$0xf]
  %v47 = vld [vmem:[%s1 + $0x68] sm:$0xf]
  %v48 = vld [vmem:[%s1 + $0x6c] sm:$0xf]
  %v49 = vld [vmem:[%s1 + $0x70] sm:$0xf]
  %v50 = vld [vmem:[%s1 + $0x74] sm:$0xf]
  %v51 = vld [vmem:[%s1 + $0x78] sm:$0xf]
  %v52 = vld [vmem:[%s1 + $0x7c] sm:$0xf]
  %v53 = vld [vmem:[%s2] sm:$0x1]
  %v55 = vperm.slane %v53, 0
  %58 = vst [vmem:[#allocation1] ss:$4 sm:$0xff] %v20
  %v59 = vld.sshfl [vmem:[#allocation1] sm:$0xff pattern:$0x73625140]
  %v60 = vld.sshfl [vmem:[#allocation1 + $0x8] sm:$0xff pattern:$0x73625140]
  %v95 = vunpack.c.l.b16 %v21
  %v96 = vunpack.c.l.b16 %v22
  %v97 = vunpack.c.l.b16 %v23
  %v98 = vunpack.c.l.b16 %v24
  %v99 = vunpack.c.l.b16 %v25
  %v100 = vunpack.c.l.b16 %v26
  %v101 = vunpack.c.l.b16 %v27
  %v102 = vunpack.c.l.b16 %v28
  %v103 = vunpack.c.l.b16 %v29
  %v104 = vunpack.c.l.b16 %v30
  %v105 = vunpack.c.l.b16 %v31
  %v106 = vunpack.c.l.b16 %v32
  %v107 = vunpack.c.l.b16 %v33
  %v108 = vunpack.c.l.b16 %v34
  %v109 = vunpack.c.l.b16 %v35
  %v110 = vunpack.c.l.b16 %v36
  %v111 = vunpack.c.l.b16 %v37
  %v112 = vunpack.c.l.b16 %v38
  %v113 = vunpack.c.l.b16 %v39
  %v114 = vunpack.c.l.b16 %v40
  %v115 = vunpack.c.l.b16 %v41
  %v116 = vunpack.c.l.b16 %v42
  %v117 = vunpack.c.l.b16 %v43
  %v118 = vunpack.c.l.b16 %v44
  %v119 = vunpack.c.l.b16 %v45
  %v120 = vunpack.c.l.b16 %v46
  %v121 = vunpack.c.l.b16 %v47
  %v122 = vunpack.c.l.b16 %v48
  %v123 = vunpack.c.l.b16 %v49
  %v124 = vunpack.c.l.b16 %v50
  %v125 = vunpack.c.l.b16 %v51
  %v126 = vunpack.c.l.b16 %v52
  %v127 = vpack.c.b16 %v96, %v95
  %v128 = vpack.c.b16 %v98, %v97
  %v129 = vpack.c.b16 %v100, %v99
  %v130 = vpack.c.b16 %v102, %v101
  %v131 = vpack.c.b16 %v104, %v103
  %v132 = vpack.c.b16 %v106, %v105
  %v133 = vpack.c.b16 %v108, %v107
  %v134 = vpack.c.b16 %v110, %v109
  %v135 = vpack.c.b16 %v112, %v111
  %v136 = vpack.c.b16 %v114, %v113
  %v137 = vpack.c.b16 %v116, %v115
  %v138 = vpack.c.b16 %v118, %v117
  %v139 = vpack.c.b16 %v120, %v119
  %v140 = vpack.c.b16 %v122, %v121
  %v141 = vpack.c.b16 %v124, %v123
  %v142 = vpack.c.b16 %v126, %v125
  %159 = vmatpush.bf16.msra.mxu0 %v134
  %160 = vmatpush.bf16.msra.mxu0 %v133
  %161 = vmatpush.bf16.msra.mxu0 %v132
  %162 = vmatpush.bf16.msra.mxu0 %v131
  %163 = vmatpush.bf16.msra.mxu0 %v130
  %164 = vmatpush.bf16.msra.mxu0 %v129
  %165 = vmatpush.bf16.msra.mxu0 %v128
  %166 = vmatpush.bf16.msra.mxu0 %v127
  %167 = vmatmul.bf16.gmra.mxu0 %v59
  %v168 = vpop.f32.mrf.mxu0
  %v169 = vadd.f32 %v55, %v168
  %v170 = vpop.f32.mrf.mxu0
  %171 = vdwg.mxu0
  %172 = vmatpush.bf16.msra.mxu0 %v142
  %173 = vmatpush.bf16.msra.mxu0 %v141
  %174 = vmatpush.bf16.msra.mxu0 %v140
  %175 = vmatpush.bf16.msra.mxu0 %v139
  %176 = vmatpush.bf16.msra.mxu0 %v138
  %177 = vmatpush.bf16.msra.mxu0 %v137
  %178 = vmatpush.bf16.msra.mxu0 %v136
  %179 = vmatpush.bf16.msra.mxu0 %v135
  %180 = vmatmul.bf16.gmra.mxu0 %v60
  %v181 = vpop.f32.mrf.mxu0
  %v182 = vadd.f32 %v169, %v181
  %v183 = vpop.f32.mrf.mxu0
  %184 = vdwg.mxu0
  %vm185 = vcmask 1043456
  %v186 = vsel %vm185, %v182, 0.0
  %187 = vadd.xlane.f32.xlu0 %v186
  %v188 = vpop.xlane.xlu0 %187
  %v189 = vrcp.pop 128.0
  %v190 = vmul.f32 128.0, %v189
  %v191 = vsub.f32 1.0, %v190
  %v192 = vmul.f32 %v189, %v191
  %v193 = vadd.f32 %v189, %v192
  %vm194 = vweird.f32 %v189
  %v195 = vsel %vm194, %v189, %v193
  %v196 = vmul.f32 %v188, %v195
  %v197 = vsub.f32 %v182, %v196
  %v198 = vmul.f32 %v197, %v197
  %v199 = vsel %vm185, %v198, 0.0
  %200 = vadd.xlane.f32.xlu0 %v199
  %v201 = vpop.xlane.xlu0 %200
  %v202 = vmul.f32 %v201, %v195
  %v203 = vadd.f32 %v202, 1e-05
  %v204 = vrsqrt.pop %v203
  %v205 = vmul.f32 %v204, %v203
  %v206 = vmul.f32 %v205, %v204
  %v207 = vmul.f32 0.5, %v206
  %v208 = vsub.f32 1.5, %v207
  %v209 = vmul.f32 %v204, %v208
  %vm210 = vweird.f32 %v203
  %vm211 = vweird.f32 %v204
  %vm212 = vmor %vm210, %vm211
  %v213 = vsel %vm212, %v204, %v209
  %v214 = vmul.f32 %v197, %v213
  %v215 = vld [vmem:[%s3] sm:$0x1]
  %v217 = vperm.slane %v215, 0
  %v219 = vmul.f32 %v214, %v217
  %v220 = vld [vmem:[%s4] sm:$0x1]
  %v222 = vperm.slane %v220, 0
  %v224 = vadd.f32 %v219, %v222
  %v225 = vpack.c.bf16 %v224, %v224
  %226 = vst [vmem:[%s5] sm:$0x3] %v225
  // Predicated region
  $region22: #{stmamba_bcd_forward.31} parent=0 // pred_check
    _
  $region23: #{stmamba_bcd_forward.31} parent=0 // pred_check_branch
    %228 = sbr.rel (0) target = $region25
  $region24: #{stmamba_bcd_forward.31} parent=0 // pred_region
    _
  $region25: #{stmamba_bcd_forward.31} parent=0 // pred_fallthru
    _
  // Predicated region
  $region26: #{stmamba_bcd_forward.31} parent=0 // pred_check
    _
  $region27: #{stmamba_bcd_forward.31} parent=0 // pred_check_branch
    %230 = sbr.rel (0) target = $region29
  $region28: #{stmamba_bcd_forward.31} parent=0 // pred_region
    _
  $region29: #{stmamba_bcd_forward.31} parent=0 // pred_fallthru
    _

// kernel: stmamba_bcd_forward.29
$region0: #{stmamba_bcd_forward.29}
  #allocation0 [shape = 'u32[]', space=smem, size = 0x4, offset = 0x4, fixed_abs, tag = 'smem constant byte address 0x4 - core index']
  #allocation1 [shape = 'u32[72,128]{1,0:T(1,128)}', space=vmem, size = 0x9000, scoped, tag = 'internal scratch']
  %s0 = inlined_call_operand.vmem [shape: bf16[16,128], index: 0, kind: input, shape index: {}]
  %s1 = inlined_call_operand.vmem [shape: bf16[128,64], index: 1, kind: input, shape index: {}]
  %s2 = inlined_call_operand.vmem [shape: f32[1,64], index: 2, kind: input, shape index: {}]
  %s3 = inlined_call_operand.vmem [shape: f32[1,64], index: 3, kind: input, shape index: {}]
  %s4 = inlined_call_operand.vmem [shape: f32[1,64], index: 4, kind: input, shape index: {}]
  %s5 = inlined_call_operand.vmem [shape: bf16[16,64], index: 5, kind: output, shape index: {}]
  %s6 = sld [smem:[#allocation0]]
  $region30: #{stmamba_bcd_forward.29} parent=0
    _
  %s8 = ssub.s32 1, %s6
  %s9 = scalar_select 0, %s8, %s6
  // Predicated region
  $region2: #{stmamba_bcd_forward.29} parent=0 // pred_check
    _
  $region3: #{stmamba_bcd_forward.29} parent=0 // pred_check_branch
    %11 = sbr.rel (0) target = $region5
  $region4: #{stmamba_bcd_forward.29} parent=0 // pred_region
    _
  $region5: #{stmamba_bcd_forward.29} parent=0 // pred_fallthru
    _
  // Predicated region
  $region6: #{stmamba_bcd_forward.29} parent=0 // pred_check
    _
  $region7: #{stmamba_bcd_forward.29} parent=0 // pred_check_branch
    %13 = sbr.rel (0) target = $region9
  $region8: #{stmamba_bcd_forward.29} parent=0 // pred_region
    _
  $region9: #{stmamba_bcd_forward.29} parent=0 // pred_fallthru
    _
  // Predicated region
  $region10: #{stmamba_bcd_forward.29} parent=0 // pred_check
    _
  $region11: #{stmamba_bcd_forward.29} parent=0 // pred_check_branch
    %15 = sbr.rel (0) target = $region13
  $region12: #{stmamba_bcd_forward.29} parent=0 // pred_region
    _
  $region13: #{stmamba_bcd_forward.29} parent=0 // pred_fallthru
    _
  // Predicated region
  $region14: #{stmamba_bcd_forward.29} parent=0 // pred_check
    _
  $region15: #{stmamba_bcd_forward.29} parent=0 // pred_check_branch
    %17 = sbr.rel (0) target = $region17
  $region16: #{stmamba_bcd_forward.29} parent=0 // pred_region
    _
  $region17: #{stmamba_bcd_forward.29} parent=0 // pred_fallthru
    _
  // Predicated region
  $region18: #{stmamba_bcd_forward.29} parent=0 // pred_check
    _
  $region19: #{stmamba_bcd_forward.29} parent=0 // pred_check_branch
    %19 = sbr.rel (0) target = $region21
  $region20: #{stmamba_bcd_forward.29} parent=0 // pred_region
    _
  $region21: #{stmamba_bcd_forward.29} parent=0 // pred_fallthru
    _
  %v20 = vld [vmem:[%s0] sm:$0xf]
  %v21 = vld [vmem:[%s0 + $0x4] sm:$0xf]
  %v22 = vld [vmem:[%s1] sm:$0xf]
  %v23 = vld [vmem:[%s1 + $0x4] sm:$0xf]
  %v24 = vld [vmem:[%s1 + $0x8] sm:$0xf]
  %v25 = vld [vmem:[%s1 + $0xc] sm:$0xf]
  %v26 = vld [vmem:[%s1 + $0x10] sm:$0xf]
  %v27 = vld [vmem:[%s1 + $0x14] sm:$0xf]
  %v28 = vld [vmem:[%s1 + $0x18] sm:$0xf]
  %v29 = vld [vmem:[%s1 + $0x1c] sm:$0xf]
  %v30 = vld [vmem:[%s1 + $0x20] sm:$0xf]
  %v31 = vld [vmem:[%s1 + $0x24] sm:$0xf]
  %v32 = vld [vmem:[%s1 + $0x28] sm:$0xf]
  %v33 = vld [vmem:[%s1 + $0x2c] sm:$0xf]
  %v34 = vld [vmem:[%s1 + $0x30] sm:$0xf]
  %v35 = vld [vmem:[%s1 + $0x34] sm:$0xf]
  %v36 = vld [vmem:[%s1 + $0x38] sm:$0xf]
  %v37 = vld [vmem:[%s1 + $0x3c] sm:$0xf]
  %v38 = vld [vmem:[%s2] sm:$0x1]
  %v40 = vperm.slane %v38, 0
  %v44 = vunpack.c.l.b16 %v20
  %v45 = vunpack.c.l.b16 %v21
  %v46 = vpack.c.b16 %v45, %v44
  %v64 = vunpack.c.l.b16 %v22
  %v65 = vunpack.c.l.b16 %v23
  %v66 = vunpack.c.l.b16 %v24
  %v67 = vunpack.c.l.b16 %v25
  %v68 = vunpack.c.l.b16 %v26
  %v69 = vunpack.c.l.b16 %v27
  %v70 = vunpack.c.l.b16 %v28
  %v71 = vunpack.c.l.b16 %v29
  %v72 = vunpack.c.l.b16 %v30
  %v73 = vunpack.c.l.b16 %v31
  %v74 = vunpack.c.l.b16 %v32
  %v75 = vunpack.c.l.b16 %v33
  %v76 = vunpack.c.l.b16 %v34
  %v77 = vunpack.c.l.b16 %v35
  %v78 = vunpack.c.l.b16 %v36
  %v79 = vunpack.c.l.b16 %v37
  %v80 = vpack.c.b16 %v65, %v64
  %v81 = vpack.c.b16 %v67, %v66
  %v82 = vpack.c.b16 %v69, %v68
  %v83 = vpack.c.b16 %v71, %v70
  %v84 = vpack.c.b16 %v73, %v72
  %v85 = vpack.c.b16 %v75, %v74
  %v86 = vpack.c.b16 %v77, %v76
  %v87 = vpack.c.b16 %v79, %v78
  %96 = vmatpush.bf16.msra.mxu0 %v87
  %97 = vmatpush.bf16.msra.mxu0 %v86
  %98 = vmatpush.bf16.msra.mxu0 %v85
  %99 = vmatpush.bf16.msra.mxu0 %v84
  %100 = vmatpush.bf16.msra.mxu0 %v83
  %101 = vmatpush.bf16.msra.mxu0 %v82
  %102 = vmatpush.bf16.msra.mxu0 %v81
  %103 = vmatpush.bf16.msra.mxu0 %v80
  %104 = vmatmul.bf16.gmra.mxu0 %v46
  %v105 = vpop.f32.mrf.mxu0
  %v106 = vadd.f32 %v40, %v105
  %v107 = vpop.f32.mrf.mxu0
  %v108 = vadd.f32 %v40, %v107
  %109 = vdwg.mxu0
  %vm110 = vcmask 523264
  %v111 = vsel %vm110, %v106, 0.0
  %112 = vadd.xlane.f32.xlu0 %v111
  %v113 = vpop.xlane.xlu0 %112
  %v114 = vsel %vm110, %v108, 0.0
  %115 = vadd.xlane.f32.xlu0 %v114
  %v116 = vpop.xlane.xlu0 %115
  %v117 = vrcp.pop 64.0
  %v118 = vmul.f32 64.0, %v117
  %v119 = vsub.f32 1.0, %v118
  %v120 = vmul.f32 %v117, %v119
  %v121 = vadd.f32 %v117, %v120
  %vm122 = vweird.f32 %v117
  %v123 = vsel %vm122, %v117, %v121
  %v124 = vmul.f32 %v113, %v123
  %v125 = vmul.f32 %v116, %v123
  %v126 = vsub.f32 %v106, %v124
  %v127 = vsub.f32 %v108, %v125
  %v128 = vmul.f32 %v126, %v126
  %v129 = vmul.f32 %v127, %v127
  %v130 = vsel %vm110, %v128, 0.0
  %131 = vadd.xlane.f32.xlu0 %v130
  %v132 = vpop.xlane.xlu0 %131
  %v133 = vsel %vm110, %v129, 0.0
  %134 = vadd.xlane.f32.xlu0 %v133
  %v135 = vpop.xlane.xlu0 %134
  %v136 = vmul.f32 %v132, %v123
  %v137 = vmul.f32 %v135, %v123
  %v138 = vadd.f32 %v136, 1e-05
  %v139 = vadd.f32 %v137, 1e-05
  %v140 = vrsqrt.pop %v138
  %v141 = vmul.f32 %v140, %v138
  %v142 = vmul.f32 %v141, %v140
  %v143 = vmul.f32 0.5, %v142
  %v144 = vsub.f32 1.5, %v143
  %v145 = vmul.f32 %v140, %v144
  %vm146 = vweird.f32 %v138
  %vm147 = vweird.f32 %v140
  %vm148 = vmor %vm146, %vm147
  %v149 = vsel %vm148, %v140, %v145
  %v150 = vrsqrt.pop %v139
  %v151 = vmul.f32 %v150, %v139
  %v152 = vmul.f32 %v151, %v150
  %v153 = vmul.f32 0.5, %v152
  %v154 = vsub.f32 1.5, %v153
  %v155 = vmul.f32 %v150, %v154
  %vm156 = vweird.f32 %v139
  %vm157 = vweird.f32 %v150
  %vm158 = vmor %vm156, %vm157
  %v159 = vsel %vm158, %v150, %v155
  %v160 = vmul.f32 %v126, %v149
  %v161 = vmul.f32 %v127, %v159
  %v162 = vld [vmem:[%s3] sm:$0x1]
  %v164 = vperm.slane %v162, 0
  %v166 = vmul.f32 %v160, %v164
  %v167 = vmul.f32 %v161, %v164
  %v168 = vld [vmem:[%s4] sm:$0x1]
  %v170 = vperm.slane %v168, 0
  %v172 = vadd.f32 %v166, %v170
  %v173 = vadd.f32 %v167, %v170
  %v174 = vpack.c.bf16 %v172, %v172
  %v175 = vpack.c.bf16 %v173, %v173
  %vm176 = vcmask 519168
  %177 = vst.msk [vmem:[%s5] sm:$0xf] %vm176, %v174
  %178 = vst.msk [vmem:[%s5 + $0x4] sm:$0xf] %vm176, %v175
  // Predicated region
  $region22: #{stmamba_bcd_forward.29} parent=0 // pred_check
    _
  $region23: #{stmamba_bcd_forward.29} parent=0 // pred_check_branch
    %180 = sbr.rel (0) target = $region25
  $region24: #{stmamba_bcd_forward.29} parent=0 // pred_region
    _
  $region25: #{stmamba_bcd_forward.29} parent=0 // pred_fallthru
    _
  // Predicated region
  $region26: #{stmamba_bcd_forward.29} parent=0 // pred_check
    _
  $region27: #{stmamba_bcd_forward.29} parent=0 // pred_check_branch
    %182 = sbr.rel (0) target = $region29
  $region28: #{stmamba_bcd_forward.29} parent=0 // pred_region
    _
  $region29: #{stmamba_bcd_forward.29} parent=0 // pred_fallthru
    _

// kernel: stmamba_bcd_forward.30
$region0: #{stmamba_bcd_forward.30}
  #allocation0 [shape = 'u32[]', space=smem, size = 0x4, offset = 0x4, fixed_abs, tag = 'smem constant byte address 0x4 - core index']
  #allocation1 [shape = 'u32[72,128]{1,0:T(1,128)}', space=vmem, size = 0x9000, scoped, tag = 'internal scratch']
  %s0 = inlined_call_operand.vmem [shape: bf16[16,64], index: 0, kind: input, shape index: {}]
  %s1 = inlined_call_operand.vmem [shape: f32[1,64], index: 1, kind: input, shape index: {}]
  %s2 = inlined_call_operand.vmem [shape: f32[1,64], index: 2, kind: input, shape index: {}]
  %s3 = inlined_call_operand.vmem [shape: bf16[64,128], index: 3, kind: input, shape index: {}]
  %s4 = inlined_call_operand.vmem [shape: f32[1,128], index: 4, kind: input, shape index: {}]
  %s5 = inlined_call_operand.vmem [shape: bf16[128,64], index: 5, kind: input, shape index: {}]
  %s6 = inlined_call_operand.vmem [shape: f32[1,64], index: 6, kind: input, shape index: {}]
  %s7 = inlined_call_operand.vmem [shape: bf16[16,64], index: 7, kind: output, shape index: {}]
  %s8 = sld [smem:[#allocation0]]
  $region38: #{stmamba_bcd_forward.30} parent=0
    _
  %s10 = ssub.s32 1, %s8
  %s11 = scalar_select 0, %s10, %s8
  // Predicated region
  $region2: #{stmamba_bcd_forward.30} parent=0 // pred_check
    _
  $region3: #{stmamba_bcd_forward.30} parent=0 // pred_check_branch
    %13 = sbr.rel (0) target = $region5
  $region4: #{stmamba_bcd_forward.30} parent=0 // pred_region
    _
  $region5: #{stmamba_bcd_forward.30} parent=0 // pred_fallthru
    _
  // Predicated region
  $region6: #{stmamba_bcd_forward.30} parent=0 // pred_check
    _
  $region7: #{stmamba_bcd_forward.30} parent=0 // pred_check_branch
    %15 = sbr.rel (0) target = $region9
  $region8: #{stmamba_bcd_forward.30} parent=0 // pred_region
    _
  $region9: #{stmamba_bcd_forward.30} parent=0 // pred_fallthru
    _
  // Predicated region
  $region10: #{stmamba_bcd_forward.30} parent=0 // pred_check
    _
  $region11: #{stmamba_bcd_forward.30} parent=0 // pred_check_branch
    %17 = sbr.rel (0) target = $region13
  $region12: #{stmamba_bcd_forward.30} parent=0 // pred_region
    _
  $region13: #{stmamba_bcd_forward.30} parent=0 // pred_fallthru
    _
  // Predicated region
  $region14: #{stmamba_bcd_forward.30} parent=0 // pred_check
    _
  $region15: #{stmamba_bcd_forward.30} parent=0 // pred_check_branch
    %19 = sbr.rel (0) target = $region17
  $region16: #{stmamba_bcd_forward.30} parent=0 // pred_region
    _
  $region17: #{stmamba_bcd_forward.30} parent=0 // pred_fallthru
    _
  // Predicated region
  $region18: #{stmamba_bcd_forward.30} parent=0 // pred_check
    _
  $region19: #{stmamba_bcd_forward.30} parent=0 // pred_check_branch
    %21 = sbr.rel (0) target = $region21
  $region20: #{stmamba_bcd_forward.30} parent=0 // pred_region
    _
  $region21: #{stmamba_bcd_forward.30} parent=0 // pred_fallthru
    _
  // Predicated region
  $region22: #{stmamba_bcd_forward.30} parent=0 // pred_check
    _
  $region23: #{stmamba_bcd_forward.30} parent=0 // pred_check_branch
    %23 = sbr.rel (0) target = $region25
  $region24: #{stmamba_bcd_forward.30} parent=0 // pred_region
    _
  $region25: #{stmamba_bcd_forward.30} parent=0 // pred_fallthru
    _
  // Predicated region
  $region26: #{stmamba_bcd_forward.30} parent=0 // pred_check
    _
  $region27: #{stmamba_bcd_forward.30} parent=0 // pred_check_branch
    %25 = sbr.rel (0) target = $region29
  $region28: #{stmamba_bcd_forward.30} parent=0 // pred_region
    _
  $region29: #{stmamba_bcd_forward.30} parent=0 // pred_fallthru
    _
  %v27 = vld [vmem:[%s0] sm:$0xf]
  %v28 = vld [vmem:[%s0 + $0x4] sm:$0xf]
  %v29 = vunpack.c.l.bf16 %v27
  %v30 = vunpack.c.l.bf16 %v28
  %vm31 = vcmask 523264
  %v32 = vsel %vm31, %v29, 0.0
  %33 = vadd.xlane.f32.xlu0 %v32
  %v34 = vpop.xlane.xlu0 %33
  %v35 = vsel %vm31, %v30, 0.0
  %36 = vadd.xlane.f32.xlu0 %v35
  %v37 = vpop.xlane.xlu0 %36
  %v38 = vrcp.pop 64.0
  %v39 = vmul.f32 64.0, %v38
  %v40 = vsub.f32 1.0, %v39
  %v41 = vmul.f32 %v38, %v40
  %v42 = vadd.f32 %v38, %v41
  %vm43 = vweird.f32 %v38
  %v44 = vsel %vm43, %v38, %v42
  %v45 = vmul.f32 %v34, %v44
  %v46 = vmul.f32 %v37, %v44
  %v47 = vsub.f32 %v29, %v45
  %v48 = vsub.f32 %v30, %v46
  %v49 = vmul.f32 %v47, %v47
  %v50 = vmul.f32 %v48, %v48
  %v51 = vsel %vm31, %v49, 0.0
  %52 = vadd.xlane.f32.xlu0 %v51
  %v53 = vpop.xlane.xlu0 %52
  %v54 = vsel %vm31, %v50, 0.0
  %55 = vadd.xlane.f32.xlu0 %v54
  %v56 = vpop.xlane.xlu0 %55
  %v57 = vmul.f32 %v53, %v44
  %v58 = vmul.f32 %v56, %v44
  %v59 = vadd.f32 %v57, 1e-05
  %v60 = vadd.f32 %v58, 1e-05
  %v61 = vrsqrt.pop %v59
  %v62 = vmul.f32 %v61, %v59
  %v63 = vmul.f32 %v62, %v61
  %v64 = vmul.f32 0.5, %v63
  %v65 = vsub.f32 1.5, %v64
  %v66 = vmul.f32 %v61, %v65
  %vm67 = vweird.f32 %v59
  %vm68 = vweird.f32 %v61
  %vm69 = vmor %vm67, %vm68
  %v70 = vsel %vm69, %v61, %v66
  %v71 = vrsqrt.pop %v60
  %v72 = vmul.f32 %v71, %v60
  %v73 = vmul.f32 %v72, %v71
  %v74 = vmul.f32 0.5, %v73
  %v75 = vsub.f32 1.5, %v74
  %v76 = vmul.f32 %v71, %v75
  %vm77 = vweird.f32 %v60
  %vm78 = vweird.f32 %v71
  %vm79 = vmor %vm77, %vm78
  %v80 = vsel %vm79, %v71, %v76
  %v81 = vmul.f32 %v47, %v70
  %v82 = vmul.f32 %v48, %v80
  %v83 = vld [vmem:[%s1] sm:$0x1]
  %v85 = vperm.slane %v83, 0
  %v87 = vmul.f32 %v81, %v85
  %v88 = vmul.f32 %v82, %v85
  %v89 = vld [vmem:[%s2] sm:$0x1]
  %v91 = vperm.slane %v89, 0
  %v93 = vadd.f32 %v87, %v91
  %v94 = vadd.f32 %v88, %v91
  %v95 = vpack.c.bf16 %v94, %v93
  %v96 = vld [vmem:[%s3] sm:$0xf]
  %v97 = vld [vmem:[%s3 + $0x4] sm:$0xf]
  %v98 = vld [vmem:[%s3 + $0x8] sm:$0xf]
  %v99 = vld [vmem:[%s3 + $0xc] sm:$0xf]
  %v100 = vld [vmem:[%s3 + $0x10] sm:$0xf]
  %v101 = vld [vmem:[%s3 + $0x14] sm:$0xf]
  %v102 = vld [vmem:[%s3 + $0x18] sm:$0xf]
  %v103 = vld [vmem:[%s3 + $0x1c] sm:$0xf]
  %v104 = vld [vmem:[%s4] sm:$0x1]
  %v106 = vperm.slane %v104, 0
  %v116 = vunpack.c.l.b16 %v96
  %v117 = vunpack.c.l.b16 %v97
  %v118 = vunpack.c.l.b16 %v98
  %v119 = vunpack.c.l.b16 %v99
  %v120 = vunpack.c.l.b16 %v100
  %v121 = vunpack.c.l.b16 %v101
  %v122 = vunpack.c.l.b16 %v102
  %v123 = vunpack.c.l.b16 %v103
  %v124 = vpack.c.b16 %v117, %v116
  %v125 = vpack.c.b16 %v119, %v118
  %v126 = vpack.c.b16 %v121, %v120
  %v127 = vpack.c.b16 %v123, %v122
  %v133 = vsel %vm31, %v95, 0
  %135 = vmatpush.bf16.msra.mxu0 0
  %136 = vmatpush.bf16.msra.mxu0 0
  %137 = vmatpush.bf16.msra.mxu0 0
  %138 = vmatpush.bf16.msra.mxu0 0
  %139 = vmatpush.bf16.msra.mxu0 %v127
  %140 = vmatpush.bf16.msra.mxu0 %v126
  %141 = vmatpush.bf16.msra.mxu0 %v125
  %142 = vmatpush.bf16.msra.mxu0 %v124
  %143 = vmatmul.bf16.gmra.mxu0 %v133
  %v144 = vpop.f32.mrf.mxu0
  %v145 = vadd.f32 %v106, %v144
  %v146 = vpop.f32.mrf.mxu0
  %v147 = vadd.f32 %v106, %v146
  %148 = vdwg.mxu0
  %v149 = vxor.u32 %v145, 2147483648
  %v150 = vxor.u32 %v147, 2147483648
  %v151 = vmul.f32 %v149, 1.442695
  %v152 = vpow.pop %v151
  %v153 = vmul.f32 %v150, 1.442695
  %v154 = vpow.pop %v153
  %v155 = vadd.f32 %v152, 1.0
  %v156 = vadd.f32 %v154, 1.0
  %v157 = vrcp.pop %v155
  %v158 = vmul.f32 %v155, %v157
  %v159 = vsub.f32 1.0, %v158
  %v160 = vmul.f32 %v157, %v159
  %v161 = vadd.f32 %v157, %v160
  %vm162 = vweird.f32 %v155
  %vm163 = vweird.f32 %v157
  %vm164 = vmor %vm162, %vm163
  %v165 = vsel %vm164, %v157, %v161
  %v166 = vand.u32 2147483647, %v155
  %vm167 = vcmp.eq.f32.partialorder %v166, 8.507059e+37
  %v168 = vand.u32 %v155, 2147483648
  %v169 = vor.u32 1.1754944e-38, %v168
  %v170 = vsel %vm167, %v169, %v165
  %v171 = vmul.f32 1.0, %v170
  %v172 = vrcp.pop %v156
  %v173 = vmul.f32 %v156, %v172
  %v174 = vsub.f32 1.0, %v173
  %v175 = vmul.f32 %v172, %v174
  %v176 = vadd.f32 %v172, %v175
  %vm177 = vweird.f32 %v156
  %vm178 = vweird.f32 %v172
  %vm179 = vmor %vm177, %vm178
  %v180 = vsel %vm179, %v172, %v176
  %v181 = vand.u32 2147483647, %v156
  %vm182 = vcmp.eq.f32.partialorder %v181, 8.507059e+37
  %v183 = vand.u32 %v156, 2147483648
  %v184 = vor.u32 1.1754944e-38, %v183
  %v185 = vsel %vm182, %v184, %v180
  %v186 = vmul.f32 1.0, %v185
  %v187 = vmul.f32 %v145, %v171
  %v188 = vmul.f32 %v147, %v186
  %v189 = vpack.c.bf16 %v188, %v187
  %v190 = vld [vmem:[%s5] sm:$0xf]
  %v191 = vld [vmem:[%s5 + $0x4] sm:$0xf]
  %v192 = vld [vmem:[%s5 + $0x8] sm:$0xf]
  %v193 = vld [vmem:[%s5 + $0xc] sm:$0xf]
  %v194 = vld [vmem:[%s5 + $0x10] sm:$0xf]
  %v195 = vld [vmem:[%s5 + $0x14] sm:$0xf]
  %v196 = vld [vmem:[%s5 + $0x18] sm:$0xf]
  %v197 = vld [vmem:[%s5 + $0x1c] sm:$0xf]
  %v198 = vld [vmem:[%s5 + $0x20] sm:$0xf]
  %v199 = vld [vmem:[%s5 + $0x24] sm:$0xf]
  %v200 = vld [vmem:[%s5 + $0x28] sm:$0xf]
  %v201 = vld [vmem:[%s5 + $0x2c] sm:$0xf]
  %v202 = vld [vmem:[%s5 + $0x30] sm:$0xf]
  %v203 = vld [vmem:[%s5 + $0x34] sm:$0xf]
  %v204 = vld [vmem:[%s5 + $0x38] sm:$0xf]
  %v205 = vld [vmem:[%s5 + $0x3c] sm:$0xf]
  %v206 = vld [vmem:[%s6] sm:$0x1]
  %v208 = vperm.slane %v206, 0
  %v226 = vunpack.c.l.b16 %v190
  %v227 = vunpack.c.l.b16 %v191
  %v228 = vunpack.c.l.b16 %v192
  %v229 = vunpack.c.l.b16 %v193
  %v230 = vunpack.c.l.b16 %v194
  %v231 = vunpack.c.l.b16 %v195
  %v232 = vunpack.c.l.b16 %v196
  %v233 = vunpack.c.l.b16 %v197
  %v234 = vunpack.c.l.b16 %v198
  %v235 = vunpack.c.l.b16 %v199
  %v236 = vunpack.c.l.b16 %v200
  %v237 = vunpack.c.l.b16 %v201
  %v238 = vunpack.c.l.b16 %v202
  %v239 = vunpack.c.l.b16 %v203
  %v240 = vunpack.c.l.b16 %v204
  %v241 = vunpack.c.l.b16 %v205
  %v242 = vpack.c.b16 %v227, %v226
  %v243 = vpack.c.b16 %v229, %v228
  %v244 = vpack.c.b16 %v231, %v230
  %v245 = vpack.c.b16 %v233, %v232
  %v246 = vpack.c.b16 %v235, %v234
  %v247 = vpack.c.b16 %v237, %v236
  %v248 = vpack.c.b16 %v239, %v238
  %v249 = vpack.c.b16 %v241, %v240
  %258 = vmatpush.bf16.msra.mxu0 %v249
  %259 = vmatpush.bf16.msra.mxu0 %v248
  %260 = vmatpush.bf16.msra.mxu0 %v247
  %261 = vmatpush.bf16.msra.mxu0 %v246
  %262 = vmatpush.bf16.msra.mxu0 %v245
  %263 = vmatpush.bf16.msra.mxu0 %v244
  %264 = vmatpush.bf16.msra.mxu0 %v243
  %265 = vmatpush.bf16.msra.mxu0 %v242
  %266 = vmatmul.bf16.gmra.mxu0 %v189
  %v267 = vpop.f32.mrf.mxu0
  %v268 = vadd.f32 %v208, %v267
  %v269 = vpop.f32.mrf.mxu0
  %v270 = vadd.f32 %v208, %v269
  %271 = vdwg.mxu0
  %v272 = vadd.f32 %v29, %v268
  %v273 = vadd.f32 %v30, %v270
  %v274 = vpack.c.bf16 %v272, %v272
  %v275 = vpack.c.bf16 %v273, %v273
  %vm276 = vcmask 519168
  %277 = vst.msk [vmem:[%s7] sm:$0xf] %vm276, %v274
  %278 = vst.msk [vmem:[%s7 + $0x4] sm:$0xf] %vm276, %v275
  // Predicated region
  $region30: #{stmamba_bcd_forward.30} parent=0 // pred_check
    _
  $region31: #{stmamba_bcd_forward.30} parent=0 // pred_check_branch
    %280 = sbr.rel (0) target = $region33
  $region32: #{stmamba_bcd_forward.30} parent=0 // pred_region
    _
  $region33: #{stmamba_bcd_forward.30} parent=0 // pred_fallthru
    _
  // Predicated region
  $region34: #{stmamba_bcd_forward.30} parent=0 // pred_check
    _
  $region35: #{stmamba_bcd_forward.30} parent=0 // pred_check_branch
    %282 = sbr.rel (0) target = $region37
  $region36: #{stmamba_bcd_forward.30} parent=0 // pred_region
    _
  $region37: #{stmamba_bcd_forward.30} parent=0 // pred_fallthru
    _

// kernel: stmamba_bcd_forward.32
$region0: #{stmamba_bcd_forward.32}
  #allocation0 [shape = 'u32[]', space=smem, size = 0x4, offset = 0x4, fixed_abs, tag = 'smem constant byte address 0x4 - core index']
  #allocation1 [shape = 'u32[72,128]{1,0:T(1,128)}', space=vmem, size = 0x9000, scoped, tag = 'internal scratch']
  %s0 = inlined_call_operand.vmem [shape: bf16[4,128], index: 0, kind: input, shape index: {}]
  %s1 = inlined_call_operand.vmem [shape: f32[1,128], index: 1, kind: input, shape index: {}]
  %s2 = inlined_call_operand.vmem [shape: f32[1,128], index: 2, kind: input, shape index: {}]
  %s3 = inlined_call_operand.vmem [shape: bf16[128,256], index: 3, kind: input, shape index: {}]
  %s4 = inlined_call_operand.vmem [shape: f32[1,256], index: 4, kind: input, shape index: {}]
  %s5 = inlined_call_operand.vmem [shape: bf16[256,128], index: 5, kind: input, shape index: {}]
  %s6 = inlined_call_operand.vmem [shape: f32[1,128], index: 6, kind: input, shape index: {}]
  %s7 = inlined_call_operand.vmem [shape: bf16[4,128], index: 7, kind: output, shape index: {}]
  %s8 = sld [smem:[#allocation0]]
  $region38: #{stmamba_bcd_forward.32} parent=0
    _
  %s10 = ssub.s32 1, %s8
  %s11 = scalar_select 0, %s10, %s8
  // Predicated region
  $region2: #{stmamba_bcd_forward.32} parent=0 // pred_check
    _
  $region3: #{stmamba_bcd_forward.32} parent=0 // pred_check_branch
    %13 = sbr.rel (0) target = $region5
  $region4: #{stmamba_bcd_forward.32} parent=0 // pred_region
    _
  $region5: #{stmamba_bcd_forward.32} parent=0 // pred_fallthru
    _
  // Predicated region
  $region6: #{stmamba_bcd_forward.32} parent=0 // pred_check
    _
  $region7: #{stmamba_bcd_forward.32} parent=0 // pred_check_branch
    %15 = sbr.rel (0) target = $region9
  $region8: #{stmamba_bcd_forward.32} parent=0 // pred_region
    _
  $region9: #{stmamba_bcd_forward.32} parent=0 // pred_fallthru
    _
  // Predicated region
  $region10: #{stmamba_bcd_forward.32} parent=0 // pred_check
    _
  $region11: #{stmamba_bcd_forward.32} parent=0 // pred_check_branch
    %17 = sbr.rel (0) target = $region13
  $region12: #{stmamba_bcd_forward.32} parent=0 // pred_region
    _
  $region13: #{stmamba_bcd_forward.32} parent=0 // pred_fallthru
    _
  // Predicated region
  $region14: #{stmamba_bcd_forward.32} parent=0 // pred_check
    _
  $region15: #{stmamba_bcd_forward.32} parent=0 // pred_check_branch
    %19 = sbr.rel (0) target = $region17
  $region16: #{stmamba_bcd_forward.32} parent=0 // pred_region
    _
  $region17: #{stmamba_bcd_forward.32} parent=0 // pred_fallthru
    _
  // Predicated region
  $region18: #{stmamba_bcd_forward.32} parent=0 // pred_check
    _
  $region19: #{stmamba_bcd_forward.32} parent=0 // pred_check_branch
    %21 = sbr.rel (0) target = $region21
  $region20: #{stmamba_bcd_forward.32} parent=0 // pred_region
    _
  $region21: #{stmamba_bcd_forward.32} parent=0 // pred_fallthru
    _
  // Predicated region
  $region22: #{stmamba_bcd_forward.32} parent=0 // pred_check
    _
  $region23: #{stmamba_bcd_forward.32} parent=0 // pred_check_branch
    %23 = sbr.rel (0) target = $region25
  $region24: #{stmamba_bcd_forward.32} parent=0 // pred_region
    _
  $region25: #{stmamba_bcd_forward.32} parent=0 // pred_fallthru
    _
  // Predicated region
  $region26: #{stmamba_bcd_forward.32} parent=0 // pred_check
    _
  $region27: #{stmamba_bcd_forward.32} parent=0 // pred_check_branch
    %25 = sbr.rel (0) target = $region29
  $region28: #{stmamba_bcd_forward.32} parent=0 // pred_region
    _
  $region29: #{stmamba_bcd_forward.32} parent=0 // pred_fallthru
    _
  %v26 = vld [vmem:[%s0] sm:$0x3]
  %v27 = vunpack.c.l.bf16 %v26
  %vm28 = vcmask 1043456
  %v29 = vsel %vm28, %v27, 0.0
  %30 = vadd.xlane.f32.xlu0 %v29
  %v31 = vpop.xlane.xlu0 %30
  %v32 = vrcp.pop 128.0
  %v33 = vmul.f32 128.0, %v32
  %v34 = vsub.f32 1.0, %v33
  %v35 = vmul.f32 %v32, %v34
  %v36 = vadd.f32 %v32, %v35
  %vm37 = vweird.f32 %v32
  %v38 = vsel %vm37, %v32, %v36
  %v39 = vmul.f32 %v31, %v38
  %v40 = vsub.f32 %v27, %v39
  %v41 = vmul.f32 %v40, %v40
  %v42 = vsel %vm28, %v41, 0.0
  %43 = vadd.xlane.f32.xlu0 %v42
  %v44 = vpop.xlane.xlu0 %43
  %v45 = vmul.f32 %v44, %v38
  %v46 = vadd.f32 %v45, 1e-05
  %v47 = vrsqrt.pop %v46
  %v48 = vmul.f32 %v47, %v46
  %v49 = vmul.f32 %v48, %v47
  %v50 = vmul.f32 0.5, %v49
  %v51 = vsub.f32 1.5, %v50
  %v52 = vmul.f32 %v47, %v51
  %vm53 = vweird.f32 %v46
  %vm54 = vweird.f32 %v47
  %vm55 = vmor %vm53, %vm54
  %v56 = vsel %vm55, %v47, %v52
  %v57 = vmul.f32 %v40, %v56
  %v58 = vld [vmem:[%s1] sm:$0x1]
  %v60 = vperm.slane %v58, 0
  %v62 = vmul.f32 %v57, %v60
  %v63 = vld [vmem:[%s2] sm:$0x1]
  %v65 = vperm.slane %v63, 0
  %v67 = vadd.f32 %v62, %v65
  %v68 = vpack.c.bf16 %v67, %v67
  %v69 = vld [vmem:[%s3] sm:$0xff]
  %v70 = vld [vmem:[%s3 + $0x8] sm:$0xff]
  %v71 = vld [vmem:[%s3 + $0x10] sm:$0xff]
  %v72 = vld [vmem:[%s3 + $0x18] sm:$0xff]
  %v73 = vld [vmem:[%s3 + $0x20] sm:$0xff]
  %v74 = vld [vmem:[%s3 + $0x28] sm:$0xff]
  %v75 = vld [vmem:[%s3 + $0x30] sm:$0xff]
  %v76 = vld [vmem:[%s3 + $0x38] sm:$0xff]
  %v77 = vld [vmem:[%s3 + $0x40] sm:$0xff]
  %v78 = vld [vmem:[%s3 + $0x48] sm:$0xff]
  %v79 = vld [vmem:[%s3 + $0x50] sm:$0xff]
  %v80 = vld [vmem:[%s3 + $0x58] sm:$0xff]
  %v81 = vld [vmem:[%s3 + $0x60] sm:$0xff]
  %v82 = vld [vmem:[%s3 + $0x68] sm:$0xff]
  %v83 = vld [vmem:[%s3 + $0x70] sm:$0xff]
  %v84 = vld [vmem:[%s3 + $0x78] sm:$0xff]
  %v85 = vld [vmem:[%s4] sm:$0x3]
  %v87 = vperm.slane %v85, 0
  %v88 = vperm.slane %v85, 1
  %v107 = vunpack.c.l.b16 %v69
  %v108 = vunpack.c.h.b16 %v69
  %v109 = vunpack.c.l.b16 %v70
  %v110 = vunpack.c.h.b16 %v70
  %v111 = vunpack.c.l.b16 %v71
  %v112 = vunpack.c.h.b16 %v71
  %v113 = vunpack.c.l.b16 %v72
  %v114 = vunpack.c.h.b16 %v72
  %v115 = vunpack.c.l.b16 %v73
  %v116 = vunpack.c.h.b16 %v73
  %v117 = vunpack.c.l.b16 %v74
  %v118 = vunpack.c.h.b16 %v74
  %v119 = vunpack.c.l.b16 %v75
  %v120 = vunpack.c.h.b16 %v75
  %v121 = vunpack.c.l.b16 %v76
  %v122 = vunpack.c.h.b16 %v76
  %v123 = vunpack.c.l.b16 %v77
  %v124 = vunpack.c.h.b16 %v77
  %v125 = vunpack.c.l.b16 %v78
  %v126 = vunpack.c.h.b16 %v78
  %v127 = vunpack.c.l.b16 %v79
  %v128 = vunpack.c.h.b16 %v79
  %v129 = vunpack.c.l.b16 %v80
  %v130 = vunpack.c.h.b16 %v80
  %v131 = vunpack.c.l.b16 %v81
  %v132 = vunpack.c.h.b16 %v81
  %v133 = vunpack.c.l.b16 %v82
  %v134 = vunpack.c.h.b16 %v82
  %v135 = vunpack.c.l.b16 %v83
  %v136 = vunpack.c.h.b16 %v83
  %v137 = vunpack.c.l.b16 %v84
  %v138 = vunpack.c.h.b16 %v84
  %v139 = vpack.c.b16 %v109, %v107
  %v140 = vpack.c.b16 %v110, %v108
  %v141 = vpack.c.b16 %v113, %v111
  %v142 = vpack.c.b16 %v114, %v112
  %v143 = vpack.c.b16 %v117, %v115
  %v144 = vpack.c.b16 %v118, %v116
  %v145 = vpack.c.b16 %v121, %v119
  %v146 = vpack.c.b16 %v122, %v120
  %v147 = vpack.c.b16 %v125, %v123
  %v148 = vpack.c.b16 %v126, %v124
  %v149 = vpack.c.b16 %v129, %v127
  %v150 = vpack.c.b16 %v130, %v128
  %v151 = vpack.c.b16 %v133, %v131
  %v152 = vpack.c.b16 %v134, %v132
  %v153 = vpack.c.b16 %v137, %v135
  %v154 = vpack.c.b16 %v138, %v136
  %171 = vmatpush.bf16.msra.mxu0 %v153
  %172 = vmatpush.bf16.msra.mxu0 %v151
  %173 = vmatpush.bf16.msra.mxu0 %v149
  %174 = vmatpush.bf16.msra.mxu0 %v147
  %175 = vmatpush.bf16.msra.mxu0 %v145
  %176 = vmatpush.bf16.msra.mxu0 %v143
  %177 = vmatpush.bf16.msra.mxu0 %v141
  %178 = vmatpush.bf16.msra.mxu0 %v139
  %179 = vmatmul.bf16.gmra.mxu0 %v68
  %v180 = vpop.f32.mrf.mxu0
  %v181 = vadd.f32 %v87, %v180
  %v182 = vpop.f32.mrf.mxu0
  %183 = vdwg.mxu0
  %184 = vmatpush.bf16.msra.mxu0 %v154
  %185 = vmatpush.bf16.msra.mxu0 %v152
  %186 = vmatpush.bf16.msra.mxu0 %v150
  %187 = vmatpush.bf16.msra.mxu0 %v148
  %188 = vmatpush.bf16.msra.mxu0 %v146
  %189 = vmatpush.bf16.msra.mxu0 %v144
  %190 = vmatpush.bf16.msra.mxu0 %v142
  %191 = vmatpush.bf16.msra.mxu0 %v140
  %192 = vmatmul.bf16.gmra.mxu0 %v68
  %v193 = vpop.f32.mrf.mxu0
  %v194 = vadd.f32 %v88, %v193
  %v195 = vpop.f32.mrf.mxu0
  %196 = vdwg.mxu0
  %v197 = vxor.u32 %v181, 2147483648
  %v198 = vxor.u32 %v194, 2147483648
  %v199 = vmul.f32 %v197, 1.442695
  %v200 = vpow.pop %v199
  %v201 = vmul.f32 %v198, 1.442695
  %v202 = vpow.pop %v201
  %v203 = vadd.f32 %v200, 1.0
  %v204 = vadd.f32 %v202, 1.0
  %v205 = vrcp.pop %v203
  %v206 = vmul.f32 %v203, %v205
  %v207 = vsub.f32 1.0, %v206
  %v208 = vmul.f32 %v205, %v207
  %v209 = vadd.f32 %v205, %v208
  %vm210 = vweird.f32 %v203
  %vm211 = vweird.f32 %v205
  %vm212 = vmor %vm210, %vm211
  %v213 = vsel %vm212, %v205, %v209
  %v214 = vand.u32 2147483647, %v203
  %vm215 = vcmp.eq.f32.partialorder %v214, 8.507059e+37
  %v216 = vand.u32 %v203, 2147483648
  %v217 = vor.u32 1.1754944e-38, %v216
  %v218 = vsel %vm215, %v217, %v213
  %v219 = vmul.f32 1.0, %v218
  %v220 = vrcp.pop %v204
  %v221 = vmul.f32 %v204, %v220
  %v222 = vsub.f32 1.0, %v221
  %v223 = vmul.f32 %v220, %v222
  %v224 = vadd.f32 %v220, %v223
  %vm225 = vweird.f32 %v204
  %vm226 = vweird.f32 %v220
  %vm227 = vmor %vm225, %vm226
  %v228 = vsel %vm227, %v220, %v224
  %v229 = vand.u32 2147483647, %v204
  %vm230 = vcmp.eq.f32.partialorder %v229, 8.507059e+37
  %v231 = vand.u32 %v204, 2147483648
  %v232 = vor.u32 1.1754944e-38, %v231
  %v233 = vsel %vm230, %v232, %v228
  %v234 = vmul.f32 1.0, %v233
  %v235 = vmul.f32 %v181, %v219
  %v236 = vmul.f32 %v194, %v234
  %v237 = vpack.c.bf16 %v235, %v235
  %v238 = vpack.c.bf16 %v236, %v236
  %v239 = vld [vmem:[%s5] sm:$0xf]
  %v240 = vld [vmem:[%s5 + $0x4] sm:$0xf]
  %v241 = vld [vmem:[%s5 + $0x8] sm:$0xf]
  %v242 = vld [vmem:[%s5 + $0xc] sm:$0xf]
  %v243 = vld [vmem:[%s5 + $0x10] sm:$0xf]
  %v244 = vld [vmem:[%s5 + $0x14] sm:$0xf]
  %v245 = vld [vmem:[%s5 + $0x18] sm:$0xf]
  %v246 = vld [vmem:[%s5 + $0x1c] sm:$0xf]
  %v247 = vld [vmem:[%s5 + $0x20] sm:$0xf]
  %v248 = vld [vmem:[%s5 + $0x24] sm:$0xf]
  %v249 = vld [vmem:[%s5 + $0x28] sm:$0xf]
  %v250 = vld [vmem:[%s5 + $0x2c] sm:$0xf]
  %v251 = vld [vmem:[%s5 + $0x30] sm:$0xf]
  %v252 = vld [vmem:[%s5 + $0x34] sm:$0xf]
  %v253 = vld [vmem:[%s5 + $0x38] sm:$0xf]
  %v254 = vld [vmem:[%s5 + $0x3c] sm:$0xf]
  %v255 = vld [vmem:[%s5 + $0x40] sm:$0xf]
  %v256 = vld [vmem:[%s5 + $0x44] sm:$0xf]
  %v257 = vld [vmem:[%s5 + $0x48] sm:$0xf]
  %v258 = vld [vmem:[%s5 + $0x4c] sm:$0xf]
  %v259 = vld [vmem:[%s5 + $0x50] sm:$0xf]
  %v260 = vld [vmem:[%s5 + $0x54] sm:$0xf]
  %v261 = vld [vmem:[%s5 + $0x58] sm:$0xf]
  %v262 = vld [vmem:[%s5 + $0x5c] sm:$0xf]
  %v263 = vld [vmem:[%s5 + $0x60] sm:$0xf]
  %v264 = vld [vmem:[%s5 + $0x64] sm:$0xf]
  %v265 = vld [vmem:[%s5 + $0x68] sm:$0xf]
  %v266 = vld [vmem:[%s5 + $0x6c] sm:$0xf]
  %v267 = vld [vmem:[%s5 + $0x70] sm:$0xf]
  %v268 = vld [vmem:[%s5 + $0x74] sm:$0xf]
  %v269 = vld [vmem:[%s5 + $0x78] sm:$0xf]
  %v270 = vld [vmem:[%s5 + $0x7c] sm:$0xf]
  %v271 = vld [vmem:[%s6] sm:$0x1]
  %v273 = vperm.slane %v271, 0
  %v307 = vunpack.c.l.b16 %v239
  %v308 = vunpack.c.l.b16 %v240
  %v309 = vunpack.c.l.b16 %v241
  %v310 = vunpack.c.l.b16 %v242
  %v311 = vunpack.c.l.b16 %v243
  %v312 = vunpack.c.l.b16 %v244
  %v313 = vunpack.c.l.b16 %v245
  %v314 = vunpack.c.l.b16 %v246
  %v315 = vunpack.c.l.b16 %v247
  %v316 = vunpack.c.l.b16 %v248
  %v317 = vunpack.c.l.b16 %v249
  %v318 = vunpack.c.l.b16 %v250
  %v319 = vunpack.c.l.b16 %v251
  %v320 = vunpack.c.l.b16 %v252
  %v321 = vunpack.c.l.b16 %v253
  %v322 = vunpack.c.l.b16 %v254
  %v323 = vunpack.c.l.b16 %v255
  %v324 = vunpack.c.l.b16 %v256
  %v325 = vunpack.c.l.b16 %v257
  %v326 = vunpack.c.l.b16 %v258
  %v327 = vunpack.c.l.b16 %v259
  %v328 = vunpack.c.l.b16 %v260
  %v329 = vunpack.c.l.b16 %v261
  %v330 = vunpack.c.l.b16 %v262
  %v331 = vunpack.c.l.b16 %v263
  %v332 = vunpack.c.l.b16 %v264
  %v333 = vunpack.c.l.b16 %v265
  %v334 = vunpack.c.l.b16 %v266
  %v335 = vunpack.c.l.b16 %v267
  %v336 = vunpack.c.l.b16 %v268
  %v337 = vunpack.c.l.b16 %v269
  %v338 = vunpack.c.l.b16 %v270
  %v339 = vpack.c.b16 %v308, %v307
  %v340 = vpack.c.b16 %v310, %v309
  %v341 = vpack.c.b16 %v312, %v311
  %v342 = vpack.c.b16 %v314, %v313
  %v343 = vpack.c.b16 %v316, %v315
  %v344 = vpack.c.b16 %v318, %v317
  %v345 = vpack.c.b16 %v320, %v319
  %v346 = vpack.c.b16 %v322, %v321
  %v347 = vpack.c.b16 %v324, %v323
  %v348 = vpack.c.b16 %v326, %v325
  %v349 = vpack.c.b16 %v328, %v327
  %v350 = vpack.c.b16 %v330, %v329
  %v351 = vpack.c.b16 %v332, %v331
  %v352 = vpack.c.b16 %v334, %v333
  %v353 = vpack.c.b16 %v336, %v335
  %v354 = vpack.c.b16 %v338, %v337
  %371 = vmatpush.bf16.msra.mxu0 %v346
  %372 = vmatpush.bf16.msra.mxu0 %v345
  %373 = vmatpush.bf16.msra.mxu0 %v344
  %374 = vmatpush.bf16.msra.mxu0 %v343
  %375 = vmatpush.bf16.msra.mxu0 %v342
  %376 = vmatpush.bf16.msra.mxu0 %v341
  %377 = vmatpush.bf16.msra.mxu0 %v340
  %378 = vmatpush.bf16.msra.mxu0 %v339
  %379 = vmatmul.bf16.gmra.mxu0 %v237
  %v380 = vpop.f32.mrf.mxu0
  %v381 = vadd.f32 %v273, %v380
  %v382 = vpop.f32.mrf.mxu0
  %383 = vdwg.mxu0
  %384 = vmatpush.bf16.msra.mxu0 %v354
  %385 = vmatpush.bf16.msra.mxu0 %v353
  %386 = vmatpush.bf16.msra.mxu0 %v352
  %387 = vmatpush.bf16.msra.mxu0 %v351
  %388 = vmatpush.bf16.msra.mxu0 %v350
  %389 = vmatpush.bf16.msra.mxu0 %v349
  %390 = vmatpush.bf16.msra.mxu0 %v348
  %391 = vmatpush.bf16.msra.mxu0 %v347
  %392 = vmatmul.bf16.gmra.mxu0 %v238
  %v393 = vpop.f32.mrf.mxu0
  %v394 = vadd.f32 %v381, %v393
  %v395 = vpop.f32.mrf.mxu0
  %396 = vdwg.mxu0
  %v397 = vadd.f32 %v27, %v394
  %v398 = vpack.c.bf16 %v397, %v397
  %399 = vst [vmem:[%s7] sm:$0x3] %v398
  // Predicated region
  $region30: #{stmamba_bcd_forward.32} parent=0 // pred_check
    _
  $region31: #{stmamba_bcd_forward.32} parent=0 // pred_check_branch
    %401 = sbr.rel (0) target = $region33
  $region32: #{stmamba_bcd_forward.32} parent=0 // pred_region
    _
  $region33: #{stmamba_bcd_forward.32} parent=0 // pred_fallthru
    _
  // Predicated region
  $region34: #{stmamba_bcd_forward.32} parent=0 // pred_check
    _
  $region35: #{stmamba_bcd_forward.32} parent=0 // pred_check_branch
    %403 = sbr.rel (0) target = $region37
  $region36: #{stmamba_bcd_forward.32} parent=0 // pred_region
    _
  $region37: #{stmamba_bcd_forward.32} parent=0 // pred_fallthru
    _

// kernel: stmamba_bcd_forward.33
$region0: #{stmamba_bcd_forward.33}
  #allocation0 [shape = 'u32[]', space=smem, size = 0x4, offset = 0x4, fixed_abs, tag = 'smem constant byte address 0x4 - core index']
  #allocation1 [shape = 'u32[72,128]{1,0:T(1,128)}', space=vmem, size = 0x9000, scoped, tag = 'internal scratch']
  %s0 = inlined_call_operand.vmem [shape: bf16[256,32], index: 0, kind: input, shape index: {}]
  %s1 = inlined_call_operand.vmem [shape: bf16[32,16], index: 1, kind: input, shape index: {}]
  %s2 = inlined_call_operand.vmem [shape: f32[1,16], index: 2, kind: input, shape index: {}]
  %s3 = inlined_call_operand.vmem [shape: f32[1,16], index: 3, kind: input, shape index: {}]
  %s4 = inlined_call_operand.vmem [shape: f32[1,16], index: 4, kind: input, shape index: {}]
  %s5 = inlined_call_operand.vmem [shape: bf16[256,16], index: 5, kind: output, shape index: {}]
  %s6 = sld [smem:[#allocation0]]
  $region30: #{stmamba_bcd_forward.33} parent=0
    _
  %s8 = ssub.s32 1, %s6
  %s9 = scalar_select 0, %s8, %s6
  // Predicated region
  $region2: #{stmamba_bcd_forward.33} parent=0 // pred_check
    _
  $region3: #{stmamba_bcd_forward.33} parent=0 // pred_check_branch
    %11 = sbr.rel (0) target = $region5
  $region4: #{stmamba_bcd_forward.33} parent=0 // pred_region
    _
  $region5: #{stmamba_bcd_forward.33} parent=0 // pred_fallthru
    _
  // Predicated region
  $region6: #{stmamba_bcd_forward.33} parent=0 // pred_check
    _
  $region7: #{stmamba_bcd_forward.33} parent=0 // pred_check_branch
    %13 = sbr.rel (0) target = $region9
  $region8: #{stmamba_bcd_forward.33} parent=0 // pred_region
    _
  $region9: #{stmamba_bcd_forward.33} parent=0 // pred_fallthru
    _
  // Predicated region
  $region10: #{stmamba_bcd_forward.33} parent=0 // pred_check
    _
  $region11: #{stmamba_bcd_forward.33} parent=0 // pred_check_branch
    %15 = sbr.rel (0) target = $region13
  $region12: #{stmamba_bcd_forward.33} parent=0 // pred_region
    _
  $region13: #{stmamba_bcd_forward.33} parent=0 // pred_fallthru
    _
  // Predicated region
  $region14: #{stmamba_bcd_forward.33} parent=0 // pred_check
    _
  $region15: #{stmamba_bcd_forward.33} parent=0 // pred_check_branch
    %17 = sbr.rel (0) target = $region17
  $region16: #{stmamba_bcd_forward.33} parent=0 // pred_region
    _
  $region17: #{stmamba_bcd_forward.33} parent=0 // pred_fallthru
    _
  // Predicated region
  $region18: #{stmamba_bcd_forward.33} parent=0 // pred_check
    _
  $region19: #{stmamba_bcd_forward.33} parent=0 // pred_check_branch
    %19 = sbr.rel (0) target = $region21
  $region20: #{stmamba_bcd_forward.33} parent=0 // pred_region
    _
  $region21: #{stmamba_bcd_forward.33} parent=0 // pred_fallthru
    _
  %v21 = vld [vmem:[%s0] sm:$0xf]
  %v22 = vld [vmem:[%s0 + $0x4] sm:$0xf]
  %v23 = vld [vmem:[%s0 + $0x8] sm:$0xf]
  %v24 = vld [vmem:[%s0 + $0xc] sm:$0xf]
  %v25 = vld [vmem:[%s0 + $0x10] sm:$0xf]
  %v26 = vld [vmem:[%s0 + $0x14] sm:$0xf]
  %v27 = vld [vmem:[%s0 + $0x18] sm:$0xf]
  %v28 = vld [vmem:[%s0 + $0x1c] sm:$0xf]
  %v29 = vld [vmem:[%s0 + $0x20] sm:$0xf]
  %v30 = vld [vmem:[%s0 + $0x24] sm:$0xf]
  %v31 = vld [vmem:[%s0 + $0x28] sm:$0xf]
  %v32 = vld [vmem:[%s0 + $0x2c] sm:$0xf]
  %v33 = vld [vmem:[%s0 + $0x30] sm:$0xf]
  %v34 = vld [vmem:[%s0 + $0x34] sm:$0xf]
  %v35 = vld [vmem:[%s0 + $0x38] sm:$0xf]
  %v36 = vld [vmem:[%s0 + $0x3c] sm:$0xf]
  %v37 = vld [vmem:[%s0 + $0x40] sm:$0xf]
  %v38 = vld [vmem:[%s0 + $0x44] sm:$0xf]
  %v39 = vld [vmem:[%s0 + $0x48] sm:$0xf]
  %v40 = vld [vmem:[%s0 + $0x4c] sm:$0xf]
  %v41 = vld [vmem:[%s0 + $0x50] sm:$0xf]
  %v42 = vld [vmem:[%s0 + $0x54] sm:$0xf]
  %v43 = vld [vmem:[%s0 + $0x58] sm:$0xf]
  %v44 = vld [vmem:[%s0 + $0x5c] sm:$0xf]
  %v45 = vld [vmem:[%s0 + $0x60] sm:$0xf]
  %v46 = vld [vmem:[%s0 + $0x64] sm:$0xf]
  %v47 = vld [vmem:[%s0 + $0x68] sm:$0xf]
  %v48 = vld [vmem:[%s0 + $0x6c] sm:$0xf]
  %v49 = vld [vmem:[%s0 + $0x70] sm:$0xf]
  %v50 = vld [vmem:[%s0 + $0x74] sm:$0xf]
  %v51 = vld [vmem:[%s0 + $0x78] sm:$0xf]
  %v52 = vld [vmem:[%s0 + $0x7c] sm:$0xf]
  %v53 = vld [vmem:[%s1] sm:$0xf]
  %v54 = vld [vmem:[%s1 + $0x4] sm:$0xf]
  %v55 = vld [vmem:[%s1 + $0x8] sm:$0xf]
  %v56 = vld [vmem:[%s1 + $0xc] sm:$0xf]
  %v57 = vld [vmem:[%s2] sm:$0x1]
  %v59 = vperm.slane %v57, 0
  %v93 = vunpack.c.l.b16 %v21
  %v94 = vunpack.c.l.b16 %v22
  %v95 = vunpack.c.l.b16 %v23
  %v96 = vunpack.c.l.b16 %v24
  %v97 = vunpack.c.l.b16 %v25
  %v98 = vunpack.c.l.b16 %v26
  %v99 = vunpack.c.l.b16 %v27
  %v100 = vunpack.c.l.b16 %v28
  %v101 = vunpack.c.l.b16 %v29
  %v102 = vunpack.c.l.b16 %v30
  %v103 = vunpack.c.l.b16 %v31
  %v104 = vunpack.c.l.b16 %v32
  %v105 = vunpack.c.l.b16 %v33
  %v106 = vunpack.c.l.b16 %v34
  %v107 = vunpack.c.l.b16 %v35
  %v108 = vunpack.c.l.b16 %v36
  %v109 = vunpack.c.l.b16 %v37
  %v110 = vunpack.c.l.b16 %v38
  %v111 = vunpack.c.l.b16 %v39
  %v112 = vunpack.c.l.b16 %v40
  %v113 = vunpack.c.l.b16 %v41
  %v114 = vunpack.c.l.b16 %v42
  %v115 = vunpack.c.l.b16 %v43
  %v116 = vunpack.c.l.b16 %v44
  %v117 = vunpack.c.l.b16 %v45
  %v118 = vunpack.c.l.b16 %v46
  %v119 = vunpack.c.l.b16 %v47
  %v120 = vunpack.c.l.b16 %v48
  %v121 = vunpack.c.l.b16 %v49
  %v122 = vunpack.c.l.b16 %v50
  %v123 = vunpack.c.l.b16 %v51
  %v124 = vunpack.c.l.b16 %v52
  %v125 = vpack.c.b16 %v94, %v93
  %v126 = vpack.c.b16 %v96, %v95
  %v127 = vpack.c.b16 %v98, %v97
  %v128 = vpack.c.b16 %v100, %v99
  %v129 = vpack.c.b16 %v102, %v101
  %v130 = vpack.c.b16 %v104, %v103
  %v131 = vpack.c.b16 %v106, %v105
  %v132 = vpack.c.b16 %v108, %v107
  %v133 = vpack.c.b16 %v110, %v109
  %v134 = vpack.c.b16 %v112, %v111
  %v135 = vpack.c.b16 %v114, %v113
  %v136 = vpack.c.b16 %v116, %v115
  %v137 = vpack.c.b16 %v118, %v117
  %v138 = vpack.c.b16 %v120, %v119
  %v139 = vpack.c.b16 %v122, %v121
  %v140 = vpack.c.b16 %v124, %v123
  %v145 = vunpack.c.l.b16 %v53
  %v146 = vunpack.c.l.b16 %v54
  %v147 = vunpack.c.l.b16 %v55
  %v148 = vunpack.c.l.b16 %v56
  %v149 = vpack.c.b16 %v146, %v145
  %v150 = vpack.c.b16 %v148, %v147
  %vm153 = vcmask 261120
  %v155 = vsel %vm153, %v125, 0
  %v158 = vsel %vm153, %v126, 0
  %v161 = vsel %vm153, %v127, 0
  %v164 = vsel %vm153, %v128, 0
  %v167 = vsel %vm153, %v129, 0
  %v170 = vsel %vm153, %v130, 0
  %v173 = vsel %vm153, %v131, 0
  %v176 = vsel %vm153, %v132, 0
  %v179 = vsel %vm153, %v133, 0
  %v182 = vsel %vm153, %v134, 0
  %v185 = vsel %vm153, %v135, 0
  %v188 = vsel %vm153, %v136, 0
  %v191 = vsel %vm153, %v137, 0
  %v194 = vsel %vm153, %v138, 0
  %v197 = vsel %vm153, %v139, 0
  %v200 = vsel %vm153, %v140, 0
  %202 = vmatpush.bf16.msra.mxu0 0
  %203 = vmatpush.bf16.msra.mxu0 0
  %204 = vmatpush.bf16.msra.mxu0 0
  %205 = vmatpush.bf16.msra.mxu0 0
  %206 = vmatpush.bf16.msra.mxu0 0
  %207 = vmatpush.bf16.msra.mxu0 0
  %208 = vmatpush.bf16.msra.mxu0 %v150
  %209 = vmatpush.bf16.msra.mxu0 %v149
  %210 = vmatmul.bf16.gmra.mxu0 %v155
  %v211 = vpop.f32.mrf.mxu0
  %v212 = vadd.f32 %v59, %v211
  %v213 = vpop.f32.mrf.mxu0
  %v214 = vadd.f32 %v59, %v213
  %215 = vmatmul.bf16.gmra.mxu0 %v158
  %v216 = vpop.f32.mrf.mxu0
  %v217 = vadd.f32 %v59, %v216
  %v218 = vpop.f32.mrf.mxu0
  %v219 = vadd.f32 %v59, %v218
  %220 = vmatmul.bf16.gmra.mxu0 %v161
  %v221 = vpop.f32.mrf.mxu0
  %v222 = vadd.f32 %v59, %v221
  %v223 = vpop.f32.mrf.mxu0
  %v224 = vadd.f32 %v59, %v223
  %225 = vmatmul.bf16.gmra.mxu0 %v164
  %v226 = vpop.f32.mrf.mxu0
  %v227 = vadd.f32 %v59, %v226
  %v228 = vpop.f32.mrf.mxu0
  %v229 = vadd.f32 %v59, %v228
  %230 = vmatmul.bf16.gmra.mxu0 %v167
  %v231 = vpop.f32.mrf.mxu0
  %v232 = vadd.f32 %v59, %v231
  %v233 = vpop.f32.mrf.mxu0
  %v234 = vadd.f32 %v59, %v233
  %235 = vmatmul.bf16.gmra.mxu0 %v170
  %v236 = vpop.f32.mrf.mxu0
  %v237 = vadd.f32 %v59, %v236
  %v238 = vpop.f32.mrf.mxu0
  %v239 = vadd.f32 %v59, %v238
  %240 = vmatmul.bf16.gmra.mxu0 %v173
  %v241 = vpop.f32.mrf.mxu0
  %v242 = vadd.f32 %v59, %v241
  %v243 = vpop.f32.mrf.mxu0
  %v244 = vadd.f32 %v59, %v243
  %245 = vmatmul.bf16.gmra.mxu0 %v176
  %v246 = vpop.f32.mrf.mxu0
  %v247 = vadd.f32 %v59, %v246
  %v248 = vpop.f32.mrf.mxu0
  %v249 = vadd.f32 %v59, %v248
  %250 = vmatmul.bf16.gmra.mxu0 %v179
  %v251 = vpop.f32.mrf.mxu0
  %v252 = vadd.f32 %v59, %v251
  %v253 = vpop.f32.mrf.mxu0
  %v254 = vadd.f32 %v59, %v253
  %255 = vmatmul.bf16.gmra.mxu0 %v182
  %v256 = vpop.f32.mrf.mxu0
  %v257 = vadd.f32 %v59, %v256
  %v258 = vpop.f32.mrf.mxu0
  %v259 = vadd.f32 %v59, %v258
  %260 = vmatmul.bf16.gmra.mxu0 %v185
  %v261 = vpop.f32.mrf.mxu0
  %v262 = vadd.f32 %v59, %v261
  %v263 = vpop.f32.mrf.mxu0
  %v264 = vadd.f32 %v59, %v263
  %265 = vmatmul.bf16.gmra.mxu0 %v188
  %v266 = vpop.f32.mrf.mxu0
  %v267 = vadd.f32 %v59, %v266
  %v268 = vpop.f32.mrf.mxu0
  %v269 = vadd.f32 %v59, %v268
  %270 = vmatmul.bf16.gmra.mxu0 %v191
  %v271 = vpop.f32.mrf.mxu0
  %v272 = vadd.f32 %v59, %v271
  %v273 = vpop.f32.mrf.mxu0
  %v274 = vadd.f32 %v59, %v273
  %275 = vmatmul.bf16.gmra.mxu0 %v194
  %v276 = vpop.f32.mrf.mxu0
  %v277 = vadd.f32 %v59, %v276
  %v278 = vpop.f32.mrf.mxu0
  %v279 = vadd.f32 %v59, %v278
  %280 = vmatmul.bf16.gmra.mxu0 %v197
  %v281 = vpop.f32.mrf.mxu0
  %v282 = vadd.f32 %v59, %v281
  %v283 = vpop.f32.mrf.mxu0
  %v284 = vadd.f32 %v59, %v283
  %285 = vmatmul.bf16.gmra.mxu0 %v200
  %v286 = vpop.f32.mrf.mxu0
  %v287 = vadd.f32 %v59, %v286
  %v288 = vpop.f32.mrf.mxu0
  %v289 = vadd.f32 %v59, %v288
  %290 = vdwg.mxu0
  %vm291 = vcmask 130048
  %v292 = vsel %vm291, %v212, 0.0
  %293 = vadd.xlane.f32.xlu0 %v292
  %v294 = vpop.xlane.xlu0 %293
  %v295 = vsel %vm291, %v214, 0.0
  %296 = vadd.xlane.f32.xlu0 %v295
  %v297 = vpop.xlane.xlu0 %296
  %v298 = vsel %vm291, %v217, 0.0
  %299 = vadd.xlane.f32.xlu0 %v298
  %v300 = vpop.xlane.xlu0 %299
  %v301 = vsel %vm291, %v219, 0.0
  %302 = vadd.xlane.f32.xlu0 %v301
  %v303 = vpop.xlane.xlu0 %302
  %v304 = vsel %vm291, %v222, 0.0
  %305 = vadd.xlane.f32.xlu0 %v304
  %v306 = vpop.xlane.xlu0 %305
  %v307 = vsel %vm291, %v224, 0.0
  %308 = vadd.xlane.f32.xlu0 %v307
  %v309 = vpop.xlane.xlu0 %308
  %v310 = vsel %vm291, %v227, 0.0
  %311 = vadd.xlane.f32.xlu0 %v310
  %v312 = vpop.xlane.xlu0 %311
  %v313 = vsel %vm291, %v229, 0.0
  %314 = vadd.xlane.f32.xlu0 %v313
  %v315 = vpop.xlane.xlu0 %314
  %v316 = vsel %vm291, %v232, 0.0
  %317 = vadd.xlane.f32.xlu0 %v316
  %v318 = vpop.xlane.xlu0 %317
  %v319 = vsel %vm291, %v234, 0.0
  %320 = vadd.xlane.f32.xlu0 %v319
  %v321 = vpop.xlane.xlu0 %320
  %v322 = vsel %vm291, %v237, 0.0
  %323 = vadd.xlane.f32.xlu0 %v322
  %v324 = vpop.xlane.xlu0 %323
  %v325 = vsel %vm291, %v239, 0.0
  %326 = vadd.xlane.f32.xlu0 %v325
  %v327 = vpop.xlane.xlu0 %326
  %v328 = vsel %vm291, %v242, 0.0
  %329 = vadd.xlane.f32.xlu0 %v328
  %v330 = vpop.xlane.xlu0 %329
  %v331 = vsel %vm291, %v244, 0.0
  %332 = vadd.xlane.f32.xlu0 %v331
  %v333 = vpop.xlane.xlu0 %332
  %v334 = vsel %vm291, %v247, 0.0
  %335 = vadd.xlane.f32.xlu0 %v334
  %v336 = vpop.xlane.xlu0 %335
  %v337 = vsel %vm291, %v249, 0.0
  %338 = vadd.xlane.f32.xlu0 %v337
  %v339 = vpop.xlane.xlu0 %338
  %v340 = vsel %vm291, %v252, 0.0
  %341 = vadd.xlane.f32.xlu0 %v340
  %v342 = vpop.xlane.xlu0 %341
  %v343 = vsel %vm291, %v254, 0.0
  %344 = vadd.xlane.f32.xlu0 %v343
  %v345 = vpop.xlane.xlu0 %344
  %v346 = vsel %vm291, %v257, 0.0
  %347 = vadd.xlane.f32.xlu0 %v346
  %v348 = vpop.xlane.xlu0 %347
  %v349 = vsel %vm291, %v259, 0.0
  %350 = vadd.xlane.f32.xlu0 %v349
  %v351 = vpop.xlane.xlu0 %350
  %v352 = vsel %vm291, %v262, 0.0
  %353 = vadd.xlane.f32.xlu0 %v352
  %v354 = vpop.xlane.xlu0 %353
  %v355 = vsel %vm291, %v264, 0.0
  %356 = vadd.xlane.f32.xlu0 %v355
  %v357 = vpop.xlane.xlu0 %356
  %v358 = vsel %vm291, %v267, 0.0
  %359 = vadd.xlane.f32.xlu0 %v358
  %v360 = vpop.xlane.xlu0 %359
  %v361 = vsel %vm291, %v269, 0.0
  %362 = vadd.xlane.f32.xlu0 %v361
  %v363 = vpop.xlane.xlu0 %362
  %v364 = vsel %vm291, %v272, 0.0
  %365 = vadd.xlane.f32.xlu0 %v364
  %v366 = vpop.xlane.xlu0 %365
  %v367 = vsel %vm291, %v274, 0.0
  %368 = vadd.xlane.f32.xlu0 %v367
  %v369 = vpop.xlane.xlu0 %368
  %v370 = vsel %vm291, %v277, 0.0
  %371 = vadd.xlane.f32.xlu0 %v370
  %v372 = vpop.xlane.xlu0 %371
  %v373 = vsel %vm291, %v279, 0.0
  %374 = vadd.xlane.f32.xlu0 %v373
  %v375 = vpop.xlane.xlu0 %374
  %v376 = vsel %vm291, %v282, 0.0
  %377 = vadd.xlane.f32.xlu0 %v376
  %v378 = vpop.xlane.xlu0 %377
  %v379 = vsel %vm291, %v284, 0.0
  %380 = vadd.xlane.f32.xlu0 %v379
  %v381 = vpop.xlane.xlu0 %380
  %v382 = vsel %vm291, %v287, 0.0
  %383 = vadd.xlane.f32.xlu0 %v382
  %v384 = vpop.xlane.xlu0 %383
  %v385 = vsel %vm291, %v289, 0.0
  %386 = vadd.xlane.f32.xlu0 %v385
  %v387 = vpop.xlane.xlu0 %386
  %v388 = vrcp.pop 16.0
  %v389 = vmul.f32 16.0, %v388
  %v390 = vsub.f32 1.0, %v389
  %v391 = vmul.f32 %v388, %v390
  %v392 = vadd.f32 %v388, %v391
  %vm393 = vweird.f32 %v388
  %v394 = vsel %vm393, %v388, %v392
  %v395 = vmul.f32 %v294, %v394
  %v396 = vmul.f32 %v297, %v394
  %v397 = vmul.f32 %v300, %v394
  %v398 = vmul.f32 %v303, %v394
  %v399 = vmul.f32 %v306, %v394
  %v400 = vmul.f32 %v309, %v394
  %v401 = vmul.f32 %v312, %v394
  %v402 = vmul.f32 %v315, %v394
  %v403 = vmul.f32 %v318, %v394
  %v404 = vmul.f32 %v321, %v394
  %v405 = vmul.f32 %v324, %v394
  %v406 = vmul.f32 %v327, %v394
  %v407 = vmul.f32 %v330, %v394
  %v408 = vmul.f32 %v333, %v394
  %v409 = vmul.f32 %v336, %v394
  %v410 = vmul.f32 %v339, %v394
  %v411 = vmul.f32 %v342, %v394
  %v412 = vmul.f32 %v345, %v394
  %v413 = vmul.f32 %v348, %v394
  %v414 = vmul.f32 %v351, %v394
  %v415 = vmul.f32 %v354, %v394
  %v416 = vmul.f32 %v357, %v394
  %v417 = vmul.f32 %v360, %v394
  %v418 = vmul.f32 %v363, %v394
  %v419 = vmul.f32 %v366, %v394
  %v420 = vmul.f32 %v369, %v394
  %v421 = vmul.f32 %v372, %v394
  %v422 = vmul.f32 %v375, %v394
  %v423 = vmul.f32 %v378, %v394
  %v424 = vmul.f32 %v381, %v394
  %v425 = vmul.f32 %v384, %v394
  %v426 = vmul.f32 %v387, %v394
  %v427 = vsub.f32 %v212, %v395
  %v428 = vsub.f32 %v214, %v396
  %v429 = vsub.f32 %v217, %v397
  %v430 = vsub.f32 %v219, %v398
  %v431 = vsub.f32 %v222, %v399
  %v432 = vsub.f32 %v224, %v400
  %v433 = vsub.f32 %v227, %v401
  %v434 = vsub.f32 %v229, %v402
  %v435 = vsub.f32 %v232, %v403
  %v436 = vsub.f32 %v234, %v404
  %v437 = vsub.f32 %v237, %v405
  %v438 = vsub.f32 %v239, %v406
  %v439 = vsub.f32 %v242, %v407
  %v440 = vsub.f32 %v244, %v408
  %v441 = vsub.f32 %v247, %v409
  %v442 = vsub.f32 %v249, %v410
  %v443 = vsub.f32 %v252, %v411
  %v444 = vsub.f32 %v254, %v412
  %v445 = vsub.f32 %v257, %v413
  %v446 = vsub.f32 %v259, %v414
  %v447 = vsub.f32 %v262, %v415
  %v448 = vsub.f32 %v264, %v416
  %v449 = vsub.f32 %v267, %v417
  %v450 = vsub.f32 %v269, %v418
  %v451 = vsub.f32 %v272, %v419
  %v452 = vsub.f32 %v274, %v420
  %v453 = vsub.f32 %v277, %v421
  %v454 = vsub.f32 %v279, %v422
  %v455 = vsub.f32 %v282, %v423
  %v456 = vsub.f32 %v284, %v424
  %v457 = vsub.f32 %v287, %v425
  %v458 = vsub.f32 %v289, %v426
  %v459 = vmul.f32 %v427, %v427
  %v460 = vmul.f32 %v428, %v428
  %v461 = vmul.f32 %v429, %v429
  %v462 = vmul.f32 %v430, %v430
  %v463 = vmul.f32 %v431, %v431
  %v464 = vmul.f32 %v432, %v432
  %v465 = vmul.f32 %v433, %v433
  %v466 = vmul.f32 %v434, %v434
  %v467 = vmul.f32 %v435, %v435
  %v468 = vmul.f32 %v436, %v436
  %v469 = vmul.f32 %v437, %v437
  %v470 = vmul.f32 %v438, %v438
  %v471 = vmul.f32 %v439, %v439
  %v472 = vmul.f32 %v440, %v440
  %v473 = vmul.f32 %v441, %v441
  %v474 = vmul.f32 %v442, %v442
  %v475 = vmul.f32 %v443, %v443
  %v476 = vmul.f32 %v444, %v444
  %v477 = vmul.f32 %v445, %v445
  %v478 = vmul.f32 %v446, %v446
  %v479 = vmul.f32 %v447, %v447
  %v480 = vmul.f32 %v448, %v448
  %v481 = vmul.f32 %v449, %v449
  %v482 = vmul.f32 %v450, %v450
  %v483 = vmul.f32 %v451, %v451
  %v484 = vmul.f32 %v452, %v452
  %v485 = vmul.f32 %v453, %v453
  %v486 = vmul.f32 %v454, %v454
  %v487 = vmul.f32 %v455, %v455
  %v488 = vmul.f32 %v456, %v456
  %v489 = vmul.f32 %v457, %v457
  %v490 = vmul.f32 %v458, %v458
  %v491 = vsel %vm291, %v459, 0.0
  %492 = vadd.xlane.f32.xlu0 %v491
  %v493 = vpop.xlane.xlu0 %492
  %v494 = vsel %vm291, %v460, 0.0
  %495 = vadd.xlane.f32.xlu0 %v494
  %v496 = vpop.xlane.xlu0 %495
  %v497 = vsel %vm291, %v461, 0.0
  %498 = vadd.xlane.f32.xlu0 %v497
  %v499 = vpop.xlane.xlu0 %498
  %v500 = vsel %vm291, %v462, 0.0
  %501 = vadd.xlane.f32.xlu0 %v500
  %v502 = vpop.xlane.xlu0 %501
  %v503 = vsel %vm291, %v463, 0.0
  %504 = vadd.xlane.f32.xlu0 %v503
  %v505 = vpop.xlane.xlu0 %504
  %v506 = vsel %vm291, %v464, 0.0
  %507 = vadd.xlane.f32.xlu0 %v506
  %v508 = vpop.xlane.xlu0 %507
  %v509 = vsel %vm291, %v465, 0.0
  %510 = vadd.xlane.f32.xlu0 %v509
  %v511 = vpop.xlane.xlu0 %510
  %v512 = vsel %vm291, %v466, 0.0
  %513 = vadd.xlane.f32.xlu0 %v512
  %v514 = vpop.xlane.xlu0 %513
  %v515 = vsel %vm291, %v467, 0.0
  %516 = vadd.xlane.f32.xlu0 %v515
  %v517 = vpop.xlane.xlu0 %516
  %v518 = vsel %vm291, %v468, 0.0
  %519 = vadd.xlane.f32.xlu0 %v518
  %v520 = vpop.xlane.xlu0 %519
  %v521 = vsel %vm291, %v469, 0.0
  %522 = vadd.xlane.f32.xlu0 %v521
  %v523 = vpop.xlane.xlu0 %522
  %v524 = vsel %vm291, %v470, 0.0
  %525 = vadd.xlane.f32.xlu0 %v524
  %v526 = vpop.xlane.xlu0 %525
  %v527 = vsel %vm291, %v471, 0.0
  %528 = vadd.xlane.f32.xlu0 %v527
  %v529 = vpop.xlane.xlu0 %528
  %v530 = vsel %vm291, %v472, 0.0
  %531 = vadd.xlane.f32.xlu0 %v530
  %v532 = vpop.xlane.xlu0 %531
  %v533 = vsel %vm291, %v473, 0.0
  %534 = vadd.xlane.f32.xlu0 %v533
  %v535 = vpop.xlane.xlu0 %534
  %v536 = vsel %vm291, %v474, 0.0
  %537 = vadd.xlane.f32.xlu0 %v536
  %v538 = vpop.xlane.xlu0 %537
  %v539 = vsel %vm291, %v475, 0.0
  %540 = vadd.xlane.f32.xlu0 %v539
  %v541 = vpop.xlane.xlu0 %540
  %v542 = vsel %vm291, %v476, 0.0
  %543 = vadd.xlane.f32.xlu0 %v542
  %v544 = vpop.xlane.xlu0 %543
  %v545 = vsel %vm291, %v477, 0.0
  %546 = vadd.xlane.f32.xlu0 %v545
  %v547 = vpop.xlane.xlu0 %546
  %v548 = vsel %vm291, %v478, 0.0
  %549 = vadd.xlane.f32.xlu0 %v548
  %v550 = vpop.xlane.xlu0 %549
  %v551 = vsel %vm291, %v479, 0.0
  %552 = vadd.xlane.f32.xlu0 %v551
  %v553 = vpop.xlane.xlu0 %552
  %v554 = vsel %vm291, %v480, 0.0
  %555 = vadd.xlane.f32.xlu0 %v554
  %v556 = vpop.xlane.xlu0 %555
  %v557 = vsel %vm291, %v481, 0.0
  %558 = vadd.xlane.f32.xlu0 %v557
  %v559 = vpop.xlane.xlu0 %558
  %v560 = vsel %vm291, %v482, 0.0
  %561 = vadd.xlane.f32.xlu0 %v560
  %v562 = vpop.xlane.xlu0 %561
  %v563 = vsel %vm291, %v483, 0.0
  %564 = vadd.xlane.f32.xlu0 %v563
  %v565 = vpop.xlane.xlu0 %564
  %v566 = vsel %vm291, %v484, 0.0
  %567 = vadd.xlane.f32.xlu0 %v566
  %v568 = vpop.xlane.xlu0 %567
  %v569 = vsel %vm291, %v485, 0.0
  %570 = vadd.xlane.f32.xlu0 %v569
  %v571 = vpop.xlane.xlu0 %570
  %v572 = vsel %vm291, %v486, 0.0
  %573 = vadd.xlane.f32.xlu0 %v572
  %v574 = vpop.xlane.xlu0 %573
  %v575 = vsel %vm291, %v487, 0.0
  %576 = vadd.xlane.f32.xlu0 %v575
  %v577 = vpop.xlane.xlu0 %576
  %v578 = vsel %vm291, %v488, 0.0
  %579 = vadd.xlane.f32.xlu0 %v578
  %v580 = vpop.xlane.xlu0 %579
  %v581 = vsel %vm291, %v489, 0.0
  %582 = vadd.xlane.f32.xlu0 %v581
  %v583 = vpop.xlane.xlu0 %582
  %v584 = vsel %vm291, %v490, 0.0
  %585 = vadd.xlane.f32.xlu0 %v584
  %v586 = vpop.xlane.xlu0 %585
  %v587 = vmul.f32 %v493, %v394
  %v588 = vmul.f32 %v496, %v394
  %v589 = vmul.f32 %v499, %v394
  %v590 = vmul.f32 %v502, %v394
  %v591 = vmul.f32 %v505, %v394
  %v592 = vmul.f32 %v508, %v394
  %v593 = vmul.f32 %v511, %v394
  %v594 = vmul.f32 %v514, %v394
  %v595 = vmul.f32 %v517, %v394
  %v596 = vmul.f32 %v520, %v394
  %v597 = vmul.f32 %v523, %v394
  %v598 = vmul.f32 %v526, %v394
  %v599 = vmul.f32 %v529, %v394
  %v600 = vmul.f32 %v532, %v394
  %v601 = vmul.f32 %v535, %v394
  %v602 = vmul.f32 %v538, %v394
  %v603 = vmul.f32 %v541, %v394
  %v604 = vmul.f32 %v544, %v394
  %v605 = vmul.f32 %v547, %v394
  %v606 = vmul.f32 %v550, %v394
  %v607 = vmul.f32 %v553, %v394
  %v608 = vmul.f32 %v556, %v394
  %v609 = vmul.f32 %v559, %v394
  %v610 = vmul.f32 %v562, %v394
  %v611 = vmul.f32 %v565, %v394
  %v612 = vmul.f32 %v568, %v394
  %v613 = vmul.f32 %v571, %v394
  %v614 = vmul.f32 %v574, %v394
  %v615 = vmul.f32 %v577, %v394
  %v616 = vmul.f32 %v580, %v394
  %v617 = vmul.f32 %v583, %v394
  %v618 = vmul.f32 %v586, %v394
  %v619 = vadd.f32 %v587, 1e-05
  %v620 = vadd.f32 %v588, 1e-05
  %v621 = vadd.f32 %v589, 1e-05
  %v622 = vadd.f32 %v590, 1e-05
  %v623 = vadd.f32 %v591, 1e-05
  %v624 = vadd.f32 %v592, 1e-05
  %v625 = vadd.f32 %v593, 1e-05
  %v626 = vadd.f32 %v594, 1e-05
  %v627 = vadd.f32 %v595, 1e-05
  %v628 = vadd.f32 %v596, 1e-05
  %v629 = vadd.f32 %v597, 1e-05
  %v630 = vadd.f32 %v598, 1e-05
  %v631 = vadd.f32 %v599, 1e-05
  %v632 = vadd.f32 %v600, 1e-05
  %v633 = vadd.f32 %v601, 1e-05
  %v634 = vadd.f32 %v602, 1e-05
  %v635 = vadd.f32 %v603, 1e-05
  %v636 = vadd.f32 %v604, 1e-05
  %v637 = vadd.f32 %v605, 1e-05
  %v638 = vadd.f32 %v606, 1e-05
  %v639 = vadd.f32 %v607, 1e-05
  %v640 = vadd.f32 %v608, 1e-05
  %v641 = vadd.f32 %v609, 1e-05
  %v642 = vadd.f32 %v610, 1e-05
  %v643 = vadd.f32 %v611, 1e-05
  %v644 = vadd.f32 %v612, 1e-05
  %v645 = vadd.f32 %v613, 1e-05
  %v646 = vadd.f32 %v614, 1e-05
  %v647 = vadd.f32 %v615, 1e-05
  %v648 = vadd.f32 %v616, 1e-05
  %v649 = vadd.f32 %v617, 1e-05
  %v650 = vadd.f32 %v618, 1e-05
  %v651 = vrsqrt.pop %v619
  %v652 = vmul.f32 %v651, %v619
  %v653 = vmul.f32 %v652, %v651
  %v654 = vmul.f32 0.5, %v653
  %v655 = vsub.f32 1.5, %v654
  %v656 = vmul.f32 %v651, %v655
  %vm657 = vweird.f32 %v619
  %vm658 = vweird.f32 %v651
  %vm659 = vmor %vm657, %vm658
  %v660 = vsel %vm659, %v651, %v656
  %v661 = vrsqrt.pop %v620
  %v662 = vmul.f32 %v661, %v620
  %v663 = vmul.f32 %v662, %v661
  %v664 = vmul.f32 0.5, %v663
  %v665 = vsub.f32 1.5, %v664
  %v666 = vmul.f32 %v661, %v665
  %vm667 = vweird.f32 %v620
  %vm668 = vweird.f32 %v661
  %vm669 = vmor %vm667, %vm668
  %v670 = vsel %vm669, %v661, %v666
  %v671 = vrsqrt.pop %v621
  %v672 = vmul.f32 %v671, %v621
  %v673 = vmul.f32 %v672, %v671
  %v674 = vmul.f32 0.5, %v673
  %v675 = vsub.f32 1.5, %v674
  %v676 = vmul.f32 %v671, %v675
  %vm677 = vweird.f32 %v621
  %vm678 = vweird.f32 %v671
  %vm679 = vmor %vm677, %vm678
  %v680 = vsel %vm679, %v671, %v676
  %v681 = vrsqrt.pop %v622
  %v682 = vmul.f32 %v681, %v622
  %v683 = vmul.f32 %v682, %v681
  %v684 = vmul.f32 0.5, %v683
  %v685 = vsub.f32 1.5, %v684
  %v686 = vmul.f32 %v681, %v685
  %vm687 = vweird.f32 %v622
  %vm688 = vweird.f32 %v681
  %vm689 = vmor %vm687, %vm688
  %v690 = vsel %vm689, %v681, %v686
  %v691 = vrsqrt.pop %v623
  %v692 = vmul.f32 %v691, %v623
  %v693 = vmul.f32 %v692, %v691
  %v694 = vmul.f32 0.5, %v693
  %v695 = vsub.f32 1.5, %v694
  %v696 = vmul.f32 %v691, %v695
  %vm697 = vweird.f32 %v623
  %vm698 = vweird.f32 %v691
  %vm699 = vmor %vm697, %vm698
  %v700 = vsel %vm699, %v691, %v696
  %v701 = vrsqrt.pop %v624
  %v702 = vmul.f32 %v701, %v624
  %v703 = vmul.f32 %v702, %v701
  %v704 = vmul.f32 0.5, %v703
  %v705 = vsub.f32 1.5, %v704
  %v706 = vmul.f32 %v701, %v705
  %vm707 = vweird.f32 %v624
  %vm708 = vweird.f32 %v701
  %vm709 = vmor %vm707, %vm708
  %v710 = vsel %vm709, %v701, %v706
  %v711 = vrsqrt.pop %v625
  %v712 = vmul.f32 %v711, %v625
  %v713 = vmul.f32 %v712, %v711
  %v714 = vmul.f32 0.5, %v713
  %v715 = vsub.f32 1.5, %v714
  %v716 = vmul.f32 %v711, %v715
  %vm717 = vweird.f32 %v625
  %vm718 = vweird.f32 %v711
  %vm719 = vmor %vm717, %vm718
  %v720 = vsel %vm719, %v711, %v716
  %v721 = vrsqrt.pop %v626
  %v722 = vmul.f32 %v721, %v626
  %v723 = vmul.f32 %v722, %v721
  %v724 = vmul.f32 0.5, %v723
  %v725 = vsub.f32 1.5, %v724
  %v726 = vmul.f32 %v721, %v725
  %vm727 = vweird.f32 %v626
  %vm728 = vweird.f32 %v721
  %vm729 = vmor %vm727, %vm728
  %v730 = vsel %vm729, %v721, %v726
  %v731 = vrsqrt.pop %v627
  %v732 = vmul.f32 %v731, %v627
  %v733 = vmul.f32 %v732, %v731
  %v734 = vmul.f32 0.5, %v733
  %v735 = vsub.f32 1.5, %v734
  %v736 = vmul.f32 %v731, %v735
  %vm737 = vweird.f32 %v627
  %vm738 = vweird.f32 %v731
  %vm739 = vmor %vm737, %vm738
  %v740 = vsel %vm739, %v731, %v736
  %v741 = vrsqrt.pop %v628
  %v742 = vmul.f32 %v741, %v628
  %v743 = vmul.f32 %v742, %v741
  %v744 = vmul.f32 0.5, %v743
  %v745 = vsub.f32 1.5, %v744
  %v746 = vmul.f32 %v741, %v745
  %vm747 = vweird.f32 %v628
  %vm748 = vweird.f32 %v741
  %vm749 = vmor %vm747, %vm748
  %v750 = vsel %vm749, %v741, %v746
  %v751 = vrsqrt.pop %v629
  %v752 = vmul.f32 %v751, %v629
  %v753 = vmul.f32 %v752, %v751
  %v754 = vmul.f32 0.5, %v753
  %v755 = vsub.f32 1.5, %v754
  %v756 = vmul.f32 %v751, %v755
  %vm757 = vweird.f32 %v629
  %vm758 = vweird.f32 %v751
  %vm759 = vmor %vm757, %vm758
  %v760 = vsel %vm759, %v751, %v756
  %v761 = vrsqrt.pop %v630
  %v762 = vmul.f32 %v761, %v630
  %v763 = vmul.f32 %v762, %v761
  %v764 = vmul.f32 0.5, %v763
  %v765 = vsub.f32 1.5, %v764
  %v766 = vmul.f32 %v761, %v765
  %vm767 = vweird.f32 %v630
  %vm768 = vweird.f32 %v761
  %vm769 = vmor %vm767, %vm768
  %v770 = vsel %vm769, %v761, %v766
  %v771 = vrsqrt.pop %v631
  %v772 = vmul.f32 %v771, %v631
  %v773 = vmul.f32 %v772, %v771
  %v774 = vmul.f32 0.5, %v773
  %v775 = vsub.f32 1.5, %v774
  %v776 = vmul.f32 %v771, %v775
  %vm777 = vweird.f32 %v631
  %vm778 = vweird.f32 %v771
  %vm779 = vmor %vm777, %vm778
  %v780 = vsel %vm779, %v771, %v776
  %v781 = vrsqrt.pop %v632
  %v782 = vmul.f32 %v781, %v632
  %v783 = vmul.f32 %v782, %v781
  %v784 = vmul.f32 0.5, %v783
  %v785 = vsub.f32 1.5, %v784
  %v786 = vmul.f32 %v781, %v785
  %vm787 = vweird.f32 %v632
  %vm788 = vweird.f32 %v781
  %vm789 = vmor %vm787, %vm788
  %v790 = vsel %vm789, %v781, %v786
  %v791 = vrsqrt.pop %v633
  %v792 = vmul.f32 %v791, %v633
  %v793 = vmul.f32 %v792, %v791
  %v794 = vmul.f32 0.5, %v793
  %v795 = vsub.f32 1.5, %v794
  %v796 = vmul.f32 %v791, %v795
  %vm797 = vweird.f32 %v633
  %vm798 = vweird.f32 %v791
  %vm799 = vmor %vm797, %vm798
  %v800 = vsel %vm799, %v791, %v796
  %v801 = vrsqrt.pop %v634
  %v802 = vmul.f32 %v801, %v634
  %v803 = vmul.f32 %v802, %v801
  %v804 = vmul.f32 0.5, %v803
  %v805 = vsub.f32 1.5, %v804
  %v806 = vmul.f32 %v801, %v805
  %vm807 = vweird.f32 %v634
  %vm808 = vweird.f32 %v801
  %vm809 = vmor %vm807, %vm808
  %v810 = vsel %vm809, %v801, %v806
  %v811 = vrsqrt.pop %v635
  %v812 = vmul.f32 %v811, %v635
  %v813 = vmul.f32 %v812, %v811
  %v814 = vmul.f32 0.5, %v813
  %v815 = vsub.f32 1.5, %v814
  %v816 = vmul.f32 %v811, %v815
  %vm817 = vweird.f32 %v635
  %vm818 = vweird.f32 %v811
  %vm819 = vmor %vm817, %vm818
  %v820 = vsel %vm819, %v811, %v816
  %v821 = vrsqrt.pop %v636
  %v822 = vmul.f32 %v821, %v636
  %v823 = vmul.f32 %v822, %v821
  %v824 = vmul.f32 0.5, %v823
  %v825 = vsub.f32 1.5, %v824
  %v826 = vmul.f32 %v821, %v825
  %vm827 = vweird.f32 %v636
  %vm828 = vweird.f32 %v821
  %vm829 = vmor %vm827, %vm828
  %v830 = vsel %vm829, %v821, %v826
  %v831 = vrsqrt.pop %v637
  %v832 = vmul.f32 %v831, %v637
  %v833 = vmul.f32 %v832, %v831
  %v834 = vmul.f32 0.5, %v833
  %v835 = vsub.f32 1.5, %v834
  %v836 = vmul.f32 %v831, %v835
  %vm837 = vweird.f32 %v637
  %vm838 = vweird.f32 %v831
  %vm839 = vmor %vm837, %vm838
  %v840 = vsel %vm839, %v831, %v836
  %v841 = vrsqrt.pop %v638
  %v842 = vmul.f32 %v841, %v638
  %v843 = vmul.f32 %v842, %v841
  %v844 = vmul.f32 0.5, %v843
  %v845 = vsub.f32 1.5, %v844
  %v846 = vmul.f32 %v841, %v845
  %vm847 = vweird.f32 %v638
  %vm848 = vweird.f32 %v841
  %vm849 = vmor %vm847, %vm848
  %v850 = vsel %vm849, %v841, %v846
  %v851 = vrsqrt.pop %v639
  %v852 = vmul.f32 %v851, %v639
  %v853 = vmul.f32 %v852, %v851
  %v854 = vmul.f32 0.5, %v853
  %v855 = vsub.f32 1.5, %v854
  %v856 = vmul.f32 %v851, %v855
  %vm857 = vweird.f32 %v639
  %vm858 = vweird.f32 %v851
  %vm859 = vmor %vm857, %vm858
  %v860 = vsel %vm859, %v851, %v856
  %v861 = vrsqrt.pop %v640
  %v862 = vmul.f32 %v861, %v640
  %v863 = vmul.f32 %v862, %v861
  %v864 = vmul.f32 0.5, %v863
  %v865 = vsub.f32 1.5, %v864
  %v866 = vmul.f32 %v861, %v865
  %vm867 = vweird.f32 %v640
  %vm868 = vweird.f32 %v861
  %vm869 = vmor %vm867, %vm868
  %v870 = vsel %vm869, %v861, %v866
  %v871 = vrsqrt.pop %v641
  %v872 = vmul.f32 %v871, %v641
  %v873 = vmul.f32 %v872, %v871
  %v874 = vmul.f32 0.5, %v873
  %v875 = vsub.f32 1.5, %v874
  %v876 = vmul.f32 %v871, %v875
  %vm877 = vweird.f32 %v641
  %vm878 = vweird.f32 %v871
  %vm879 = vmor %vm877, %vm878
  %v880 = vsel %vm879, %v871, %v876
  %v881 = vrsqrt.pop %v642
  %v882 = vmul.f32 %v881, %v642
  %v883 = vmul.f32 %v882, %v881
  %v884 = vmul.f32 0.5, %v883
  %v885 = vsub.f32 1.5, %v884
  %v886 = vmul.f32 %v881, %v885
  %vm887 = vweird.f32 %v642
  %vm888 = vweird.f32 %v881
  %vm889 = vmor %vm887, %vm888
  %v890 = vsel %vm889, %v881, %v886
  %v891 = vrsqrt.pop %v643
  %v892 = vmul.f32 %v891, %v643
  %v893 = vmul.f32 %v892, %v891
  %v894 = vmul.f32 0.5, %v893
  %v895 = vsub.f32 1.5, %v894
  %v896 = vmul.f32 %v891, %v895
  %vm897 = vweird.f32 %v643
  %vm898 = vweird.f32 %v891
  %vm899 = vmor %vm897, %vm898
  %v900 = vsel %vm899, %v891, %v896
  %v901 = vrsqrt.pop %v644
  %v902 = vmul.f32 %v901, %v644
  %v903 = vmul.f32 %v902, %v901
  %v904 = vmul.f32 0.5, %v903
  %v905 = vsub.f32 1.5, %v904
  %v906 = vmul.f32 %v901, %v905
  %vm907 = vweird.f32 %v644
  %vm908 = vweird.f32 %v901
  %vm909 = vmor %vm907, %vm908
  %v910 = vsel %vm909, %v901, %v906
  %v911 = vrsqrt.pop %v645
  %v912 = vmul.f32 %v911, %v645
  %v913 = vmul.f32 %v912, %v911
  %v914 = vmul.f32 0.5, %v913
  %v915 = vsub.f32 1.5, %v914
  %v916 = vmul.f32 %v911, %v915
  %vm917 = vweird.f32 %v645
  %vm918 = vweird.f32 %v911
  %vm919 = vmor %vm917, %vm918
  %v920 = vsel %vm919, %v911, %v916
  %v921 = vrsqrt.pop %v646
  %v922 = vmul.f32 %v921, %v646
  %v923 = vmul.f32 %v922, %v921
  %v924 = vmul.f32 0.5, %v923
  %v925 = vsub.f32 1.5, %v924
  %v926 = vmul.f32 %v921, %v925
  %vm927 = vweird.f32 %v646
  %vm928 = vweird.f32 %v921
  %vm929 = vmor %vm927, %vm928
  %v930 = vsel %vm929, %v921, %v926
  %v931 = vrsqrt.pop %v647
  %v932 = vmul.f32 %v931, %v647
  %v933 = vmul.f32 %v932, %v931
  %v934 = vmul.f32 0.5, %v933
  %v935 = vsub.f32 1.5, %v934
  %v936 = vmul.f32 %v931, %v935
  %vm937 = vweird.f32 %v647
  %vm938 = vweird.f32 %v931
  %vm939 = vmor %vm937, %vm938
  %v940 = vsel %vm939, %v931, %v936
  %v941 = vrsqrt.pop %v648
  %v942 = vmul.f32 %v941, %v648
  %v943 = vmul.f32 %v942, %v941
  %v944 = vmul.f32 0.5, %v943
  %v945 = vsub.f32 1.5, %v944
  %v946 = vmul.f32 %v941, %v945
  %vm947 = vweird.f32 %v648
  %vm948 = vweird.f32 %v941
  %vm949 = vmor %vm947, %vm948
  %v950 = vsel %vm949, %v941, %v946
  %v951 = vrsqrt.pop %v649
  %v952 = vmul.f32 %v951, %v649
  %v953 = vmul.f32 %v952, %v951
  %v954 = vmul.f32 0.5, %v953
  %v955 = vsub.f32 1.5, %v954
  %v956 = vmul.f32 %v951, %v955
  %vm957 = vweird.f32 %v649
  %vm958 = vweird.f32 %v951
  %vm959 = vmor %vm957, %vm958
  %v960 = vsel %vm959, %v951, %v956
  %v961 = vrsqrt.pop %v650
  %v962 = vmul.f32 %v961, %v650
  %v963 = vmul.f32 %v962, %v961
  %v964 = vmul.f32 0.5, %v963
  %v965 = vsub.f32 1.5, %v964
  %v966 = vmul.f32 %v961, %v965
  %vm967 = vweird.f32 %v650
  %vm968 = vweird.f32 %v961
  %vm969 = vmor %vm967, %vm968
  %v970 = vsel %vm969, %v961, %v966
  %v971 = vmul.f32 %v427, %v660
  %v972 = vmul.f32 %v428, %v670
  %v973 = vmul.f32 %v429, %v680
  %v974 = vmul.f32 %v430, %v690
  %v975 = vmul.f32 %v431, %v700
  %v976 = vmul.f32 %v432, %v710
  %v977 = vmul.f32 %v433, %v720
  %v978 = vmul.f32 %v434, %v730
  %v979 = vmul.f32 %v435, %v740
  %v980 = vmul.f32 %v436, %v750
  %v981 = vmul.f32 %v437, %v760
  %v982 = vmul.f32 %v438, %v770
  %v983 = vmul.f32 %v439, %v780
  %v984 = vmul.f32 %v440, %v790
  %v985 = vmul.f32 %v441, %v800
  %v986 = vmul.f32 %v442, %v810
  %v987 = vmul.f32 %v443, %v820
  %v988 = vmul.f32 %v444, %v830
  %v989 = vmul.f32 %v445, %v840
  %v990 = vmul.f32 %v446, %v850
  %v991 = vmul.f32 %v447, %v860
  %v992 = vmul.f32 %v448, %v870
  %v993 = vmul.f32 %v449, %v880
  %v994 = vmul.f32 %v450, %v890
  %v995 = vmul.f32 %v451, %v900
  %v996 = vmul.f32 %v452, %v910
  %v997 = vmul.f32 %v453, %v920
  %v998 = vmul.f32 %v454, %v930
  %v999 = vmul.f32 %v455, %v940
  %v1000 = vmul.f32 %v456, %v950
  %v1001 = vmul.f32 %v457, %v960
  %v1002 = vmul.f32 %v458, %v970
  %v1003 = vld [vmem:[%s3] sm:$0x1]
  %v1005 = vperm.slane %v1003, 0
  %v1007 = vmul.f32 %v971, %v1005
  %v1008 = vmul.f32 %v972, %v1005
  %v1009 = vmul.f32 %v973, %v1005
  %v1010 = vmul.f32 %v974, %v1005
  %v1011 = vmul.f32 %v975, %v1005
  %v1012 = vmul.f32 %v976, %v1005
  %v1013 = vmul.f32 %v977, %v1005
  %v1014 = vmul.f32 %v978, %v1005
  %v1015 = vmul.f32 %v979, %v1005
  %v1016 = vmul.f32 %v980, %v1005
  %v1017 = vmul.f32 %v981, %v1005
  %v1018 = vmul.f32 %v982, %v1005
  %v1019 = vmul.f32 %v983, %v1005
  %v1020 = vmul.f32 %v984, %v1005
  %v1021 = vmul.f32 %v985, %v1005
  %v1022 = vmul.f32 %v986, %v1005
  %v1023 = vmul.f32 %v987, %v1005
  %v1024 = vmul.f32 %v988, %v1005
  %v1025 = vmul.f32 %v989, %v1005
  %v1026 = vmul.f32 %v990, %v1005
  %v1027 = vmul.f32 %v991, %v1005
  %v1028 = vmul.f32 %v992, %v1005
  %v1029 = vmul.f32 %v993, %v1005
  %v1030 = vmul.f32 %v994, %v1005
  %v1031 = vmul.f32 %v995, %v1005
  %v1032 = vmul.f32 %v996, %v1005
  %v1033 = vmul.f32 %v997, %v1005
  %v1034 = vmul.f32 %v998, %v1005
  %v1035 = vmul.f32 %v999, %v1005
  %v1036 = vmul.f32 %v1000, %v1005
  %v1037 = vmul.f32 %v1001, %v1005
  %v1038 = vmul.f32 %v1002, %v1005
  %v1039 = vld [vmem:[%s4] sm:$0x1]
  %v1041 = vperm.slane %v1039, 0
  %v1043 = vadd.f32 %v1007, %v1041
  %v1044 = vadd.f32 %v1008, %v1041
  %v1045 = vadd.f32 %v1009, %v1041
  %v1046 = vadd.f32 %v1010, %v1041
  %v1047 = vadd.f32 %v1011, %v1041
  %v1048 = vadd.f32 %v1012, %v1041
  %v1049 = vadd.f32 %v1013, %v1041
  %v1050 = vadd.f32 %v1014, %v1041
  %v1051 = vadd.f32 %v1015, %v1041
  %v1052 = vadd.f32 %v1016, %v1041
  %v1053 = vadd.f32 %v1017, %v1041
  %v1054 = vadd.f32 %v1018, %v1041
  %v1055 = vadd.f32 %v1019, %v1041
  %v1056 = vadd.f32 %v1020, %v1041
  %v1057 = vadd.f32 %v1021, %v1041
  %v1058 = vadd.f32 %v1022, %v1041
  %v1059 = vadd.f32 %v1023, %v1041
  %v1060 = vadd.f32 %v1024, %v1041
  %v1061 = vadd.f32 %v1025, %v1041
  %v1062 = vadd.f32 %v1026, %v1041
  %v1063 = vadd.f32 %v1027, %v1041
  %v1064 = vadd.f32 %v1028, %v1041
  %v1065 = vadd.f32 %v1029, %v1041
  %v1066 = vadd.f32 %v1030, %v1041
  %v1067 = vadd.f32 %v1031, %v1041
  %v1068 = vadd.f32 %v1032, %v1041
  %v1069 = vadd.f32 %v1033, %v1041
  %v1070 = vadd.f32 %v1034, %v1041
  %v1071 = vadd.f32 %v1035, %v1041
  %v1072 = vadd.f32 %v1036, %v1041
  %v1073 = vadd.f32 %v1037, %v1041
  %v1074 = vadd.f32 %v1038, %v1041
  %v1075 = vpack.c.bf16 %v1043, %v1043
  %v1076 = vpack.c.bf16 %v1044, %v1044
  %v1077 = vpack.c.bf16 %v1045, %v1045
  %v1078 = vpack.c.bf16 %v1046, %v1046
  %v1079 = vpack.c.bf16 %v1047, %v1047
  %v1080 = vpack.c.bf16 %v1048, %v1048
  %v1081 = vpack.c.bf16 %v1049, %v1049
  %v1082 = vpack.c.bf16 %v1050, %v1050
  %v1083 = vpack.c.bf16 %v1051, %v1051
  %v1084 = vpack.c.bf16 %v1052, %v1052
  %v1085 = vpack.c.bf16 %v1053, %v1053
  %v1086 = vpack.c.bf16 %v1054, %v1054
  %v1087 = vpack.c.bf16 %v1055, %v1055
  %v1088 = vpack.c.bf16 %v1056, %v1056
  %v1089 = vpack.c.bf16 %v1057, %v1057
  %v1090 = vpack.c.bf16 %v1058, %v1058
  %v1091 = vpack.c.bf16 %v1059, %v1059
  %v1092 = vpack.c.bf16 %v1060, %v1060
  %v1093 = vpack.c.bf16 %v1061, %v1061
  %v1094 = vpack.c.bf16 %v1062, %v1062
  %v1095 = vpack.c.bf16 %v1063, %v1063
  %v1096 = vpack.c.bf16 %v1064, %v1064
  %v1097 = vpack.c.bf16 %v1065, %v1065
  %v1098 = vpack.c.bf16 %v1066, %v1066
  %v1099 = vpack.c.bf16 %v1067, %v1067
  %v1100 = vpack.c.bf16 %v1068, %v1068
  %v1101 = vpack.c.bf16 %v1069, %v1069
  %v1102 = vpack.c.bf16 %v1070, %v1070
  %v1103 = vpack.c.bf16 %v1071, %v1071
  %v1104 = vpack.c.bf16 %v1072, %v1072
  %v1105 = vpack.c.bf16 %v1073, %v1073
  %v1106 = vpack.c.bf16 %v1074, %v1074
  %vm1107 = vcmask 125952
  %1108 = vst.msk [vmem:[%s5] sm:$0xf] %vm1107, %v1075
  %1109 = vst.msk [vmem:[%s5 + $0x4] sm:$0xf] %vm1107, %v1076
  %1110 = vst.msk [vmem:[%s5 + $0x8] sm:$0xf] %vm1107, %v1077
  %1111 = vst.msk [vmem:[%s5 + $0xc] sm:$0xf] %vm1107, %v1078
  %1112 = vst.msk [vmem:[%s5 + $0x10] sm:$0xf] %vm1107, %v1079
  %1113 = vst.msk [vmem:[%s5 + $0x14] sm:$0xf] %vm1107, %v1080
  %1114 = vst.msk [vmem:[%s5 + $0x18] sm:$0xf] %vm1107, %v1081
  %1115 = vst.msk [vmem:[%s5 + $0x1c] sm:$0xf] %vm1107, %v1082
  %1116 = vst.msk [vmem:[%s5 + $0x20] sm:$0xf] %vm1107, %v1083
  %1117 = vst.msk [vmem:[%s5 + $0x24] sm:$0xf] %vm1107, %v1084
  %1118 = vst.msk [vmem:[%s5 + $0x28] sm:$0xf] %vm1107, %v1085
  %1119 = vst.msk [vmem:[%s5 + $0x2c] sm:$0xf] %vm1107, %v1086
  %1120 = vst.msk [vmem:[%s5 + $0x30] sm:$0xf] %vm1107, %v1087
  %1121 = vst.msk [vmem:[%s5 + $0x34] sm:$0xf] %vm1107, %v1088
  %1122 = vst.msk [vmem:[%s5 + $0x38] sm:$0xf] %vm1107, %v1089
  %1123 = vst.msk [vmem:[%s5 + $0x3c] sm:$0xf] %vm1107, %v1090
  %1124 = vst.msk [vmem:[%s5 + $0x40] sm:$0xf] %vm1107, %v1091
  %1125 = vst.msk [vmem:[%s5 + $0x44] sm:$0xf] %vm1107, %v1092
  %1126 = vst.msk [vmem:[%s5 + $0x48] sm:$0xf] %vm1107, %v1093
  %1127 = vst.msk [vmem:[%s5 + $0x4c] sm:$0xf] %vm1107, %v1094
  %1128 = vst.msk [vmem:[%s5 + $0x50] sm:$0xf] %vm1107, %v1095
  %1129 = vst.msk [vmem:[%s5 + $0x54] sm:$0xf] %vm1107, %v1096
  %1130 = vst.msk [vmem:[%s5 + $0x58] sm:$0xf] %vm1107, %v1097
  %1131 = vst.msk [vmem:[%s5 + $0x5c] sm:$0xf] %vm1107, %v1098
  %1132 = vst.msk [vmem:[%s5 + $0x60] sm:$0xf] %vm1107, %v1099
  %1133 = vst.msk [vmem:[%s5 + $0x64] sm:$0xf] %vm1107, %v1100
  %1134 = vst.msk [vmem:[%s5 + $0x68] sm:$0xf] %vm1107, %v1101
  %1135 = vst.msk [vmem:[%s5 + $0x6c] sm:$0xf] %vm1107, %v1102
  %1136 = vst.msk [vmem:[%s5 + $0x70] sm:$0xf] %vm1107, %v1103
  %1137 = vst.msk [vmem:[%s5 + $0x74] sm:$0xf] %vm1107, %v1104
  %1138 = vst.msk [vmem:[%s5 + $0x78] sm:$0xf] %vm1107, %v1105
  %1139 = vst.msk [vmem:[%s5 + $0x7c] sm:$0xf] %vm1107, %v1106
  // Predicated region
  $region22: #{stmamba_bcd_forward.33} parent=0 // pred_check
    _
  $region23: #{stmamba_bcd_forward.33} parent=0 // pred_check_branch
    %1141 = sbr.rel (0) target = $region25
  $region24: #{stmamba_bcd_forward.33} parent=0 // pred_region
    _
  $region25: #{stmamba_bcd_forward.33} parent=0 // pred_fallthru
    _
  // Predicated region
  $region26: #{stmamba_bcd_forward.33} parent=0 // pred_check
    _
  $region27: #{stmamba_bcd_forward.33} parent=0 // pred_check_branch
    %1143 = sbr.rel (0) target = $region29
  $region28: #{stmamba_bcd_forward.33} parent=0 // pred_region
    _
  $region29: #{stmamba_bcd_forward.33} parent=0 // pred_fallthru
    _

// kernel: stmamba_bcd_forward.44
$region0: #{stmamba_bcd_forward.44}
  #allocation0 [shape = 'u32[]', space=smem, size = 0x4, offset = 0x4, fixed_abs, tag = 'smem constant byte address 0x4 - core index']
  #allocation1 [shape = 'u32[72,128]{1,0:T(1,128)}', space=vmem, size = 0x9000, scoped, tag = 'internal scratch']
  %s0 = inlined_call_operand.vmem [shape: bf16[4,128], index: 0, kind: input, shape index: {}]
  %s1 = inlined_call_operand.vmem [shape: bf16[4,128], index: 1, kind: input, shape index: {}]
  %s2 = inlined_call_operand.vmem [shape: bf16[128,128], index: 2, kind: input, shape index: {}]
  %s3 = inlined_call_operand.vmem [shape: bf16[128,128], index: 3, kind: input, shape index: {}]
  %s4 = inlined_call_operand.vmem [shape: f32[1,128], index: 4, kind: input, shape index: {}]
  %s5 = inlined_call_operand.vmem [shape: bf16[4,128], index: 5, kind: output, shape index: {}]
  %s6 = sld [smem:[#allocation0]]
  $region30: #{stmamba_bcd_forward.44} parent=0
    _
  %s8 = ssub.s32 1, %s6
  %s9 = scalar_select 0, %s8, %s6
  // Predicated region
  $region2: #{stmamba_bcd_forward.44} parent=0 // pred_check
    _
  $region3: #{stmamba_bcd_forward.44} parent=0 // pred_check_branch
    %11 = sbr.rel (0) target = $region5
  $region4: #{stmamba_bcd_forward.44} parent=0 // pred_region
    _
  $region5: #{stmamba_bcd_forward.44} parent=0 // pred_fallthru
    _
  // Predicated region
  $region6: #{stmamba_bcd_forward.44} parent=0 // pred_check
    _
  $region7: #{stmamba_bcd_forward.44} parent=0 // pred_check_branch
    %13 = sbr.rel (0) target = $region9
  $region8: #{stmamba_bcd_forward.44} parent=0 // pred_region
    _
  $region9: #{stmamba_bcd_forward.44} parent=0 // pred_fallthru
    _
  // Predicated region
  $region10: #{stmamba_bcd_forward.44} parent=0 // pred_check
    _
  $region11: #{stmamba_bcd_forward.44} parent=0 // pred_check_branch
    %15 = sbr.rel (0) target = $region13
  $region12: #{stmamba_bcd_forward.44} parent=0 // pred_region
    _
  $region13: #{stmamba_bcd_forward.44} parent=0 // pred_fallthru
    _
  // Predicated region
  $region14: #{stmamba_bcd_forward.44} parent=0 // pred_check
    _
  $region15: #{stmamba_bcd_forward.44} parent=0 // pred_check_branch
    %17 = sbr.rel (0) target = $region17
  $region16: #{stmamba_bcd_forward.44} parent=0 // pred_region
    _
  $region17: #{stmamba_bcd_forward.44} parent=0 // pred_fallthru
    _
  // Predicated region
  $region18: #{stmamba_bcd_forward.44} parent=0 // pred_check
    _
  $region19: #{stmamba_bcd_forward.44} parent=0 // pred_check_branch
    %19 = sbr.rel (0) target = $region21
  $region20: #{stmamba_bcd_forward.44} parent=0 // pred_region
    _
  $region21: #{stmamba_bcd_forward.44} parent=0 // pred_fallthru
    _
  %v20 = vld [vmem:[%s0] sm:$0x3]
  %v21 = vld [vmem:[%s2] sm:$0xf]
  %v22 = vld [vmem:[%s2 + $0x4] sm:$0xf]
  %v23 = vld [vmem:[%s2 + $0x8] sm:$0xf]
  %v24 = vld [vmem:[%s2 + $0xc] sm:$0xf]
  %v25 = vld [vmem:[%s2 + $0x10] sm:$0xf]
  %v26 = vld [vmem:[%s2 + $0x14] sm:$0xf]
  %v27 = vld [vmem:[%s2 + $0x18] sm:$0xf]
  %v28 = vld [vmem:[%s2 + $0x1c] sm:$0xf]
  %v29 = vld [vmem:[%s2 + $0x20] sm:$0xf]
  %v30 = vld [vmem:[%s2 + $0x24] sm:$0xf]
  %v31 = vld [vmem:[%s2 + $0x28] sm:$0xf]
  %v32 = vld [vmem:[%s2 + $0x2c] sm:$0xf]
  %v33 = vld [vmem:[%s2 + $0x30] sm:$0xf]
  %v34 = vld [vmem:[%s2 + $0x34] sm:$0xf]
  %v35 = vld [vmem:[%s2 + $0x38] sm:$0xf]
  %v36 = vld [vmem:[%s2 + $0x3c] sm:$0xf]
  %v37 = vld [vmem:[%s1] sm:$0x3]
  %v38 = vld [vmem:[%s3] sm:$0xf]
  %v39 = vld [vmem:[%s3 + $0x4] sm:$0xf]
  %v40 = vld [vmem:[%s3 + $0x8] sm:$0xf]
  %v41 = vld [vmem:[%s3 + $0xc] sm:$0xf]
  %v42 = vld [vmem:[%s3 + $0x10] sm:$0xf]
  %v43 = vld [vmem:[%s3 + $0x14] sm:$0xf]
  %v44 = vld [vmem:[%s3 + $0x18] sm:$0xf]
  %v45 = vld [vmem:[%s3 + $0x1c] sm:$0xf]
  %v46 = vld [vmem:[%s3 + $0x20] sm:$0xf]
  %v47 = vld [vmem:[%s3 + $0x24] sm:$0xf]
  %v48 = vld [vmem:[%s3 + $0x28] sm:$0xf]
  %v49 = vld [vmem:[%s3 + $0x2c] sm:$0xf]
  %v50 = vld [vmem:[%s3 + $0x30] sm:$0xf]
  %v51 = vld [vmem:[%s3 + $0x34] sm:$0xf]
  %v52 = vld [vmem:[%s3 + $0x38] sm:$0xf]
  %v53 = vld [vmem:[%s3 + $0x3c] sm:$0xf]
  %v70 = vunpack.c.l.b16 %v38
  %v71 = vunpack.c.l.b16 %v39
  %v72 = vunpack.c.l.b16 %v40
  %v73 = vunpack.c.l.b16 %v41
  %v74 = vunpack.c.l.b16 %v42
  %v75 = vunpack.c.l.b16 %v43
  %v76 = vunpack.c.l.b16 %v44
  %v77 = vunpack.c.l.b16 %v45
  %v78 = vunpack.c.l.b16 %v46
  %v79 = vunpack.c.l.b16 %v47
  %v80 = vunpack.c.l.b16 %v48
  %v81 = vunpack.c.l.b16 %v49
  %v82 = vunpack.c.l.b16 %v50
  %v83 = vunpack.c.l.b16 %v51
  %v84 = vunpack.c.l.b16 %v52
  %v85 = vunpack.c.l.b16 %v53
  %v86 = vpack.c.b16 %v71, %v70
  %v87 = vpack.c.b16 %v73, %v72
  %v88 = vpack.c.b16 %v75, %v74
  %v89 = vpack.c.b16 %v77, %v76
  %v90 = vpack.c.b16 %v79, %v78
  %v91 = vpack.c.b16 %v81, %v80
  %v92 = vpack.c.b16 %v83, %v82
  %v93 = vpack.c.b16 %v85, %v84
  %102 = vmatpush.bf16.msra.mxu0 %v93
  %103 = vmatpush.bf16.msra.mxu0 %v92
  %104 = vmatpush.bf16.msra.mxu0 %v91
  %105 = vmatpush.bf16.msra.mxu0 %v90
  %106 = vmatpush.bf16.msra.mxu0 %v89
  %107 = vmatpush.bf16.msra.mxu0 %v88
  %108 = vmatpush.bf16.msra.mxu0 %v87
  %109 = vmatpush.bf16.msra.mxu0 %v86
  %110 = vmatmul.bf16.gmra.mxu0 %v37
  %v111 = vpop.f32.mrf.mxu0
  %v112 = vadd.f32 0.0, %v111
  %v113 = vpop.f32.mrf.mxu0
  %114 = vdwg.mxu0
  %v131 = vunpack.c.l.b16 %v21
  %v132 = vunpack.c.l.b16 %v22
  %v133 = vunpack.c.l.b16 %v23
  %v134 = vunpack.c.l.b16 %v24
  %v135 = vunpack.c.l.b16 %v25
  %v136 = vunpack.c.l.b16 %v26
  %v137 = vunpack.c.l.b16 %v27
  %v138 = vunpack.c.l.b16 %v28
  %v139 = vunpack.c.l.b16 %v29
  %v140 = vunpack.c.l.b16 %v30
  %v141 = vunpack.c.l.b16 %v31
  %v142 = vunpack.c.l.b16 %v32
  %v143 = vunpack.c.l.b16 %v33
  %v144 = vunpack.c.l.b16 %v34
  %v145 = vunpack.c.l.b16 %v35
  %v146 = vunpack.c.l.b16 %v36
  %v147 = vpack.c.b16 %v132, %v131
  %v148 = vpack.c.b16 %v134, %v133
  %v149 = vpack.c.b16 %v136, %v135
  %v150 = vpack.c.b16 %v138, %v137
  %v151 = vpack.c.b16 %v140, %v139
  %v152 = vpack.c.b16 %v142, %v141
  %v153 = vpack.c.b16 %v144, %v143
  %v154 = vpack.c.b16 %v146, %v145
  %163 = vmatpush.bf16.msra.mxu0 %v154
  %164 = vmatpush.bf16.msra.mxu0 %v153
  %165 = vmatpush.bf16.msra.mxu0 %v152
  %166 = vmatpush.bf16.msra.mxu0 %v151
  %167 = vmatpush.bf16.msra.mxu0 %v150
  %168 = vmatpush.bf16.msra.mxu0 %v149
  %169 = vmatpush.bf16.msra.mxu0 %v148
  %170 = vmatpush.bf16.msra.mxu0 %v147
  %171 = vmatmul.bf16.gmra.mxu0 %v20
  %v172 = vpop.f32.mrf.mxu0
  %v173 = vadd.f32 %v112, %v172
  %v174 = vpop.f32.mrf.mxu0
  %175 = vdwg.mxu0
  %v176 = vld [vmem:[%s4] sm:$0x1]
  %v178 = vperm.slane %v176, 0
  %v180 = vadd.f32 %v173, %v178
  %v181 = vmax.f32 %v180, 0.0
  %v182 = vpack.c.bf16 %v181, %v181
  %183 = vst [vmem:[%s5] sm:$0x3] %v182
  // Predicated region
  $region22: #{stmamba_bcd_forward.44} parent=0 // pred_check
    _
  $region23: #{stmamba_bcd_forward.44} parent=0 // pred_check_branch
    %185 = sbr.rel (0) target = $region25
  $region24: #{stmamba_bcd_forward.44} parent=0 // pred_region
    _
  $region25: #{stmamba_bcd_forward.44} parent=0 // pred_fallthru
    _
  // Predicated region
  $region26: #{stmamba_bcd_forward.44} parent=0 // pred_check
    _
  $region27: #{stmamba_bcd_forward.44} parent=0 // pred_check_branch
    %187 = sbr.rel (0) target = $region29
  $region28: #{stmamba_bcd_forward.44} parent=0 // pred_region
    _
  $region29: #{stmamba_bcd_forward.44} parent=0 // pred_fallthru
    _

// kernel: stmamba_bcd_forward.43
$region0: #{stmamba_bcd_forward.43}
  #allocation0 [shape = 'u32[]', space=smem, size = 0x4, offset = 0x4, fixed_abs, tag = 'smem constant byte address 0x4 - core index']
  #allocation1 [shape = 'u32[72,128]{1,0:T(1,128)}', space=vmem, size = 0x9000, scoped, tag = 'internal scratch']
  %s0 = inlined_call_operand.vmem [shape: bf16[16,64], index: 0, kind: input, shape index: {}]
  %s1 = inlined_call_operand.vmem [shape: bf16[16,64], index: 1, kind: input, shape index: {}]
  %s2 = inlined_call_operand.vmem [shape: bf16[64,64], index: 2, kind: input, shape index: {}]
  %s3 = inlined_call_operand.vmem [shape: bf16[64,64], index: 3, kind: input, shape index: {}]
  %s4 = inlined_call_operand.vmem [shape: f32[1,64], index: 4, kind: input, shape index: {}]
  %s5 = inlined_call_operand.vmem [shape: bf16[16,64], index: 5, kind: output, shape index: {}]
  %s6 = sld [smem:[#allocation0]]
  $region30: #{stmamba_bcd_forward.43} parent=0
    _
  %s8 = ssub.s32 1, %s6
  %s9 = scalar_select 0, %s8, %s6
  // Predicated region
  $region2: #{stmamba_bcd_forward.43} parent=0 // pred_check
    _
  $region3: #{stmamba_bcd_forward.43} parent=0 // pred_check_branch
    %11 = sbr.rel (0) target = $region5
  $region4: #{stmamba_bcd_forward.43} parent=0 // pred_region
    _
  $region5: #{stmamba_bcd_forward.43} parent=0 // pred_fallthru
    _
  // Predicated region
  $region6: #{stmamba_bcd_forward.43} parent=0 // pred_check
    _
  $region7: #{stmamba_bcd_forward.43} parent=0 // pred_check_branch
    %13 = sbr.rel (0) target = $region9
  $region8: #{stmamba_bcd_forward.43} parent=0 // pred_region
    _
  $region9: #{stmamba_bcd_forward.43} parent=0 // pred_fallthru
    _
  // Predicated region
  $region10: #{stmamba_bcd_forward.43} parent=0 // pred_check
    _
  $region11: #{stmamba_bcd_forward.43} parent=0 // pred_check_branch
    %15 = sbr.rel (0) target = $region13
  $region12: #{stmamba_bcd_forward.43} parent=0 // pred_region
    _
  $region13: #{stmamba_bcd_forward.43} parent=0 // pred_fallthru
    _
  // Predicated region
  $region14: #{stmamba_bcd_forward.43} parent=0 // pred_check
    _
  $region15: #{stmamba_bcd_forward.43} parent=0 // pred_check_branch
    %17 = sbr.rel (0) target = $region17
  $region16: #{stmamba_bcd_forward.43} parent=0 // pred_region
    _
  $region17: #{stmamba_bcd_forward.43} parent=0 // pred_fallthru
    _
  // Predicated region
  $region18: #{stmamba_bcd_forward.43} parent=0 // pred_check
    _
  $region19: #{stmamba_bcd_forward.43} parent=0 // pred_check_branch
    %19 = sbr.rel (0) target = $region21
  $region20: #{stmamba_bcd_forward.43} parent=0 // pred_region
    _
  $region21: #{stmamba_bcd_forward.43} parent=0 // pred_fallthru
    _
  %v21 = vld [vmem:[%s0] sm:$0xf]
  %v22 = vld [vmem:[%s0 + $0x4] sm:$0xf]
  %v23 = vld [vmem:[%s2] sm:$0xf]
  %v24 = vld [vmem:[%s2 + $0x4] sm:$0xf]
  %v25 = vld [vmem:[%s2 + $0x8] sm:$0xf]
  %v26 = vld [vmem:[%s2 + $0xc] sm:$0xf]
  %v27 = vld [vmem:[%s2 + $0x10] sm:$0xf]
  %v28 = vld [vmem:[%s2 + $0x14] sm:$0xf]
  %v29 = vld [vmem:[%s2 + $0x18] sm:$0xf]
  %v30 = vld [vmem:[%s2 + $0x1c] sm:$0xf]
  %v31 = vld [vmem:[%s1] sm:$0xf]
  %v32 = vld [vmem:[%s1 + $0x4] sm:$0xf]
  %v33 = vld [vmem:[%s3] sm:$0xf]
  %v34 = vld [vmem:[%s3 + $0x4] sm:$0xf]
  %v35 = vld [vmem:[%s3 + $0x8] sm:$0xf]
  %v36 = vld [vmem:[%s3 + $0xc] sm:$0xf]
  %v37 = vld [vmem:[%s3 + $0x10] sm:$0xf]
  %v38 = vld [vmem:[%s3 + $0x14] sm:$0xf]
  %v39 = vld [vmem:[%s3 + $0x18] sm:$0xf]
  %v40 = vld [vmem:[%s3 + $0x1c] sm:$0xf]
  %v43 = vunpack.c.l.b16 %v31
  %v44 = vunpack.c.l.b16 %v32
  %v45 = vpack.c.b16 %v44, %v43
  %v54 = vunpack.c.l.b16 %v33
  %v55 = vunpack.c.l.b16 %v34
  %v56 = vunpack.c.l.b16 %v35
  %v57 = vunpack.c.l.b16 %v36
  %v58 = vunpack.c.l.b16 %v37
  %v59 = vunpack.c.l.b16 %v38
  %v60 = vunpack.c.l.b16 %v39
  %v61 = vunpack.c.l.b16 %v40
  %v62 = vpack.c.b16 %v55, %v54
  %v63 = vpack.c.b16 %v57, %v56
  %v64 = vpack.c.b16 %v59, %v58
  %v65 = vpack.c.b16 %v61, %v60
  %vm70 = vcmask 523264
  %v72 = vsel %vm70, %v45, 0
  %74 = vmatpush.bf16.msra.mxu0 0
  %75 = vmatpush.bf16.msra.mxu0 0
  %76 = vmatpush.bf16.msra.mxu0 0
  %77 = vmatpush.bf16.msra.mxu0 0
  %78 = vmatpush.bf16.msra.mxu0 %v65
  %79 = vmatpush.bf16.msra.mxu0 %v64
  %80 = vmatpush.bf16.msra.mxu0 %v63
  %81 = vmatpush.bf16.msra.mxu0 %v62
  %82 = vmatmul.bf16.gmra.mxu0 %v72
  %v83 = vpop.f32.mrf.mxu0
  %v84 = vadd.f32 0.0, %v83
  %v85 = vpop.f32.mrf.mxu0
  %v86 = vadd.f32 0.0, %v85
  %87 = vdwg.mxu0
  %v90 = vunpack.c.l.b16 %v21
  %v91 = vunpack.c.l.b16 %v22
  %v92 = vpack.c.b16 %v91, %v90
  %v101 = vunpack.c.l.b16 %v23
  %v102 = vunpack.c.l.b16 %v24
  %v103 = vunpack.c.l.b16 %v25
  %v104 = vunpack.c.l.b16 %v26
  %v105 = vunpack.c.l.b16 %v27
  %v106 = vunpack.c.l.b16 %v28
  %v107 = vunpack.c.l.b16 %v29
  %v108 = vunpack.c.l.b16 %v30
  %v109 = vpack.c.b16 %v102, %v101
  %v110 = vpack.c.b16 %v104, %v103
  %v111 = vpack.c.b16 %v106, %v105
  %v112 = vpack.c.b16 %v108, %v107
  %v118 = vsel %vm70, %v92, 0
  %120 = vmatpush.bf16.msra.mxu0 0
  %121 = vmatpush.bf16.msra.mxu0 0
  %122 = vmatpush.bf16.msra.mxu0 0
  %123 = vmatpush.bf16.msra.mxu0 0
  %124 = vmatpush.bf16.msra.mxu0 %v112
  %125 = vmatpush.bf16.msra.mxu0 %v111
  %126 = vmatpush.bf16.msra.mxu0 %v110
  %127 = vmatpush.bf16.msra.mxu0 %v109
  %128 = vmatmul.bf16.gmra.mxu0 %v118
  %v129 = vpop.f32.mrf.mxu0
  %v130 = vadd.f32 %v84, %v129
  %v131 = vpop.f32.mrf.mxu0
  %v132 = vadd.f32 %v86, %v131
  %133 = vdwg.mxu0
  %v134 = vld [vmem:[%s4] sm:$0x1]
  %v136 = vperm.slane %v134, 0
  %v138 = vadd.f32 %v130, %v136
  %v139 = vadd.f32 %v132, %v136
  %v140 = vmax.f32 %v138, 0.0
  %v141 = vmax.f32 %v139, 0.0
  %v142 = vpack.c.bf16 %v140, %v140
  %v143 = vpack.c.bf16 %v141, %v141
  %vm144 = vcmask 519168
  %145 = vst.msk [vmem:[%s5] sm:$0xf] %vm144, %v142
  %146 = vst.msk [vmem:[%s5 + $0x4] sm:$0xf] %vm144, %v143
  // Predicated region
  $region22: #{stmamba_bcd_forward.43} parent=0 // pred_check
    _
  $region23: #{stmamba_bcd_forward.43} parent=0 // pred_check_branch
    %148 = sbr.rel (0) target = $region25
  $region24: #{stmamba_bcd_forward.43} parent=0 // pred_region
    _
  $region25: #{stmamba_bcd_forward.43} parent=0 // pred_fallthru
    _
  // Predicated region
  $region26: #{stmamba_bcd_forward.43} parent=0 // pred_check
    _
  $region27: #{stmamba_bcd_forward.43} parent=0 // pred_check_branch
    %150 = sbr.rel (0) target = $region29
  $region28: #{stmamba_bcd_forward.43} parent=0 // pred_region
    _
  $region29: #{stmamba_bcd_forward.43} parent=0 // pred_fallthru
    _

// kernel: stmamba_bcd_forward.48
$region0: #{stmamba_bcd_forward.48}
  #allocation0 [shape = 'u32[]', space=smem, size = 0x4, offset = 0x4, fixed_abs, tag = 'smem constant byte address 0x4 - core index']
  #allocation1 [shape = 'u32[72,128]{1,0:T(1,128)}', space=vmem, size = 0x9000, scoped, tag = 'internal scratch']
  %s0 = inlined_call_operand.vmem [shape: bf16[2,128], index: 0, kind: input, shape index: {}]
  %s1 = inlined_call_operand.vmem [shape: bf16[2,128], index: 1, kind: input, shape index: {}]
  %s2 = inlined_call_operand.vmem [shape: bf16[128,64], index: 2, kind: input, shape index: {}]
  %s3 = inlined_call_operand.vmem [shape: bf16[128,64], index: 3, kind: input, shape index: {}]
  %s4 = inlined_call_operand.vmem [shape: f32[1,64], index: 4, kind: input, shape index: {}]
  %s5 = inlined_call_operand.vmem [shape: bf16[2,64], index: 5, kind: output, shape index: {}]
  %s6 = sld [smem:[#allocation0]]
  $region30: #{stmamba_bcd_forward.48} parent=0
    _
  %s8 = ssub.s32 1, %s6
  %s9 = scalar_select 0, %s8, %s6
  // Predicated region
  $region2: #{stmamba_bcd_forward.48} parent=0 // pred_check
    _
  $region3: #{stmamba_bcd_forward.48} parent=0 // pred_check_branch
    %11 = sbr.rel (0) target = $region5
  $region4: #{stmamba_bcd_forward.48} parent=0 // pred_region
    _
  $region5: #{stmamba_bcd_forward.48} parent=0 // pred_fallthru
    _
  // Predicated region
  $region6: #{stmamba_bcd_forward.48} parent=0 // pred_check
    _
  $region7: #{stmamba_bcd_forward.48} parent=0 // pred_check_branch
    %13 = sbr.rel (0) target = $region9
  $region8: #{stmamba_bcd_forward.48} parent=0 // pred_region
    _
  $region9: #{stmamba_bcd_forward.48} parent=0 // pred_fallthru
    _
  // Predicated region
  $region10: #{stmamba_bcd_forward.48} parent=0 // pred_check
    _
  $region11: #{stmamba_bcd_forward.48} parent=0 // pred_check_branch
    %15 = sbr.rel (0) target = $region13
  $region12: #{stmamba_bcd_forward.48} parent=0 // pred_region
    _
  $region13: #{stmamba_bcd_forward.48} parent=0 // pred_fallthru
    _
  // Predicated region
  $region14: #{stmamba_bcd_forward.48} parent=0 // pred_check
    _
  $region15: #{stmamba_bcd_forward.48} parent=0 // pred_check_branch
    %17 = sbr.rel (0) target = $region17
  $region16: #{stmamba_bcd_forward.48} parent=0 // pred_region
    _
  $region17: #{stmamba_bcd_forward.48} parent=0 // pred_fallthru
    _
  // Predicated region
  $region18: #{stmamba_bcd_forward.48} parent=0 // pred_check
    _
  $region19: #{stmamba_bcd_forward.48} parent=0 // pred_check_branch
    %19 = sbr.rel (0) target = $region21
  $region20: #{stmamba_bcd_forward.48} parent=0 // pred_region
    _
  $region21: #{stmamba_bcd_forward.48} parent=0 // pred_fallthru
    _
  %v20 = vld [vmem:[%s0] sm:$0x1]
  %v21 = vld [vmem:[%s2] sm:$0xf]
  %v22 = vld [vmem:[%s2 + $0x4] sm:$0xf]
  %v23 = vld [vmem:[%s2 + $0x8] sm:$0xf]
  %v24 = vld [vmem:[%s2 + $0xc] sm:$0xf]
  %v25 = vld [vmem:[%s2 + $0x10] sm:$0xf]
  %v26 = vld [vmem:[%s2 + $0x14] sm:$0xf]
  %v27 = vld [vmem:[%s2 + $0x18] sm:$0xf]
  %v28 = vld [vmem:[%s2 + $0x1c] sm:$0xf]
  %v29 = vld [vmem:[%s2 + $0x20] sm:$0xf]
  %v30 = vld [vmem:[%s2 + $0x24] sm:$0xf]
  %v31 = vld [vmem:[%s2 + $0x28] sm:$0xf]
  %v32 = vld [vmem:[%s2 + $0x2c] sm:$0xf]
  %v33 = vld [vmem:[%s2 + $0x30] sm:$0xf]
  %v34 = vld [vmem:[%s2 + $0x34] sm:$0xf]
  %v35 = vld [vmem:[%s2 + $0x38] sm:$0xf]
  %v36 = vld [vmem:[%s2 + $0x3c] sm:$0xf]
  %v37 = vld [vmem:[%s1] sm:$0x1]
  %v38 = vld [vmem:[%s3] sm:$0xf]
  %v39 = vld [vmem:[%s3 + $0x4] sm:$0xf]
  %v40 = vld [vmem:[%s3 + $0x8] sm:$0xf]
  %v41 = vld [vmem:[%s3 + $0xc] sm:$0xf]
  %v42 = vld [vmem:[%s3 + $0x10] sm:$0xf]
  %v43 = vld [vmem:[%s3 + $0x14] sm:$0xf]
  %v44 = vld [vmem:[%s3 + $0x18] sm:$0xf]
  %v45 = vld [vmem:[%s3 + $0x1c] sm:$0xf]
  %v46 = vld [vmem:[%s3 + $0x20] sm:$0xf]
  %v47 = vld [vmem:[%s3 + $0x24] sm:$0xf]
  %v48 = vld [vmem:[%s3 + $0x28] sm:$0xf]
  %v49 = vld [vmem:[%s3 + $0x2c] sm:$0xf]
  %v50 = vld [vmem:[%s3 + $0x30] sm:$0xf]
  %v51 = vld [vmem:[%s3 + $0x34] sm:$0xf]
  %v52 = vld [vmem:[%s3 + $0x38] sm:$0xf]
  %v53 = vld [vmem:[%s3 + $0x3c] sm:$0xf]
  %v70 = vunpack.c.l.b16 %v38
  %v71 = vunpack.c.l.b16 %v39
  %v72 = vunpack.c.l.b16 %v40
  %v73 = vunpack.c.l.b16 %v41
  %v74 = vunpack.c.l.b16 %v42
  %v75 = vunpack.c.l.b16 %v43
  %v76 = vunpack.c.l.b16 %v44
  %v77 = vunpack.c.l.b16 %v45
  %v78 = vunpack.c.l.b16 %v46
  %v79 = vunpack.c.l.b16 %v47
  %v80 = vunpack.c.l.b16 %v48
  %v81 = vunpack.c.l.b16 %v49
  %v82 = vunpack.c.l.b16 %v50
  %v83 = vunpack.c.l.b16 %v51
  %v84 = vunpack.c.l.b16 %v52
  %v85 = vunpack.c.l.b16 %v53
  %v86 = vpack.c.b16 %v71, %v70
  %v87 = vpack.c.b16 %v73, %v72
  %v88 = vpack.c.b16 %v75, %v74
  %v89 = vpack.c.b16 %v77, %v76
  %v90 = vpack.c.b16 %v79, %v78
  %v91 = vpack.c.b16 %v81, %v80
  %v92 = vpack.c.b16 %v83, %v82
  %v93 = vpack.c.b16 %v85, %v84
  %102 = vmatpush.bf16.msra.mxu0 %v93
  %103 = vmatpush.bf16.msra.mxu0 %v92
  %104 = vmatpush.bf16.msra.mxu0 %v91
  %105 = vmatpush.bf16.msra.mxu0 %v90
  %106 = vmatpush.bf16.msra.mxu0 %v89
  %107 = vmatpush.bf16.msra.mxu0 %v88
  %108 = vmatpush.bf16.msra.mxu0 %v87
  %109 = vmatpush.bf16.msra.mxu0 %v86
  %110 = vmatmul.bf16.gmra.mxu0 %v37
  %v111 = vpop.f32.mrf.mxu0
  %v112 = vadd.f32 0.0, %v111
  %v113 = vpop.f32.mrf.mxu0
  %114 = vdwg.mxu0
  %v131 = vunpack.c.l.b16 %v21
  %v132 = vunpack.c.l.b16 %v22
  %v133 = vunpack.c.l.b16 %v23
  %v134 = vunpack.c.l.b16 %v24
  %v135 = vunpack.c.l.b16 %v25
  %v136 = vunpack.c.l.b16 %v26
  %v137 = vunpack.c.l.b16 %v27
  %v138 = vunpack.c.l.b16 %v28
  %v139 = vunpack.c.l.b16 %v29
  %v140 = vunpack.c.l.b16 %v30
  %v141 = vunpack.c.l.b16 %v31
  %v142 = vunpack.c.l.b16 %v32
  %v143 = vunpack.c.l.b16 %v33
  %v144 = vunpack.c.l.b16 %v34
  %v145 = vunpack.c.l.b16 %v35
  %v146 = vunpack.c.l.b16 %v36
  %v147 = vpack.c.b16 %v132, %v131
  %v148 = vpack.c.b16 %v134, %v133
  %v149 = vpack.c.b16 %v136, %v135
  %v150 = vpack.c.b16 %v138, %v137
  %v151 = vpack.c.b16 %v140, %v139
  %v152 = vpack.c.b16 %v142, %v141
  %v153 = vpack.c.b16 %v144, %v143
  %v154 = vpack.c.b16 %v146, %v145
  %163 = vmatpush.bf16.msra.mxu0 %v154
  %164 = vmatpush.bf16.msra.mxu0 %v153
  %165 = vmatpush.bf16.msra.mxu0 %v152
  %166 = vmatpush.bf16.msra.mxu0 %v151
  %167 = vmatpush.bf16.msra.mxu0 %v150
  %168 = vmatpush.bf16.msra.mxu0 %v149
  %169 = vmatpush.bf16.msra.mxu0 %v148
  %170 = vmatpush.bf16.msra.mxu0 %v147
  %171 = vmatmul.bf16.gmra.mxu0 %v20
  %v172 = vpop.f32.mrf.mxu0
  %v173 = vadd.f32 %v112, %v172
  %v174 = vpop.f32.mrf.mxu0
  %175 = vdwg.mxu0
  %v176 = vld [vmem:[%s4] sm:$0x1]
  %v178 = vperm.slane %v176, 0
  %v180 = vadd.f32 %v173, %v178
  %v181 = vmax.f32 %v180, 0.0
  %v182 = vpack.c.bf16 %v181, %v181
  %vm183 = vcmask 516096
  %184 = vst.msk [vmem:[%s5] sm:$0x1] %vm183, %v182
  // Predicated region
  $region22: #{stmamba_bcd_forward.48} parent=0 // pred_check
    _
  $region23: #{stmamba_bcd_forward.48} parent=0 // pred_check_branch
    %186 = sbr.rel (0) target = $region25
  $region24: #{stmamba_bcd_forward.48} parent=0 // pred_region
    _
  $region25: #{stmamba_bcd_forward.48} parent=0 // pred_fallthru
    _
  // Predicated region
  $region26: #{stmamba_bcd_forward.48} parent=0 // pred_check
    _
  $region27: #{stmamba_bcd_forward.48} parent=0 // pred_check_branch
    %188 = sbr.rel (0) target = $region29
  $region28: #{stmamba_bcd_forward.48} parent=0 // pred_region
    _
  $region29: #{stmamba_bcd_forward.48} parent=0 // pred_fallthru
    _

// kernel: stmamba_bcd_forward.47
$region0: #{stmamba_bcd_forward.47}
  #allocation0 [shape = 'u32[]', space=smem, size = 0x4, offset = 0x4, fixed_abs, tag = 'smem constant byte address 0x4 - core index']
  #allocation1 [shape = 'u32[72,128]{1,0:T(1,128)}', space=vmem, size = 0x9000, scoped, tag = 'internal scratch']
  %s0 = inlined_call_operand.vmem [shape: bf16[8,64], index: 0, kind: input, shape index: {}]
  %s1 = inlined_call_operand.vmem [shape: bf16[8,64], index: 1, kind: input, shape index: {}]
  %s2 = inlined_call_operand.vmem [shape: bf16[64,64], index: 2, kind: input, shape index: {}]
  %s3 = inlined_call_operand.vmem [shape: bf16[64,64], index: 3, kind: input, shape index: {}]
  %s4 = inlined_call_operand.vmem [shape: f32[1,64], index: 4, kind: input, shape index: {}]
  %s5 = inlined_call_operand.vmem [shape: bf16[8,64], index: 5, kind: output, shape index: {}]
  %s6 = sld [smem:[#allocation0]]
  $region30: #{stmamba_bcd_forward.47} parent=0
    _
  %s8 = ssub.s32 1, %s6
  %s9 = scalar_select 0, %s8, %s6
  // Predicated region
  $region2: #{stmamba_bcd_forward.47} parent=0 // pred_check
    _
  $region3: #{stmamba_bcd_forward.47} parent=0 // pred_check_branch
    %11 = sbr.rel (0) target = $region5
  $region4: #{stmamba_bcd_forward.47} parent=0 // pred_region
    _
  $region5: #{stmamba_bcd_forward.47} parent=0 // pred_fallthru
    _
  // Predicated region
  $region6: #{stmamba_bcd_forward.47} parent=0 // pred_check
    _
  $region7: #{stmamba_bcd_forward.47} parent=0 // pred_check_branch
    %13 = sbr.rel (0) target = $region9
  $region8: #{stmamba_bcd_forward.47} parent=0 // pred_region
    _
  $region9: #{stmamba_bcd_forward.47} parent=0 // pred_fallthru
    _
  // Predicated region
  $region10: #{stmamba_bcd_forward.47} parent=0 // pred_check
    _
  $region11: #{stmamba_bcd_forward.47} parent=0 // pred_check_branch
    %15 = sbr.rel (0) target = $region13
  $region12: #{stmamba_bcd_forward.47} parent=0 // pred_region
    _
  $region13: #{stmamba_bcd_forward.47} parent=0 // pred_fallthru
    _
  // Predicated region
  $region14: #{stmamba_bcd_forward.47} parent=0 // pred_check
    _
  $region15: #{stmamba_bcd_forward.47} parent=0 // pred_check_branch
    %17 = sbr.rel (0) target = $region17
  $region16: #{stmamba_bcd_forward.47} parent=0 // pred_region
    _
  $region17: #{stmamba_bcd_forward.47} parent=0 // pred_fallthru
    _
  // Predicated region
  $region18: #{stmamba_bcd_forward.47} parent=0 // pred_check
    _
  $region19: #{stmamba_bcd_forward.47} parent=0 // pred_check_branch
    %19 = sbr.rel (0) target = $region21
  $region20: #{stmamba_bcd_forward.47} parent=0 // pred_region
    _
  $region21: #{stmamba_bcd_forward.47} parent=0 // pred_fallthru
    _
  %v21 = vld [vmem:[%s0] sm:$0xf]
  %v22 = vld [vmem:[%s2] sm:$0xf]
  %v23 = vld [vmem:[%s2 + $0x4] sm:$0xf]
  %v24 = vld [vmem:[%s2 + $0x8] sm:$0xf]
  %v25 = vld [vmem:[%s2 + $0xc] sm:$0xf]
  %v26 = vld [vmem:[%s2 + $0x10] sm:$0xf]
  %v27 = vld [vmem:[%s2 + $0x14] sm:$0xf]
  %v28 = vld [vmem:[%s2 + $0x18] sm:$0xf]
  %v29 = vld [vmem:[%s2 + $0x1c] sm:$0xf]
  %v30 = vld [vmem:[%s1] sm:$0xf]
  %v31 = vld [vmem:[%s3] sm:$0xf]
  %v32 = vld [vmem:[%s3 + $0x4] sm:$0xf]
  %v33 = vld [vmem:[%s3 + $0x8] sm:$0xf]
  %v34 = vld [vmem:[%s3 + $0xc] sm:$0xf]
  %v35 = vld [vmem:[%s3 + $0x10] sm:$0xf]
  %v36 = vld [vmem:[%s3 + $0x14] sm:$0xf]
  %v37 = vld [vmem:[%s3 + $0x18] sm:$0xf]
  %v38 = vld [vmem:[%s3 + $0x1c] sm:$0xf]
  %v47 = vunpack.c.l.b16 %v31
  %v48 = vunpack.c.l.b16 %v32
  %v49 = vunpack.c.l.b16 %v33
  %v50 = vunpack.c.l.b16 %v34
  %v51 = vunpack.c.l.b16 %v35
  %v52 = vunpack.c.l.b16 %v36
  %v53 = vunpack.c.l.b16 %v37
  %v54 = vunpack.c.l.b16 %v38
  %v55 = vpack.c.b16 %v48, %v47
  %v56 = vpack.c.b16 %v50, %v49
  %v57 = vpack.c.b16 %v52, %v51
  %v58 = vpack.c.b16 %v54, %v53
  %vm63 = vcmask 523264
  %v65 = vsel %vm63, %v30, 0
  %67 = vmatpush.bf16.msra.mxu0 0
  %68 = vmatpush.bf16.msra.mxu0 0
  %69 = vmatpush.bf16.msra.mxu0 0
  %70 = vmatpush.bf16.msra.mxu0 0
  %71 = vmatpush.bf16.msra.mxu0 %v58
  %72 = vmatpush.bf16.msra.mxu0 %v57
  %73 = vmatpush.bf16.msra.mxu0 %v56
  %74 = vmatpush.bf16.msra.mxu0 %v55
  %75 = vmatmul.bf16.gmra.mxu0 %v65
  %v76 = vpop.f32.mrf.mxu0
  %v77 = vadd.f32 0.0, %v76
  %v78 = vpop.f32.mrf.mxu0
  %79 = vdwg.mxu0
  %v88 = vunpack.c.l.b16 %v22
  %v89 = vunpack.c.l.b16 %v23
  %v90 = vunpack.c.l.b16 %v24
  %v91 = vunpack.c.l.b16 %v25
  %v92 = vunpack.c.l.b16 %v26
  %v93 = vunpack.c.l.b16 %v27
  %v94 = vunpack.c.l.b16 %v28
  %v95 = vunpack.c.l.b16 %v29
  %v96 = vpack.c.b16 %v89, %v88
  %v97 = vpack.c.b16 %v91, %v90
  %v98 = vpack.c.b16 %v93, %v92
  %v99 = vpack.c.b16 %v95, %v94
  %v105 = vsel %vm63, %v21, 0
  %107 = vmatpush.bf16.msra.mxu0 0
  %108 = vmatpush.bf16.msra.mxu0 0
  %109 = vmatpush.bf16.msra.mxu0 0
  %110 = vmatpush.bf16.msra.mxu0 0
  %111 = vmatpush.bf16.msra.mxu0 %v99
  %112 = vmatpush.bf16.msra.mxu0 %v98
  %113 = vmatpush.bf16.msra.mxu0 %v97
  %114 = vmatpush.bf16.msra.mxu0 %v96
  %115 = vmatmul.bf16.gmra.mxu0 %v105
  %v116 = vpop.f32.mrf.mxu0
  %v117 = vadd.f32 %v77, %v116
  %v118 = vpop.f32.mrf.mxu0
  %119 = vdwg.mxu0
  %v120 = vld [vmem:[%s4] sm:$0x1]
  %v122 = vperm.slane %v120, 0
  %v124 = vadd.f32 %v117, %v122
  %v125 = vmax.f32 %v124, 0.0
  %v126 = vpack.c.bf16 %v125, %v125
  %vm127 = vcmask 519168
  %128 = vst.msk [vmem:[%s5] sm:$0xf] %vm127, %v126
  // Predicated region
  $region22: #{stmamba_bcd_forward.47} parent=0 // pred_check
    _
  $region23: #{stmamba_bcd_forward.47} parent=0 // pred_check_branch
    %130 = sbr.rel (0) target = $region25
  $region24: #{stmamba_bcd_forward.47} parent=0 // pred_region
    _
  $region25: #{stmamba_bcd_forward.47} parent=0 // pred_fallthru
    _
  // Predicated region
  $region26: #{stmamba_bcd_forward.47} parent=0 // pred_check
    _
  $region27: #{stmamba_bcd_forward.47} parent=0 // pred_check_branch
    %132 = sbr.rel (0) target = $region29
  $region28: #{stmamba_bcd_forward.47} parent=0 // pred_region
    _
  $region29: #{stmamba_bcd_forward.47} parent=0 // pred_fallthru
    _

// kernel: stmamba_bcd_forward.42
$region0: #{stmamba_bcd_forward.42}
  #allocation0 [shape = 'u32[]', space=smem, size = 0x4, offset = 0x4, fixed_abs, tag = 'smem constant byte address 0x4 - core index']
  #allocation1 [shape = 'u32[72,128]{1,0:T(1,128)}', space=vmem, size = 0x9000, scoped, tag = 'internal scratch']
  %s0 = inlined_call_operand.vmem [shape: bf16[64,32], index: 0, kind: input, shape index: {}]
  %s1 = inlined_call_operand.vmem [shape: bf16[64,32], index: 1, kind: input, shape index: {}]
  %s2 = inlined_call_operand.vmem [shape: bf16[32,32], index: 2, kind: input, shape index: {}]
  %s3 = inlined_call_operand.vmem [shape: bf16[32,32], index: 3, kind: input, shape index: {}]
  %s4 = inlined_call_operand.vmem [shape: f32[1,32], index: 4, kind: input, shape index: {}]
  %s5 = inlined_call_operand.vmem [shape: bf16[64,32], index: 5, kind: output, shape index: {}]
  %s6 = sld [smem:[#allocation0]]
  $region30: #{stmamba_bcd_forward.42} parent=0
    _
  %s8 = ssub.s32 1, %s6
  %s9 = scalar_select 0, %s8, %s6
  // Predicated region
  $region2: #{stmamba_bcd_forward.42} parent=0 // pred_check
    _
  $region3: #{stmamba_bcd_forward.42} parent=0 // pred_check_branch
    %11 = sbr.rel (0) target = $region5
  $region4: #{stmamba_bcd_forward.42} parent=0 // pred_region
    _
  $region5: #{stmamba_bcd_forward.42} parent=0 // pred_fallthru
    _
  // Predicated region
  $region6: #{stmamba_bcd_forward.42} parent=0 // pred_check
    _
  $region7: #{stmamba_bcd_forward.42} parent=0 // pred_check_branch
    %13 = sbr.rel (0) target = $region9
  $region8: #{stmamba_bcd_forward.42} parent=0 // pred_region
    _
  $region9: #{stmamba_bcd_forward.42} parent=0 // pred_fallthru
    _
  // Predicated region
  $region10: #{stmamba_bcd_forward.42} parent=0 // pred_check
    _
  $region11: #{stmamba_bcd_forward.42} parent=0 // pred_check_branch
    %15 = sbr.rel (0) target = $region13
  $region12: #{stmamba_bcd_forward.42} parent=0 // pred_region
    _
  $region13: #{stmamba_bcd_forward.42} parent=0 // pred_fallthru
    _
  // Predicated region
  $region14: #{stmamba_bcd_forward.42} parent=0 // pred_check
    _
  $region15: #{stmamba_bcd_forward.42} parent=0 // pred_check_branch
    %17 = sbr.rel (0) target = $region17
  $region16: #{stmamba_bcd_forward.42} parent=0 // pred_region
    _
  $region17: #{stmamba_bcd_forward.42} parent=0 // pred_fallthru
    _
  // Predicated region
  $region18: #{stmamba_bcd_forward.42} parent=0 // pred_check
    _
  $region19: #{stmamba_bcd_forward.42} parent=0 // pred_check_branch
    %19 = sbr.rel (0) target = $region21
  $region20: #{stmamba_bcd_forward.42} parent=0 // pred_region
    _
  $region21: #{stmamba_bcd_forward.42} parent=0 // pred_fallthru
    _
  %v21 = vld [vmem:[%s0] sm:$0xf]
  %v22 = vld [vmem:[%s0 + $0x4] sm:$0xf]
  %v23 = vld [vmem:[%s0 + $0x8] sm:$0xf]
  %v24 = vld [vmem:[%s0 + $0xc] sm:$0xf]
  %v25 = vld [vmem:[%s0 + $0x10] sm:$0xf]
  %v26 = vld [vmem:[%s0 + $0x14] sm:$0xf]
  %v27 = vld [vmem:[%s0 + $0x18] sm:$0xf]
  %v28 = vld [vmem:[%s0 + $0x1c] sm:$0xf]
  %v29 = vld [vmem:[%s2] sm:$0xf]
  %v30 = vld [vmem:[%s2 + $0x4] sm:$0xf]
  %v31 = vld [vmem:[%s2 + $0x8] sm:$0xf]
  %v32 = vld [vmem:[%s2 + $0xc] sm:$0xf]
  %v33 = vld [vmem:[%s1] sm:$0xf]
  %v34 = vld [vmem:[%s1 + $0x4] sm:$0xf]
  %v35 = vld [vmem:[%s1 + $0x8] sm:$0xf]
  %v36 = vld [vmem:[%s1 + $0xc] sm:$0xf]
  %v37 = vld [vmem:[%s1 + $0x10] sm:$0xf]
  %v38 = vld [vmem:[%s1 + $0x14] sm:$0xf]
  %v39 = vld [vmem:[%s1 + $0x18] sm:$0xf]
  %v40 = vld [vmem:[%s1 + $0x1c] sm:$0xf]
  %v41 = vld [vmem:[%s3] sm:$0xf]
  %v42 = vld [vmem:[%s3 + $0x4] sm:$0xf]
  %v43 = vld [vmem:[%s3 + $0x8] sm:$0xf]
  %v44 = vld [vmem:[%s3 + $0xc] sm:$0xf]
  %v53 = vunpack.c.l.b16 %v33
  %v54 = vunpack.c.l.b16 %v34
  %v55 = vunpack.c.l.b16 %v35
  %v56 = vunpack.c.l.b16 %v36
  %v57 = vunpack.c.l.b16 %v37
  %v58 = vunpack.c.l.b16 %v38
  %v59 = vunpack.c.l.b16 %v39
  %v60 = vunpack.c.l.b16 %v40
  %v61 = vpack.c.b16 %v54, %v53
  %v62 = vpack.c.b16 %v56, %v55
  %v63 = vpack.c.b16 %v58, %v57
  %v64 = vpack.c.b16 %v60, %v59
  %v69 = vunpack.c.l.b16 %v41
  %v70 = vunpack.c.l.b16 %v42
  %v71 = vunpack.c.l.b16 %v43
  %v72 = vunpack.c.l.b16 %v44
  %v73 = vpack.c.b16 %v70, %v69
  %v74 = vpack.c.b16 %v72, %v71
  %vm77 = vcmask 261120
  %v79 = vsel %vm77, %v61, 0
  %v82 = vsel %vm77, %v62, 0
  %v85 = vsel %vm77, %v63, 0
  %v88 = vsel %vm77, %v64, 0
  %90 = vmatpush.bf16.msra.mxu0 0
  %91 = vmatpush.bf16.msra.mxu0 0
  %92 = vmatpush.bf16.msra.mxu0 0
  %93 = vmatpush.bf16.msra.mxu0 0
  %94 = vmatpush.bf16.msra.mxu0 0
  %95 = vmatpush.bf16.msra.mxu0 0
  %96 = vmatpush.bf16.msra.mxu0 %v74
  %97 = vmatpush.bf16.msra.mxu0 %v73
  %98 = vmatmul.bf16.gmra.mxu0 %v79
  %v99 = vpop.f32.mrf.mxu0
  %v100 = vadd.f32 0.0, %v99
  %v101 = vpop.f32.mrf.mxu0
  %v102 = vadd.f32 0.0, %v101
  %103 = vmatmul.bf16.gmra.mxu0 %v82
  %v104 = vpop.f32.mrf.mxu0
  %v105 = vadd.f32 0.0, %v104
  %v106 = vpop.f32.mrf.mxu0
  %v107 = vadd.f32 0.0, %v106
  %108 = vmatmul.bf16.gmra.mxu0 %v85
  %v109 = vpop.f32.mrf.mxu0
  %v110 = vadd.f32 0.0, %v109
  %v111 = vpop.f32.mrf.mxu0
  %v112 = vadd.f32 0.0, %v111
  %113 = vmatmul.bf16.gmra.mxu0 %v88
  %v114 = vpop.f32.mrf.mxu0
  %v115 = vadd.f32 0.0, %v114
  %v116 = vpop.f32.mrf.mxu0
  %v117 = vadd.f32 0.0, %v116
  %118 = vdwg.mxu0
  %v127 = vunpack.c.l.b16 %v21
  %v128 = vunpack.c.l.b16 %v22
  %v129 = vunpack.c.l.b16 %v23
  %v130 = vunpack.c.l.b16 %v24
  %v131 = vunpack.c.l.b16 %v25
  %v132 = vunpack.c.l.b16 %v26
  %v133 = vunpack.c.l.b16 %v27
  %v134 = vunpack.c.l.b16 %v28
  %v135 = vpack.c.b16 %v128, %v127
  %v136 = vpack.c.b16 %v130, %v129
  %v137 = vpack.c.b16 %v132, %v131
  %v138 = vpack.c.b16 %v134, %v133
  %v143 = vunpack.c.l.b16 %v29
  %v144 = vunpack.c.l.b16 %v30
  %v145 = vunpack.c.l.b16 %v31
  %v146 = vunpack.c.l.b16 %v32
  %v147 = vpack.c.b16 %v144, %v143
  %v148 = vpack.c.b16 %v146, %v145
  %v152 = vsel %vm77, %v135, 0
  %v155 = vsel %vm77, %v136, 0
  %v158 = vsel %vm77, %v137, 0
  %v161 = vsel %vm77, %v138, 0
  %163 = vmatpush.bf16.msra.mxu0 0
  %164 = vmatpush.bf16.msra.mxu0 0
  %165 = vmatpush.bf16.msra.mxu0 0
  %166 = vmatpush.bf16.msra.mxu0 0
  %167 = vmatpush.bf16.msra.mxu0 0
  %168 = vmatpush.bf16.msra.mxu0 0
  %169 = vmatpush.bf16.msra.mxu0 %v148
  %170 = vmatpush.bf16.msra.mxu0 %v147
  %171 = vmatmul.bf16.gmra.mxu0 %v152
  %v172 = vpop.f32.mrf.mxu0
  %v173 = vadd.f32 %v100, %v172
  %v174 = vpop.f32.mrf.mxu0
  %v175 = vadd.f32 %v102, %v174
  %176 = vmatmul.bf16.gmra.mxu0 %v155
  %v177 = vpop.f32.mrf.mxu0
  %v178 = vadd.f32 %v105, %v177
  %v179 = vpop.f32.mrf.mxu0
  %v180 = vadd.f32 %v107, %v179
  %181 = vmatmul.bf16.gmra.mxu0 %v158
  %v182 = vpop.f32.mrf.mxu0
  %v183 = vadd.f32 %v110, %v182
  %v184 = vpop.f32.mrf.mxu0
  %v185 = vadd.f32 %v112, %v184
  %186 = vmatmul.bf16.gmra.mxu0 %v161
  %v187 = vpop.f32.mrf.mxu0
  %v188 = vadd.f32 %v115, %v187
  %v189 = vpop.f32.mrf.mxu0
  %v190 = vadd.f32 %v117, %v189
  %191 = vdwg.mxu0
  %v192 = vld [vmem:[%s4] sm:$0x1]
  %v194 = vperm.slane %v192, 0
  %v196 = vadd.f32 %v173, %v194
  %v197 = vadd.f32 %v175, %v194
  %v198 = vadd.f32 %v178, %v194
  %v199 = vadd.f32 %v180, %v194
  %v200 = vadd.f32 %v183, %v194
  %v201 = vadd.f32 %v185, %v194
  %v202 = vadd.f32 %v188, %v194
  %v203 = vadd.f32 %v190, %v194
  %v204 = vmax.f32 %v196, 0.0
  %v205 = vmax.f32 %v197, 0.0
  %v206 = vmax.f32 %v198, 0.0
  %v207 = vmax.f32 %v199, 0.0
  %v208 = vmax.f32 %v200, 0.0
  %v209 = vmax.f32 %v201, 0.0
  %v210 = vmax.f32 %v202, 0.0
  %v211 = vmax.f32 %v203, 0.0
  %v212 = vpack.c.bf16 %v204, %v204
  %v213 = vpack.c.bf16 %v205, %v205
  %v214 = vpack.c.bf16 %v206, %v206
  %v215 = vpack.c.bf16 %v207, %v207
  %v216 = vpack.c.bf16 %v208, %v208
  %v217 = vpack.c.bf16 %v209, %v209
  %v218 = vpack.c.bf16 %v210, %v210
  %v219 = vpack.c.bf16 %v211, %v211
  %vm220 = vcmask 257024
  %221 = vst.msk [vmem:[%s5] sm:$0xf] %vm220, %v212
  %222 = vst.msk [vmem:[%s5 + $0x4] sm:$0xf] %vm220, %v213
  %223 = vst.msk [vmem:[%s5 + $0x8] sm:$0xf] %vm220, %v214
  %224 = vst.msk [vmem:[%s5 + $0xc] sm:$0xf] %vm220, %v215
  %225 = vst.msk [vmem:[%s5 + $0x10] sm:$0xf] %vm220, %v216
  %226 = vst.msk [vmem:[%s5 + $0x14] sm:$0xf] %vm220, %v217
  %227 = vst.msk [vmem:[%s5 + $0x18] sm:$0xf] %vm220, %v218
  %228 = vst.msk [vmem:[%s5 + $0x1c] sm:$0xf] %vm220, %v219
  // Predicated region
  $region22: #{stmamba_bcd_forward.42} parent=0 // pred_check
    _
  $region23: #{stmamba_bcd_forward.42} parent=0 // pred_check_branch
    %230 = sbr.rel (0) target = $region25
  $region24: #{stmamba_bcd_forward.42} parent=0 // pred_region
    _
  $region25: #{stmamba_bcd_forward.42} parent=0 // pred_fallthru
    _
  // Predicated region
  $region26: #{stmamba_bcd_forward.42} parent=0 // pred_check
    _
  $region27: #{stmamba_bcd_forward.42} parent=0 // pred_check_branch
    %232 = sbr.rel (0) target = $region29
  $region28: #{stmamba_bcd_forward.42} parent=0 // pred_region
    _
  $region29: #{stmamba_bcd_forward.42} parent=0 // pred_fallthru
    _

// kernel: stmamba_bcd_forward.46
$region0: #{stmamba_bcd_forward.46}
  #allocation0 [shape = 'u32[]', space=smem, size = 0x4, offset = 0x4, fixed_abs, tag = 'smem constant byte address 0x4 - core index']
  #allocation1 [shape = 'u32[72,128]{1,0:T(1,128)}', space=vmem, size = 0x9000, scoped, tag = 'internal scratch']
  %s0 = inlined_call_operand.vmem [shape: bf16[32,32], index: 0, kind: input, shape index: {}]
  %s1 = inlined_call_operand.vmem [shape: bf16[32,32], index: 1, kind: input, shape index: {}]
  %s2 = inlined_call_operand.vmem [shape: bf16[32,64], index: 2, kind: input, shape index: {}]
  %s3 = inlined_call_operand.vmem [shape: bf16[32,64], index: 3, kind: input, shape index: {}]
  %s4 = inlined_call_operand.vmem [shape: f32[1,64], index: 4, kind: input, shape index: {}]
  %s5 = inlined_call_operand.vmem [shape: bf16[32,64], index: 5, kind: output, shape index: {}]
  %s6 = sld [smem:[#allocation0]]
  $region30: #{stmamba_bcd_forward.46} parent=0
    _
  %s8 = ssub.s32 1, %s6
  %s9 = scalar_select 0, %s8, %s6
  // Predicated region
  $region2: #{stmamba_bcd_forward.46} parent=0 // pred_check
    _
  $region3: #{stmamba_bcd_forward.46} parent=0 // pred_check_branch
    %11 = sbr.rel (0) target = $region5
  $region4: #{stmamba_bcd_forward.46} parent=0 // pred_region
    _
  $region5: #{stmamba_bcd_forward.46} parent=0 // pred_fallthru
    _
  // Predicated region
  $region6: #{stmamba_bcd_forward.46} parent=0 // pred_check
    _
  $region7: #{stmamba_bcd_forward.46} parent=0 // pred_check_branch
    %13 = sbr.rel (0) target = $region9
  $region8: #{stmamba_bcd_forward.46} parent=0 // pred_region
    _
  $region9: #{stmamba_bcd_forward.46} parent=0 // pred_fallthru
    _
  // Predicated region
  $region10: #{stmamba_bcd_forward.46} parent=0 // pred_check
    _
  $region11: #{stmamba_bcd_forward.46} parent=0 // pred_check_branch
    %15 = sbr.rel (0) target = $region13
  $region12: #{stmamba_bcd_forward.46} parent=0 // pred_region
    _
  $region13: #{stmamba_bcd_forward.46} parent=0 // pred_fallthru
    _
  // Predicated region
  $region14: #{stmamba_bcd_forward.46} parent=0 // pred_check
    _
  $region15: #{stmamba_bcd_forward.46} parent=0 // pred_check_branch
    %17 = sbr.rel (0) target = $region17
  $region16: #{stmamba_bcd_forward.46} parent=0 // pred_region
    _
  $region17: #{stmamba_bcd_forward.46} parent=0 // pred_fallthru
    _
  // Predicated region
  $region18: #{stmamba_bcd_forward.46} parent=0 // pred_check
    _
  $region19: #{stmamba_bcd_forward.46} parent=0 // pred_check_branch
    %19 = sbr.rel (0) target = $region21
  $region20: #{stmamba_bcd_forward.46} parent=0 // pred_region
    _
  $region21: #{stmamba_bcd_forward.46} parent=0 // pred_fallthru
    _
  %v21 = vld [vmem:[%s0] sm:$0xf]
  %v22 = vld [vmem:[%s0 + $0x4] sm:$0xf]
  %v23 = vld [vmem:[%s0 + $0x8] sm:$0xf]
  %v24 = vld [vmem:[%s0 + $0xc] sm:$0xf]
  %v25 = vld [vmem:[%s2] sm:$0xf]
  %v26 = vld [vmem:[%s2 + $0x4] sm:$0xf]
  %v27 = vld [vmem:[%s2 + $0x8] sm:$0xf]
  %v28 = vld [vmem:[%s2 + $0xc] sm:$0xf]
  %v29 = vld [vmem:[%s1] sm:$0xf]
  %v30 = vld [vmem:[%s1 + $0x4] sm:$0xf]
  %v31 = vld [vmem:[%s1 + $0x8] sm:$0xf]
  %v32 = vld [vmem:[%s1 + $0xc] sm:$0xf]
  %v33 = vld [vmem:[%s3] sm:$0xf]
  %v34 = vld [vmem:[%s3 + $0x4] sm:$0xf]
  %v35 = vld [vmem:[%s3 + $0x8] sm:$0xf]
  %v36 = vld [vmem:[%s3 + $0xc] sm:$0xf]
  %v41 = vunpack.c.l.b16 %v29
  %v42 = vunpack.c.l.b16 %v30
  %v43 = vunpack.c.l.b16 %v31
  %v44 = vunpack.c.l.b16 %v32
  %v45 = vpack.c.b16 %v42, %v41
  %v46 = vpack.c.b16 %v44, %v43
  %v51 = vunpack.c.l.b16 %v33
  %v52 = vunpack.c.l.b16 %v34
  %v53 = vunpack.c.l.b16 %v35
  %v54 = vunpack.c.l.b16 %v36
  %v55 = vpack.c.b16 %v52, %v51
  %v56 = vpack.c.b16 %v54, %v53
  %vm59 = vcmask 261120
  %v61 = vsel %vm59, %v45, 0
  %v64 = vsel %vm59, %v46, 0
  %66 = vmatpush.bf16.msra.mxu0 0
  %67 = vmatpush.bf16.msra.mxu0 0
  %68 = vmatpush.bf16.msra.mxu0 0
  %69 = vmatpush.bf16.msra.mxu0 0
  %70 = vmatpush.bf16.msra.mxu0 0
  %71 = vmatpush.bf16.msra.mxu0 0
  %72 = vmatpush.bf16.msra.mxu0 %v56
  %73 = vmatpush.bf16.msra.mxu0 %v55
  %74 = vmatmul.bf16.gmra.mxu0 %v61
  %v75 = vpop.f32.mrf.mxu0
  %v76 = vadd.f32 0.0, %v75
  %v77 = vpop.f32.mrf.mxu0
  %v78 = vadd.f32 0.0, %v77
  %79 = vmatmul.bf16.gmra.mxu0 %v64
  %v80 = vpop.f32.mrf.mxu0
  %v81 = vadd.f32 0.0, %v80
  %v82 = vpop.f32.mrf.mxu0
  %v83 = vadd.f32 0.0, %v82
  %84 = vdwg.mxu0
  %v89 = vunpack.c.l.b16 %v21
  %v90 = vunpack.c.l.b16 %v22
  %v91 = vunpack.c.l.b16 %v23
  %v92 = vunpack.c.l.b16 %v24
  %v93 = vpack.c.b16 %v90, %v89
  %v94 = vpack.c.b16 %v92, %v91
  %v99 = vunpack.c.l.b16 %v25
  %v100 = vunpack.c.l.b16 %v26
  %v101 = vunpack.c.l.b16 %v27
  %v102 = vunpack.c.l.b16 %v28
  %v103 = vpack.c.b16 %v100, %v99
  %v104 = vpack.c.b16 %v102, %v101
  %v108 = vsel %vm59, %v93, 0
  %v111 = vsel %vm59, %v94, 0
  %113 = vmatpush.bf16.msra.mxu0 0
  %114 = vmatpush.bf16.msra.mxu0 0
  %115 = vmatpush.bf16.msra.mxu0 0
  %116 = vmatpush.bf16.msra.mxu0 0
  %117 = vmatpush.bf16.msra.mxu0 0
  %118 = vmatpush.bf16.msra.mxu0 0
  %119 = vmatpush.bf16.msra.mxu0 %v104
  %120 = vmatpush.bf16.msra.mxu0 %v103
  %121 = vmatmul.bf16.gmra.mxu0 %v108
  %v122 = vpop.f32.mrf.mxu0
  %v123 = vadd.f32 %v76, %v122
  %v124 = vpop.f32.mrf.mxu0
  %v125 = vadd.f32 %v78, %v124
  %126 = vmatmul.bf16.gmra.mxu0 %v111
  %v127 = vpop.f32.mrf.mxu0
  %v128 = vadd.f32 %v81, %v127
  %v129 = vpop.f32.mrf.mxu0
  %v130 = vadd.f32 %v83, %v129
  %131 = vdwg.mxu0
  %v132 = vld [vmem:[%s4] sm:$0x1]
  %v134 = vperm.slane %v132, 0
  %v136 = vadd.f32 %v123, %v134
  %v137 = vadd.f32 %v125, %v134
  %v138 = vadd.f32 %v128, %v134
  %v139 = vadd.f32 %v130, %v134
  %v140 = vmax.f32 %v136, 0.0
  %v141 = vmax.f32 %v137, 0.0
  %v142 = vmax.f32 %v138, 0.0
  %v143 = vmax.f32 %v139, 0.0
  %v144 = vpack.c.bf16 %v140, %v140
  %v145 = vpack.c.bf16 %v141, %v141
  %v146 = vpack.c.bf16 %v142, %v142
  %v147 = vpack.c.bf16 %v143, %v143
  %vm148 = vcmask 519168
  %149 = vst.msk [vmem:[%s5] sm:$0xf] %vm148, %v144
  %150 = vst.msk [vmem:[%s5 + $0x4] sm:$0xf] %vm148, %v145
  %151 = vst.msk [vmem:[%s5 + $0x8] sm:$0xf] %vm148, %v146
  %152 = vst.msk [vmem:[%s5 + $0xc] sm:$0xf] %vm148, %v147
  // Predicated region
  $region22: #{stmamba_bcd_forward.46} parent=0 // pred_check
    _
  $region23: #{stmamba_bcd_forward.46} parent=0 // pred_check_branch
    %154 = sbr.rel (0) target = $region25
  $region24: #{stmamba_bcd_forward.46} parent=0 // pred_region
    _
  $region25: #{stmamba_bcd_forward.46} parent=0 // pred_fallthru
    _
  // Predicated region
  $region26: #{stmamba_bcd_forward.46} parent=0 // pred_check
    _
  $region27: #{stmamba_bcd_forward.46} parent=0 // pred_check_branch
    %156 = sbr.rel (0) target = $region29
  $region28: #{stmamba_bcd_forward.46} parent=0 // pred_region
    _
  $region29: #{stmamba_bcd_forward.46} parent=0 // pred_fallthru
    _

// kernel: stmamba_bcd_forward.45
$region0: #{stmamba_bcd_forward.45}
  #allocation0 [shape = 'u32[]', space=smem, size = 0x4, offset = 0x4, fixed_abs, tag = 'smem constant byte address 0x4 - core index']
  #allocation1 [shape = 'u32[72,128]{1,0:T(1,128)}', space=vmem, size = 0x9000, scoped, tag = 'internal scratch']
  %s0 = inlined_call_operand.vmem [shape: bf16[128,16], index: 0, kind: input, shape index: {}]
  %s1 = inlined_call_operand.vmem [shape: bf16[128,16], index: 1, kind: input, shape index: {}]
  %s2 = inlined_call_operand.vmem [shape: bf16[16,64], index: 2, kind: input, shape index: {}]
  %s3 = inlined_call_operand.vmem [shape: bf16[16,64], index: 3, kind: input, shape index: {}]
  %s4 = inlined_call_operand.vmem [shape: f32[1,64], index: 4, kind: input, shape index: {}]
  %s5 = inlined_call_operand.vmem [shape: bf16[128,64], index: 5, kind: output, shape index: {}]
  %s6 = sld [smem:[#allocation0]]
  $region30: #{stmamba_bcd_forward.45} parent=0
    _
  %s8 = ssub.s32 1, %s6
  %s9 = scalar_select 0, %s8, %s6
  // Predicated region
  $region2: #{stmamba_bcd_forward.45} parent=0 // pred_check
    _
  $region3: #{stmamba_bcd_forward.45} parent=0 // pred_check_branch
    %11 = sbr.rel (0) target = $region5
  $region4: #{stmamba_bcd_forward.45} parent=0 // pred_region
    _
  $region5: #{stmamba_bcd_forward.45} parent=0 // pred_fallthru
    _
  // Predicated region
  $region6: #{stmamba_bcd_forward.45} parent=0 // pred_check
    _
  $region7: #{stmamba_bcd_forward.45} parent=0 // pred_check_branch
    %13 = sbr.rel (0) target = $region9
  $region8: #{stmamba_bcd_forward.45} parent=0 // pred_region
    _
  $region9: #{stmamba_bcd_forward.45} parent=0 // pred_fallthru
    _
  // Predicated region
  $region10: #{stmamba_bcd_forward.45} parent=0 // pred_check
    _
  $region11: #{stmamba_bcd_forward.45} parent=0 // pred_check_branch
    %15 = sbr.rel (0) target = $region13
  $region12: #{stmamba_bcd_forward.45} parent=0 // pred_region
    _
  $region13: #{stmamba_bcd_forward.45} parent=0 // pred_fallthru
    _
  // Predicated region
  $region14: #{stmamba_bcd_forward.45} parent=0 // pred_check
    _
  $region15: #{stmamba_bcd_forward.45} parent=0 // pred_check_branch
    %17 = sbr.rel (0) target = $region17
  $region16: #{stmamba_bcd_forward.45} parent=0 // pred_region
    _
  $region17: #{stmamba_bcd_forward.45} parent=0 // pred_fallthru
    _
  // Predicated region
  $region18: #{stmamba_bcd_forward.45} parent=0 // pred_check
    _
  $region19: #{stmamba_bcd_forward.45} parent=0 // pred_check_branch
    %19 = sbr.rel (0) target = $region21
  $region20: #{stmamba_bcd_forward.45} parent=0 // pred_region
    _
  $region21: #{stmamba_bcd_forward.45} parent=0 // pred_fallthru
    _
  %v21 = vld [vmem:[%s0] sm:$0xf]
  %v22 = vld [vmem:[%s0 + $0x4] sm:$0xf]
  %v23 = vld [vmem:[%s0 + $0x8] sm:$0xf]
  %v24 = vld [vmem:[%s0 + $0xc] sm:$0xf]
  %v25 = vld [vmem:[%s0 + $0x10] sm:$0xf]
  %v26 = vld [vmem:[%s0 + $0x14] sm:$0xf]
  %v27 = vld [vmem:[%s0 + $0x18] sm:$0xf]
  %v28 = vld [vmem:[%s0 + $0x1c] sm:$0xf]
  %v29 = vld [vmem:[%s0 + $0x20] sm:$0xf]
  %v30 = vld [vmem:[%s0 + $0x24] sm:$0xf]
  %v31 = vld [vmem:[%s0 + $0x28] sm:$0xf]
  %v32 = vld [vmem:[%s0 + $0x2c] sm:$0xf]
  %v33 = vld [vmem:[%s0 + $0x30] sm:$0xf]
  %v34 = vld [vmem:[%s0 + $0x34] sm:$0xf]
  %v35 = vld [vmem:[%s0 + $0x38] sm:$0xf]
  %v36 = vld [vmem:[%s0 + $0x3c] sm:$0xf]
  %v37 = vld [vmem:[%s2] sm:$0xf]
  %v38 = vld [vmem:[%s2 + $0x4] sm:$0xf]
  %v39 = vld [vmem:[%s1] sm:$0xf]
  %v40 = vld [vmem:[%s1 + $0x4] sm:$0xf]
  %v41 = vld [vmem:[%s1 + $0x8] sm:$0xf]
  %v42 = vld [vmem:[%s1 + $0xc] sm:$0xf]
  %v43 = vld [vmem:[%s1 + $0x10] sm:$0xf]
  %v44 = vld [vmem:[%s1 + $0x14] sm:$0xf]
  %v45 = vld [vmem:[%s1 + $0x18] sm:$0xf]
  %v46 = vld [vmem:[%s1 + $0x1c] sm:$0xf]
  %v47 = vld [vmem:[%s1 + $0x20] sm:$0xf]
  %v48 = vld [vmem:[%s1 + $0x24] sm:$0xf]
  %v49 = vld [vmem:[%s1 + $0x28] sm:$0xf]
  %v50 = vld [vmem:[%s1 + $0x2c] sm:$0xf]
  %v51 = vld [vmem:[%s1 + $0x30] sm:$0xf]
  %v52 = vld [vmem:[%s1 + $0x34] sm:$0xf]
  %v53 = vld [vmem:[%s1 + $0x38] sm:$0xf]
  %v54 = vld [vmem:[%s1 + $0x3c] sm:$0xf]
  %v55 = vld [vmem:[%s3] sm:$0xf]
  %v56 = vld [vmem:[%s3 + $0x4] sm:$0xf]
  %v73 = vunpack.c.l.b16 %v39
  %v74 = vunpack.c.l.b16 %v40
  %v75 = vunpack.c.l.b16 %v41
  %v76 = vunpack.c.l.b16 %v42
  %v77 = vunpack.c.l.b16 %v43
  %v78 = vunpack.c.l.b16 %v44
  %v79 = vunpack.c.l.b16 %v45
  %v80 = vunpack.c.l.b16 %v46
  %v81 = vunpack.c.l.b16 %v47
  %v82 = vunpack.c.l.b16 %v48
  %v83 = vunpack.c.l.b16 %v49
  %v84 = vunpack.c.l.b16 %v50
  %v85 = vunpack.c.l.b16 %v51
  %v86 = vunpack.c.l.b16 %v52
  %v87 = vunpack.c.l.b16 %v53
  %v88 = vunpack.c.l.b16 %v54
  %v89 = vpack.c.b16 %v74, %v73
  %v90 = vpack.c.b16 %v76, %v75
  %v91 = vpack.c.b16 %v78, %v77
  %v92 = vpack.c.b16 %v80, %v79
  %v93 = vpack.c.b16 %v82, %v81
  %v94 = vpack.c.b16 %v84, %v83
  %v95 = vpack.c.b16 %v86, %v85
  %v96 = vpack.c.b16 %v88, %v87
  %v99 = vunpack.c.l.b16 %v55
  %v100 = vunpack.c.l.b16 %v56
  %v101 = vpack.c.b16 %v100, %v99
  %vm103 = vcmask 130048
  %v105 = vsel %vm103, %v89, 0
  %v108 = vsel %vm103, %v90, 0
  %v111 = vsel %vm103, %v91, 0
  %v114 = vsel %vm103, %v92, 0
  %v117 = vsel %vm103, %v93, 0
  %v120 = vsel %vm103, %v94, 0
  %v123 = vsel %vm103, %v95, 0
  %v126 = vsel %vm103, %v96, 0
  %128 = vmatpush.bf16.msra.mxu0 0
  %129 = vmatpush.bf16.msra.mxu0 0
  %130 = vmatpush.bf16.msra.mxu0 0
  %131 = vmatpush.bf16.msra.mxu0 0
  %132 = vmatpush.bf16.msra.mxu0 0
  %133 = vmatpush.bf16.msra.mxu0 0
  %134 = vmatpush.bf16.msra.mxu0 0
  %135 = vmatpush.bf16.msra.mxu0 %v101
  %136 = vmatmul.bf16.gmra.mxu0 %v105
  %v137 = vpop.f32.mrf.mxu0
  %v138 = vadd.f32 0.0, %v137
  %v139 = vpop.f32.mrf.mxu0
  %v140 = vadd.f32 0.0, %v139
  %141 = vmatmul.bf16.gmra.mxu0 %v108
  %v142 = vpop.f32.mrf.mxu0
  %v143 = vadd.f32 0.0, %v142
  %v144 = vpop.f32.mrf.mxu0
  %v145 = vadd.f32 0.0, %v144
  %146 = vmatmul.bf16.gmra.mxu0 %v111
  %v147 = vpop.f32.mrf.mxu0
  %v148 = vadd.f32 0.0, %v147
  %v149 = vpop.f32.mrf.mxu0
  %v150 = vadd.f32 0.0, %v149
  %151 = vmatmul.bf16.gmra.mxu0 %v114
  %v152 = vpop.f32.mrf.mxu0
  %v153 = vadd.f32 0.0, %v152
  %v154 = vpop.f32.mrf.mxu0
  %v155 = vadd.f32 0.0, %v154
  %156 = vmatmul.bf16.gmra.mxu0 %v117
  %v157 = vpop.f32.mrf.mxu0
  %v158 = vadd.f32 0.0, %v157
  %v159 = vpop.f32.mrf.mxu0
  %v160 = vadd.f32 0.0, %v159
  %161 = vmatmul.bf16.gmra.mxu0 %v120
  %v162 = vpop.f32.mrf.mxu0
  %v163 = vadd.f32 0.0, %v162
  %v164 = vpop.f32.mrf.mxu0
  %v165 = vadd.f32 0.0, %v164
  %166 = vmatmul.bf16.gmra.mxu0 %v123
  %v167 = vpop.f32.mrf.mxu0
  %v168 = vadd.f32 0.0, %v167
  %v169 = vpop.f32.mrf.mxu0
  %v170 = vadd.f32 0.0, %v169
  %171 = vmatmul.bf16.gmra.mxu0 %v126
  %v172 = vpop.f32.mrf.mxu0
  %v173 = vadd.f32 0.0, %v172
  %v174 = vpop.f32.mrf.mxu0
  %v175 = vadd.f32 0.0, %v174
  %176 = vdwg.mxu0
  %v193 = vunpack.c.l.b16 %v21
  %v194 = vunpack.c.l.b16 %v22
  %v195 = vunpack.c.l.b16 %v23
  %v196 = vunpack.c.l.b16 %v24
  %v197 = vunpack.c.l.b16 %v25
  %v198 = vunpack.c.l.b16 %v26
  %v199 = vunpack.c.l.b16 %v27
  %v200 = vunpack.c.l.b16 %v28
  %v201 = vunpack.c.l.b16 %v29
  %v202 = vunpack.c.l.b16 %v30
  %v203 = vunpack.c.l.b16 %v31
  %v204 = vunpack.c.l.b16 %v32
  %v205 = vunpack.c.l.b16 %v33
  %v206 = vunpack.c.l.b16 %v34
  %v207 = vunpack.c.l.b16 %v35
  %v208 = vunpack.c.l.b16 %v36
  %v209 = vpack.c.b16 %v194, %v193
  %v210 = vpack.c.b16 %v196, %v195
  %v211 = vpack.c.b16 %v198, %v197
  %v212 = vpack.c.b16 %v200, %v199
  %v213 = vpack.c.b16 %v202, %v201
  %v214 = vpack.c.b16 %v204, %v203
  %v215 = vpack.c.b16 %v206, %v205
  %v216 = vpack.c.b16 %v208, %v207
  %v219 = vunpack.c.l.b16 %v37
  %v220 = vunpack.c.l.b16 %v38
  %v221 = vpack.c.b16 %v220, %v219
  %v224 = vsel %vm103, %v209, 0
  %v227 = vsel %vm103, %v210, 0
  %v230 = vsel %vm103, %v211, 0
  %v233 = vsel %vm103, %v212, 0
  %v236 = vsel %vm103, %v213, 0
  %v239 = vsel %vm103, %v214, 0
  %v242 = vsel %vm103, %v215, 0
  %v245 = vsel %vm103, %v216, 0
  %247 = vmatpush.bf16.msra.mxu0 0
  %248 = vmatpush.bf16.msra.mxu0 0
  %249 = vmatpush.bf16.msra.mxu0 0
  %250 = vmatpush.bf16.msra.mxu0 0
  %251 = vmatpush.bf16.msra.mxu0 0
  %252 = vmatpush.bf16.msra.mxu0 0
  %253 = vmatpush.bf16.msra.mxu0 0
  %254 = vmatpush.bf16.msra.mxu0 %v221
  %255 = vmatmul.bf16.gmra.mxu0 %v224
  %v256 = vpop.f32.mrf.mxu0
  %v257 = vadd.f32 %v138, %v256
  %v258 = vpop.f32.mrf.mxu0
  %v259 = vadd.f32 %v140, %v258
  %260 = vmatmul.bf16.gmra.mxu0 %v227
  %v261 = vpop.f32.mrf.mxu0
  %v262 = vadd.f32 %v143, %v261
  %v263 = vpop.f32.mrf.mxu0
  %v264 = vadd.f32 %v145, %v263
  %265 = vmatmul.bf16.gmra.mxu0 %v230
  %v266 = vpop.f32.mrf.mxu0
  %v267 = vadd.f32 %v148, %v266
  %v268 = vpop.f32.mrf.mxu0
  %v269 = vadd.f32 %v150, %v268
  %270 = vmatmul.bf16.gmra.mxu0 %v233
  %v271 = vpop.f32.mrf.mxu0
  %v272 = vadd.f32 %v153, %v271
  %v273 = vpop.f32.mrf.mxu0
  %v274 = vadd.f32 %v155, %v273
  %275 = vmatmul.bf16.gmra.mxu0 %v236
  %v276 = vpop.f32.mrf.mxu0
  %v277 = vadd.f32 %v158, %v276
  %v278 = vpop.f32.mrf.mxu0
  %v279 = vadd.f32 %v160, %v278
  %280 = vmatmul.bf16.gmra.mxu0 %v239
  %v281 = vpop.f32.mrf.mxu0
  %v282 = vadd.f32 %v163, %v281
  %v283 = vpop.f32.mrf.mxu0
  %v284 = vadd.f32 %v165, %v283
  %285 = vmatmul.bf16.gmra.mxu0 %v242
  %v286 = vpop.f32.mrf.mxu0
  %v287 = vadd.f32 %v168, %v286
  %v288 = vpop.f32.mrf.mxu0
  %v289 = vadd.f32 %v170, %v288
  %290 = vmatmul.bf16.gmra.mxu0 %v245
  %v291 = vpop.f32.mrf.mxu0
  %v292 = vadd.f32 %v173, %v291
  %v293 = vpop.f32.mrf.mxu0
  %v294 = vadd.f32 %v175, %v293
  %295 = vdwg.mxu0
  %v296 = vld [vmem:[%s4] sm:$0x1]
  %v298 = vperm.slane %v296, 0
  %v300 = vadd.f32 %v257, %v298
  %v301 = vadd.f32 %v259, %v298
  %v302 = vadd.f32 %v262, %v298
  %v303 = vadd.f32 %v264, %v298
  %v304 = vadd.f32 %v267, %v298
  %v305 = vadd.f32 %v269, %v298
  %v306 = vadd.f32 %v272, %v298
  %v307 = vadd.f32 %v274, %v298
  %v308 = vadd.f32 %v277, %v298
  %v309 = vadd.f32 %v279, %v298
  %v310 = vadd.f32 %v282, %v298
  %v311 = vadd.f32 %v284, %v298
  %v312 = vadd.f32 %v287, %v298
  %v313 = vadd.f32 %v289, %v298
  %v314 = vadd.f32 %v292, %v298
  %v315 = vadd.f32 %v294, %v298
  %v316 = vmax.f32 %v300, 0.0
  %v317 = vmax.f32 %v301, 0.0
  %v318 = vmax.f32 %v302, 0.0
  %v319 = vmax.f32 %v303, 0.0
  %v320 = vmax.f32 %v304, 0.0
  %v321 = vmax.f32 %v305, 0.0
  %v322 = vmax.f32 %v306, 0.0
  %v323 = vmax.f32 %v307, 0.0
  %v324 = vmax.f32 %v308, 0.0
  %v325 = vmax.f32 %v309, 0.0
  %v326 = vmax.f32 %v310, 0.0
  %v327 = vmax.f32 %v311, 0.0
  %v328 = vmax.f32 %v312, 0.0
  %v329 = vmax.f32 %v313, 0.0
  %v330 = vmax.f32 %v314, 0.0
  %v331 = vmax.f32 %v315, 0.0
  %v332 = vpack.c.bf16 %v316, %v316
  %v333 = vpack.c.bf16 %v317, %v317
  %v334 = vpack.c.bf16 %v318, %v318
  %v335 = vpack.c.bf16 %v319, %v319
  %v336 = vpack.c.bf16 %v320, %v320
  %v337 = vpack.c.bf16 %v321, %v321
  %v338 = vpack.c.bf16 %v322, %v322
  %v339 = vpack.c.bf16 %v323, %v323
  %v340 = vpack.c.bf16 %v324, %v324
  %v341 = vpack.c.bf16 %v325, %v325
  %v342 = vpack.c.bf16 %v326, %v326
  %v343 = vpack.c.bf16 %v327, %v327
  %v344 = vpack.c.bf16 %v328, %v328
  %v345 = vpack.c.bf16 %v329, %v329
  %v346 = vpack.c.bf16 %v330, %v330
  %v347 = vpack.c.bf16 %v331, %v331
  %vm348 = vcmask 519168
  %349 = vst.msk [vmem:[%s5] sm:$0xf] %vm348, %v332
  %350 = vst.msk [vmem:[%s5 + $0x4] sm:$0xf] %vm348, %v333
  %351 = vst.msk [vmem:[%s5 + $0x8] sm:$0xf] %vm348, %v334
  %352 = vst.msk [vmem:[%s5 + $0xc] sm:$0xf] %vm348, %v335
  %353 = vst.msk [vmem:[%s5 + $0x10] sm:$0xf] %vm348, %v336
  %354 = vst.msk [vmem:[%s5 + $0x14] sm:$0xf] %vm348, %v337
  %355 = vst.msk [vmem:[%s5 + $0x18] sm:$0xf] %vm348, %v338
  %356 = vst.msk [vmem:[%s5 + $0x1c] sm:$0xf] %vm348, %v339
  %357 = vst.msk [vmem:[%s5 + $0x20] sm:$0xf] %vm348, %v340
  %358 = vst.msk [vmem:[%s5 + $0x24] sm:$0xf] %vm348, %v341
  %359 = vst.msk [vmem:[%s5 + $0x28] sm:$0xf] %vm348, %v342
  %360 = vst.msk [vmem:[%s5 + $0x2c] sm:$0xf] %vm348, %v343
  %361 = vst.msk [vmem:[%s5 + $0x30] sm:$0xf] %vm348, %v344
  %362 = vst.msk [vmem:[%s5 + $0x34] sm:$0xf] %vm348, %v345
  %363 = vst.msk [vmem:[%s5 + $0x38] sm:$0xf] %vm348, %v346
  %364 = vst.msk [vmem:[%s5 + $0x3c] sm:$0xf] %vm348, %v347
  // Predicated region
  $region22: #{stmamba_bcd_forward.45} parent=0 // pred_check
    _
  $region23: #{stmamba_bcd_forward.45} parent=0 // pred_check_branch
    %366 = sbr.rel (0) target = $region25
  $region24: #{stmamba_bcd_forward.45} parent=0 // pred_region
    _
  $region25: #{stmamba_bcd_forward.45} parent=0 // pred_fallthru
    _
  // Predicated region
  $region26: #{stmamba_bcd_forward.45} parent=0 // pred_check
    _
  $region27: #{stmamba_bcd_forward.45} parent=0 // pred_check_branch
    %368 = sbr.rel (0) target = $region29
  $region28: #{stmamba_bcd_forward.45} parent=0 // pred_region
    _
  $region29: #{stmamba_bcd_forward.45} parent=0 // pred_fallthru
    _

// kernel: stmamba_bcd_forward.49
$region0: #{stmamba_bcd_forward.49}
  #allocation0 [shape = 'u32[]', space=smem, size = 0x4, offset = 0x4, fixed_abs, tag = 'smem constant byte address 0x4 - core index']
  #allocation1 [shape = 'u32[72,128]{1,0:T(1,128)}', space=vmem, size = 0x9000, scoped, tag = 'internal scratch']
  %s0 = inlined_call_operand.vmem [shape: bf16[128,64], index: 0, kind: input, shape index: {}]
  %s1 = inlined_call_operand.vmem [shape: bf16[64,2], index: 1, kind: input, shape index: {}]
  %s2 = inlined_call_operand.vmem [shape: f32[1,2], index: 2, kind: input, shape index: {}]
  %s3 = inlined_call_operand.vmem [shape: bf16[128,2], index: 3, kind: output, shape index: {}]
  %s4 = sld [smem:[#allocation0]]
  $region22: #{stmamba_bcd_forward.49} parent=0
    _
  %s6 = ssub.s32 1, %s4
  %s7 = scalar_select 0, %s6, %s4
  // Predicated region
  $region2: #{stmamba_bcd_forward.49} parent=0 // pred_check
    _
  $region3: #{stmamba_bcd_forward.49} parent=0 // pred_check_branch
    %9 = sbr.rel (0) target = $region5
  $region4: #{stmamba_bcd_forward.49} parent=0 // pred_region
    _
  $region5: #{stmamba_bcd_forward.49} parent=0 // pred_fallthru
    _
  // Predicated region
  $region6: #{stmamba_bcd_forward.49} parent=0 // pred_check
    _
  $region7: #{stmamba_bcd_forward.49} parent=0 // pred_check_branch
    %11 = sbr.rel (0) target = $region9
  $region8: #{stmamba_bcd_forward.49} parent=0 // pred_region
    _
  $region9: #{stmamba_bcd_forward.49} parent=0 // pred_fallthru
    _
  // Predicated region
  $region10: #{stmamba_bcd_forward.49} parent=0 // pred_check
    _
  $region11: #{stmamba_bcd_forward.49} parent=0 // pred_check_branch
    %13 = sbr.rel (0) target = $region13
  $region12: #{stmamba_bcd_forward.49} parent=0 // pred_region
    _
  $region13: #{stmamba_bcd_forward.49} parent=0 // pred_fallthru
    _
  %v15 = vld [vmem:[%s0] sm:$0xf]
  %v16 = vld [vmem:[%s0 + $0x4] sm:$0xf]
  %v17 = vld [vmem:[%s0 + $0x8] sm:$0xf]
  %v18 = vld [vmem:[%s0 + $0xc] sm:$0xf]
  %v19 = vld [vmem:[%s0 + $0x10] sm:$0xf]
  %v20 = vld [vmem:[%s0 + $0x14] sm:$0xf]
  %v21 = vld [vmem:[%s0 + $0x18] sm:$0xf]
  %v22 = vld [vmem:[%s0 + $0x1c] sm:$0xf]
  %v23 = vld [vmem:[%s0 + $0x20] sm:$0xf]
  %v24 = vld [vmem:[%s0 + $0x24] sm:$0xf]
  %v25 = vld [vmem:[%s0 + $0x28] sm:$0xf]
  %v26 = vld [vmem:[%s0 + $0x2c] sm:$0xf]
  %v27 = vld [vmem:[%s0 + $0x30] sm:$0xf]
  %v28 = vld [vmem:[%s0 + $0x34] sm:$0xf]
  %v29 = vld [vmem:[%s0 + $0x38] sm:$0xf]
  %v30 = vld [vmem:[%s0 + $0x3c] sm:$0xf]
  %v31 = vld [vmem:[%s1] sm:$0xf]
  %v32 = vld [vmem:[%s1 + $0x4] sm:$0xf]
  %v33 = vld [vmem:[%s1 + $0x8] sm:$0xf]
  %v34 = vld [vmem:[%s1 + $0xc] sm:$0xf]
  %v35 = vld [vmem:[%s1 + $0x10] sm:$0xf]
  %v36 = vld [vmem:[%s1 + $0x14] sm:$0xf]
  %v37 = vld [vmem:[%s1 + $0x18] sm:$0xf]
  %v38 = vld [vmem:[%s1 + $0x1c] sm:$0xf]
  %v39 = vld [vmem:[%s2] sm:$0x1]
  %v41 = vperm.slane %v39, 0
  %v59 = vunpack.c.l.b16 %v15
  %v60 = vunpack.c.l.b16 %v16
  %v61 = vunpack.c.l.b16 %v17
  %v62 = vunpack.c.l.b16 %v18
  %v63 = vunpack.c.l.b16 %v19
  %v64 = vunpack.c.l.b16 %v20
  %v65 = vunpack.c.l.b16 %v21
  %v66 = vunpack.c.l.b16 %v22
  %v67 = vunpack.c.l.b16 %v23
  %v68 = vunpack.c.l.b16 %v24
  %v69 = vunpack.c.l.b16 %v25
  %v70 = vunpack.c.l.b16 %v26
  %v71 = vunpack.c.l.b16 %v27
  %v72 = vunpack.c.l.b16 %v28
  %v73 = vunpack.c.l.b16 %v29
  %v74 = vunpack.c.l.b16 %v30
  %v75 = vpack.c.b16 %v60, %v59
  %v76 = vpack.c.b16 %v62, %v61
  %v77 = vpack.c.b16 %v64, %v63
  %v78 = vpack.c.b16 %v66, %v65
  %v79 = vpack.c.b16 %v68, %v67
  %v80 = vpack.c.b16 %v70, %v69
  %v81 = vpack.c.b16 %v72, %v71
  %v82 = vpack.c.b16 %v74, %v73
  %v91 = vunpack.c.l.b16 %v31
  %v92 = vunpack.c.l.b16 %v32
  %v93 = vunpack.c.l.b16 %v33
  %v94 = vunpack.c.l.b16 %v34
  %v95 = vunpack.c.l.b16 %v35
  %v96 = vunpack.c.l.b16 %v36
  %v97 = vunpack.c.l.b16 %v37
  %v98 = vunpack.c.l.b16 %v38
  %v99 = vpack.c.b16 %v92, %v91
  %v100 = vpack.c.b16 %v94, %v93
  %v101 = vpack.c.b16 %v96, %v95
  %v102 = vpack.c.b16 %v98, %v97
  %vm107 = vcmask 523264
  %v109 = vsel %vm107, %v75, 0
  %v112 = vsel %vm107, %v76, 0
  %v115 = vsel %vm107, %v77, 0
  %v118 = vsel %vm107, %v78, 0
  %v121 = vsel %vm107, %v79, 0
  %v124 = vsel %vm107, %v80, 0
  %v127 = vsel %vm107, %v81, 0
  %v130 = vsel %vm107, %v82, 0
  %132 = vmatpush.bf16.msra.mxu0 0
  %133 = vmatpush.bf16.msra.mxu0 0
  %134 = vmatpush.bf16.msra.mxu0 0
  %135 = vmatpush.bf16.msra.mxu0 0
  %136 = vmatpush.bf16.msra.mxu0 %v102
  %137 = vmatpush.bf16.msra.mxu0 %v101
  %138 = vmatpush.bf16.msra.mxu0 %v100
  %139 = vmatpush.bf16.msra.mxu0 %v99
  %140 = vmatmul.bf16.gmra.mxu0 %v109
  %v141 = vpop.f32.mrf.mxu0
  %v142 = vadd.f32 %v41, %v141
  %v143 = vpop.f32.mrf.mxu0
  %v144 = vadd.f32 %v41, %v143
  %145 = vmatmul.bf16.gmra.mxu0 %v112
  %v146 = vpop.f32.mrf.mxu0
  %v147 = vadd.f32 %v41, %v146
  %v148 = vpop.f32.mrf.mxu0
  %v149 = vadd.f32 %v41, %v148
  %150 = vmatmul.bf16.gmra.mxu0 %v115
  %v151 = vpop.f32.mrf.mxu0
  %v152 = vadd.f32 %v41, %v151
  %v153 = vpop.f32.mrf.mxu0
  %v154 = vadd.f32 %v41, %v153
  %155 = vmatmul.bf16.gmra.mxu0 %v118
  %v156 = vpop.f32.mrf.mxu0
  %v157 = vadd.f32 %v41, %v156
  %v158 = vpop.f32.mrf.mxu0
  %v159 = vadd.f32 %v41, %v158
  %160 = vmatmul.bf16.gmra.mxu0 %v121
  %v161 = vpop.f32.mrf.mxu0
  %v162 = vadd.f32 %v41, %v161
  %v163 = vpop.f32.mrf.mxu0
  %v164 = vadd.f32 %v41, %v163
  %165 = vmatmul.bf16.gmra.mxu0 %v124
  %v166 = vpop.f32.mrf.mxu0
  %v167 = vadd.f32 %v41, %v166
  %v168 = vpop.f32.mrf.mxu0
  %v169 = vadd.f32 %v41, %v168
  %170 = vmatmul.bf16.gmra.mxu0 %v127
  %v171 = vpop.f32.mrf.mxu0
  %v172 = vadd.f32 %v41, %v171
  %v173 = vpop.f32.mrf.mxu0
  %v174 = vadd.f32 %v41, %v173
  %175 = vmatmul.bf16.gmra.mxu0 %v130
  %v176 = vpop.f32.mrf.mxu0
  %v177 = vadd.f32 %v41, %v176
  %v178 = vpop.f32.mrf.mxu0
  %v179 = vadd.f32 %v41, %v178
  %180 = vdwg.mxu0
  %v181 = vpack.c.bf16 %v142, %v142
  %v182 = vpack.c.bf16 %v144, %v144
  %v183 = vpack.c.bf16 %v147, %v147
  %v184 = vpack.c.bf16 %v149, %v149
  %v185 = vpack.c.bf16 %v152, %v152
  %v186 = vpack.c.bf16 %v154, %v154
  %v187 = vpack.c.bf16 %v157, %v157
  %v188 = vpack.c.bf16 %v159, %v159
  %v189 = vpack.c.bf16 %v162, %v162
  %v190 = vpack.c.bf16 %v164, %v164
  %v191 = vpack.c.bf16 %v167, %v167
  %v192 = vpack.c.bf16 %v169, %v169
  %v193 = vpack.c.bf16 %v172, %v172
  %v194 = vpack.c.bf16 %v174, %v174
  %v195 = vpack.c.bf16 %v177, %v177
  %v196 = vpack.c.bf16 %v179, %v179
  %vm197 = vcmask 11264
  %198 = vst.msk [vmem:[%s3] sm:$0xf] %vm197, %v181
  %199 = vst.msk [vmem:[%s3 + $0x4] sm:$0xf] %vm197, %v182
  %200 = vst.msk [vmem:[%s3 + $0x8] sm:$0xf] %vm197, %v183
  %201 = vst.msk [vmem:[%s3 + $0xc] sm:$0xf] %vm197, %v184
  %202 = vst.msk [vmem:[%s3 + $0x10] sm:$0xf] %vm197, %v185
  %203 = vst.msk [vmem:[%s3 + $0x14] sm:$0xf] %vm197, %v186
  %204 = vst.msk [vmem:[%s3 + $0x18] sm:$0xf] %vm197, %v187
  %205 = vst.msk [vmem:[%s3 + $0x1c] sm:$0xf] %vm197, %v188
  %206 = vst.msk [vmem:[%s3 + $0x20] sm:$0xf] %vm197, %v189
  %207 = vst.msk [vmem:[%s3 + $0x24] sm:$0xf] %vm197, %v190
  %208 = vst.msk [vmem:[%s3 + $0x28] sm:$0xf] %vm197, %v191
  %209 = vst.msk [vmem:[%s3 + $0x2c] sm:$0xf] %vm197, %v192
  %210 = vst.msk [vmem:[%s3 + $0x30] sm:$0xf] %vm197, %v193
  %211 = vst.msk [vmem:[%s3 + $0x34] sm:$0xf] %vm197, %v194
  %212 = vst.msk [vmem:[%s3 + $0x38] sm:$0xf] %vm197, %v195
  %213 = vst.msk [vmem:[%s3 + $0x3c] sm:$0xf] %vm197, %v196
  // Predicated region
  $region14: #{stmamba_bcd_forward.49} parent=0 // pred_check
    _
  $region15: #{stmamba_bcd_forward.49} parent=0 // pred_check_branch
    %215 = sbr.rel (0) target = $region17
  $region16: #{stmamba_bcd_forward.49} parent=0 // pred_region
    _
  $region17: #{stmamba_bcd_forward.49} parent=0 // pred_fallthru
    _
  // Predicated region
  $region18: #{stmamba_bcd_forward.49} parent=0 // pred_check
    _
  $region19: #{stmamba_bcd_forward.49} parent=0 // pred_check_branch
    %217 = sbr.rel (0) target = $region21
  $region20: #{stmamba_bcd_forward.49} parent=0 // pred_region
    _
  $region21: #{stmamba_bcd_forward.49} parent=0 // pred_fallthru
    _

// kernel: stmamba_bcd_forward.41
$region0: #{stmamba_bcd_forward.41}
  #allocation0 [shape = 'u32[]', space=smem, size = 0x4, offset = 0x4, fixed_abs, tag = 'smem constant byte address 0x4 - core index']
  #allocation1 [shape = 'u32[72,128]{1,0:T(1,128)}', space=vmem, size = 0x9000, scoped, tag = 'internal scratch']
  %s0 = inlined_call_operand.vmem [shape: bf16[256,16], index: 0, kind: input, shape index: {}]
  %s1 = inlined_call_operand.vmem [shape: bf16[256,16], index: 1, kind: input, shape index: {}]
  %s2 = inlined_call_operand.vmem [shape: bf16[16,16], index: 2, kind: input, shape index: {}]
  %s3 = inlined_call_operand.vmem [shape: bf16[16,16], index: 3, kind: input, shape index: {}]
  %s4 = inlined_call_operand.vmem [shape: f32[1,16], index: 4, kind: input, shape index: {}]
  %s5 = inlined_call_operand.vmem [shape: bf16[256,16], index: 5, kind: output, shape index: {}]
  %s6 = sld [smem:[#allocation0]]
  $region30: #{stmamba_bcd_forward.41} parent=0
    _
  %s8 = ssub.s32 1, %s6
  %s9 = scalar_select 0, %s8, %s6
  // Predicated region
  $region2: #{stmamba_bcd_forward.41} parent=0 // pred_check
    _
  $region3: #{stmamba_bcd_forward.41} parent=0 // pred_check_branch
    %11 = sbr.rel (0) target = $region5
  $region4: #{stmamba_bcd_forward.41} parent=0 // pred_region
    _
  $region5: #{stmamba_bcd_forward.41} parent=0 // pred_fallthru
    _
  // Predicated region
  $region6: #{stmamba_bcd_forward.41} parent=0 // pred_check
    _
  $region7: #{stmamba_bcd_forward.41} parent=0 // pred_check_branch
    %13 = sbr.rel (0) target = $region9
  $region8: #{stmamba_bcd_forward.41} parent=0 // pred_region
    _
  $region9: #{stmamba_bcd_forward.41} parent=0 // pred_fallthru
    _
  // Predicated region
  $region10: #{stmamba_bcd_forward.41} parent=0 // pred_check
    _
  $region11: #{stmamba_bcd_forward.41} parent=0 // pred_check_branch
    %15 = sbr.rel (0) target = $region13
  $region12: #{stmamba_bcd_forward.41} parent=0 // pred_region
    _
  $region13: #{stmamba_bcd_forward.41} parent=0 // pred_fallthru
    _
  // Predicated region
  $region14: #{stmamba_bcd_forward.41} parent=0 // pred_check
    _
  $region15: #{stmamba_bcd_forward.41} parent=0 // pred_check_branch
    %17 = sbr.rel (0) target = $region17
  $region16: #{stmamba_bcd_forward.41} parent=0 // pred_region
    _
  $region17: #{stmamba_bcd_forward.41} parent=0 // pred_fallthru
    _
  // Predicated region
  $region18: #{stmamba_bcd_forward.41} parent=0 // pred_check
    _
  $region19: #{stmamba_bcd_forward.41} parent=0 // pred_check_branch
    %19 = sbr.rel (0) target = $region21
  $region20: #{stmamba_bcd_forward.41} parent=0 // pred_region
    _
  $region21: #{stmamba_bcd_forward.41} parent=0 // pred_fallthru
    _
  %v21 = vld [vmem:[%s0] sm:$0xf]
  %v22 = vld [vmem:[%s0 + $0x4] sm:$0xf]
  %v23 = vld [vmem:[%s0 + $0x8] sm:$0xf]
  %v24 = vld [vmem:[%s0 + $0xc] sm:$0xf]
  %v25 = vld [vmem:[%s0 + $0x10] sm:$0xf]
  %v26 = vld [vmem:[%s0 + $0x14] sm:$0xf]
  %v27 = vld [vmem:[%s0 + $0x18] sm:$0xf]
  %v28 = vld [vmem:[%s0 + $0x1c] sm:$0xf]
  %v29 = vld [vmem:[%s0 + $0x20] sm:$0xf]
  %v30 = vld [vmem:[%s0 + $0x24] sm:$0xf]
  %v31 = vld [vmem:[%s0 + $0x28] sm:$0xf]
  %v32 = vld [vmem:[%s0 + $0x2c] sm:$0xf]
  %v33 = vld [vmem:[%s0 + $0x30] sm:$0xf]
  %v34 = vld [vmem:[%s0 + $0x34] sm:$0xf]
  %v35 = vld [vmem:[%s0 + $0x38] sm:$0xf]
  %v36 = vld [vmem:[%s0 + $0x3c] sm:$0xf]
  %v37 = vld [vmem:[%s0 + $0x40] sm:$0xf]
  %v38 = vld [vmem:[%s0 + $0x44] sm:$0xf]
  %v39 = vld [vmem:[%s0 + $0x48] sm:$0xf]
  %v40 = vld [vmem:[%s0 + $0x4c] sm:$0xf]
  %v41 = vld [vmem:[%s0 + $0x50] sm:$0xf]
  %v42 = vld [vmem:[%s0 + $0x54] sm:$0xf]
  %v43 = vld [vmem:[%s0 + $0x58] sm:$0xf]
  %v44 = vld [vmem:[%s0 + $0x5c] sm:$0xf]
  %v45 = vld [vmem:[%s0 + $0x60] sm:$0xf]
  %v46 = vld [vmem:[%s0 + $0x64] sm:$0xf]
  %v47 = vld [vmem:[%s0 + $0x68] sm:$0xf]
  %v48 = vld [vmem:[%s0 + $0x6c] sm:$0xf]
  %v49 = vld [vmem:[%s0 + $0x70] sm:$0xf]
  %v50 = vld [vmem:[%s0 + $0x74] sm:$0xf]
  %v51 = vld [vmem:[%s0 + $0x78] sm:$0xf]
  %v52 = vld [vmem:[%s0 + $0x7c] sm:$0xf]
  %v53 = vld [vmem:[%s2] sm:$0xf]
  %v54 = vld [vmem:[%s2 + $0x4] sm:$0xf]
  %v55 = vld [vmem:[%s1] sm:$0xf]
  %v56 = vld [vmem:[%s1 + $0x4] sm:$0xf]
  %v57 = vld [vmem:[%s1 + $0x8] sm:$0xf]
  %v58 = vld [vmem:[%s1 + $0xc] sm:$0xf]
  %v59 = vld [vmem:[%s1 + $0x10] sm:$0xf]
  %v60 = vld [vmem:[%s1 + $0x14] sm:$0xf]
  %v61 = vld [vmem:[%s1 + $0x18] sm:$0xf]
  %v62 = vld [vmem:[%s1 + $0x1c] sm:$0xf]
  %v63 = vld [vmem:[%s1 + $0x20] sm:$0xf]
  %v64 = vld [vmem:[%s1 + $0x24] sm:$0xf]
  %v65 = vld [vmem:[%s1 + $0x28] sm:$0xf]
  %v66 = vld [vmem:[%s1 + $0x2c] sm:$0xf]
  %v67 = vld [vmem:[%s1 + $0x30] sm:$0xf]
  %v68 = vld [vmem:[%s1 + $0x34] sm:$0xf]
  %v69 = vld [vmem:[%s1 + $0x38] sm:$0xf]
  %v70 = vld [vmem:[%s1 + $0x3c] sm:$0xf]
  %v71 = vld [vmem:[%s1 + $0x40] sm:$0xf]
  %v72 = vld [vmem:[%s1 + $0x44] sm:$0xf]
  %v73 = vld [vmem:[%s1 + $0x48] sm:$0xf]
  %v74 = vld [vmem:[%s1 + $0x4c] sm:$0xf]
  %v75 = vld [vmem:[%s1 + $0x50] sm:$0xf]
  %v76 = vld [vmem:[%s1 + $0x54] sm:$0xf]
  %v77 = vld [vmem:[%s1 + $0x58] sm:$0xf]
  %v78 = vld [vmem:[%s1 + $0x5c] sm:$0xf]
  %v79 = vld [vmem:[%s1 + $0x60] sm:$0xf]
  %v80 = vld [vmem:[%s1 + $0x64] sm:$0xf]
  %v81 = vld [vmem:[%s1 + $0x68] sm:$0xf]
  %v82 = vld [vmem:[%s1 + $0x6c] sm:$0xf]
  %v83 = vld [vmem:[%s1 + $0x70] sm:$0xf]
  %v84 = vld [vmem:[%s1 + $0x74] sm:$0xf]
  %v85 = vld [vmem:[%s1 + $0x78] sm:$0xf]
  %v86 = vld [vmem:[%s1 + $0x7c] sm:$0xf]
  %v87 = vld [vmem:[%s3] sm:$0xf]
  %v88 = vld [vmem:[%s3 + $0x4] sm:$0xf]
  %v121 = vunpack.c.l.b16 %v55
  %v122 = vunpack.c.l.b16 %v56
  %v123 = vunpack.c.l.b16 %v57
  %v124 = vunpack.c.l.b16 %v58
  %v125 = vunpack.c.l.b16 %v59
  %v126 = vunpack.c.l.b16 %v60
  %v127 = vunpack.c.l.b16 %v61
  %v128 = vunpack.c.l.b16 %v62
  %v129 = vunpack.c.l.b16 %v63
  %v130 = vunpack.c.l.b16 %v64
  %v131 = vunpack.c.l.b16 %v65
  %v132 = vunpack.c.l.b16 %v66
  %v133 = vunpack.c.l.b16 %v67
  %v134 = vunpack.c.l.b16 %v68
  %v135 = vunpack.c.l.b16 %v69
  %v136 = vunpack.c.l.b16 %v70
  %v137 = vunpack.c.l.b16 %v71
  %v138 = vunpack.c.l.b16 %v72
  %v139 = vunpack.c.l.b16 %v73
  %v140 = vunpack.c.l.b16 %v74
  %v141 = vunpack.c.l.b16 %v75
  %v142 = vunpack.c.l.b16 %v76
  %v143 = vunpack.c.l.b16 %v77
  %v144 = vunpack.c.l.b16 %v78
  %v145 = vunpack.c.l.b16 %v79
  %v146 = vunpack.c.l.b16 %v80
  %v147 = vunpack.c.l.b16 %v81
  %v148 = vunpack.c.l.b16 %v82
  %v149 = vunpack.c.l.b16 %v83
  %v150 = vunpack.c.l.b16 %v84
  %v151 = vunpack.c.l.b16 %v85
  %v152 = vunpack.c.l.b16 %v86
  %v153 = vpack.c.b16 %v122, %v121
  %v154 = vpack.c.b16 %v124, %v123
  %v155 = vpack.c.b16 %v126, %v125
  %v156 = vpack.c.b16 %v128, %v127
  %v157 = vpack.c.b16 %v130, %v129
  %v158 = vpack.c.b16 %v132, %v131
  %v159 = vpack.c.b16 %v134, %v133
  %v160 = vpack.c.b16 %v136, %v135
  %v161 = vpack.c.b16 %v138, %v137
  %v162 = vpack.c.b16 %v140, %v139
  %v163 = vpack.c.b16 %v142, %v141
  %v164 = vpack.c.b16 %v144, %v143
  %v165 = vpack.c.b16 %v146, %v145
  %v166 = vpack.c.b16 %v148, %v147
  %v167 = vpack.c.b16 %v150, %v149
  %v168 = vpack.c.b16 %v152, %v151
  %v171 = vunpack.c.l.b16 %v87
  %v172 = vunpack.c.l.b16 %v88
  %v173 = vpack.c.b16 %v172, %v171
  %vm175 = vcmask 130048
  %v177 = vsel %vm175, %v153, 0
  %v180 = vsel %vm175, %v154, 0
  %v183 = vsel %vm175, %v155, 0
  %v186 = vsel %vm175, %v156, 0
  %v189 = vsel %vm175, %v157, 0
  %v192 = vsel %vm175, %v158, 0
  %v195 = vsel %vm175, %v159, 0
  %v198 = vsel %vm175, %v160, 0
  %v201 = vsel %vm175, %v161, 0
  %v204 = vsel %vm175, %v162, 0
  %v207 = vsel %vm175, %v163, 0
  %v210 = vsel %vm175, %v164, 0
  %v213 = vsel %vm175, %v165, 0
  %v216 = vsel %vm175, %v166, 0
  %v219 = vsel %vm175, %v167, 0
  %v222 = vsel %vm175, %v168, 0
  %224 = vmatpush.bf16.msra.mxu0 0
  %225 = vmatpush.bf16.msra.mxu0 0
  %226 = vmatpush.bf16.msra.mxu0 0
  %227 = vmatpush.bf16.msra.mxu0 0
  %228 = vmatpush.bf16.msra.mxu0 0
  %229 = vmatpush.bf16.msra.mxu0 0
  %230 = vmatpush.bf16.msra.mxu0 0
  %231 = vmatpush.bf16.msra.mxu0 %v173
  %232 = vmatmul.bf16.gmra.mxu0 %v177
  %v233 = vpop.f32.mrf.mxu0
  %v234 = vadd.f32 0.0, %v233
  %v235 = vpop.f32.mrf.mxu0
  %v236 = vadd.f32 0.0, %v235
  %237 = vmatmul.bf16.gmra.mxu0 %v180
  %v238 = vpop.f32.mrf.mxu0
  %v239 = vadd.f32 0.0, %v238
  %v240 = vpop.f32.mrf.mxu0
  %v241 = vadd.f32 0.0, %v240
  %242 = vmatmul.bf16.gmra.mxu0 %v183
  %v243 = vpop.f32.mrf.mxu0
  %v244 = vadd.f32 0.0, %v243
  %v245 = vpop.f32.mrf.mxu0
  %v246 = vadd.f32 0.0, %v245
  %247 = vmatmul.bf16.gmra.mxu0 %v186
  %v248 = vpop.f32.mrf.mxu0
  %v249 = vadd.f32 0.0, %v248
  %v250 = vpop.f32.mrf.mxu0
  %v251 = vadd.f32 0.0, %v250
  %252 = vmatmul.bf16.gmra.mxu0 %v189
  %v253 = vpop.f32.mrf.mxu0
  %v254 = vadd.f32 0.0, %v253
  %v255 = vpop.f32.mrf.mxu0
  %v256 = vadd.f32 0.0, %v255
  %257 = vmatmul.bf16.gmra.mxu0 %v192
  %v258 = vpop.f32.mrf.mxu0
  %v259 = vadd.f32 0.0, %v258
  %v260 = vpop.f32.mrf.mxu0
  %v261 = vadd.f32 0.0, %v260
  %262 = vmatmul.bf16.gmra.mxu0 %v195
  %v263 = vpop.f32.mrf.mxu0
  %v264 = vadd.f32 0.0, %v263
  %v265 = vpop.f32.mrf.mxu0
  %v266 = vadd.f32 0.0, %v265
  %267 = vmatmul.bf16.gmra.mxu0 %v198
  %v268 = vpop.f32.mrf.mxu0
  %v269 = vadd.f32 0.0, %v268
  %v270 = vpop.f32.mrf.mxu0
  %v271 = vadd.f32 0.0, %v270
  %272 = vmatmul.bf16.gmra.mxu0 %v201
  %v273 = vpop.f32.mrf.mxu0
  %v274 = vadd.f32 0.0, %v273
  %v275 = vpop.f32.mrf.mxu0
  %v276 = vadd.f32 0.0, %v275
  %277 = vmatmul.bf16.gmra.mxu0 %v204
  %v278 = vpop.f32.mrf.mxu0
  %v279 = vadd.f32 0.0, %v278
  %v280 = vpop.f32.mrf.mxu0
  %v281 = vadd.f32 0.0, %v280
  %282 = vmatmul.bf16.gmra.mxu0 %v207
  %v283 = vpop.f32.mrf.mxu0
  %v284 = vadd.f32 0.0, %v283
  %v285 = vpop.f32.mrf.mxu0
  %v286 = vadd.f32 0.0, %v285
  %287 = vmatmul.bf16.gmra.mxu0 %v210
  %v288 = vpop.f32.mrf.mxu0
  %v289 = vadd.f32 0.0, %v288
  %v290 = vpop.f32.mrf.mxu0
  %v291 = vadd.f32 0.0, %v290
  %292 = vmatmul.bf16.gmra.mxu0 %v213
  %v293 = vpop.f32.mrf.mxu0
  %v294 = vadd.f32 0.0, %v293
  %v295 = vpop.f32.mrf.mxu0
  %v296 = vadd.f32 0.0, %v295
  %297 = vmatmul.bf16.gmra.mxu0 %v216
  %v298 = vpop.f32.mrf.mxu0
  %v299 = vadd.f32 0.0, %v298
  %v300 = vpop.f32.mrf.mxu0
  %v301 = vadd.f32 0.0, %v300
  %302 = vmatmul.bf16.gmra.mxu0 %v219
  %v303 = vpop.f32.mrf.mxu0
  %v304 = vadd.f32 0.0, %v303
  %v305 = vpop.f32.mrf.mxu0
  %v306 = vadd.f32 0.0, %v305
  %307 = vmatmul.bf16.gmra.mxu0 %v222
  %v308 = vpop.f32.mrf.mxu0
  %v309 = vadd.f32 0.0, %v308
  %v310 = vpop.f32.mrf.mxu0
  %v311 = vadd.f32 0.0, %v310
  %312 = vdwg.mxu0
  %v345 = vunpack.c.l.b16 %v21
  %v346 = vunpack.c.l.b16 %v22
  %v347 = vunpack.c.l.b16 %v23
  %v348 = vunpack.c.l.b16 %v24
  %v349 = vunpack.c.l.b16 %v25
  %v350 = vunpack.c.l.b16 %v26
  %v351 = vunpack.c.l.b16 %v27
  %v352 = vunpack.c.l.b16 %v28
  %v353 = vunpack.c.l.b16 %v29
  %v354 = vunpack.c.l.b16 %v30
  %v355 = vunpack.c.l.b16 %v31
  %v356 = vunpack.c.l.b16 %v32
  %v357 = vunpack.c.l.b16 %v33
  %v358 = vunpack.c.l.b16 %v34
  %v359 = vunpack.c.l.b16 %v35
  %v360 = vunpack.c.l.b16 %v36
  %v361 = vunpack.c.l.b16 %v37
  %v362 = vunpack.c.l.b16 %v38
  %v363 = vunpack.c.l.b16 %v39
  %v364 = vunpack.c.l.b16 %v40
  %v365 = vunpack.c.l.b16 %v41
  %v366 = vunpack.c.l.b16 %v42
  %v367 = vunpack.c.l.b16 %v43
  %v368 = vunpack.c.l.b16 %v44
  %v369 = vunpack.c.l.b16 %v45
  %v370 = vunpack.c.l.b16 %v46
  %v371 = vunpack.c.l.b16 %v47
  %v372 = vunpack.c.l.b16 %v48
  %v373 = vunpack.c.l.b16 %v49
  %v374 = vunpack.c.l.b16 %v50
  %v375 = vunpack.c.l.b16 %v51
  %v376 = vunpack.c.l.b16 %v52
  %v377 = vpack.c.b16 %v346, %v345
  %v378 = vpack.c.b16 %v348, %v347
  %v379 = vpack.c.b16 %v350, %v349
  %v380 = vpack.c.b16 %v352, %v351
  %v381 = vpack.c.b16 %v354, %v353
  %v382 = vpack.c.b16 %v356, %v355
  %v383 = vpack.c.b16 %v358, %v357
  %v384 = vpack.c.b16 %v360, %v359
  %v385 = vpack.c.b16 %v362, %v361
  %v386 = vpack.c.b16 %v364, %v363
  %v387 = vpack.c.b16 %v366, %v365
  %v388 = vpack.c.b16 %v368, %v367
  %v389 = vpack.c.b16 %v370, %v369
  %v390 = vpack.c.b16 %v372, %v371
  %v391 = vpack.c.b16 %v374, %v373
  %v392 = vpack.c.b16 %v376, %v375
  %v395 = vunpack.c.l.b16 %v53
  %v396 = vunpack.c.l.b16 %v54
  %v397 = vpack.c.b16 %v396, %v395
  %v400 = vsel %vm175, %v377, 0
  %v403 = vsel %vm175, %v378, 0
  %v406 = vsel %vm175, %v379, 0
  %v409 = vsel %vm175, %v380, 0
  %v412 = vsel %vm175, %v381, 0
  %v415 = vsel %vm175, %v382, 0
  %v418 = vsel %vm175, %v383, 0
  %v421 = vsel %vm175, %v384, 0
  %v424 = vsel %vm175, %v385, 0
  %v427 = vsel %vm175, %v386, 0
  %v430 = vsel %vm175, %v387, 0
  %v433 = vsel %vm175, %v388, 0
  %v436 = vsel %vm175, %v389, 0
  %v439 = vsel %vm175, %v390, 0
  %v442 = vsel %vm175, %v391, 0
  %v445 = vsel %vm175, %v392, 0
  %447 = vmatpush.bf16.msra.mxu0 0
  %448 = vmatpush.bf16.msra.mxu0 0
  %449 = vmatpush.bf16.msra.mxu0 0
  %450 = vmatpush.bf16.msra.mxu0 0
  %451 = vmatpush.bf16.msra.mxu0 0
  %452 = vmatpush.bf16.msra.mxu0 0
  %453 = vmatpush.bf16.msra.mxu0 0
  %454 = vmatpush.bf16.msra.mxu0 %v397
  %455 = vmatmul.bf16.gmra.mxu0 %v400
  %v456 = vpop.f32.mrf.mxu0
  %v457 = vadd.f32 %v234, %v456
  %v458 = vpop.f32.mrf.mxu0
  %v459 = vadd.f32 %v236, %v458
  %460 = vmatmul.bf16.gmra.mxu0 %v403
  %v461 = vpop.f32.mrf.mxu0
  %v462 = vadd.f32 %v239, %v461
  %v463 = vpop.f32.mrf.mxu0
  %v464 = vadd.f32 %v241, %v463
  %465 = vmatmul.bf16.gmra.mxu0 %v406
  %v466 = vpop.f32.mrf.mxu0
  %v467 = vadd.f32 %v244, %v466
  %v468 = vpop.f32.mrf.mxu0
  %v469 = vadd.f32 %v246, %v468
  %470 = vmatmul.bf16.gmra.mxu0 %v409
  %v471 = vpop.f32.mrf.mxu0
  %v472 = vadd.f32 %v249, %v471
  %v473 = vpop.f32.mrf.mxu0
  %v474 = vadd.f32 %v251, %v473
  %475 = vmatmul.bf16.gmra.mxu0 %v412
  %v476 = vpop.f32.mrf.mxu0
  %v477 = vadd.f32 %v254, %v476
  %v478 = vpop.f32.mrf.mxu0
  %v479 = vadd.f32 %v256, %v478
  %480 = vmatmul.bf16.gmra.mxu0 %v415
  %v481 = vpop.f32.mrf.mxu0
  %v482 = vadd.f32 %v259, %v481
  %v483 = vpop.f32.mrf.mxu0
  %v484 = vadd.f32 %v261, %v483
  %485 = vmatmul.bf16.gmra.mxu0 %v418
  %v486 = vpop.f32.mrf.mxu0
  %v487 = vadd.f32 %v264, %v486
  %v488 = vpop.f32.mrf.mxu0
  %v489 = vadd.f32 %v266, %v488
  %490 = vmatmul.bf16.gmra.mxu0 %v421
  %v491 = vpop.f32.mrf.mxu0
  %v492 = vadd.f32 %v269, %v491
  %v493 = vpop.f32.mrf.mxu0
  %v494 = vadd.f32 %v271, %v493
  %495 = vmatmul.bf16.gmra.mxu0 %v424
  %v496 = vpop.f32.mrf.mxu0
  %v497 = vadd.f32 %v274, %v496
  %v498 = vpop.f32.mrf.mxu0
  %v499 = vadd.f32 %v276, %v498
  %500 = vmatmul.bf16.gmra.mxu0 %v427
  %v501 = vpop.f32.mrf.mxu0
  %v502 = vadd.f32 %v279, %v501
  %v503 = vpop.f32.mrf.mxu0
  %v504 = vadd.f32 %v281, %v503
  %505 = vmatmul.bf16.gmra.mxu0 %v430
  %v506 = vpop.f32.mrf.mxu0
  %v507 = vadd.f32 %v284, %v506
  %v508 = vpop.f32.mrf.mxu0
  %v509 = vadd.f32 %v286, %v508
  %510 = vmatmul.bf16.gmra.mxu0 %v433
  %v511 = vpop.f32.mrf.mxu0
  %v512 = vadd.f32 %v289, %v511
  %v513 = vpop.f32.mrf.mxu0
  %v514 = vadd.f32 %v291, %v513
  %515 = vmatmul.bf16.gmra.mxu0 %v436
  %v516 = vpop.f32.mrf.mxu0
  %v517 = vadd.f32 %v294, %v516
  %v518 = vpop.f32.mrf.mxu0
  %v519 = vadd.f32 %v296, %v518
  %520 = vmatmul.bf16.gmra.mxu0 %v439
  %v521 = vpop.f32.mrf.mxu0
  %v522 = vadd.f32 %v299, %v521
  %v523 = vpop.f32.mrf.mxu0
  %v524 = vadd.f32 %v301, %v523
  %525 = vmatmul.bf16.gmra.mxu0 %v442
  %v526 = vpop.f32.mrf.mxu0
  %v527 = vadd.f32 %v304, %v526
  %v528 = vpop.f32.mrf.mxu0
  %v529 = vadd.f32 %v306, %v528
  %530 = vmatmul.bf16.gmra.mxu0 %v445
  %v531 = vpop.f32.mrf.mxu0
  %v532 = vadd.f32 %v309, %v531
  %v533 = vpop.f32.mrf.mxu0
  %v534 = vadd.f32 %v311, %v533
  %535 = vdwg.mxu0
  %v536 = vld [vmem:[%s4] sm:$0x1]
  %v538 = vperm.slane %v536, 0
  %v540 = vadd.f32 %v457, %v538
  %v541 = vadd.f32 %v459, %v538
  %v542 = vadd.f32 %v462, %v538
  %v543 = vadd.f32 %v464, %v538
  %v544 = vadd.f32 %v467, %v538
  %v545 = vadd.f32 %v469, %v538
  %v546 = vadd.f32 %v472, %v538
  %v547 = vadd.f32 %v474, %v538
  %v548 = vadd.f32 %v477, %v538
  %v549 = vadd.f32 %v479, %v538
  %v550 = vadd.f32 %v482, %v538
  %v551 = vadd.f32 %v484, %v538
  %v552 = vadd.f32 %v487, %v538
  %v553 = vadd.f32 %v489, %v538
  %v554 = vadd.f32 %v492, %v538
  %v555 = vadd.f32 %v494, %v538
  %v556 = vadd.f32 %v497, %v538
  %v557 = vadd.f32 %v499, %v538
  %v558 = vadd.f32 %v502, %v538
  %v559 = vadd.f32 %v504, %v538
  %v560 = vadd.f32 %v507, %v538
  %v561 = vadd.f32 %v509, %v538
  %v562 = vadd.f32 %v512, %v538
  %v563 = vadd.f32 %v514, %v538
  %v564 = vadd.f32 %v517, %v538
  %v565 = vadd.f32 %v519, %v538
  %v566 = vadd.f32 %v522, %v538
  %v567 = vadd.f32 %v524, %v538
  %v568 = vadd.f32 %v527, %v538
  %v569 = vadd.f32 %v529, %v538
  %v570 = vadd.f32 %v532, %v538
  %v571 = vadd.f32 %v534, %v538
  %v572 = vmax.f32 %v540, 0.0
  %v573 = vmax.f32 %v541, 0.0
  %v574 = vmax.f32 %v542, 0.0
  %v575 = vmax.f32 %v543, 0.0
  %v576 = vmax.f32 %v544, 0.0
  %v577 = vmax.f32 %v545, 0.0
  %v578 = vmax.f32 %v546, 0.0
  %v579 = vmax.f32 %v547, 0.0
  %v580 = vmax.f32 %v548, 0.0
  %v581 = vmax.f32 %v549, 0.0
  %v582 = vmax.f32 %v550, 0.0
  %v583 = vmax.f32 %v551, 0.0
  %v584 = vmax.f32 %v552, 0.0
  %v585 = vmax.f32 %v553, 0.0
  %v586 = vmax.f32 %v554, 0.0
  %v587 = vmax.f32 %v555, 0.0
  %v588 = vmax.f32 %v556, 0.0
  %v589 = vmax.f32 %v557, 0.0
  %v590 = vmax.f32 %v558, 0.0
  %v591 = vmax.f32 %v559, 0.0
  %v592 = vmax.f32 %v560, 0.0
  %v593 = vmax.f32 %v561, 0.0
  %v594 = vmax.f32 %v562, 0.0
  %v595 = vmax.f32 %v563, 0.0
  %v596 = vmax.f32 %v564, 0.0
  %v597 = vmax.f32 %v565, 0.0
  %v598 = vmax.f32 %v566, 0.0
  %v599 = vmax.f32 %v567, 0.0
  %v600 = vmax.f32 %v568, 0.0
  %v601 = vmax.f32 %v569, 0.0
  %v602 = vmax.f32 %v570, 0.0
  %v603 = vmax.f32 %v571, 0.0
  %v604 = vpack.c.bf16 %v572, %v572
  %v605 = vpack.c.bf16 %v573, %v573
  %v606 = vpack.c.bf16 %v574, %v574
  %v607 = vpack.c.bf16 %v575, %v575
  %v608 = vpack.c.bf16 %v576, %v576
  %v609 = vpack.c.bf16 %v577, %v577
  %v610 = vpack.c.bf16 %v578, %v578
  %v611 = vpack.c.bf16 %v579, %v579
  %v612 = vpack.c.bf16 %v580, %v580
  %v613 = vpack.c.bf16 %v581, %v581
  %v614 = vpack.c.bf16 %v582, %v582
  %v615 = vpack.c.bf16 %v583, %v583
  %v616 = vpack.c.bf16 %v584, %v584
  %v617 = vpack.c.bf16 %v585, %v585
  %v618 = vpack.c.bf16 %v586, %v586
  %v619 = vpack.c.bf16 %v587, %v587
  %v620 = vpack.c.bf16 %v588, %v588
  %v621 = vpack.c.bf16 %v589, %v589
  %v622 = vpack.c.bf16 %v590, %v590
  %v623 = vpack.c.bf16 %v591, %v591
  %v624 = vpack.c.bf16 %v592, %v592
  %v625 = vpack.c.bf16 %v593, %v593
  %v626 = vpack.c.bf16 %v594, %v594
  %v627 = vpack.c.bf16 %v595, %v595
  %v628 = vpack.c.bf16 %v596, %v596
  %v629 = vpack.c.bf16 %v597, %v597
  %v630 = vpack.c.bf16 %v598, %v598
  %v631 = vpack.c.bf16 %v599, %v599
  %v632 = vpack.c.bf16 %v600, %v600
  %v633 = vpack.c.bf16 %v601, %v601
  %v634 = vpack.c.bf16 %v602, %v602
  %v635 = vpack.c.bf16 %v603, %v603
  %vm636 = vcmask 125952
  %637 = vst.msk [vmem:[%s5] sm:$0xf] %vm636, %v604
  %638 = vst.msk [vmem:[%s5 + $0x4] sm:$0xf] %vm636, %v605
  %639 = vst.msk [vmem:[%s5 + $0x8] sm:$0xf] %vm636, %v606
  %640 = vst.msk [vmem:[%s5 + $0xc] sm:$0xf] %vm636, %v607
  %641 = vst.msk [vmem:[%s5 + $0x10] sm:$0xf] %vm636, %v608
  %642 = vst.msk [vmem:[%s5 + $0x14] sm:$0xf] %vm636, %v609
  %643 = vst.msk [vmem:[%s5 + $0x18] sm:$0xf] %vm636, %v610
  %644 = vst.msk [vmem:[%s5 + $0x1c] sm:$0xf] %vm636, %v611
  %645 = vst.msk [vmem:[%s5 + $0x20] sm:$0xf] %vm636, %v612
  %646 = vst.msk [vmem:[%s5 + $0x24] sm:$0xf] %vm636, %v613
  %647 = vst.msk [vmem:[%s5 + $0x28] sm:$0xf] %vm636, %v614
  %648 = vst.msk [vmem:[%s5 + $0x2c] sm:$0xf] %vm636, %v615
  %649 = vst.msk [vmem:[%s5 + $0x30] sm:$0xf] %vm636, %v616
  %650 = vst.msk [vmem:[%s5 + $0x34] sm:$0xf] %vm636, %v617
  %651 = vst.msk [vmem:[%s5 + $0x38] sm:$0xf] %vm636, %v618
  %652 = vst.msk [vmem:[%s5 + $0x3c] sm:$0xf] %vm636, %v619
  %653 = vst.msk [vmem:[%s5 + $0x40] sm:$0xf] %vm636, %v620
  %654 = vst.msk [vmem:[%s5 + $0x44] sm:$0xf] %vm636, %v621
  %655 = vst.msk [vmem:[%s5 + $0x48] sm:$0xf] %vm636, %v622
  %656 = vst.msk [vmem:[%s5 + $0x4c] sm:$0xf] %vm636, %v623
  %657 = vst.msk [vmem:[%s5 + $0x50] sm:$0xf] %vm636, %v624
  %658 = vst.msk [vmem:[%s5 + $0x54] sm:$0xf] %vm636, %v625
  %659 = vst.msk [vmem:[%s5 + $0x58] sm:$0xf] %vm636, %v626
  %660 = vst.msk [vmem:[%s5 + $0x5c] sm:$0xf] %vm636, %v627
  %661 = vst.msk [vmem:[%s5 + $0x60] sm:$0xf] %vm636, %v628
  %662 = vst.msk [vmem:[%s5 + $0x64] sm:$0xf] %vm636, %v629
  %663 = vst.msk [vmem:[%s5 + $0x68] sm:$0xf] %vm636, %v630
  %664 = vst.msk [vmem:[%s5 + $0x6c] sm:$0xf] %vm636, %v631
  %665 = vst.msk [vmem:[%s5 + $0x70] sm:$0xf] %vm636, %v632
  %666 = vst.msk [vmem:[%s5 + $0x74] sm:$0xf] %vm636, %v633
  %667 = vst.msk [vmem:[%s5 + $0x78] sm:$0xf] %vm636, %v634
  %668 = vst.msk [vmem:[%s5 + $0x7c] sm:$0xf] %vm636, %v635
  // Predicated region
  $region22: #{stmamba_bcd_forward.41} parent=0 // pred_check
    _
  $region23: #{stmamba_bcd_forward.41} parent=0 // pred_check_branch
    %670 = sbr.rel (0) target = $region25
  $region24: #{stmamba_bcd_forward.41} parent=0 // pred_region
    _
  $region25: #{stmamba_bcd_forward.41} parent=0 // pred_fallthru
    _
  // Predicated region
  $region26: #{stmamba_bcd_forward.41} parent=0 // pred_check
    _
  $region27: #{stmamba_bcd_forward.41} parent=0 // pred_check_branch
    %672 = sbr.rel (0) target = $region29
  $region28: #{stmamba_bcd_forward.41} parent=0 // pred_region
    _
  $region29: #{stmamba_bcd_forward.41} parent=0 // pred_fallthru
    _

</llo_original>
